<compile_context>
chip_gen: v5e
topology: v5e:2x2
jax: 0.10.0
libtpu: 0.0.40
codegen_flags: <defaults>
</compile_context>

<pallas_src>
import jax
import jax.numpy as jnp
from jax.experimental import pallas as pl
from jax.experimental.pallas import tpu as pltpu


def _round_up(x, m):
    return ((x + m - 1) // m) * m


def _combined_kernel(ids_ref,                      # scalar prefetch: [B_pad,S] i32 (SMEM)
                     mask_ref, meta_ref,           # per-tile blocks: [TB,S], [TB,M] f32
                     emb_hbm,                      # [V,H] f32, HBM-resident (pl.ANY)
                     w_enc_ref, b_enc_ref,         # [H,H] bf16, [1,H] f32
                     w_meta_ref, b_meta_ref,       # [M,MH] f32, [1,MH] f32
                     w_cls_txt_ref, w_cls_meta_ref, b_cls_ref,   # bf16/bf16/f32
                     out_ref,                      # [TB, LPAD] f32 (lane-dense)
                     emb_buf, dma_sem):            # scratch: [TB*S,H] f32, DMA sem (1,)
    step = pl.program_id(0)
    TB, S = mask_ref.shape
    V, H = emb_hbm.shape

    # ---- 1. issue the embedding gather first (manual DMA, ids from SMEM) ----
    # All TB*S single-row copies signal the SAME semaphore; one bulk wait below.
    # TODO(synk): at real Longformer scale (S up to 4096) this Python-unrolled
    # per-token loop must become a pl.loop over chunks with a bounded slot ring
    # and a bf16 table; kept unrolled + f32 here at toy S so single-row DMAs
    # stay on plain 32-bit sublane tiling.
    for r in range(TB):
        row = step * TB + r
        for s in range(S):
            tok = jnp.minimum(jnp.maximum(ids_ref[row, s], 0), V - 1)  # clamp like gather
            pltpu.make_async_copy(emb_hbm.at[pl.ds(tok, 1)],
                                  emb_buf.at[pl.ds(r * S + s, 1)],
                                  dma_sem.at[0]).start()

    # ---- 2. gather-independent work overlaps with the in-flight DMAs --------
    # meta_net: Linear(meta_dim, 128) + ReLU (tiny K, stays f32)
    meta_h = jnp.maximum(
        jnp.dot(meta_ref[...], w_meta_ref[...],
                preferred_element_type=jnp.float32) + b_meta_ref[...],
        0.0)                                                           # [TB, MH]
    # meta half of the classifier (split-weight concat) + bias
    logits = (jnp.dot(meta_h.astype(jnp.bfloat16), w_cls_meta_ref[...],
                      preferred_element_type=jnp.float32)
              + b_cls_ref[...])                                        # [TB, LPAD]
    mask = mask_ref[...]                                               # [TB, S]
    inv_counts = 1.0 / jnp.maximum(
        jnp.sum(mask, axis=1, keepdims=True), 1.0)                     # [TB, 1]

    # ---- 3. single bulk wait for all TB*S row copies -------------------------
    # The wait descriptor only needs a matching-size src/dst pair; it is never
    # started.  Total bytes == sum of the individual row copies.
    pltpu.make_async_copy(emb_hbm.at[pl.ds(0, TB * S)], emb_buf,
                          dma_sem.at[0]).wait()

    # ---- 4. masked mean pooling as a VPU weighted sum (no M=1 matmuls) ------
    emb = emb_buf[...].reshape(TB, S, H)                               # [TB, S, H] f32
    pooled = jnp.sum(emb * mask[:, :, None], axis=1) * inv_counts      # [TB, H]

    # ---- 5. stand-in encoder head (tanh dense) + classifier text term -------
    txt = jnp.tanh(
        jnp.dot(pooled.astype(jnp.bfloat16), w_enc_ref[...],
                preferred_element_type=jnp.float32) + b_enc_ref[...])  # [TB, H]
    out_ref[...] = logits + jnp.dot(txt.astype(jnp.bfloat16), w_cls_txt_ref[...],
                                    preferred_element_type=jnp.float32)


def combined_model_forward(input_ids, attention_mask, metadata, params):
    """input_ids [B,S] int32, attention_mask [B,S] f32, metadata [B,M] f32.
    Returns logits [B, num_labels] f32."""
    B, S = input_ids.shape
    H = params["w_enc"].shape[0]
    M = metadata.shape[1]
    MH = params["w_meta"].shape[1]
    L = params["b_cls"].shape[-1]
    V = params["emb"].shape[0]
    LPAD = _round_up(L, 128)                  # lane-dense output width

    # ---- batch tiling: TB rows per grid step (f32 sublane multiple of 8) ----
    TB = min(128, _round_up(B, 8))
    if TB >= B and B >= 16:
        # keep >= 2 grid steps so v7x's 2 TensorCores both get work
        TB = _round_up(-(-B // 2), 8)
    B_pad = _round_up(B, TB)
    num_tiles = B_pad // TB
    assert V >= TB * S, "bulk-wait descriptor reuses a [TB*S, H] table slice"

    pad_b = B_pad - B
    ids = jnp.pad(input_ids.astype(jnp.int32), ((0, pad_b), (0, 0)))     # prefetch
    mask = jnp.pad(attention_mask.astype(jnp.float32), ((0, pad_b), (0, 0)))
    meta = jnp.pad(metadata.astype(jnp.float32), ((0, pad_b), (0, 0)))

    emb = params["emb"].astype(jnp.float32)            # stays HBM-resident
    w_enc = params["w_enc"].astype(jnp.bfloat16)
    b_enc = params["b_enc"].astype(jnp.float32)
    w_meta = params["w_meta"].astype(jnp.float32)
    b_meta = params["b_meta"].astype(jnp.float32)
    w_cls_txt = jnp.pad(params["w_cls_txt"],
                        ((0, 0), (0, LPAD - L))).astype(jnp.bfloat16)
    w_cls_meta = jnp.pad(params["w_cls_meta"],
                         ((0, 0), (0, LPAD - L))).astype(jnp.bfloat16)
    b_cls = jnp.pad(params["b_cls"], ((0, 0), (0, LPAD - L))).astype(jnp.float32)

    # ---- explicit VMEM budget: 2x pipelined I/O blocks + 2x weights + scratch
    io_bytes = 2 * 4 * (TB * S + TB * M + TB * LPAD)
    wt_bytes = 2 * (2 * (H * H + H * LPAD + MH * LPAD)          # bf16 weights
                    + 4 * (M * MH + H + MH + LPAD))             # f32 weights/biases
    scratch_bytes = 4 * TB * S * H
    vmem_limit = min(64 * 1024 * 1024,
                     max(16 * 1024 * 1024,
                         2 * (io_bytes + wt_bytes + scratch_bytes)))

    grid_spec = pltpu.PrefetchScalarGridSpec(
        num_scalar_prefetch=1,
        grid=(num_tiles,),
        in_specs=[
            pl.BlockSpec((TB, S), lambda i, ids_s: (i, 0)),        # attention mask
            pl.BlockSpec((TB, M), lambda i, ids_s: (i, 0)),        # metadata
            pl.BlockSpec(memory_space=pl.ANY),                     # emb table (HBM)
            pl.BlockSpec((H, H), lambda i, ids_s: (0, 0)),         # w_enc
            pl.BlockSpec((1, H), lambda i, ids_s: (0, 0)),         # b_enc
            pl.BlockSpec((M, MH), lambda i, ids_s: (0, 0)),        # w_meta
            pl.BlockSpec((1, MH), lambda i, ids_s: (0, 0)),        # b_meta
            pl.BlockSpec((H, LPAD), lambda i, ids_s: (0, 0)),      # w_cls_txt
            pl.BlockSpec((MH, LPAD), lambda i, ids_s: (0, 0)),     # w_cls_meta
            pl.BlockSpec((1, LPAD), lambda i, ids_s: (0, 0)),      # b_cls
        ],
        out_specs=pl.BlockSpec((TB, LPAD), lambda i, ids_s: (i, 0)),
        scratch_shapes=[pltpu.VMEM((TB * S, H), jnp.float32),
                        pltpu.SemaphoreType.DMA((1,))],
    )

    out = pl.pallas_call(
        _combined_kernel,
        out_shape=jax.ShapeDtypeStruct((B_pad, LPAD), jnp.float32),
        grid_spec=grid_spec,
        compiler_params=pltpu.CompilerParams(
            dimension_semantics=("parallel",),       # v7x: shard batch tiles over 2 TCs
            vmem_limit_bytes=vmem_limit),
    )(ids, mask, meta, emb, w_enc, b_enc, w_meta, b_meta,
      w_cls_txt, w_cls_meta, b_cls)

    return out[:B, :L]


def _reference_forward(input_ids, attention_mask, metadata, params):
    """Plain-JAX reference of the same (synthetic-encoder) forward, mirroring
    the kernel's bf16 matmul-input casts so tolerances stay tight."""
    bf = lambda x: x.astype(jnp.bfloat16).astype(jnp.float32)
    emb = params["emb"][input_ids]                                  # [B,S,H]
    m = attention_mask[..., None].astype(jnp.float32)
    pooled = (emb * m).sum(axis=1) / jnp.maximum(m.sum(axis=1), 1.0)
    txt = jnp.tanh(bf(pooled) @ bf(params["w_enc"]) + params["b_enc"])
    meta = jnp.maximum(metadata @ params["w_meta"] + params["b_meta"], 0.0)
    return (bf(txt) @ bf(params["w_cls_txt"])
            + bf(meta) @ bf(params["w_cls_meta"]) + params["b_cls"])


def make_params(key, vocab, hidden, meta_dim, meta_hidden, num_labels):
    ks = jax.random.split(key, 7)
    s = lambda k, shp, fan_in: (jax.random.normal(k, shp, jnp.float32)
                                / jnp.sqrt(jnp.float32(fan_in)))
    return {
        "emb":        s(ks[0], (vocab, hidden), hidden),
        "w_enc":      s(ks[1], (hidden, hidden), hidden),
        "b_enc":      jnp.zeros((1, hidden), jnp.float32),
        "w_meta":     s(ks[2], (meta_dim, meta_hidden), meta_dim),
        "b_meta":     0.01 * jnp.ones((1, meta_hidden), jnp.float32),
        "w_cls_txt":  s(ks[3], (hidden, num_labels), hidden + meta_hidden),
        "w_cls_meta": s(ks[4], (meta_hidden, num_labels), hidden + meta_hidden),
        "b_cls":      jnp.zeros((1, num_labels), jnp.float32),
    }


if __name__ == "__main__":
    B, S = 2, 16          # batch, sequence length
    VOCAB = 1024          # synthetic vocab (table stays HBM-resident)
    HIDDEN = 256          # stand-in for Longformer hidden_size (768)
    META_DIM = 16
    META_HIDDEN = 128     # nn.Linear(meta_dim, 128)
    NUM_LABELS = 8

    key = jax.random.PRNGKey(0)
    k_ids, k_meta, k_params = jax.random.split(key, 3)

    input_ids = jax.random.randint(k_ids, (B, S), 0, VOCAB, dtype=jnp.int32)
    attention_mask = jnp.concatenate(
        [jnp.ones((B, S - 4), jnp.float32), jnp.zeros((B, 4), jnp.float32)],
        axis=1)                                            # last 4 tokens padded
    metadata = jax.random.normal(k_meta, (B, META_DIM), jnp.float32)

    params = make_params(k_params, VOCAB, HIDDEN, META_DIM, META_HIDDEN,
                         NUM_LABELS)

    logits = combined_model_forward(input_ids, attention_mask, metadata, params)
    logits = jax.block_until_ready(logits)

    ref = _reference_forward(input_ids, attention_mask, metadata, params)
    assert logits.shape == (B, NUM_LABELS)
    # tolerance covers bf16 matmul inputs in the kernel vs reference
    assert jnp.allclose(logits, ref, atol=2e-2, rtol=2e-2), "mismatch vs reference"

    print("KERNEL_OK")
</pallas_src>

<mosaic_0001>
module attributes {stable_mosaic.version = 11 : i64} {
  func.func @_combined_kernel(%arg0: i32, %arg1: memref<8x16xi32, #tpu.memory_space<smem>>, %arg2: memref<8x16xf32, #tpu.memory_space<vmem>>, %arg3: memref<8x16xf32, #tpu.memory_space<vmem>>, %arg4: memref<1024x256xf32, #tpu.memory_space<any>>, %arg5: memref<256x256xbf16, #tpu.memory_space<vmem>>, %arg6: memref<1x256xf32, #tpu.memory_space<vmem>>, %arg7: memref<16x128xf32, #tpu.memory_space<vmem>>, %arg8: memref<1x128xf32, #tpu.memory_space<vmem>>, %arg9: memref<256x128xbf16, #tpu.memory_space<vmem>>, %arg10: memref<128x128xbf16, #tpu.memory_space<vmem>>, %arg11: memref<1x128xf32, #tpu.memory_space<vmem>>, %arg12: memref<8x128xf32, #tpu.memory_space<vmem>>, %arg13: memref<128x256xf32, #tpu.memory_space<vmem>>, %arg14: memref<1x!tpu.dma_semaphore, #tpu.memory_space<semaphore_mem>>) attributes {dimension_semantics = [#tpu.dimension_semantics<parallel>], iteration_bounds = array<i64: 1>, scalar_prefetch = 1 : i64, scratch_operands = 2 : i64, tpu.core_type = #tpu.core_type<tc>, window_params = [{transform_indices = @transform_0, window_bounds = array<i64: 8, 16>}, {transform_indices = @transform_1, window_bounds = array<i64: 8, 16>}, {}, {pipeline_mode = #tpu.pipeline_mode<synchronous>, transform_indices = @transform_3, window_bounds = array<i64: 256, 256>}, {pipeline_mode = #tpu.pipeline_mode<synchronous>, transform_indices = @transform_4, window_bounds = array<i64: 1, 256>}, {pipeline_mode = #tpu.pipeline_mode<synchronous>, transform_indices = @transform_5, window_bounds = array<i64: 16, 128>}, {pipeline_mode = #tpu.pipeline_mode<synchronous>, transform_indices = @transform_6, window_bounds = array<i64: 1, 128>}, {pipeline_mode = #tpu.pipeline_mode<synchronous>, transform_indices = @transform_7, window_bounds = array<i64: 256, 128>}, {pipeline_mode = #tpu.pipeline_mode<synchronous>, transform_indices = @transform_8, window_bounds = array<i64: 128, 128>}, {pipeline_mode = #tpu.pipeline_mode<synchronous>, transform_indices = @transform_9, window_bounds = array<i64: 1, 128>}, {transform_indices = @transform_10, window_bounds = array<i64: 8, 128>}]} {
    %c8_i32 = arith.constant 8 : i32
    %0 = arith.muli %arg0, %c8_i32 : i32
    %c0_i32 = arith.constant 0 : i32
    %1 = arith.addi %0, %c0_i32 : i32
    %2 = arith.index_cast %1 : i32 to index
    %c0 = arith.constant 0 : index
    %3 = memref.load %arg1[%2, %c0] : memref<8x16xi32, #tpu.memory_space<smem>>
    %c0_i32_0 = arith.constant 0 : i32
    %4 = arith.maxsi %3, %c0_i32_0 : i32
    %c1023_i32 = arith.constant 1023 : i32
    %5 = arith.minsi %4, %c1023_i32 : i32
    %c0_i32_1 = arith.constant 0 : i32
    %c0_i32_2 = arith.constant 0 : i32
    %6 = tpu.memref_slice %arg4[%5, %c0_i32_2] : memref<1024x256xf32, #tpu.memory_space<any>> -> memref<1x256xf32, #tpu.memory_space<any>>
    %c0_i32_3 = arith.constant 0 : i32
    %c0_i32_4 = arith.constant 0 : i32
    %7 = tpu.memref_slice %arg13[%c0_i32_3, %c0_i32_4] : memref<128x256xf32, #tpu.memory_space<vmem>> -> memref<1x256xf32, #tpu.memory_space<vmem>>
    %8 = tpu.memref_slice %arg14[%c0_i32_1] : memref<1x!tpu.dma_semaphore, #tpu.memory_space<semaphore_mem>> -> memref<1x!tpu.dma_semaphore, #tpu.memory_space<semaphore_mem>>
    %9 = tpu.memref_squeeze %8 : memref<1x!tpu.dma_semaphore, #tpu.memory_space<semaphore_mem>> -> memref<!tpu.dma_semaphore, #tpu.memory_space<semaphore_mem>>
    tpu.enqueue_dma source(%6 : memref<1x256xf32, #tpu.memory_space<any>>) target(%7 : memref<1x256xf32, #tpu.memory_space<vmem>>) target_semaphore(%9 : memref<!tpu.dma_semaphore, #tpu.memory_space<semaphore_mem>>)
    %10 = arith.index_cast %1 : i32 to index
    %c1 = arith.constant 1 : index
    %11 = memref.load %arg1[%10, %c1] : memref<8x16xi32, #tpu.memory_space<smem>>
    %c0_i32_5 = arith.constant 0 : i32
    %12 = arith.maxsi %11, %c0_i32_5 : i32
    %c1023_i32_6 = arith.constant 1023 : i32
    %13 = arith.minsi %12, %c1023_i32_6 : i32
    %c0_i32_7 = arith.constant 0 : i32
    %c0_i32_8 = arith.constant 0 : i32
    %14 = tpu.memref_slice %arg4[%13, %c0_i32_8] : memref<1024x256xf32, #tpu.memory_space<any>> -> memref<1x256xf32, #tpu.memory_space<any>>
    %c1_i32 = arith.constant 1 : i32
    %c0_i32_9 = arith.constant 0 : i32
    %15 = tpu.memref_slice %arg13[%c1_i32, %c0_i32_9] : memref<128x256xf32, #tpu.memory_space<vmem>> -> memref<1x256xf32, #tpu.memory_space<vmem>>
    %16 = tpu.memref_slice %arg14[%c0_i32_7] : memref<1x!tpu.dma_semaphore, #tpu.memory_space<semaphore_mem>> -> memref<1x!tpu.dma_semaphore, #tpu.memory_space<semaphore_mem>>
    %17 = tpu.memref_squeeze %16 : memref<1x!tpu.dma_semaphore, #tpu.memory_space<semaphore_mem>> -> memref<!tpu.dma_semaphore, #tpu.memory_space<semaphore_mem>>
    tpu.enqueue_dma source(%14 : memref<1x256xf32, #tpu.memory_space<any>>) target(%15 : memref<1x256xf32, #tpu.memory_space<vmem>>) target_semaphore(%17 : memref<!tpu.dma_semaphore, #tpu.memory_space<semaphore_mem>>)
    %18 = arith.index_cast %1 : i32 to index
    %c2 = arith.constant 2 : index
    %19 = memref.load %arg1[%18, %c2] : memref<8x16xi32, #tpu.memory_space<smem>>
    %c0_i32_10 = arith.constant 0 : i32
    %20 = arith.maxsi %19, %c0_i32_10 : i32
    %c1023_i32_11 = arith.constant 1023 : i32
    %21 = arith.minsi %20, %c1023_i32_11 : i32
    %c0_i32_12 = arith.constant 0 : i32
    %c0_i32_13 = arith.constant 0 : i32
    %22 = tpu.memref_slice %arg4[%21, %c0_i32_13] : memref<1024x256xf32, #tpu.memory_space<any>> -> memref<1x256xf32, #tpu.memory_space<any>>
    %c2_i32 = arith.constant 2 : i32
    %c0_i32_14 = arith.constant 0 : i32
    %23 = tpu.memref_slice %arg13[%c2_i32, %c0_i32_14] : memref<128x256xf32, #tpu.memory_space<vmem>> -> memref<1x256xf32, #tpu.memory_space<vmem>>
    %24 = tpu.memref_slice %arg14[%c0_i32_12] : memref<1x!tpu.dma_semaphore, #tpu.memory_space<semaphore_mem>> -> memref<1x!tpu.dma_semaphore, #tpu.memory_space<semaphore_mem>>
    %25 = tpu.memref_squeeze %24 : memref<1x!tpu.dma_semaphore, #tpu.memory_space<semaphore_mem>> -> memref<!tpu.dma_semaphore, #tpu.memory_space<semaphore_mem>>
    tpu.enqueue_dma source(%22 : memref<1x256xf32, #tpu.memory_space<any>>) target(%23 : memref<1x256xf32, #tpu.memory_space<vmem>>) target_semaphore(%25 : memref<!tpu.dma_semaphore, #tpu.memory_space<semaphore_mem>>)
    %26 = arith.index_cast %1 : i32 to index
    %c3 = arith.constant 3 : index
    %27 = memref.load %arg1[%26, %c3] : memref<8x16xi32, #tpu.memory_space<smem>>
    %c0_i32_15 = arith.constant 0 : i32
    %28 = arith.maxsi %27, %c0_i32_15 : i32
    %c1023_i32_16 = arith.constant 1023 : i32
    %29 = arith.minsi %28, %c1023_i32_16 : i32
    %c0_i32_17 = arith.constant 0 : i32
    %c0_i32_18 = arith.constant 0 : i32
    %30 = tpu.memref_slice %arg4[%29, %c0_i32_18] : memref<1024x256xf32, #tpu.memory_space<any>> -> memref<1x256xf32, #tpu.memory_space<any>>
    %c3_i32 = arith.constant 3 : i32
    %c0_i32_19 = arith.constant 0 : i32
    %31 = tpu.memref_slice %arg13[%c3_i32, %c0_i32_19] : memref<128x256xf32, #tpu.memory_space<vmem>> -> memref<1x256xf32, #tpu.memory_space<vmem>>
    %32 = tpu.memref_slice %arg14[%c0_i32_17] : memref<1x!tpu.dma_semaphore, #tpu.memory_space<semaphore_mem>> -> memref<1x!tpu.dma_semaphore, #tpu.memory_space<semaphore_mem>>
    %33 = tpu.memref_squeeze %32 : memref<1x!tpu.dma_semaphore, #tpu.memory_space<semaphore_mem>> -> memref<!tpu.dma_semaphore, #tpu.memory_space<semaphore_mem>>
    tpu.enqueue_dma source(%30 : memref<1x256xf32, #tpu.memory_space<any>>) target(%31 : memref<1x256xf32, #tpu.memory_space<vmem>>) target_semaphore(%33 : memref<!tpu.dma_semaphore, #tpu.memory_space<semaphore_mem>>)
    %34 = arith.index_cast %1 : i32 to index
    %c4 = arith.constant 4 : index
    %35 = memref.load %arg1[%34, %c4] : memref<8x16xi32, #tpu.memory_space<smem>>
    %c0_i32_20 = arith.constant 0 : i32
    %36 = arith.maxsi %35, %c0_i32_20 : i32
    %c1023_i32_21 = arith.constant 1023 : i32
    %37 = arith.minsi %36, %c1023_i32_21 : i32
    %c0_i32_22 = arith.constant 0 : i32
    %c0_i32_23 = arith.constant 0 : i32
    %38 = tpu.memref_slice %arg4[%37, %c0_i32_23] : memref<1024x256xf32, #tpu.memory_space<any>> -> memref<1x256xf32, #tpu.memory_space<any>>
    %c4_i32 = arith.constant 4 : i32
    %c0_i32_24 = arith.constant 0 : i32
    %39 = tpu.memref_slice %arg13[%c4_i32, %c0_i32_24] : memref<128x256xf32, #tpu.memory_space<vmem>> -> memref<1x256xf32, #tpu.memory_space<vmem>>
    %40 = tpu.memref_slice %arg14[%c0_i32_22] : memref<1x!tpu.dma_semaphore, #tpu.memory_space<semaphore_mem>> -> memref<1x!tpu.dma_semaphore, #tpu.memory_space<semaphore_mem>>
    %41 = tpu.memref_squeeze %40 : memref<1x!tpu.dma_semaphore, #tpu.memory_space<semaphore_mem>> -> memref<!tpu.dma_semaphore, #tpu.memory_space<semaphore_mem>>
    tpu.enqueue_dma source(%38 : memref<1x256xf32, #tpu.memory_space<any>>) target(%39 : memref<1x256xf32, #tpu.memory_space<vmem>>) target_semaphore(%41 : memref<!tpu.dma_semaphore, #tpu.memory_space<semaphore_mem>>)
    %42 = arith.index_cast %1 : i32 to index
    %c5 = arith.constant 5 : index
    %43 = memref.load %arg1[%42, %c5] : memref<8x16xi32, #tpu.memory_space<smem>>
    %c0_i32_25 = arith.constant 0 : i32
    %44 = arith.maxsi %43, %c0_i32_25 : i32
    %c1023_i32_26 = arith.constant 1023 : i32
    %45 = arith.minsi %44, %c1023_i32_26 : i32
    %c0_i32_27 = arith.constant 0 : i32
    %c0_i32_28 = arith.constant 0 : i32
    %46 = tpu.memref_slice %arg4[%45, %c0_i32_28] : memref<1024x256xf32, #tpu.memory_space<any>> -> memref<1x256xf32, #tpu.memory_space<any>>
    %c5_i32 = arith.constant 5 : i32
    %c0_i32_29 = arith.constant 0 : i32
    %47 = tpu.memref_slice %arg13[%c5_i32, %c0_i32_29] : memref<128x256xf32, #tpu.memory_space<vmem>> -> memref<1x256xf32, #tpu.memory_space<vmem>>
    %48 = tpu.memref_slice %arg14[%c0_i32_27] : memref<1x!tpu.dma_semaphore, #tpu.memory_space<semaphore_mem>> -> memref<1x!tpu.dma_semaphore, #tpu.memory_space<semaphore_mem>>
    %49 = tpu.memref_squeeze %48 : memref<1x!tpu.dma_semaphore, #tpu.memory_space<semaphore_mem>> -> memref<!tpu.dma_semaphore, #tpu.memory_space<semaphore_mem>>
    tpu.enqueue_dma source(%46 : memref<1x256xf32, #tpu.memory_space<any>>) target(%47 : memref<1x256xf32, #tpu.memory_space<vmem>>) target_semaphore(%49 : memref<!tpu.dma_semaphore, #tpu.memory_space<semaphore_mem>>)
    %50 = arith.index_cast %1 : i32 to index
    %c6 = arith.constant 6 : index
    %51 = memref.load %arg1[%50, %c6] : memref<8x16xi32, #tpu.memory_space<smem>>
    %c0_i32_30 = arith.constant 0 : i32
    %52 = arith.maxsi %51, %c0_i32_30 : i32
    %c1023_i32_31 = arith.constant 1023 : i32
    %53 = arith.minsi %52, %c1023_i32_31 : i32
    %c0_i32_32 = arith.constant 0 : i32
    %c0_i32_33 = arith.constant 0 : i32
    %54 = tpu.memref_slice %arg4[%53, %c0_i32_33] : memref<1024x256xf32, #tpu.memory_space<any>> -> memref<1x256xf32, #tpu.memory_space<any>>
    %c6_i32 = arith.constant 6 : i32
    %c0_i32_34 = arith.constant 0 : i32
    %55 = tpu.memref_slice %arg13[%c6_i32, %c0_i32_34] : memref<128x256xf32, #tpu.memory_space<vmem>> -> memref<1x256xf32, #tpu.memory_space<vmem>>
    %56 = tpu.memref_slice %arg14[%c0_i32_32] : memref<1x!tpu.dma_semaphore, #tpu.memory_space<semaphore_mem>> -> memref<1x!tpu.dma_semaphore, #tpu.memory_space<semaphore_mem>>
    %57 = tpu.memref_squeeze %56 : memref<1x!tpu.dma_semaphore, #tpu.memory_space<semaphore_mem>> -> memref<!tpu.dma_semaphore, #tpu.memory_space<semaphore_mem>>
    tpu.enqueue_dma source(%54 : memref<1x256xf32, #tpu.memory_space<any>>) target(%55 : memref<1x256xf32, #tpu.memory_space<vmem>>) target_semaphore(%57 : memref<!tpu.dma_semaphore, #tpu.memory_space<semaphore_mem>>)
    %58 = arith.index_cast %1 : i32 to index
    %c7 = arith.constant 7 : index
    %59 = memref.load %arg1[%58, %c7] : memref<8x16xi32, #tpu.memory_space<smem>>
    %c0_i32_35 = arith.constant 0 : i32
    %60 = arith.maxsi %59, %c0_i32_35 : i32
    %c1023_i32_36 = arith.constant 1023 : i32
    %61 = arith.minsi %60, %c1023_i32_36 : i32
    %c0_i32_37 = arith.constant 0 : i32
    %c0_i32_38 = arith.constant 0 : i32
    %62 = tpu.memref_slice %arg4[%61, %c0_i32_38] : memref<1024x256xf32, #tpu.memory_space<any>> -> memref<1x256xf32, #tpu.memory_space<any>>
    %c7_i32 = arith.constant 7 : i32
    %c0_i32_39 = arith.constant 0 : i32
    %63 = tpu.memref_slice %arg13[%c7_i32, %c0_i32_39] : memref<128x256xf32, #tpu.memory_space<vmem>> -> memref<1x256xf32, #tpu.memory_space<vmem>>
    %64 = tpu.memref_slice %arg14[%c0_i32_37] : memref<1x!tpu.dma_semaphore, #tpu.memory_space<semaphore_mem>> -> memref<1x!tpu.dma_semaphore, #tpu.memory_space<semaphore_mem>>
    %65 = tpu.memref_squeeze %64 : memref<1x!tpu.dma_semaphore, #tpu.memory_space<semaphore_mem>> -> memref<!tpu.dma_semaphore, #tpu.memory_space<semaphore_mem>>
    tpu.enqueue_dma source(%62 : memref<1x256xf32, #tpu.memory_space<any>>) target(%63 : memref<1x256xf32, #tpu.memory_space<vmem>>) target_semaphore(%65 : memref<!tpu.dma_semaphore, #tpu.memory_space<semaphore_mem>>)
    %66 = arith.index_cast %1 : i32 to index
    %c8 = arith.constant 8 : index
    %67 = memref.load %arg1[%66, %c8] : memref<8x16xi32, #tpu.memory_space<smem>>
    %c0_i32_40 = arith.constant 0 : i32
    %68 = arith.maxsi %67, %c0_i32_40 : i32
    %c1023_i32_41 = arith.constant 1023 : i32
    %69 = arith.minsi %68, %c1023_i32_41 : i32
    %c0_i32_42 = arith.constant 0 : i32
    %c0_i32_43 = arith.constant 0 : i32
    %70 = tpu.memref_slice %arg4[%69, %c0_i32_43] : memref<1024x256xf32, #tpu.memory_space<any>> -> memref<1x256xf32, #tpu.memory_space<any>>
    %c8_i32_44 = arith.constant 8 : i32
    %c0_i32_45 = arith.constant 0 : i32
    %71 = tpu.memref_slice %arg13[%c8_i32_44, %c0_i32_45] : memref<128x256xf32, #tpu.memory_space<vmem>> -> memref<1x256xf32, #tpu.memory_space<vmem>>
    %72 = tpu.memref_slice %arg14[%c0_i32_42] : memref<1x!tpu.dma_semaphore, #tpu.memory_space<semaphore_mem>> -> memref<1x!tpu.dma_semaphore, #tpu.memory_space<semaphore_mem>>
    %73 = tpu.memref_squeeze %72 : memref<1x!tpu.dma_semaphore, #tpu.memory_space<semaphore_mem>> -> memref<!tpu.dma_semaphore, #tpu.memory_space<semaphore_mem>>
    tpu.enqueue_dma source(%70 : memref<1x256xf32, #tpu.memory_space<any>>) target(%71 : memref<1x256xf32, #tpu.memory_space<vmem>>) target_semaphore(%73 : memref<!tpu.dma_semaphore, #tpu.memory_space<semaphore_mem>>)
    %74 = arith.index_cast %1 : i32 to index
    %c9 = arith.constant 9 : index
    %75 = memref.load %arg1[%74, %c9] : memref<8x16xi32, #tpu.memory_space<smem>>
    %c0_i32_46 = arith.constant 0 : i32
    %76 = arith.maxsi %75, %c0_i32_46 : i32
    %c1023_i32_47 = arith.constant 1023 : i32
    %77 = arith.minsi %76, %c1023_i32_47 : i32
    %c0_i32_48 = arith.constant 0 : i32
    %c0_i32_49 = arith.constant 0 : i32
    %78 = tpu.memref_slice %arg4[%77, %c0_i32_49] : memref<1024x256xf32, #tpu.memory_space<any>> -> memref<1x256xf32, #tpu.memory_space<any>>
    %c9_i32 = arith.constant 9 : i32
    %c0_i32_50 = arith.constant 0 : i32
    %79 = tpu.memref_slice %arg13[%c9_i32, %c0_i32_50] : memref<128x256xf32, #tpu.memory_space<vmem>> -> memref<1x256xf32, #tpu.memory_space<vmem>>
    %80 = tpu.memref_slice %arg14[%c0_i32_48] : memref<1x!tpu.dma_semaphore, #tpu.memory_space<semaphore_mem>> -> memref<1x!tpu.dma_semaphore, #tpu.memory_space<semaphore_mem>>
    %81 = tpu.memref_squeeze %80 : memref<1x!tpu.dma_semaphore, #tpu.memory_space<semaphore_mem>> -> memref<!tpu.dma_semaphore, #tpu.memory_space<semaphore_mem>>
    tpu.enqueue_dma source(%78 : memref<1x256xf32, #tpu.memory_space<any>>) target(%79 : memref<1x256xf32, #tpu.memory_space<vmem>>) target_semaphore(%81 : memref<!tpu.dma_semaphore, #tpu.memory_space<semaphore_mem>>)
    %82 = arith.index_cast %1 : i32 to index
    %c10 = arith.constant 10 : index
    %83 = memref.load %arg1[%82, %c10] : memref<8x16xi32, #tpu.memory_space<smem>>
    %c0_i32_51 = arith.constant 0 : i32
    %84 = arith.maxsi %83, %c0_i32_51 : i32
    %c1023_i32_52 = arith.constant 1023 : i32
    %85 = arith.minsi %84, %c1023_i32_52 : i32
    %c0_i32_53 = arith.constant 0 : i32
    %c0_i32_54 = arith.constant 0 : i32
    %86 = tpu.memref_slice %arg4[%85, %c0_i32_54] : memref<1024x256xf32, #tpu.memory_space<any>> -> memref<1x256xf32, #tpu.memory_space<any>>
    %c10_i32 = arith.constant 10 : i32
    %c0_i32_55 = arith.constant 0 : i32
    %87 = tpu.memref_slice %arg13[%c10_i32, %c0_i32_55] : memref<128x256xf32, #tpu.memory_space<vmem>> -> memref<1x256xf32, #tpu.memory_space<vmem>>
    %88 = tpu.memref_slice %arg14[%c0_i32_53] : memref<1x!tpu.dma_semaphore, #tpu.memory_space<semaphore_mem>> -> memref<1x!tpu.dma_semaphore, #tpu.memory_space<semaphore_mem>>
    %89 = tpu.memref_squeeze %88 : memref<1x!tpu.dma_semaphore, #tpu.memory_space<semaphore_mem>> -> memref<!tpu.dma_semaphore, #tpu.memory_space<semaphore_mem>>
    tpu.enqueue_dma source(%86 : memref<1x256xf32, #tpu.memory_space<any>>) target(%87 : memref<1x256xf32, #tpu.memory_space<vmem>>) target_semaphore(%89 : memref<!tpu.dma_semaphore, #tpu.memory_space<semaphore_mem>>)
    %90 = arith.index_cast %1 : i32 to index
    %c11 = arith.constant 11 : index
    %91 = memref.load %arg1[%90, %c11] : memref<8x16xi32, #tpu.memory_space<smem>>
    %c0_i32_56 = arith.constant 0 : i32
    %92 = arith.maxsi %91, %c0_i32_56 : i32
    %c1023_i32_57 = arith.constant 1023 : i32
    %93 = arith.minsi %92, %c1023_i32_57 : i32
    %c0_i32_58 = arith.constant 0 : i32
    %c0_i32_59 = arith.constant 0 : i32
    %94 = tpu.memref_slice %arg4[%93, %c0_i32_59] : memref<1024x256xf32, #tpu.memory_space<any>> -> memref<1x256xf32, #tpu.memory_space<any>>
    %c11_i32 = arith.constant 11 : i32
    %c0_i32_60 = arith.constant 0 : i32
    %95 = tpu.memref_slice %arg13[%c11_i32, %c0_i32_60] : memref<128x256xf32, #tpu.memory_space<vmem>> -> memref<1x256xf32, #tpu.memory_space<vmem>>
    %96 = tpu.memref_slice %arg14[%c0_i32_58] : memref<1x!tpu.dma_semaphore, #tpu.memory_space<semaphore_mem>> -> memref<1x!tpu.dma_semaphore, #tpu.memory_space<semaphore_mem>>
    %97 = tpu.memref_squeeze %96 : memref<1x!tpu.dma_semaphore, #tpu.memory_space<semaphore_mem>> -> memref<!tpu.dma_semaphore, #tpu.memory_space<semaphore_mem>>
    tpu.enqueue_dma source(%94 : memref<1x256xf32, #tpu.memory_space<any>>) target(%95 : memref<1x256xf32, #tpu.memory_space<vmem>>) target_semaphore(%97 : memref<!tpu.dma_semaphore, #tpu.memory_space<semaphore_mem>>)
    %98 = arith.index_cast %1 : i32 to index
    %c12 = arith.constant 12 : index
    %99 = memref.load %arg1[%98, %c12] : memref<8x16xi32, #tpu.memory_space<smem>>
    %c0_i32_61 = arith.constant 0 : i32
    %100 = arith.maxsi %99, %c0_i32_61 : i32
    %c1023_i32_62 = arith.constant 1023 : i32
    %101 = arith.minsi %100, %c1023_i32_62 : i32
    %c0_i32_63 = arith.constant 0 : i32
    %c0_i32_64 = arith.constant 0 : i32
    %102 = tpu.memref_slice %arg4[%101, %c0_i32_64] : memref<1024x256xf32, #tpu.memory_space<any>> -> memref<1x256xf32, #tpu.memory_space<any>>
    %c12_i32 = arith.constant 12 : i32
    %c0_i32_65 = arith.constant 0 : i32
    %103 = tpu.memref_slice %arg13[%c12_i32, %c0_i32_65] : memref<128x256xf32, #tpu.memory_space<vmem>> -> memref<1x256xf32, #tpu.memory_space<vmem>>
    %104 = tpu.memref_slice %arg14[%c0_i32_63] : memref<1x!tpu.dma_semaphore, #tpu.memory_space<semaphore_mem>> -> memref<1x!tpu.dma_semaphore, #tpu.memory_space<semaphore_mem>>
    %105 = tpu.memref_squeeze %104 : memref<1x!tpu.dma_semaphore, #tpu.memory_space<semaphore_mem>> -> memref<!tpu.dma_semaphore, #tpu.memory_space<semaphore_mem>>
    tpu.enqueue_dma source(%102 : memref<1x256xf32, #tpu.memory_space<any>>) target(%103 : memref<1x256xf32, #tpu.memory_space<vmem>>) target_semaphore(%105 : memref<!tpu.dma_semaphore, #tpu.memory_space<semaphore_mem>>)
    %106 = arith.index_cast %1 : i32 to index
    %c13 = arith.constant 13 : index
    %107 = memref.load %arg1[%106, %c13] : memref<8x16xi32, #tpu.memory_space<smem>>
    %c0_i32_66 = arith.constant 0 : i32
    %108 = arith.maxsi %107, %c0_i32_66 : i32
    %c1023_i32_67 = arith.constant 1023 : i32
    %109 = arith.minsi %108, %c1023_i32_67 : i32
    %c0_i32_68 = arith.constant 0 : i32
    %c0_i32_69 = arith.constant 0 : i32
    %110 = tpu.memref_slice %arg4[%109, %c0_i32_69] : memref<1024x256xf32, #tpu.memory_space<any>> -> memref<1x256xf32, #tpu.memory_space<any>>
    %c13_i32 = arith.constant 13 : i32
    %c0_i32_70 = arith.constant 0 : i32
    %111 = tpu.memref_slice %arg13[%c13_i32, %c0_i32_70] : memref<128x256xf32, #tpu.memory_space<vmem>> -> memref<1x256xf32, #tpu.memory_space<vmem>>
    %112 = tpu.memref_slice %arg14[%c0_i32_68] : memref<1x!tpu.dma_semaphore, #tpu.memory_space<semaphore_mem>> -> memref<1x!tpu.dma_semaphore, #tpu.memory_space<semaphore_mem>>
    %113 = tpu.memref_squeeze %112 : memref<1x!tpu.dma_semaphore, #tpu.memory_space<semaphore_mem>> -> memref<!tpu.dma_semaphore, #tpu.memory_space<semaphore_mem>>
    tpu.enqueue_dma source(%110 : memref<1x256xf32, #tpu.memory_space<any>>) target(%111 : memref<1x256xf32, #tpu.memory_space<vmem>>) target_semaphore(%113 : memref<!tpu.dma_semaphore, #tpu.memory_space<semaphore_mem>>)
    %114 = arith.index_cast %1 : i32 to index
    %c14 = arith.constant 14 : index
    %115 = memref.load %arg1[%114, %c14] : memref<8x16xi32, #tpu.memory_space<smem>>
    %c0_i32_71 = arith.constant 0 : i32
    %116 = arith.maxsi %115, %c0_i32_71 : i32
    %c1023_i32_72 = arith.constant 1023 : i32
    %117 = arith.minsi %116, %c1023_i32_72 : i32
    %c0_i32_73 = arith.constant 0 : i32
    %c0_i32_74 = arith.constant 0 : i32
    %118 = tpu.memref_slice %arg4[%117, %c0_i32_74] : memref<1024x256xf32, #tpu.memory_space<any>> -> memref<1x256xf32, #tpu.memory_space<any>>
    %c14_i32 = arith.constant 14 : i32
    %c0_i32_75 = arith.constant 0 : i32
    %119 = tpu.memref_slice %arg13[%c14_i32, %c0_i32_75] : memref<128x256xf32, #tpu.memory_space<vmem>> -> memref<1x256xf32, #tpu.memory_space<vmem>>
    %120 = tpu.memref_slice %arg14[%c0_i32_73] : memref<1x!tpu.dma_semaphore, #tpu.memory_space<semaphore_mem>> -> memref<1x!tpu.dma_semaphore, #tpu.memory_space<semaphore_mem>>
    %121 = tpu.memref_squeeze %120 : memref<1x!tpu.dma_semaphore, #tpu.memory_space<semaphore_mem>> -> memref<!tpu.dma_semaphore, #tpu.memory_space<semaphore_mem>>
    tpu.enqueue_dma source(%118 : memref<1x256xf32, #tpu.memory_space<any>>) target(%119 : memref<1x256xf32, #tpu.memory_space<vmem>>) target_semaphore(%121 : memref<!tpu.dma_semaphore, #tpu.memory_space<semaphore_mem>>)
    %122 = arith.index_cast %1 : i32 to index
    %c15 = arith.constant 15 : index
    %123 = memref.load %arg1[%122, %c15] : memref<8x16xi32, #tpu.memory_space<smem>>
    %c0_i32_76 = arith.constant 0 : i32
    %124 = arith.maxsi %123, %c0_i32_76 : i32
    %c1023_i32_77 = arith.constant 1023 : i32
    %125 = arith.minsi %124, %c1023_i32_77 : i32
    %c0_i32_78 = arith.constant 0 : i32
    %c0_i32_79 = arith.constant 0 : i32
    %126 = tpu.memref_slice %arg4[%125, %c0_i32_79] : memref<1024x256xf32, #tpu.memory_space<any>> -> memref<1x256xf32, #tpu.memory_space<any>>
    %c15_i32 = arith.constant 15 : i32
    %c0_i32_80 = arith.constant 0 : i32
    %127 = tpu.memref_slice %arg13[%c15_i32, %c0_i32_80] : memref<128x256xf32, #tpu.memory_space<vmem>> -> memref<1x256xf32, #tpu.memory_space<vmem>>
    %128 = tpu.memref_slice %arg14[%c0_i32_78] : memref<1x!tpu.dma_semaphore, #tpu.memory_space<semaphore_mem>> -> memref<1x!tpu.dma_semaphore, #tpu.memory_space<semaphore_mem>>
    %129 = tpu.memref_squeeze %128 : memref<1x!tpu.dma_semaphore, #tpu.memory_space<semaphore_mem>> -> memref<!tpu.dma_semaphore, #tpu.memory_space<semaphore_mem>>
    tpu.enqueue_dma source(%126 : memref<1x256xf32, #tpu.memory_space<any>>) target(%127 : memref<1x256xf32, #tpu.memory_space<vmem>>) target_semaphore(%129 : memref<!tpu.dma_semaphore, #tpu.memory_space<semaphore_mem>>)
    %c8_i32_81 = arith.constant 8 : i32
    %130 = arith.muli %arg0, %c8_i32_81 : i32
    %c1_i32_82 = arith.constant 1 : i32
    %131 = arith.addi %130, %c1_i32_82 : i32
    %132 = arith.index_cast %131 : i32 to index
    %c0_83 = arith.constant 0 : index
    %133 = memref.load %arg1[%132, %c0_83] : memref<8x16xi32, #tpu.memory_space<smem>>
    %c0_i32_84 = arith.constant 0 : i32
    %134 = arith.maxsi %133, %c0_i32_84 : i32
    %c1023_i32_85 = arith.constant 1023 : i32
    %135 = arith.minsi %134, %c1023_i32_85 : i32
    %c0_i32_86 = arith.constant 0 : i32
    %c0_i32_87 = arith.constant 0 : i32
    %136 = tpu.memref_slice %arg4[%135, %c0_i32_87] : memref<1024x256xf32, #tpu.memory_space<any>> -> memref<1x256xf32, #tpu.memory_space<any>>
    %c16_i32 = arith.constant 16 : i32
    %c0_i32_88 = arith.constant 0 : i32
    %137 = tpu.memref_slice %arg13[%c16_i32, %c0_i32_88] : memref<128x256xf32, #tpu.memory_space<vmem>> -> memref<1x256xf32, #tpu.memory_space<vmem>>
    %138 = tpu.memref_slice %arg14[%c0_i32_86] : memref<1x!tpu.dma_semaphore, #tpu.memory_space<semaphore_mem>> -> memref<1x!tpu.dma_semaphore, #tpu.memory_space<semaphore_mem>>
    %139 = tpu.memref_squeeze %138 : memref<1x!tpu.dma_semaphore, #tpu.memory_space<semaphore_mem>> -> memref<!tpu.dma_semaphore, #tpu.memory_space<semaphore_mem>>
    tpu.enqueue_dma source(%136 : memref<1x256xf32, #tpu.memory_space<any>>) target(%137 : memref<1x256xf32, #tpu.memory_space<vmem>>) target_semaphore(%139 : memref<!tpu.dma_semaphore, #tpu.memory_space<semaphore_mem>>)
    %140 = arith.index_cast %131 : i32 to index
    %c1_89 = arith.constant 1 : index
    %141 = memref.load %arg1[%140, %c1_89] : memref<8x16xi32, #tpu.memory_space<smem>>
    %c0_i32_90 = arith.constant 0 : i32
    %142 = arith.maxsi %141, %c0_i32_90 : i32
    %c1023_i32_91 = arith.constant 1023 : i32
    %143 = arith.minsi %142, %c1023_i32_91 : i32
    %c0_i32_92 = arith.constant 0 : i32
    %c0_i32_93 = arith.constant 0 : i32
    %144 = tpu.memref_slice %arg4[%143, %c0_i32_93] : memref<1024x256xf32, #tpu.memory_space<any>> -> memref<1x256xf32, #tpu.memory_space<any>>
    %c17_i32 = arith.constant 17 : i32
    %c0_i32_94 = arith.constant 0 : i32
    %145 = tpu.memref_slice %arg13[%c17_i32, %c0_i32_94] : memref<128x256xf32, #tpu.memory_space<vmem>> -> memref<1x256xf32, #tpu.memory_space<vmem>>
    %146 = tpu.memref_slice %arg14[%c0_i32_92] : memref<1x!tpu.dma_semaphore, #tpu.memory_space<semaphore_mem>> -> memref<1x!tpu.dma_semaphore, #tpu.memory_space<semaphore_mem>>
    %147 = tpu.memref_squeeze %146 : memref<1x!tpu.dma_semaphore, #tpu.memory_space<semaphore_mem>> -> memref<!tpu.dma_semaphore, #tpu.memory_space<semaphore_mem>>
    tpu.enqueue_dma source(%144 : memref<1x256xf32, #tpu.memory_space<any>>) target(%145 : memref<1x256xf32, #tpu.memory_space<vmem>>) target_semaphore(%147 : memref<!tpu.dma_semaphore, #tpu.memory_space<semaphore_mem>>)
    %148 = arith.index_cast %131 : i32 to index
    %c2_95 = arith.constant 2 : index
    %149 = memref.load %arg1[%148, %c2_95] : memref<8x16xi32, #tpu.memory_space<smem>>
    %c0_i32_96 = arith.constant 0 : i32
    %150 = arith.maxsi %149, %c0_i32_96 : i32
    %c1023_i32_97 = arith.constant 1023 : i32
    %151 = arith.minsi %150, %c1023_i32_97 : i32
    %c0_i32_98 = arith.constant 0 : i32
    %c0_i32_99 = arith.constant 0 : i32
    %152 = tpu.memref_slice %arg4[%151, %c0_i32_99] : memref<1024x256xf32, #tpu.memory_space<any>> -> memref<1x256xf32, #tpu.memory_space<any>>
    %c18_i32 = arith.constant 18 : i32
    %c0_i32_100 = arith.constant 0 : i32
    %153 = tpu.memref_slice %arg13[%c18_i32, %c0_i32_100] : memref<128x256xf32, #tpu.memory_space<vmem>> -> memref<1x256xf32, #tpu.memory_space<vmem>>
    %154 = tpu.memref_slice %arg14[%c0_i32_98] : memref<1x!tpu.dma_semaphore, #tpu.memory_space<semaphore_mem>> -> memref<1x!tpu.dma_semaphore, #tpu.memory_space<semaphore_mem>>
    %155 = tpu.memref_squeeze %154 : memref<1x!tpu.dma_semaphore, #tpu.memory_space<semaphore_mem>> -> memref<!tpu.dma_semaphore, #tpu.memory_space<semaphore_mem>>
    tpu.enqueue_dma source(%152 : memref<1x256xf32, #tpu.memory_space<any>>) target(%153 : memref<1x256xf32, #tpu.memory_space<vmem>>) target_semaphore(%155 : memref<!tpu.dma_semaphore, #tpu.memory_space<semaphore_mem>>)
    %156 = arith.index_cast %131 : i32 to index
    %c3_101 = arith.constant 3 : index
    %157 = memref.load %arg1[%156, %c3_101] : memref<8x16xi32, #tpu.memory_space<smem>>
    %c0_i32_102 = arith.constant 0 : i32
    %158 = arith.maxsi %157, %c0_i32_102 : i32
    %c1023_i32_103 = arith.constant 1023 : i32
    %159 = arith.minsi %158, %c1023_i32_103 : i32
    %c0_i32_104 = arith.constant 0 : i32
    %c0_i32_105 = arith.constant 0 : i32
    %160 = tpu.memref_slice %arg4[%159, %c0_i32_105] : memref<1024x256xf32, #tpu.memory_space<any>> -> memref<1x256xf32, #tpu.memory_space<any>>
    %c19_i32 = arith.constant 19 : i32
    %c0_i32_106 = arith.constant 0 : i32
    %161 = tpu.memref_slice %arg13[%c19_i32, %c0_i32_106] : memref<128x256xf32, #tpu.memory_space<vmem>> -> memref<1x256xf32, #tpu.memory_space<vmem>>
    %162 = tpu.memref_slice %arg14[%c0_i32_104] : memref<1x!tpu.dma_semaphore, #tpu.memory_space<semaphore_mem>> -> memref<1x!tpu.dma_semaphore, #tpu.memory_space<semaphore_mem>>
    %163 = tpu.memref_squeeze %162 : memref<1x!tpu.dma_semaphore, #tpu.memory_space<semaphore_mem>> -> memref<!tpu.dma_semaphore, #tpu.memory_space<semaphore_mem>>
    tpu.enqueue_dma source(%160 : memref<1x256xf32, #tpu.memory_space<any>>) target(%161 : memref<1x256xf32, #tpu.memory_space<vmem>>) target_semaphore(%163 : memref<!tpu.dma_semaphore, #tpu.memory_space<semaphore_mem>>)
    %164 = arith.index_cast %131 : i32 to index
    %c4_107 = arith.constant 4 : index
    %165 = memref.load %arg1[%164, %c4_107] : memref<8x16xi32, #tpu.memory_space<smem>>
    %c0_i32_108 = arith.constant 0 : i32
    %166 = arith.maxsi %165, %c0_i32_108 : i32
    %c1023_i32_109 = arith.constant 1023 : i32
    %167 = arith.minsi %166, %c1023_i32_109 : i32
    %c0_i32_110 = arith.constant 0 : i32
    %c0_i32_111 = arith.constant 0 : i32
    %168 = tpu.memref_slice %arg4[%167, %c0_i32_111] : memref<1024x256xf32, #tpu.memory_space<any>> -> memref<1x256xf32, #tpu.memory_space<any>>
    %c20_i32 = arith.constant 20 : i32
    %c0_i32_112 = arith.constant 0 : i32
    %169 = tpu.memref_slice %arg13[%c20_i32, %c0_i32_112] : memref<128x256xf32, #tpu.memory_space<vmem>> -> memref<1x256xf32, #tpu.memory_space<vmem>>
    %170 = tpu.memref_slice %arg14[%c0_i32_110] : memref<1x!tpu.dma_semaphore, #tpu.memory_space<semaphore_mem>> -> memref<1x!tpu.dma_semaphore, #tpu.memory_space<semaphore_mem>>
    %171 = tpu.memref_squeeze %170 : memref<1x!tpu.dma_semaphore, #tpu.memory_space<semaphore_mem>> -> memref<!tpu.dma_semaphore, #tpu.memory_space<semaphore_mem>>
    tpu.enqueue_dma source(%168 : memref<1x256xf32, #tpu.memory_space<any>>) target(%169 : memref<1x256xf32, #tpu.memory_space<vmem>>) target_semaphore(%171 : memref<!tpu.dma_semaphore, #tpu.memory_space<semaphore_mem>>)
    %172 = arith.index_cast %131 : i32 to index
    %c5_113 = arith.constant 5 : index
    %173 = memref.load %arg1[%172, %c5_113] : memref<8x16xi32, #tpu.memory_space<smem>>
    %c0_i32_114 = arith.constant 0 : i32
    %174 = arith.maxsi %173, %c0_i32_114 : i32
    %c1023_i32_115 = arith.constant 1023 : i32
    %175 = arith.minsi %174, %c1023_i32_115 : i32
    %c0_i32_116 = arith.constant 0 : i32
    %c0_i32_117 = arith.constant 0 : i32
    %176 = tpu.memref_slice %arg4[%175, %c0_i32_117] : memref<1024x256xf32, #tpu.memory_space<any>> -> memref<1x256xf32, #tpu.memory_space<any>>
    %c21_i32 = arith.constant 21 : i32
    %c0_i32_118 = arith.constant 0 : i32
    %177 = tpu.memref_slice %arg13[%c21_i32, %c0_i32_118] : memref<128x256xf32, #tpu.memory_space<vmem>> -> memref<1x256xf32, #tpu.memory_space<vmem>>
    %178 = tpu.memref_slice %arg14[%c0_i32_116] : memref<1x!tpu.dma_semaphore, #tpu.memory_space<semaphore_mem>> -> memref<1x!tpu.dma_semaphore, #tpu.memory_space<semaphore_mem>>
    %179 = tpu.memref_squeeze %178 : memref<1x!tpu.dma_semaphore, #tpu.memory_space<semaphore_mem>> -> memref<!tpu.dma_semaphore, #tpu.memory_space<semaphore_mem>>
    tpu.enqueue_dma source(%176 : memref<1x256xf32, #tpu.memory_space<any>>) target(%177 : memref<1x256xf32, #tpu.memory_space<vmem>>) target_semaphore(%179 : memref<!tpu.dma_semaphore, #tpu.memory_space<semaphore_mem>>)
    %180 = arith.index_cast %131 : i32 to index
    %c6_119 = arith.constant 6 : index
    %181 = memref.load %arg1[%180, %c6_119] : memref<8x16xi32, #tpu.memory_space<smem>>
    %c0_i32_120 = arith.constant 0 : i32
    %182 = arith.maxsi %181, %c0_i32_120 : i32
    %c1023_i32_121 = arith.constant 1023 : i32
    %183 = arith.minsi %182, %c1023_i32_121 : i32
    %c0_i32_122 = arith.constant 0 : i32
    %c0_i32_123 = arith.constant 0 : i32
    %184 = tpu.memref_slice %arg4[%183, %c0_i32_123] : memref<1024x256xf32, #tpu.memory_space<any>> -> memref<1x256xf32, #tpu.memory_space<any>>
    %c22_i32 = arith.constant 22 : i32
    %c0_i32_124 = arith.constant 0 : i32
    %185 = tpu.memref_slice %arg13[%c22_i32, %c0_i32_124] : memref<128x256xf32, #tpu.memory_space<vmem>> -> memref<1x256xf32, #tpu.memory_space<vmem>>
    %186 = tpu.memref_slice %arg14[%c0_i32_122] : memref<1x!tpu.dma_semaphore, #tpu.memory_space<semaphore_mem>> -> memref<1x!tpu.dma_semaphore, #tpu.memory_space<semaphore_mem>>
    %187 = tpu.memref_squeeze %186 : memref<1x!tpu.dma_semaphore, #tpu.memory_space<semaphore_mem>> -> memref<!tpu.dma_semaphore, #tpu.memory_space<semaphore_mem>>
    tpu.enqueue_dma source(%184 : memref<1x256xf32, #tpu.memory_space<any>>) target(%185 : memref<1x256xf32, #tpu.memory_space<vmem>>) target_semaphore(%187 : memref<!tpu.dma_semaphore, #tpu.memory_space<semaphore_mem>>)
    %188 = arith.index_cast %131 : i32 to index
    %c7_125 = arith.constant 7 : index
    %189 = memref.load %arg1[%188, %c7_125] : memref<8x16xi32, #tpu.memory_space<smem>>
    %c0_i32_126 = arith.constant 0 : i32
    %190 = arith.maxsi %189, %c0_i32_126 : i32
    %c1023_i32_127 = arith.constant 1023 : i32
    %191 = arith.minsi %190, %c1023_i32_127 : i32
    %c0_i32_128 = arith.constant 0 : i32
    %c0_i32_129 = arith.constant 0 : i32
    %192 = tpu.memref_slice %arg4[%191, %c0_i32_129] : memref<1024x256xf32, #tpu.memory_space<any>> -> memref<1x256xf32, #tpu.memory_space<any>>
    %c23_i32 = arith.constant 23 : i32
    %c0_i32_130 = arith.constant 0 : i32
    %193 = tpu.memref_slice %arg13[%c23_i32, %c0_i32_130] : memref<128x256xf32, #tpu.memory_space<vmem>> -> memref<1x256xf32, #tpu.memory_space<vmem>>
    %194 = tpu.memref_slice %arg14[%c0_i32_128] : memref<1x!tpu.dma_semaphore, #tpu.memory_space<semaphore_mem>> -> memref<1x!tpu.dma_semaphore, #tpu.memory_space<semaphore_mem>>
    %195 = tpu.memref_squeeze %194 : memref<1x!tpu.dma_semaphore, #tpu.memory_space<semaphore_mem>> -> memref<!tpu.dma_semaphore, #tpu.memory_space<semaphore_mem>>
    tpu.enqueue_dma source(%192 : memref<1x256xf32, #tpu.memory_space<any>>) target(%193 : memref<1x256xf32, #tpu.memory_space<vmem>>) target_semaphore(%195 : memref<!tpu.dma_semaphore, #tpu.memory_space<semaphore_mem>>)
    %196 = arith.index_cast %131 : i32 to index
    %c8_131 = arith.constant 8 : index
    %197 = memref.load %arg1[%196, %c8_131] : memref<8x16xi32, #tpu.memory_space<smem>>
    %c0_i32_132 = arith.constant 0 : i32
    %198 = arith.maxsi %197, %c0_i32_132 : i32
    %c1023_i32_133 = arith.constant 1023 : i32
    %199 = arith.minsi %198, %c1023_i32_133 : i32
    %c0_i32_134 = arith.constant 0 : i32
    %c0_i32_135 = arith.constant 0 : i32
    %200 = tpu.memref_slice %arg4[%199, %c0_i32_135] : memref<1024x256xf32, #tpu.memory_space<any>> -> memref<1x256xf32, #tpu.memory_space<any>>
    %c24_i32 = arith.constant 24 : i32
    %c0_i32_136 = arith.constant 0 : i32
    %201 = tpu.memref_slice %arg13[%c24_i32, %c0_i32_136] : memref<128x256xf32, #tpu.memory_space<vmem>> -> memref<1x256xf32, #tpu.memory_space<vmem>>
    %202 = tpu.memref_slice %arg14[%c0_i32_134] : memref<1x!tpu.dma_semaphore, #tpu.memory_space<semaphore_mem>> -> memref<1x!tpu.dma_semaphore, #tpu.memory_space<semaphore_mem>>
    %203 = tpu.memref_squeeze %202 : memref<1x!tpu.dma_semaphore, #tpu.memory_space<semaphore_mem>> -> memref<!tpu.dma_semaphore, #tpu.memory_space<semaphore_mem>>
    tpu.enqueue_dma source(%200 : memref<1x256xf32, #tpu.memory_space<any>>) target(%201 : memref<1x256xf32, #tpu.memory_space<vmem>>) target_semaphore(%203 : memref<!tpu.dma_semaphore, #tpu.memory_space<semaphore_mem>>)
    %204 = arith.index_cast %131 : i32 to index
    %c9_137 = arith.constant 9 : index
    %205 = memref.load %arg1[%204, %c9_137] : memref<8x16xi32, #tpu.memory_space<smem>>
    %c0_i32_138 = arith.constant 0 : i32
    %206 = arith.maxsi %205, %c0_i32_138 : i32
    %c1023_i32_139 = arith.constant 1023 : i32
    %207 = arith.minsi %206, %c1023_i32_139 : i32
    %c0_i32_140 = arith.constant 0 : i32
    %c0_i32_141 = arith.constant 0 : i32
    %208 = tpu.memref_slice %arg4[%207, %c0_i32_141] : memref<1024x256xf32, #tpu.memory_space<any>> -> memref<1x256xf32, #tpu.memory_space<any>>
    %c25_i32 = arith.constant 25 : i32
    %c0_i32_142 = arith.constant 0 : i32
    %209 = tpu.memref_slice %arg13[%c25_i32, %c0_i32_142] : memref<128x256xf32, #tpu.memory_space<vmem>> -> memref<1x256xf32, #tpu.memory_space<vmem>>
    %210 = tpu.memref_slice %arg14[%c0_i32_140] : memref<1x!tpu.dma_semaphore, #tpu.memory_space<semaphore_mem>> -> memref<1x!tpu.dma_semaphore, #tpu.memory_space<semaphore_mem>>
    %211 = tpu.memref_squeeze %210 : memref<1x!tpu.dma_semaphore, #tpu.memory_space<semaphore_mem>> -> memref<!tpu.dma_semaphore, #tpu.memory_space<semaphore_mem>>
    tpu.enqueue_dma source(%208 : memref<1x256xf32, #tpu.memory_space<any>>) target(%209 : memref<1x256xf32, #tpu.memory_space<vmem>>) target_semaphore(%211 : memref<!tpu.dma_semaphore, #tpu.memory_space<semaphore_mem>>)
    %212 = arith.index_cast %131 : i32 to index
    %c10_143 = arith.constant 10 : index
    %213 = memref.load %arg1[%212, %c10_143] : memref<8x16xi32, #tpu.memory_space<smem>>
    %c0_i32_144 = arith.constant 0 : i32
    %214 = arith.maxsi %213, %c0_i32_144 : i32
    %c1023_i32_145 = arith.constant 1023 : i32
    %215 = arith.minsi %214, %c1023_i32_145 : i32
    %c0_i32_146 = arith.constant 0 : i32
    %c0_i32_147 = arith.constant 0 : i32
    %216 = tpu.memref_slice %arg4[%215, %c0_i32_147] : memref<1024x256xf32, #tpu.memory_space<any>> -> memref<1x256xf32, #tpu.memory_space<any>>
    %c26_i32 = arith.constant 26 : i32
    %c0_i32_148 = arith.constant 0 : i32
    %217 = tpu.memref_slice %arg13[%c26_i32, %c0_i32_148] : memref<128x256xf32, #tpu.memory_space<vmem>> -> memref<1x256xf32, #tpu.memory_space<vmem>>
    %218 = tpu.memref_slice %arg14[%c0_i32_146] : memref<1x!tpu.dma_semaphore, #tpu.memory_space<semaphore_mem>> -> memref<1x!tpu.dma_semaphore, #tpu.memory_space<semaphore_mem>>
    %219 = tpu.memref_squeeze %218 : memref<1x!tpu.dma_semaphore, #tpu.memory_space<semaphore_mem>> -> memref<!tpu.dma_semaphore, #tpu.memory_space<semaphore_mem>>
    tpu.enqueue_dma source(%216 : memref<1x256xf32, #tpu.memory_space<any>>) target(%217 : memref<1x256xf32, #tpu.memory_space<vmem>>) target_semaphore(%219 : memref<!tpu.dma_semaphore, #tpu.memory_space<semaphore_mem>>)
    %220 = arith.index_cast %131 : i32 to index
    %c11_149 = arith.constant 11 : index
    %221 = memref.load %arg1[%220, %c11_149] : memref<8x16xi32, #tpu.memory_space<smem>>
    %c0_i32_150 = arith.constant 0 : i32
    %222 = arith.maxsi %221, %c0_i32_150 : i32
    %c1023_i32_151 = arith.constant 1023 : i32
    %223 = arith.minsi %222, %c1023_i32_151 : i32
    %c0_i32_152 = arith.constant 0 : i32
    %c0_i32_153 = arith.constant 0 : i32
    %224 = tpu.memref_slice %arg4[%223, %c0_i32_153] : memref<1024x256xf32, #tpu.memory_space<any>> -> memref<1x256xf32, #tpu.memory_space<any>>
    %c27_i32 = arith.constant 27 : i32
    %c0_i32_154 = arith.constant 0 : i32
    %225 = tpu.memref_slice %arg13[%c27_i32, %c0_i32_154] : memref<128x256xf32, #tpu.memory_space<vmem>> -> memref<1x256xf32, #tpu.memory_space<vmem>>
    %226 = tpu.memref_slice %arg14[%c0_i32_152] : memref<1x!tpu.dma_semaphore, #tpu.memory_space<semaphore_mem>> -> memref<1x!tpu.dma_semaphore, #tpu.memory_space<semaphore_mem>>
    %227 = tpu.memref_squeeze %226 : memref<1x!tpu.dma_semaphore, #tpu.memory_space<semaphore_mem>> -> memref<!tpu.dma_semaphore, #tpu.memory_space<semaphore_mem>>
    tpu.enqueue_dma source(%224 : memref<1x256xf32, #tpu.memory_space<any>>) target(%225 : memref<1x256xf32, #tpu.memory_space<vmem>>) target_semaphore(%227 : memref<!tpu.dma_semaphore, #tpu.memory_space<semaphore_mem>>)
    %228 = arith.index_cast %131 : i32 to index
    %c12_155 = arith.constant 12 : index
    %229 = memref.load %arg1[%228, %c12_155] : memref<8x16xi32, #tpu.memory_space<smem>>
    %c0_i32_156 = arith.constant 0 : i32
    %230 = arith.maxsi %229, %c0_i32_156 : i32
    %c1023_i32_157 = arith.constant 1023 : i32
    %231 = arith.minsi %230, %c1023_i32_157 : i32
    %c0_i32_158 = arith.constant 0 : i32
    %c0_i32_159 = arith.constant 0 : i32
    %232 = tpu.memref_slice %arg4[%231, %c0_i32_159] : memref<1024x256xf32, #tpu.memory_space<any>> -> memref<1x256xf32, #tpu.memory_space<any>>
    %c28_i32 = arith.constant 28 : i32
    %c0_i32_160 = arith.constant 0 : i32
    %233 = tpu.memref_slice %arg13[%c28_i32, %c0_i32_160] : memref<128x256xf32, #tpu.memory_space<vmem>> -> memref<1x256xf32, #tpu.memory_space<vmem>>
    %234 = tpu.memref_slice %arg14[%c0_i32_158] : memref<1x!tpu.dma_semaphore, #tpu.memory_space<semaphore_mem>> -> memref<1x!tpu.dma_semaphore, #tpu.memory_space<semaphore_mem>>
    %235 = tpu.memref_squeeze %234 : memref<1x!tpu.dma_semaphore, #tpu.memory_space<semaphore_mem>> -> memref<!tpu.dma_semaphore, #tpu.memory_space<semaphore_mem>>
    tpu.enqueue_dma source(%232 : memref<1x256xf32, #tpu.memory_space<any>>) target(%233 : memref<1x256xf32, #tpu.memory_space<vmem>>) target_semaphore(%235 : memref<!tpu.dma_semaphore, #tpu.memory_space<semaphore_mem>>)
    %236 = arith.index_cast %131 : i32 to index
    %c13_161 = arith.constant 13 : index
    %237 = memref.load %arg1[%236, %c13_161] : memref<8x16xi32, #tpu.memory_space<smem>>
    %c0_i32_162 = arith.constant 0 : i32
    %238 = arith.maxsi %237, %c0_i32_162 : i32
    %c1023_i32_163 = arith.constant 1023 : i32
    %239 = arith.minsi %238, %c1023_i32_163 : i32
    %c0_i32_164 = arith.constant 0 : i32
    %c0_i32_165 = arith.constant 0 : i32
    %240 = tpu.memref_slice %arg4[%239, %c0_i32_165] : memref<1024x256xf32, #tpu.memory_space<any>> -> memref<1x256xf32, #tpu.memory_space<any>>
    %c29_i32 = arith.constant 29 : i32
    %c0_i32_166 = arith.constant 0 : i32
    %241 = tpu.memref_slice %arg13[%c29_i32, %c0_i32_166] : memref<128x256xf32, #tpu.memory_space<vmem>> -> memref<1x256xf32, #tpu.memory_space<vmem>>
    %242 = tpu.memref_slice %arg14[%c0_i32_164] : memref<1x!tpu.dma_semaphore, #tpu.memory_space<semaphore_mem>> -> memref<1x!tpu.dma_semaphore, #tpu.memory_space<semaphore_mem>>
    %243 = tpu.memref_squeeze %242 : memref<1x!tpu.dma_semaphore, #tpu.memory_space<semaphore_mem>> -> memref<!tpu.dma_semaphore, #tpu.memory_space<semaphore_mem>>
    tpu.enqueue_dma source(%240 : memref<1x256xf32, #tpu.memory_space<any>>) target(%241 : memref<1x256xf32, #tpu.memory_space<vmem>>) target_semaphore(%243 : memref<!tpu.dma_semaphore, #tpu.memory_space<semaphore_mem>>)
    %244 = arith.index_cast %131 : i32 to index
    %c14_167 = arith.constant 14 : index
    %245 = memref.load %arg1[%244, %c14_167] : memref<8x16xi32, #tpu.memory_space<smem>>
    %c0_i32_168 = arith.constant 0 : i32
    %246 = arith.maxsi %245, %c0_i32_168 : i32
    %c1023_i32_169 = arith.constant 1023 : i32
    %247 = arith.minsi %246, %c1023_i32_169 : i32
    %c0_i32_170 = arith.constant 0 : i32
    %c0_i32_171 = arith.constant 0 : i32
    %248 = tpu.memref_slice %arg4[%247, %c0_i32_171] : memref<1024x256xf32, #tpu.memory_space<any>> -> memref<1x256xf32, #tpu.memory_space<any>>
    %c30_i32 = arith.constant 30 : i32
    %c0_i32_172 = arith.constant 0 : i32
    %249 = tpu.memref_slice %arg13[%c30_i32, %c0_i32_172] : memref<128x256xf32, #tpu.memory_space<vmem>> -> memref<1x256xf32, #tpu.memory_space<vmem>>
    %250 = tpu.memref_slice %arg14[%c0_i32_170] : memref<1x!tpu.dma_semaphore, #tpu.memory_space<semaphore_mem>> -> memref<1x!tpu.dma_semaphore, #tpu.memory_space<semaphore_mem>>
    %251 = tpu.memref_squeeze %250 : memref<1x!tpu.dma_semaphore, #tpu.memory_space<semaphore_mem>> -> memref<!tpu.dma_semaphore, #tpu.memory_space<semaphore_mem>>
    tpu.enqueue_dma source(%248 : memref<1x256xf32, #tpu.memory_space<any>>) target(%249 : memref<1x256xf32, #tpu.memory_space<vmem>>) target_semaphore(%251 : memref<!tpu.dma_semaphore, #tpu.memory_space<semaphore_mem>>)
    %252 = arith.index_cast %131 : i32 to index
    %c15_173 = arith.constant 15 : index
    %253 = memref.load %arg1[%252, %c15_173] : memref<8x16xi32, #tpu.memory_space<smem>>
    %c0_i32_174 = arith.constant 0 : i32
    %254 = arith.maxsi %253, %c0_i32_174 : i32
    %c1023_i32_175 = arith.constant 1023 : i32
    %255 = arith.minsi %254, %c1023_i32_175 : i32
    %c0_i32_176 = arith.constant 0 : i32
    %c0_i32_177 = arith.constant 0 : i32
    %256 = tpu.memref_slice %arg4[%255, %c0_i32_177] : memref<1024x256xf32, #tpu.memory_space<any>> -> memref<1x256xf32, #tpu.memory_space<any>>
    %c31_i32 = arith.constant 31 : i32
    %c0_i32_178 = arith.constant 0 : i32
    %257 = tpu.memref_slice %arg13[%c31_i32, %c0_i32_178] : memref<128x256xf32, #tpu.memory_space<vmem>> -> memref<1x256xf32, #tpu.memory_space<vmem>>
    %258 = tpu.memref_slice %arg14[%c0_i32_176] : memref<1x!tpu.dma_semaphore, #tpu.memory_space<semaphore_mem>> -> memref<1x!tpu.dma_semaphore, #tpu.memory_space<semaphore_mem>>
    %259 = tpu.memref_squeeze %258 : memref<1x!tpu.dma_semaphore, #tpu.memory_space<semaphore_mem>> -> memref<!tpu.dma_semaphore, #tpu.memory_space<semaphore_mem>>
    tpu.enqueue_dma source(%256 : memref<1x256xf32, #tpu.memory_space<any>>) target(%257 : memref<1x256xf32, #tpu.memory_space<vmem>>) target_semaphore(%259 : memref<!tpu.dma_semaphore, #tpu.memory_space<semaphore_mem>>)
    %c8_i32_179 = arith.constant 8 : i32
    %260 = arith.muli %arg0, %c8_i32_179 : i32
    %c2_i32_180 = arith.constant 2 : i32
    %261 = arith.addi %260, %c2_i32_180 : i32
    %262 = arith.index_cast %261 : i32 to index
    %c0_181 = arith.constant 0 : index
    %263 = memref.load %arg1[%262, %c0_181] : memref<8x16xi32, #tpu.memory_space<smem>>
    %c0_i32_182 = arith.constant 0 : i32
    %264 = arith.maxsi %263, %c0_i32_182 : i32
    %c1023_i32_183 = arith.constant 1023 : i32
    %265 = arith.minsi %264, %c1023_i32_183 : i32
    %c0_i32_184 = arith.constant 0 : i32
    %c0_i32_185 = arith.constant 0 : i32
    %266 = tpu.memref_slice %arg4[%265, %c0_i32_185] : memref<1024x256xf32, #tpu.memory_space<any>> -> memref<1x256xf32, #tpu.memory_space<any>>
    %c32_i32 = arith.constant 32 : i32
    %c0_i32_186 = arith.constant 0 : i32
    %267 = tpu.memref_slice %arg13[%c32_i32, %c0_i32_186] : memref<128x256xf32, #tpu.memory_space<vmem>> -> memref<1x256xf32, #tpu.memory_space<vmem>>
    %268 = tpu.memref_slice %arg14[%c0_i32_184] : memref<1x!tpu.dma_semaphore, #tpu.memory_space<semaphore_mem>> -> memref<1x!tpu.dma_semaphore, #tpu.memory_space<semaphore_mem>>
    %269 = tpu.memref_squeeze %268 : memref<1x!tpu.dma_semaphore, #tpu.memory_space<semaphore_mem>> -> memref<!tpu.dma_semaphore, #tpu.memory_space<semaphore_mem>>
    tpu.enqueue_dma source(%266 : memref<1x256xf32, #tpu.memory_space<any>>) target(%267 : memref<1x256xf32, #tpu.memory_space<vmem>>) target_semaphore(%269 : memref<!tpu.dma_semaphore, #tpu.memory_space<semaphore_mem>>)
    %270 = arith.index_cast %261 : i32 to index
    %c1_187 = arith.constant 1 : index
    %271 = memref.load %arg1[%270, %c1_187] : memref<8x16xi32, #tpu.memory_space<smem>>
    %c0_i32_188 = arith.constant 0 : i32
    %272 = arith.maxsi %271, %c0_i32_188 : i32
    %c1023_i32_189 = arith.constant 1023 : i32
    %273 = arith.minsi %272, %c1023_i32_189 : i32
    %c0_i32_190 = arith.constant 0 : i32
    %c0_i32_191 = arith.constant 0 : i32
    %274 = tpu.memref_slice %arg4[%273, %c0_i32_191] : memref<1024x256xf32, #tpu.memory_space<any>> -> memref<1x256xf32, #tpu.memory_space<any>>
    %c33_i32 = arith.constant 33 : i32
    %c0_i32_192 = arith.constant 0 : i32
    %275 = tpu.memref_slice %arg13[%c33_i32, %c0_i32_192] : memref<128x256xf32, #tpu.memory_space<vmem>> -> memref<1x256xf32, #tpu.memory_space<vmem>>
    %276 = tpu.memref_slice %arg14[%c0_i32_190] : memref<1x!tpu.dma_semaphore, #tpu.memory_space<semaphore_mem>> -> memref<1x!tpu.dma_semaphore, #tpu.memory_space<semaphore_mem>>
    %277 = tpu.memref_squeeze %276 : memref<1x!tpu.dma_semaphore, #tpu.memory_space<semaphore_mem>> -> memref<!tpu.dma_semaphore, #tpu.memory_space<semaphore_mem>>
    tpu.enqueue_dma source(%274 : memref<1x256xf32, #tpu.memory_space<any>>) target(%275 : memref<1x256xf32, #tpu.memory_space<vmem>>) target_semaphore(%277 : memref<!tpu.dma_semaphore, #tpu.memory_space<semaphore_mem>>)
    %278 = arith.index_cast %261 : i32 to index
    %c2_193 = arith.constant 2 : index
    %279 = memref.load %arg1[%278, %c2_193] : memref<8x16xi32, #tpu.memory_space<smem>>
    %c0_i32_194 = arith.constant 0 : i32
    %280 = arith.maxsi %279, %c0_i32_194 : i32
    %c1023_i32_195 = arith.constant 1023 : i32
    %281 = arith.minsi %280, %c1023_i32_195 : i32
    %c0_i32_196 = arith.constant 0 : i32
    %c0_i32_197 = arith.constant 0 : i32
    %282 = tpu.memref_slice %arg4[%281, %c0_i32_197] : memref<1024x256xf32, #tpu.memory_space<any>> -> memref<1x256xf32, #tpu.memory_space<any>>
    %c34_i32 = arith.constant 34 : i32
    %c0_i32_198 = arith.constant 0 : i32
    %283 = tpu.memref_slice %arg13[%c34_i32, %c0_i32_198] : memref<128x256xf32, #tpu.memory_space<vmem>> -> memref<1x256xf32, #tpu.memory_space<vmem>>
    %284 = tpu.memref_slice %arg14[%c0_i32_196] : memref<1x!tpu.dma_semaphore, #tpu.memory_space<semaphore_mem>> -> memref<1x!tpu.dma_semaphore, #tpu.memory_space<semaphore_mem>>
    %285 = tpu.memref_squeeze %284 : memref<1x!tpu.dma_semaphore, #tpu.memory_space<semaphore_mem>> -> memref<!tpu.dma_semaphore, #tpu.memory_space<semaphore_mem>>
    tpu.enqueue_dma source(%282 : memref<1x256xf32, #tpu.memory_space<any>>) target(%283 : memref<1x256xf32, #tpu.memory_space<vmem>>) target_semaphore(%285 : memref<!tpu.dma_semaphore, #tpu.memory_space<semaphore_mem>>)
    %286 = arith.index_cast %261 : i32 to index
    %c3_199 = arith.constant 3 : index
    %287 = memref.load %arg1[%286, %c3_199] : memref<8x16xi32, #tpu.memory_space<smem>>
    %c0_i32_200 = arith.constant 0 : i32
    %288 = arith.maxsi %287, %c0_i32_200 : i32
    %c1023_i32_201 = arith.constant 1023 : i32
    %289 = arith.minsi %288, %c1023_i32_201 : i32
    %c0_i32_202 = arith.constant 0 : i32
    %c0_i32_203 = arith.constant 0 : i32
    %290 = tpu.memref_slice %arg4[%289, %c0_i32_203] : memref<1024x256xf32, #tpu.memory_space<any>> -> memref<1x256xf32, #tpu.memory_space<any>>
    %c35_i32 = arith.constant 35 : i32
    %c0_i32_204 = arith.constant 0 : i32
    %291 = tpu.memref_slice %arg13[%c35_i32, %c0_i32_204] : memref<128x256xf32, #tpu.memory_space<vmem>> -> memref<1x256xf32, #tpu.memory_space<vmem>>
    %292 = tpu.memref_slice %arg14[%c0_i32_202] : memref<1x!tpu.dma_semaphore, #tpu.memory_space<semaphore_mem>> -> memref<1x!tpu.dma_semaphore, #tpu.memory_space<semaphore_mem>>
    %293 = tpu.memref_squeeze %292 : memref<1x!tpu.dma_semaphore, #tpu.memory_space<semaphore_mem>> -> memref<!tpu.dma_semaphore, #tpu.memory_space<semaphore_mem>>
    tpu.enqueue_dma source(%290 : memref<1x256xf32, #tpu.memory_space<any>>) target(%291 : memref<1x256xf32, #tpu.memory_space<vmem>>) target_semaphore(%293 : memref<!tpu.dma_semaphore, #tpu.memory_space<semaphore_mem>>)
    %294 = arith.index_cast %261 : i32 to index
    %c4_205 = arith.constant 4 : index
    %295 = memref.load %arg1[%294, %c4_205] : memref<8x16xi32, #tpu.memory_space<smem>>
    %c0_i32_206 = arith.constant 0 : i32
    %296 = arith.maxsi %295, %c0_i32_206 : i32
    %c1023_i32_207 = arith.constant 1023 : i32
    %297 = arith.minsi %296, %c1023_i32_207 : i32
    %c0_i32_208 = arith.constant 0 : i32
    %c0_i32_209 = arith.constant 0 : i32
    %298 = tpu.memref_slice %arg4[%297, %c0_i32_209] : memref<1024x256xf32, #tpu.memory_space<any>> -> memref<1x256xf32, #tpu.memory_space<any>>
    %c36_i32 = arith.constant 36 : i32
    %c0_i32_210 = arith.constant 0 : i32
    %299 = tpu.memref_slice %arg13[%c36_i32, %c0_i32_210] : memref<128x256xf32, #tpu.memory_space<vmem>> -> memref<1x256xf32, #tpu.memory_space<vmem>>
    %300 = tpu.memref_slice %arg14[%c0_i32_208] : memref<1x!tpu.dma_semaphore, #tpu.memory_space<semaphore_mem>> -> memref<1x!tpu.dma_semaphore, #tpu.memory_space<semaphore_mem>>
    %301 = tpu.memref_squeeze %300 : memref<1x!tpu.dma_semaphore, #tpu.memory_space<semaphore_mem>> -> memref<!tpu.dma_semaphore, #tpu.memory_space<semaphore_mem>>
    tpu.enqueue_dma source(%298 : memref<1x256xf32, #tpu.memory_space<any>>) target(%299 : memref<1x256xf32, #tpu.memory_space<vmem>>) target_semaphore(%301 : memref<!tpu.dma_semaphore, #tpu.memory_space<semaphore_mem>>)
    %302 = arith.index_cast %261 : i32 to index
    %c5_211 = arith.constant 5 : index
    %303 = memref.load %arg1[%302, %c5_211] : memref<8x16xi32, #tpu.memory_space<smem>>
    %c0_i32_212 = arith.constant 0 : i32
    %304 = arith.maxsi %303, %c0_i32_212 : i32
    %c1023_i32_213 = arith.constant 1023 : i32
    %305 = arith.minsi %304, %c1023_i32_213 : i32
    %c0_i32_214 = arith.constant 0 : i32
    %c0_i32_215 = arith.constant 0 : i32
    %306 = tpu.memref_slice %arg4[%305, %c0_i32_215] : memref<1024x256xf32, #tpu.memory_space<any>> -> memref<1x256xf32, #tpu.memory_space<any>>
    %c37_i32 = arith.constant 37 : i32
    %c0_i32_216 = arith.constant 0 : i32
    %307 = tpu.memref_slice %arg13[%c37_i32, %c0_i32_216] : memref<128x256xf32, #tpu.memory_space<vmem>> -> memref<1x256xf32, #tpu.memory_space<vmem>>
    %308 = tpu.memref_slice %arg14[%c0_i32_214] : memref<1x!tpu.dma_semaphore, #tpu.memory_space<semaphore_mem>> -> memref<1x!tpu.dma_semaphore, #tpu.memory_space<semaphore_mem>>
    %309 = tpu.memref_squeeze %308 : memref<1x!tpu.dma_semaphore, #tpu.memory_space<semaphore_mem>> -> memref<!tpu.dma_semaphore, #tpu.memory_space<semaphore_mem>>
    tpu.enqueue_dma source(%306 : memref<1x256xf32, #tpu.memory_space<any>>) target(%307 : memref<1x256xf32, #tpu.memory_space<vmem>>) target_semaphore(%309 : memref<!tpu.dma_semaphore, #tpu.memory_space<semaphore_mem>>)
    %310 = arith.index_cast %261 : i32 to index
    %c6_217 = arith.constant 6 : index
    %311 = memref.load %arg1[%310, %c6_217] : memref<8x16xi32, #tpu.memory_space<smem>>
    %c0_i32_218 = arith.constant 0 : i32
    %312 = arith.maxsi %311, %c0_i32_218 : i32
    %c1023_i32_219 = arith.constant 1023 : i32
    %313 = arith.minsi %312, %c1023_i32_219 : i32
    %c0_i32_220 = arith.constant 0 : i32
    %c0_i32_221 = arith.constant 0 : i32
    %314 = tpu.memref_slice %arg4[%313, %c0_i32_221] : memref<1024x256xf32, #tpu.memory_space<any>> -> memref<1x256xf32, #tpu.memory_space<any>>
    %c38_i32 = arith.constant 38 : i32
    %c0_i32_222 = arith.constant 0 : i32
    %315 = tpu.memref_slice %arg13[%c38_i32, %c0_i32_222] : memref<128x256xf32, #tpu.memory_space<vmem>> -> memref<1x256xf32, #tpu.memory_space<vmem>>
    %316 = tpu.memref_slice %arg14[%c0_i32_220] : memref<1x!tpu.dma_semaphore, #tpu.memory_space<semaphore_mem>> -> memref<1x!tpu.dma_semaphore, #tpu.memory_space<semaphore_mem>>
    %317 = tpu.memref_squeeze %316 : memref<1x!tpu.dma_semaphore, #tpu.memory_space<semaphore_mem>> -> memref<!tpu.dma_semaphore, #tpu.memory_space<semaphore_mem>>
    tpu.enqueue_dma source(%314 : memref<1x256xf32, #tpu.memory_space<any>>) target(%315 : memref<1x256xf32, #tpu.memory_space<vmem>>) target_semaphore(%317 : memref<!tpu.dma_semaphore, #tpu.memory_space<semaphore_mem>>)
    %318 = arith.index_cast %261 : i32 to index
    %c7_223 = arith.constant 7 : index
    %319 = memref.load %arg1[%318, %c7_223] : memref<8x16xi32, #tpu.memory_space<smem>>
    %c0_i32_224 = arith.constant 0 : i32
    %320 = arith.maxsi %319, %c0_i32_224 : i32
    %c1023_i32_225 = arith.constant 1023 : i32
    %321 = arith.minsi %320, %c1023_i32_225 : i32
    %c0_i32_226 = arith.constant 0 : i32
    %c0_i32_227 = arith.constant 0 : i32
    %322 = tpu.memref_slice %arg4[%321, %c0_i32_227] : memref<1024x256xf32, #tpu.memory_space<any>> -> memref<1x256xf32, #tpu.memory_space<any>>
    %c39_i32 = arith.constant 39 : i32
    %c0_i32_228 = arith.constant 0 : i32
    %323 = tpu.memref_slice %arg13[%c39_i32, %c0_i32_228] : memref<128x256xf32, #tpu.memory_space<vmem>> -> memref<1x256xf32, #tpu.memory_space<vmem>>
    %324 = tpu.memref_slice %arg14[%c0_i32_226] : memref<1x!tpu.dma_semaphore, #tpu.memory_space<semaphore_mem>> -> memref<1x!tpu.dma_semaphore, #tpu.memory_space<semaphore_mem>>
    %325 = tpu.memref_squeeze %324 : memref<1x!tpu.dma_semaphore, #tpu.memory_space<semaphore_mem>> -> memref<!tpu.dma_semaphore, #tpu.memory_space<semaphore_mem>>
    tpu.enqueue_dma source(%322 : memref<1x256xf32, #tpu.memory_space<any>>) target(%323 : memref<1x256xf32, #tpu.memory_space<vmem>>) target_semaphore(%325 : memref<!tpu.dma_semaphore, #tpu.memory_space<semaphore_mem>>)
    %326 = arith.index_cast %261 : i32 to index
    %c8_229 = arith.constant 8 : index
    %327 = memref.load %arg1[%326, %c8_229] : memref<8x16xi32, #tpu.memory_space<smem>>
    %c0_i32_230 = arith.constant 0 : i32
    %328 = arith.maxsi %327, %c0_i32_230 : i32
    %c1023_i32_231 = arith.constant 1023 : i32
    %329 = arith.minsi %328, %c1023_i32_231 : i32
    %c0_i32_232 = arith.constant 0 : i32
    %c0_i32_233 = arith.constant 0 : i32
    %330 = tpu.memref_slice %arg4[%329, %c0_i32_233] : memref<1024x256xf32, #tpu.memory_space<any>> -> memref<1x256xf32, #tpu.memory_space<any>>
    %c40_i32 = arith.constant 40 : i32
    %c0_i32_234 = arith.constant 0 : i32
    %331 = tpu.memref_slice %arg13[%c40_i32, %c0_i32_234] : memref<128x256xf32, #tpu.memory_space<vmem>> -> memref<1x256xf32, #tpu.memory_space<vmem>>
    %332 = tpu.memref_slice %arg14[%c0_i32_232] : memref<1x!tpu.dma_semaphore, #tpu.memory_space<semaphore_mem>> -> memref<1x!tpu.dma_semaphore, #tpu.memory_space<semaphore_mem>>
    %333 = tpu.memref_squeeze %332 : memref<1x!tpu.dma_semaphore, #tpu.memory_space<semaphore_mem>> -> memref<!tpu.dma_semaphore, #tpu.memory_space<semaphore_mem>>
    tpu.enqueue_dma source(%330 : memref<1x256xf32, #tpu.memory_space<any>>) target(%331 : memref<1x256xf32, #tpu.memory_space<vmem>>) target_semaphore(%333 : memref<!tpu.dma_semaphore, #tpu.memory_space<semaphore_mem>>)
    %334 = arith.index_cast %261 : i32 to index
    %c9_235 = arith.constant 9 : index
    %335 = memref.load %arg1[%334, %c9_235] : memref<8x16xi32, #tpu.memory_space<smem>>
    %c0_i32_236 = arith.constant 0 : i32
    %336 = arith.maxsi %335, %c0_i32_236 : i32
    %c1023_i32_237 = arith.constant 1023 : i32
    %337 = arith.minsi %336, %c1023_i32_237 : i32
    %c0_i32_238 = arith.constant 0 : i32
    %c0_i32_239 = arith.constant 0 : i32
    %338 = tpu.memref_slice %arg4[%337, %c0_i32_239] : memref<1024x256xf32, #tpu.memory_space<any>> -> memref<1x256xf32, #tpu.memory_space<any>>
    %c41_i32 = arith.constant 41 : i32
    %c0_i32_240 = arith.constant 0 : i32
    %339 = tpu.memref_slice %arg13[%c41_i32, %c0_i32_240] : memref<128x256xf32, #tpu.memory_space<vmem>> -> memref<1x256xf32, #tpu.memory_space<vmem>>
    %340 = tpu.memref_slice %arg14[%c0_i32_238] : memref<1x!tpu.dma_semaphore, #tpu.memory_space<semaphore_mem>> -> memref<1x!tpu.dma_semaphore, #tpu.memory_space<semaphore_mem>>
    %341 = tpu.memref_squeeze %340 : memref<1x!tpu.dma_semaphore, #tpu.memory_space<semaphore_mem>> -> memref<!tpu.dma_semaphore, #tpu.memory_space<semaphore_mem>>
    tpu.enqueue_dma source(%338 : memref<1x256xf32, #tpu.memory_space<any>>) target(%339 : memref<1x256xf32, #tpu.memory_space<vmem>>) target_semaphore(%341 : memref<!tpu.dma_semaphore, #tpu.memory_space<semaphore_mem>>)
    %342 = arith.index_cast %261 : i32 to index
    %c10_241 = arith.constant 10 : index
    %343 = memref.load %arg1[%342, %c10_241] : memref<8x16xi32, #tpu.memory_space<smem>>
    %c0_i32_242 = arith.constant 0 : i32
    %344 = arith.maxsi %343, %c0_i32_242 : i32
    %c1023_i32_243 = arith.constant 1023 : i32
    %345 = arith.minsi %344, %c1023_i32_243 : i32
    %c0_i32_244 = arith.constant 0 : i32
    %c0_i32_245 = arith.constant 0 : i32
    %346 = tpu.memref_slice %arg4[%345, %c0_i32_245] : memref<1024x256xf32, #tpu.memory_space<any>> -> memref<1x256xf32, #tpu.memory_space<any>>
    %c42_i32 = arith.constant 42 : i32
    %c0_i32_246 = arith.constant 0 : i32
    %347 = tpu.memref_slice %arg13[%c42_i32, %c0_i32_246] : memref<128x256xf32, #tpu.memory_space<vmem>> -> memref<1x256xf32, #tpu.memory_space<vmem>>
    %348 = tpu.memref_slice %arg14[%c0_i32_244] : memref<1x!tpu.dma_semaphore, #tpu.memory_space<semaphore_mem>> -> memref<1x!tpu.dma_semaphore, #tpu.memory_space<semaphore_mem>>
    %349 = tpu.memref_squeeze %348 : memref<1x!tpu.dma_semaphore, #tpu.memory_space<semaphore_mem>> -> memref<!tpu.dma_semaphore, #tpu.memory_space<semaphore_mem>>
    tpu.enqueue_dma source(%346 : memref<1x256xf32, #tpu.memory_space<any>>) target(%347 : memref<1x256xf32, #tpu.memory_space<vmem>>) target_semaphore(%349 : memref<!tpu.dma_semaphore, #tpu.memory_space<semaphore_mem>>)
    %350 = arith.index_cast %261 : i32 to index
    %c11_247 = arith.constant 11 : index
    %351 = memref.load %arg1[%350, %c11_247] : memref<8x16xi32, #tpu.memory_space<smem>>
    %c0_i32_248 = arith.constant 0 : i32
    %352 = arith.maxsi %351, %c0_i32_248 : i32
    %c1023_i32_249 = arith.constant 1023 : i32
    %353 = arith.minsi %352, %c1023_i32_249 : i32
    %c0_i32_250 = arith.constant 0 : i32
    %c0_i32_251 = arith.constant 0 : i32
    %354 = tpu.memref_slice %arg4[%353, %c0_i32_251] : memref<1024x256xf32, #tpu.memory_space<any>> -> memref<1x256xf32, #tpu.memory_space<any>>
    %c43_i32 = arith.constant 43 : i32
    %c0_i32_252 = arith.constant 0 : i32
    %355 = tpu.memref_slice %arg13[%c43_i32, %c0_i32_252] : memref<128x256xf32, #tpu.memory_space<vmem>> -> memref<1x256xf32, #tpu.memory_space<vmem>>
    %356 = tpu.memref_slice %arg14[%c0_i32_250] : memref<1x!tpu.dma_semaphore, #tpu.memory_space<semaphore_mem>> -> memref<1x!tpu.dma_semaphore, #tpu.memory_space<semaphore_mem>>
    %357 = tpu.memref_squeeze %356 : memref<1x!tpu.dma_semaphore, #tpu.memory_space<semaphore_mem>> -> memref<!tpu.dma_semaphore, #tpu.memory_space<semaphore_mem>>
    tpu.enqueue_dma source(%354 : memref<1x256xf32, #tpu.memory_space<any>>) target(%355 : memref<1x256xf32, #tpu.memory_space<vmem>>) target_semaphore(%357 : memref<!tpu.dma_semaphore, #tpu.memory_space<semaphore_mem>>)
    %358 = arith.index_cast %261 : i32 to index
    %c12_253 = arith.constant 12 : index
    %359 = memref.load %arg1[%358, %c12_253] : memref<8x16xi32, #tpu.memory_space<smem>>
    %c0_i32_254 = arith.constant 0 : i32
    %360 = arith.maxsi %359, %c0_i32_254 : i32
    %c1023_i32_255 = arith.constant 1023 : i32
    %361 = arith.minsi %360, %c1023_i32_255 : i32
    %c0_i32_256 = arith.constant 0 : i32
    %c0_i32_257 = arith.constant 0 : i32
    %362 = tpu.memref_slice %arg4[%361, %c0_i32_257] : memref<1024x256xf32, #tpu.memory_space<any>> -> memref<1x256xf32, #tpu.memory_space<any>>
    %c44_i32 = arith.constant 44 : i32
    %c0_i32_258 = arith.constant 0 : i32
    %363 = tpu.memref_slice %arg13[%c44_i32, %c0_i32_258] : memref<128x256xf32, #tpu.memory_space<vmem>> -> memref<1x256xf32, #tpu.memory_space<vmem>>
    %364 = tpu.memref_slice %arg14[%c0_i32_256] : memref<1x!tpu.dma_semaphore, #tpu.memory_space<semaphore_mem>> -> memref<1x!tpu.dma_semaphore, #tpu.memory_space<semaphore_mem>>
    %365 = tpu.memref_squeeze %364 : memref<1x!tpu.dma_semaphore, #tpu.memory_space<semaphore_mem>> -> memref<!tpu.dma_semaphore, #tpu.memory_space<semaphore_mem>>
    tpu.enqueue_dma source(%362 : memref<1x256xf32, #tpu.memory_space<any>>) target(%363 : memref<1x256xf32, #tpu.memory_space<vmem>>) target_semaphore(%365 : memref<!tpu.dma_semaphore, #tpu.memory_space<semaphore_mem>>)
    %366 = arith.index_cast %261 : i32 to index
    %c13_259 = arith.constant 13 : index
    %367 = memref.load %arg1[%366, %c13_259] : memref<8x16xi32, #tpu.memory_space<smem>>
    %c0_i32_260 = arith.constant 0 : i32
    %368 = arith.maxsi %367, %c0_i32_260 : i32
    %c1023_i32_261 = arith.constant 1023 : i32
    %369 = arith.minsi %368, %c1023_i32_261 : i32
    %c0_i32_262 = arith.constant 0 : i32
    %c0_i32_263 = arith.constant 0 : i32
    %370 = tpu.memref_slice %arg4[%369, %c0_i32_263] : memref<1024x256xf32, #tpu.memory_space<any>> -> memref<1x256xf32, #tpu.memory_space<any>>
    %c45_i32 = arith.constant 45 : i32
    %c0_i32_264 = arith.constant 0 : i32
    %371 = tpu.memref_slice %arg13[%c45_i32, %c0_i32_264] : memref<128x256xf32, #tpu.memory_space<vmem>> -> memref<1x256xf32, #tpu.memory_space<vmem>>
    %372 = tpu.memref_slice %arg14[%c0_i32_262] : memref<1x!tpu.dma_semaphore, #tpu.memory_space<semaphore_mem>> -> memref<1x!tpu.dma_semaphore, #tpu.memory_space<semaphore_mem>>
    %373 = tpu.memref_squeeze %372 : memref<1x!tpu.dma_semaphore, #tpu.memory_space<semaphore_mem>> -> memref<!tpu.dma_semaphore, #tpu.memory_space<semaphore_mem>>
    tpu.enqueue_dma source(%370 : memref<1x256xf32, #tpu.memory_space<any>>) target(%371 : memref<1x256xf32, #tpu.memory_space<vmem>>) target_semaphore(%373 : memref<!tpu.dma_semaphore, #tpu.memory_space<semaphore_mem>>)
    %374 = arith.index_cast %261 : i32 to index
    %c14_265 = arith.constant 14 : index
    %375 = memref.load %arg1[%374, %c14_265] : memref<8x16xi32, #tpu.memory_space<smem>>
    %c0_i32_266 = arith.constant 0 : i32
    %376 = arith.maxsi %375, %c0_i32_266 : i32
    %c1023_i32_267 = arith.constant 1023 : i32
    %377 = arith.minsi %376, %c1023_i32_267 : i32
    %c0_i32_268 = arith.constant 0 : i32
    %c0_i32_269 = arith.constant 0 : i32
    %378 = tpu.memref_slice %arg4[%377, %c0_i32_269] : memref<1024x256xf32, #tpu.memory_space<any>> -> memref<1x256xf32, #tpu.memory_space<any>>
    %c46_i32 = arith.constant 46 : i32
    %c0_i32_270 = arith.constant 0 : i32
    %379 = tpu.memref_slice %arg13[%c46_i32, %c0_i32_270] : memref<128x256xf32, #tpu.memory_space<vmem>> -> memref<1x256xf32, #tpu.memory_space<vmem>>
    %380 = tpu.memref_slice %arg14[%c0_i32_268] : memref<1x!tpu.dma_semaphore, #tpu.memory_space<semaphore_mem>> -> memref<1x!tpu.dma_semaphore, #tpu.memory_space<semaphore_mem>>
    %381 = tpu.memref_squeeze %380 : memref<1x!tpu.dma_semaphore, #tpu.memory_space<semaphore_mem>> -> memref<!tpu.dma_semaphore, #tpu.memory_space<semaphore_mem>>
    tpu.enqueue_dma source(%378 : memref<1x256xf32, #tpu.memory_space<any>>) target(%379 : memref<1x256xf32, #tpu.memory_space<vmem>>) target_semaphore(%381 : memref<!tpu.dma_semaphore, #tpu.memory_space<semaphore_mem>>)
    %382 = arith.index_cast %261 : i32 to index
    %c15_271 = arith.constant 15 : index
    %383 = memref.load %arg1[%382, %c15_271] : memref<8x16xi32, #tpu.memory_space<smem>>
    %c0_i32_272 = arith.constant 0 : i32
    %384 = arith.maxsi %383, %c0_i32_272 : i32
    %c1023_i32_273 = arith.constant 1023 : i32
    %385 = arith.minsi %384, %c1023_i32_273 : i32
    %c0_i32_274 = arith.constant 0 : i32
    %c0_i32_275 = arith.constant 0 : i32
    %386 = tpu.memref_slice %arg4[%385, %c0_i32_275] : memref<1024x256xf32, #tpu.memory_space<any>> -> memref<1x256xf32, #tpu.memory_space<any>>
    %c47_i32 = arith.constant 47 : i32
    %c0_i32_276 = arith.constant 0 : i32
    %387 = tpu.memref_slice %arg13[%c47_i32, %c0_i32_276] : memref<128x256xf32, #tpu.memory_space<vmem>> -> memref<1x256xf32, #tpu.memory_space<vmem>>
    %388 = tpu.memref_slice %arg14[%c0_i32_274] : memref<1x!tpu.dma_semaphore, #tpu.memory_space<semaphore_mem>> -> memref<1x!tpu.dma_semaphore, #tpu.memory_space<semaphore_mem>>
    %389 = tpu.memref_squeeze %388 : memref<1x!tpu.dma_semaphore, #tpu.memory_space<semaphore_mem>> -> memref<!tpu.dma_semaphore, #tpu.memory_space<semaphore_mem>>
    tpu.enqueue_dma source(%386 : memref<1x256xf32, #tpu.memory_space<any>>) target(%387 : memref<1x256xf32, #tpu.memory_space<vmem>>) target_semaphore(%389 : memref<!tpu.dma_semaphore, #tpu.memory_space<semaphore_mem>>)
    %c8_i32_277 = arith.constant 8 : i32
    %390 = arith.muli %arg0, %c8_i32_277 : i32
    %c3_i32_278 = arith.constant 3 : i32
    %391 = arith.addi %390, %c3_i32_278 : i32
    %392 = arith.index_cast %391 : i32 to index
    %c0_279 = arith.constant 0 : index
    %393 = memref.load %arg1[%392, %c0_279] : memref<8x16xi32, #tpu.memory_space<smem>>
    %c0_i32_280 = arith.constant 0 : i32
    %394 = arith.maxsi %393, %c0_i32_280 : i32
    %c1023_i32_281 = arith.constant 1023 : i32
    %395 = arith.minsi %394, %c1023_i32_281 : i32
    %c0_i32_282 = arith.constant 0 : i32
    %c0_i32_283 = arith.constant 0 : i32
    %396 = tpu.memref_slice %arg4[%395, %c0_i32_283] : memref<1024x256xf32, #tpu.memory_space<any>> -> memref<1x256xf32, #tpu.memory_space<any>>
    %c48_i32 = arith.constant 48 : i32
    %c0_i32_284 = arith.constant 0 : i32
    %397 = tpu.memref_slice %arg13[%c48_i32, %c0_i32_284] : memref<128x256xf32, #tpu.memory_space<vmem>> -> memref<1x256xf32, #tpu.memory_space<vmem>>
    %398 = tpu.memref_slice %arg14[%c0_i32_282] : memref<1x!tpu.dma_semaphore, #tpu.memory_space<semaphore_mem>> -> memref<1x!tpu.dma_semaphore, #tpu.memory_space<semaphore_mem>>
    %399 = tpu.memref_squeeze %398 : memref<1x!tpu.dma_semaphore, #tpu.memory_space<semaphore_mem>> -> memref<!tpu.dma_semaphore, #tpu.memory_space<semaphore_mem>>
    tpu.enqueue_dma source(%396 : memref<1x256xf32, #tpu.memory_space<any>>) target(%397 : memref<1x256xf32, #tpu.memory_space<vmem>>) target_semaphore(%399 : memref<!tpu.dma_semaphore, #tpu.memory_space<semaphore_mem>>)
    %400 = arith.index_cast %391 : i32 to index
    %c1_285 = arith.constant 1 : index
    %401 = memref.load %arg1[%400, %c1_285] : memref<8x16xi32, #tpu.memory_space<smem>>
    %c0_i32_286 = arith.constant 0 : i32
    %402 = arith.maxsi %401, %c0_i32_286 : i32
    %c1023_i32_287 = arith.constant 1023 : i32
    %403 = arith.minsi %402, %c1023_i32_287 : i32
    %c0_i32_288 = arith.constant 0 : i32
    %c0_i32_289 = arith.constant 0 : i32
    %404 = tpu.memref_slice %arg4[%403, %c0_i32_289] : memref<1024x256xf32, #tpu.memory_space<any>> -> memref<1x256xf32, #tpu.memory_space<any>>
    %c49_i32 = arith.constant 49 : i32
    %c0_i32_290 = arith.constant 0 : i32
    %405 = tpu.memref_slice %arg13[%c49_i32, %c0_i32_290] : memref<128x256xf32, #tpu.memory_space<vmem>> -> memref<1x256xf32, #tpu.memory_space<vmem>>
    %406 = tpu.memref_slice %arg14[%c0_i32_288] : memref<1x!tpu.dma_semaphore, #tpu.memory_space<semaphore_mem>> -> memref<1x!tpu.dma_semaphore, #tpu.memory_space<semaphore_mem>>
    %407 = tpu.memref_squeeze %406 : memref<1x!tpu.dma_semaphore, #tpu.memory_space<semaphore_mem>> -> memref<!tpu.dma_semaphore, #tpu.memory_space<semaphore_mem>>
    tpu.enqueue_dma source(%404 : memref<1x256xf32, #tpu.memory_space<any>>) target(%405 : memref<1x256xf32, #tpu.memory_space<vmem>>) target_semaphore(%407 : memref<!tpu.dma_semaphore, #tpu.memory_space<semaphore_mem>>)
    %408 = arith.index_cast %391 : i32 to index
    %c2_291 = arith.constant 2 : index
    %409 = memref.load %arg1[%408, %c2_291] : memref<8x16xi32, #tpu.memory_space<smem>>
    %c0_i32_292 = arith.constant 0 : i32
    %410 = arith.maxsi %409, %c0_i32_292 : i32
    %c1023_i32_293 = arith.constant 1023 : i32
    %411 = arith.minsi %410, %c1023_i32_293 : i32
    %c0_i32_294 = arith.constant 0 : i32
    %c0_i32_295 = arith.constant 0 : i32
    %412 = tpu.memref_slice %arg4[%411, %c0_i32_295] : memref<1024x256xf32, #tpu.memory_space<any>> -> memref<1x256xf32, #tpu.memory_space<any>>
    %c50_i32 = arith.constant 50 : i32
    %c0_i32_296 = arith.constant 0 : i32
    %413 = tpu.memref_slice %arg13[%c50_i32, %c0_i32_296] : memref<128x256xf32, #tpu.memory_space<vmem>> -> memref<1x256xf32, #tpu.memory_space<vmem>>
    %414 = tpu.memref_slice %arg14[%c0_i32_294] : memref<1x!tpu.dma_semaphore, #tpu.memory_space<semaphore_mem>> -> memref<1x!tpu.dma_semaphore, #tpu.memory_space<semaphore_mem>>
    %415 = tpu.memref_squeeze %414 : memref<1x!tpu.dma_semaphore, #tpu.memory_space<semaphore_mem>> -> memref<!tpu.dma_semaphore, #tpu.memory_space<semaphore_mem>>
    tpu.enqueue_dma source(%412 : memref<1x256xf32, #tpu.memory_space<any>>) target(%413 : memref<1x256xf32, #tpu.memory_space<vmem>>) target_semaphore(%415 : memref<!tpu.dma_semaphore, #tpu.memory_space<semaphore_mem>>)
    %416 = arith.index_cast %391 : i32 to index
    %c3_297 = arith.constant 3 : index
    %417 = memref.load %arg1[%416, %c3_297] : memref<8x16xi32, #tpu.memory_space<smem>>
    %c0_i32_298 = arith.constant 0 : i32
    %418 = arith.maxsi %417, %c0_i32_298 : i32
    %c1023_i32_299 = arith.constant 1023 : i32
    %419 = arith.minsi %418, %c1023_i32_299 : i32
    %c0_i32_300 = arith.constant 0 : i32
    %c0_i32_301 = arith.constant 0 : i32
    %420 = tpu.memref_slice %arg4[%419, %c0_i32_301] : memref<1024x256xf32, #tpu.memory_space<any>> -> memref<1x256xf32, #tpu.memory_space<any>>
    %c51_i32 = arith.constant 51 : i32
    %c0_i32_302 = arith.constant 0 : i32
    %421 = tpu.memref_slice %arg13[%c51_i32, %c0_i32_302] : memref<128x256xf32, #tpu.memory_space<vmem>> -> memref<1x256xf32, #tpu.memory_space<vmem>>
    %422 = tpu.memref_slice %arg14[%c0_i32_300] : memref<1x!tpu.dma_semaphore, #tpu.memory_space<semaphore_mem>> -> memref<1x!tpu.dma_semaphore, #tpu.memory_space<semaphore_mem>>
    %423 = tpu.memref_squeeze %422 : memref<1x!tpu.dma_semaphore, #tpu.memory_space<semaphore_mem>> -> memref<!tpu.dma_semaphore, #tpu.memory_space<semaphore_mem>>
    tpu.enqueue_dma source(%420 : memref<1x256xf32, #tpu.memory_space<any>>) target(%421 : memref<1x256xf32, #tpu.memory_space<vmem>>) target_semaphore(%423 : memref<!tpu.dma_semaphore, #tpu.memory_space<semaphore_mem>>)
    %424 = arith.index_cast %391 : i32 to index
    %c4_303 = arith.constant 4 : index
    %425 = memref.load %arg1[%424, %c4_303] : memref<8x16xi32, #tpu.memory_space<smem>>
    %c0_i32_304 = arith.constant 0 : i32
    %426 = arith.maxsi %425, %c0_i32_304 : i32
    %c1023_i32_305 = arith.constant 1023 : i32
    %427 = arith.minsi %426, %c1023_i32_305 : i32
    %c0_i32_306 = arith.constant 0 : i32
    %c0_i32_307 = arith.constant 0 : i32
    %428 = tpu.memref_slice %arg4[%427, %c0_i32_307] : memref<1024x256xf32, #tpu.memory_space<any>> -> memref<1x256xf32, #tpu.memory_space<any>>
    %c52_i32 = arith.constant 52 : i32
    %c0_i32_308 = arith.constant 0 : i32
    %429 = tpu.memref_slice %arg13[%c52_i32, %c0_i32_308] : memref<128x256xf32, #tpu.memory_space<vmem>> -> memref<1x256xf32, #tpu.memory_space<vmem>>
    %430 = tpu.memref_slice %arg14[%c0_i32_306] : memref<1x!tpu.dma_semaphore, #tpu.memory_space<semaphore_mem>> -> memref<1x!tpu.dma_semaphore, #tpu.memory_space<semaphore_mem>>
    %431 = tpu.memref_squeeze %430 : memref<1x!tpu.dma_semaphore, #tpu.memory_space<semaphore_mem>> -> memref<!tpu.dma_semaphore, #tpu.memory_space<semaphore_mem>>
    tpu.enqueue_dma source(%428 : memref<1x256xf32, #tpu.memory_space<any>>) target(%429 : memref<1x256xf32, #tpu.memory_space<vmem>>) target_semaphore(%431 : memref<!tpu.dma_semaphore, #tpu.memory_space<semaphore_mem>>)
    %432 = arith.index_cast %391 : i32 to index
    %c5_309 = arith.constant 5 : index
    %433 = memref.load %arg1[%432, %c5_309] : memref<8x16xi32, #tpu.memory_space<smem>>
    %c0_i32_310 = arith.constant 0 : i32
    %434 = arith.maxsi %433, %c0_i32_310 : i32
    %c1023_i32_311 = arith.constant 1023 : i32
    %435 = arith.minsi %434, %c1023_i32_311 : i32
    %c0_i32_312 = arith.constant 0 : i32
    %c0_i32_313 = arith.constant 0 : i32
    %436 = tpu.memref_slice %arg4[%435, %c0_i32_313] : memref<1024x256xf32, #tpu.memory_space<any>> -> memref<1x256xf32, #tpu.memory_space<any>>
    %c53_i32 = arith.constant 53 : i32
    %c0_i32_314 = arith.constant 0 : i32
    %437 = tpu.memref_slice %arg13[%c53_i32, %c0_i32_314] : memref<128x256xf32, #tpu.memory_space<vmem>> -> memref<1x256xf32, #tpu.memory_space<vmem>>
    %438 = tpu.memref_slice %arg14[%c0_i32_312] : memref<1x!tpu.dma_semaphore, #tpu.memory_space<semaphore_mem>> -> memref<1x!tpu.dma_semaphore, #tpu.memory_space<semaphore_mem>>
    %439 = tpu.memref_squeeze %438 : memref<1x!tpu.dma_semaphore, #tpu.memory_space<semaphore_mem>> -> memref<!tpu.dma_semaphore, #tpu.memory_space<semaphore_mem>>
    tpu.enqueue_dma source(%436 : memref<1x256xf32, #tpu.memory_space<any>>) target(%437 : memref<1x256xf32, #tpu.memory_space<vmem>>) target_semaphore(%439 : memref<!tpu.dma_semaphore, #tpu.memory_space<semaphore_mem>>)
    %440 = arith.index_cast %391 : i32 to index
    %c6_315 = arith.constant 6 : index
    %441 = memref.load %arg1[%440, %c6_315] : memref<8x16xi32, #tpu.memory_space<smem>>
    %c0_i32_316 = arith.constant 0 : i32
    %442 = arith.maxsi %441, %c0_i32_316 : i32
    %c1023_i32_317 = arith.constant 1023 : i32
    %443 = arith.minsi %442, %c1023_i32_317 : i32
    %c0_i32_318 = arith.constant 0 : i32
    %c0_i32_319 = arith.constant 0 : i32
    %444 = tpu.memref_slice %arg4[%443, %c0_i32_319] : memref<1024x256xf32, #tpu.memory_space<any>> -> memref<1x256xf32, #tpu.memory_space<any>>
    %c54_i32 = arith.constant 54 : i32
    %c0_i32_320 = arith.constant 0 : i32
    %445 = tpu.memref_slice %arg13[%c54_i32, %c0_i32_320] : memref<128x256xf32, #tpu.memory_space<vmem>> -> memref<1x256xf32, #tpu.memory_space<vmem>>
    %446 = tpu.memref_slice %arg14[%c0_i32_318] : memref<1x!tpu.dma_semaphore, #tpu.memory_space<semaphore_mem>> -> memref<1x!tpu.dma_semaphore, #tpu.memory_space<semaphore_mem>>
    %447 = tpu.memref_squeeze %446 : memref<1x!tpu.dma_semaphore, #tpu.memory_space<semaphore_mem>> -> memref<!tpu.dma_semaphore, #tpu.memory_space<semaphore_mem>>
    tpu.enqueue_dma source(%444 : memref<1x256xf32, #tpu.memory_space<any>>) target(%445 : memref<1x256xf32, #tpu.memory_space<vmem>>) target_semaphore(%447 : memref<!tpu.dma_semaphore, #tpu.memory_space<semaphore_mem>>)
    %448 = arith.index_cast %391 : i32 to index
    %c7_321 = arith.constant 7 : index
    %449 = memref.load %arg1[%448, %c7_321] : memref<8x16xi32, #tpu.memory_space<smem>>
    %c0_i32_322 = arith.constant 0 : i32
    %450 = arith.maxsi %449, %c0_i32_322 : i32
    %c1023_i32_323 = arith.constant 1023 : i32
    %451 = arith.minsi %450, %c1023_i32_323 : i32
    %c0_i32_324 = arith.constant 0 : i32
    %c0_i32_325 = arith.constant 0 : i32
    %452 = tpu.memref_slice %arg4[%451, %c0_i32_325] : memref<1024x256xf32, #tpu.memory_space<any>> -> memref<1x256xf32, #tpu.memory_space<any>>
    %c55_i32 = arith.constant 55 : i32
    %c0_i32_326 = arith.constant 0 : i32
    %453 = tpu.memref_slice %arg13[%c55_i32, %c0_i32_326] : memref<128x256xf32, #tpu.memory_space<vmem>> -> memref<1x256xf32, #tpu.memory_space<vmem>>
    %454 = tpu.memref_slice %arg14[%c0_i32_324] : memref<1x!tpu.dma_semaphore, #tpu.memory_space<semaphore_mem>> -> memref<1x!tpu.dma_semaphore, #tpu.memory_space<semaphore_mem>>
    %455 = tpu.memref_squeeze %454 : memref<1x!tpu.dma_semaphore, #tpu.memory_space<semaphore_mem>> -> memref<!tpu.dma_semaphore, #tpu.memory_space<semaphore_mem>>
    tpu.enqueue_dma source(%452 : memref<1x256xf32, #tpu.memory_space<any>>) target(%453 : memref<1x256xf32, #tpu.memory_space<vmem>>) target_semaphore(%455 : memref<!tpu.dma_semaphore, #tpu.memory_space<semaphore_mem>>)
    %456 = arith.index_cast %391 : i32 to index
    %c8_327 = arith.constant 8 : index
    %457 = memref.load %arg1[%456, %c8_327] : memref<8x16xi32, #tpu.memory_space<smem>>
    %c0_i32_328 = arith.constant 0 : i32
    %458 = arith.maxsi %457, %c0_i32_328 : i32
    %c1023_i32_329 = arith.constant 1023 : i32
    %459 = arith.minsi %458, %c1023_i32_329 : i32
    %c0_i32_330 = arith.constant 0 : i32
    %c0_i32_331 = arith.constant 0 : i32
    %460 = tpu.memref_slice %arg4[%459, %c0_i32_331] : memref<1024x256xf32, #tpu.memory_space<any>> -> memref<1x256xf32, #tpu.memory_space<any>>
    %c56_i32 = arith.constant 56 : i32
    %c0_i32_332 = arith.constant 0 : i32
    %461 = tpu.memref_slice %arg13[%c56_i32, %c0_i32_332] : memref<128x256xf32, #tpu.memory_space<vmem>> -> memref<1x256xf32, #tpu.memory_space<vmem>>
    %462 = tpu.memref_slice %arg14[%c0_i32_330] : memref<1x!tpu.dma_semaphore, #tpu.memory_space<semaphore_mem>> -> memref<1x!tpu.dma_semaphore, #tpu.memory_space<semaphore_mem>>
    %463 = tpu.memref_squeeze %462 : memref<1x!tpu.dma_semaphore, #tpu.memory_space<semaphore_mem>> -> memref<!tpu.dma_semaphore, #tpu.memory_space<semaphore_mem>>
    tpu.enqueue_dma source(%460 : memref<1x256xf32, #tpu.memory_space<any>>) target(%461 : memref<1x256xf32, #tpu.memory_space<vmem>>) target_semaphore(%463 : memref<!tpu.dma_semaphore, #tpu.memory_space<semaphore_mem>>)
    %464 = arith.index_cast %391 : i32 to index
    %c9_333 = arith.constant 9 : index
    %465 = memref.load %arg1[%464, %c9_333] : memref<8x16xi32, #tpu.memory_space<smem>>
    %c0_i32_334 = arith.constant 0 : i32
    %466 = arith.maxsi %465, %c0_i32_334 : i32
    %c1023_i32_335 = arith.constant 1023 : i32
    %467 = arith.minsi %466, %c1023_i32_335 : i32
    %c0_i32_336 = arith.constant 0 : i32
    %c0_i32_337 = arith.constant 0 : i32
    %468 = tpu.memref_slice %arg4[%467, %c0_i32_337] : memref<1024x256xf32, #tpu.memory_space<any>> -> memref<1x256xf32, #tpu.memory_space<any>>
    %c57_i32 = arith.constant 57 : i32
    %c0_i32_338 = arith.constant 0 : i32
    %469 = tpu.memref_slice %arg13[%c57_i32, %c0_i32_338] : memref<128x256xf32, #tpu.memory_space<vmem>> -> memref<1x256xf32, #tpu.memory_space<vmem>>
    %470 = tpu.memref_slice %arg14[%c0_i32_336] : memref<1x!tpu.dma_semaphore, #tpu.memory_space<semaphore_mem>> -> memref<1x!tpu.dma_semaphore, #tpu.memory_space<semaphore_mem>>
    %471 = tpu.memref_squeeze %470 : memref<1x!tpu.dma_semaphore, #tpu.memory_space<semaphore_mem>> -> memref<!tpu.dma_semaphore, #tpu.memory_space<semaphore_mem>>
    tpu.enqueue_dma source(%468 : memref<1x256xf32, #tpu.memory_space<any>>) target(%469 : memref<1x256xf32, #tpu.memory_space<vmem>>) target_semaphore(%471 : memref<!tpu.dma_semaphore, #tpu.memory_space<semaphore_mem>>)
    %472 = arith.index_cast %391 : i32 to index
    %c10_339 = arith.constant 10 : index
    %473 = memref.load %arg1[%472, %c10_339] : memref<8x16xi32, #tpu.memory_space<smem>>
    %c0_i32_340 = arith.constant 0 : i32
    %474 = arith.maxsi %473, %c0_i32_340 : i32
    %c1023_i32_341 = arith.constant 1023 : i32
    %475 = arith.minsi %474, %c1023_i32_341 : i32
    %c0_i32_342 = arith.constant 0 : i32
    %c0_i32_343 = arith.constant 0 : i32
    %476 = tpu.memref_slice %arg4[%475, %c0_i32_343] : memref<1024x256xf32, #tpu.memory_space<any>> -> memref<1x256xf32, #tpu.memory_space<any>>
    %c58_i32 = arith.constant 58 : i32
    %c0_i32_344 = arith.constant 0 : i32
    %477 = tpu.memref_slice %arg13[%c58_i32, %c0_i32_344] : memref<128x256xf32, #tpu.memory_space<vmem>> -> memref<1x256xf32, #tpu.memory_space<vmem>>
    %478 = tpu.memref_slice %arg14[%c0_i32_342] : memref<1x!tpu.dma_semaphore, #tpu.memory_space<semaphore_mem>> -> memref<1x!tpu.dma_semaphore, #tpu.memory_space<semaphore_mem>>
    %479 = tpu.memref_squeeze %478 : memref<1x!tpu.dma_semaphore, #tpu.memory_space<semaphore_mem>> -> memref<!tpu.dma_semaphore, #tpu.memory_space<semaphore_mem>>
    tpu.enqueue_dma source(%476 : memref<1x256xf32, #tpu.memory_space<any>>) target(%477 : memref<1x256xf32, #tpu.memory_space<vmem>>) target_semaphore(%479 : memref<!tpu.dma_semaphore, #tpu.memory_space<semaphore_mem>>)
    %480 = arith.index_cast %391 : i32 to index
    %c11_345 = arith.constant 11 : index
    %481 = memref.load %arg1[%480, %c11_345] : memref<8x16xi32, #tpu.memory_space<smem>>
    %c0_i32_346 = arith.constant 0 : i32
    %482 = arith.maxsi %481, %c0_i32_346 : i32
    %c1023_i32_347 = arith.constant 1023 : i32
    %483 = arith.minsi %482, %c1023_i32_347 : i32
    %c0_i32_348 = arith.constant 0 : i32
    %c0_i32_349 = arith.constant 0 : i32
    %484 = tpu.memref_slice %arg4[%483, %c0_i32_349] : memref<1024x256xf32, #tpu.memory_space<any>> -> memref<1x256xf32, #tpu.memory_space<any>>
    %c59_i32 = arith.constant 59 : i32
    %c0_i32_350 = arith.constant 0 : i32
    %485 = tpu.memref_slice %arg13[%c59_i32, %c0_i32_350] : memref<128x256xf32, #tpu.memory_space<vmem>> -> memref<1x256xf32, #tpu.memory_space<vmem>>
    %486 = tpu.memref_slice %arg14[%c0_i32_348] : memref<1x!tpu.dma_semaphore, #tpu.memory_space<semaphore_mem>> -> memref<1x!tpu.dma_semaphore, #tpu.memory_space<semaphore_mem>>
    %487 = tpu.memref_squeeze %486 : memref<1x!tpu.dma_semaphore, #tpu.memory_space<semaphore_mem>> -> memref<!tpu.dma_semaphore, #tpu.memory_space<semaphore_mem>>
    tpu.enqueue_dma source(%484 : memref<1x256xf32, #tpu.memory_space<any>>) target(%485 : memref<1x256xf32, #tpu.memory_space<vmem>>) target_semaphore(%487 : memref<!tpu.dma_semaphore, #tpu.memory_space<semaphore_mem>>)
    %488 = arith.index_cast %391 : i32 to index
    %c12_351 = arith.constant 12 : index
    %489 = memref.load %arg1[%488, %c12_351] : memref<8x16xi32, #tpu.memory_space<smem>>
    %c0_i32_352 = arith.constant 0 : i32
    %490 = arith.maxsi %489, %c0_i32_352 : i32
    %c1023_i32_353 = arith.constant 1023 : i32
    %491 = arith.minsi %490, %c1023_i32_353 : i32
    %c0_i32_354 = arith.constant 0 : i32
    %c0_i32_355 = arith.constant 0 : i32
    %492 = tpu.memref_slice %arg4[%491, %c0_i32_355] : memref<1024x256xf32, #tpu.memory_space<any>> -> memref<1x256xf32, #tpu.memory_space<any>>
    %c60_i32 = arith.constant 60 : i32
    %c0_i32_356 = arith.constant 0 : i32
    %493 = tpu.memref_slice %arg13[%c60_i32, %c0_i32_356] : memref<128x256xf32, #tpu.memory_space<vmem>> -> memref<1x256xf32, #tpu.memory_space<vmem>>
    %494 = tpu.memref_slice %arg14[%c0_i32_354] : memref<1x!tpu.dma_semaphore, #tpu.memory_space<semaphore_mem>> -> memref<1x!tpu.dma_semaphore, #tpu.memory_space<semaphore_mem>>
    %495 = tpu.memref_squeeze %494 : memref<1x!tpu.dma_semaphore, #tpu.memory_space<semaphore_mem>> -> memref<!tpu.dma_semaphore, #tpu.memory_space<semaphore_mem>>
    tpu.enqueue_dma source(%492 : memref<1x256xf32, #tpu.memory_space<any>>) target(%493 : memref<1x256xf32, #tpu.memory_space<vmem>>) target_semaphore(%495 : memref<!tpu.dma_semaphore, #tpu.memory_space<semaphore_mem>>)
    %496 = arith.index_cast %391 : i32 to index
    %c13_357 = arith.constant 13 : index
    %497 = memref.load %arg1[%496, %c13_357] : memref<8x16xi32, #tpu.memory_space<smem>>
    %c0_i32_358 = arith.constant 0 : i32
    %498 = arith.maxsi %497, %c0_i32_358 : i32
    %c1023_i32_359 = arith.constant 1023 : i32
    %499 = arith.minsi %498, %c1023_i32_359 : i32
    %c0_i32_360 = arith.constant 0 : i32
    %c0_i32_361 = arith.constant 0 : i32
    %500 = tpu.memref_slice %arg4[%499, %c0_i32_361] : memref<1024x256xf32, #tpu.memory_space<any>> -> memref<1x256xf32, #tpu.memory_space<any>>
    %c61_i32 = arith.constant 61 : i32
    %c0_i32_362 = arith.constant 0 : i32
    %501 = tpu.memref_slice %arg13[%c61_i32, %c0_i32_362] : memref<128x256xf32, #tpu.memory_space<vmem>> -> memref<1x256xf32, #tpu.memory_space<vmem>>
    %502 = tpu.memref_slice %arg14[%c0_i32_360] : memref<1x!tpu.dma_semaphore, #tpu.memory_space<semaphore_mem>> -> memref<1x!tpu.dma_semaphore, #tpu.memory_space<semaphore_mem>>
    %503 = tpu.memref_squeeze %502 : memref<1x!tpu.dma_semaphore, #tpu.memory_space<semaphore_mem>> -> memref<!tpu.dma_semaphore, #tpu.memory_space<semaphore_mem>>
    tpu.enqueue_dma source(%500 : memref<1x256xf32, #tpu.memory_space<any>>) target(%501 : memref<1x256xf32, #tpu.memory_space<vmem>>) target_semaphore(%503 : memref<!tpu.dma_semaphore, #tpu.memory_space<semaphore_mem>>)
    %504 = arith.index_cast %391 : i32 to index
    %c14_363 = arith.constant 14 : index
    %505 = memref.load %arg1[%504, %c14_363] : memref<8x16xi32, #tpu.memory_space<smem>>
    %c0_i32_364 = arith.constant 0 : i32
    %506 = arith.maxsi %505, %c0_i32_364 : i32
    %c1023_i32_365 = arith.constant 1023 : i32
    %507 = arith.minsi %506, %c1023_i32_365 : i32
    %c0_i32_366 = arith.constant 0 : i32
    %c0_i32_367 = arith.constant 0 : i32
    %508 = tpu.memref_slice %arg4[%507, %c0_i32_367] : memref<1024x256xf32, #tpu.memory_space<any>> -> memref<1x256xf32, #tpu.memory_space<any>>
    %c62_i32 = arith.constant 62 : i32
    %c0_i32_368 = arith.constant 0 : i32
    %509 = tpu.memref_slice %arg13[%c62_i32, %c0_i32_368] : memref<128x256xf32, #tpu.memory_space<vmem>> -> memref<1x256xf32, #tpu.memory_space<vmem>>
    %510 = tpu.memref_slice %arg14[%c0_i32_366] : memref<1x!tpu.dma_semaphore, #tpu.memory_space<semaphore_mem>> -> memref<1x!tpu.dma_semaphore, #tpu.memory_space<semaphore_mem>>
    %511 = tpu.memref_squeeze %510 : memref<1x!tpu.dma_semaphore, #tpu.memory_space<semaphore_mem>> -> memref<!tpu.dma_semaphore, #tpu.memory_space<semaphore_mem>>
    tpu.enqueue_dma source(%508 : memref<1x256xf32, #tpu.memory_space<any>>) target(%509 : memref<1x256xf32, #tpu.memory_space<vmem>>) target_semaphore(%511 : memref<!tpu.dma_semaphore, #tpu.memory_space<semaphore_mem>>)
    %512 = arith.index_cast %391 : i32 to index
    %c15_369 = arith.constant 15 : index
    %513 = memref.load %arg1[%512, %c15_369] : memref<8x16xi32, #tpu.memory_space<smem>>
    %c0_i32_370 = arith.constant 0 : i32
    %514 = arith.maxsi %513, %c0_i32_370 : i32
    %c1023_i32_371 = arith.constant 1023 : i32
    %515 = arith.minsi %514, %c1023_i32_371 : i32
    %c0_i32_372 = arith.constant 0 : i32
    %c0_i32_373 = arith.constant 0 : i32
    %516 = tpu.memref_slice %arg4[%515, %c0_i32_373] : memref<1024x256xf32, #tpu.memory_space<any>> -> memref<1x256xf32, #tpu.memory_space<any>>
    %c63_i32 = arith.constant 63 : i32
    %c0_i32_374 = arith.constant 0 : i32
    %517 = tpu.memref_slice %arg13[%c63_i32, %c0_i32_374] : memref<128x256xf32, #tpu.memory_space<vmem>> -> memref<1x256xf32, #tpu.memory_space<vmem>>
    %518 = tpu.memref_slice %arg14[%c0_i32_372] : memref<1x!tpu.dma_semaphore, #tpu.memory_space<semaphore_mem>> -> memref<1x!tpu.dma_semaphore, #tpu.memory_space<semaphore_mem>>
    %519 = tpu.memref_squeeze %518 : memref<1x!tpu.dma_semaphore, #tpu.memory_space<semaphore_mem>> -> memref<!tpu.dma_semaphore, #tpu.memory_space<semaphore_mem>>
    tpu.enqueue_dma source(%516 : memref<1x256xf32, #tpu.memory_space<any>>) target(%517 : memref<1x256xf32, #tpu.memory_space<vmem>>) target_semaphore(%519 : memref<!tpu.dma_semaphore, #tpu.memory_space<semaphore_mem>>)
    %c8_i32_375 = arith.constant 8 : i32
    %520 = arith.muli %arg0, %c8_i32_375 : i32
    %c4_i32_376 = arith.constant 4 : i32
    %521 = arith.addi %520, %c4_i32_376 : i32
    %522 = arith.index_cast %521 : i32 to index
    %c0_377 = arith.constant 0 : index
    %523 = memref.load %arg1[%522, %c0_377] : memref<8x16xi32, #tpu.memory_space<smem>>
    %c0_i32_378 = arith.constant 0 : i32
    %524 = arith.maxsi %523, %c0_i32_378 : i32
    %c1023_i32_379 = arith.constant 1023 : i32
    %525 = arith.minsi %524, %c1023_i32_379 : i32
    %c0_i32_380 = arith.constant 0 : i32
    %c0_i32_381 = arith.constant 0 : i32
    %526 = tpu.memref_slice %arg4[%525, %c0_i32_381] : memref<1024x256xf32, #tpu.memory_space<any>> -> memref<1x256xf32, #tpu.memory_space<any>>
    %c64_i32 = arith.constant 64 : i32
    %c0_i32_382 = arith.constant 0 : i32
    %527 = tpu.memref_slice %arg13[%c64_i32, %c0_i32_382] : memref<128x256xf32, #tpu.memory_space<vmem>> -> memref<1x256xf32, #tpu.memory_space<vmem>>
    %528 = tpu.memref_slice %arg14[%c0_i32_380] : memref<1x!tpu.dma_semaphore, #tpu.memory_space<semaphore_mem>> -> memref<1x!tpu.dma_semaphore, #tpu.memory_space<semaphore_mem>>
    %529 = tpu.memref_squeeze %528 : memref<1x!tpu.dma_semaphore, #tpu.memory_space<semaphore_mem>> -> memref<!tpu.dma_semaphore, #tpu.memory_space<semaphore_mem>>
    tpu.enqueue_dma source(%526 : memref<1x256xf32, #tpu.memory_space<any>>) target(%527 : memref<1x256xf32, #tpu.memory_space<vmem>>) target_semaphore(%529 : memref<!tpu.dma_semaphore, #tpu.memory_space<semaphore_mem>>)
    %530 = arith.index_cast %521 : i32 to index
    %c1_383 = arith.constant 1 : index
    %531 = memref.load %arg1[%530, %c1_383] : memref<8x16xi32, #tpu.memory_space<smem>>
    %c0_i32_384 = arith.constant 0 : i32
    %532 = arith.maxsi %531, %c0_i32_384 : i32
    %c1023_i32_385 = arith.constant 1023 : i32
    %533 = arith.minsi %532, %c1023_i32_385 : i32
    %c0_i32_386 = arith.constant 0 : i32
    %c0_i32_387 = arith.constant 0 : i32
    %534 = tpu.memref_slice %arg4[%533, %c0_i32_387] : memref<1024x256xf32, #tpu.memory_space<any>> -> memref<1x256xf32, #tpu.memory_space<any>>
    %c65_i32 = arith.constant 65 : i32
    %c0_i32_388 = arith.constant 0 : i32
    %535 = tpu.memref_slice %arg13[%c65_i32, %c0_i32_388] : memref<128x256xf32, #tpu.memory_space<vmem>> -> memref<1x256xf32, #tpu.memory_space<vmem>>
    %536 = tpu.memref_slice %arg14[%c0_i32_386] : memref<1x!tpu.dma_semaphore, #tpu.memory_space<semaphore_mem>> -> memref<1x!tpu.dma_semaphore, #tpu.memory_space<semaphore_mem>>
    %537 = tpu.memref_squeeze %536 : memref<1x!tpu.dma_semaphore, #tpu.memory_space<semaphore_mem>> -> memref<!tpu.dma_semaphore, #tpu.memory_space<semaphore_mem>>
    tpu.enqueue_dma source(%534 : memref<1x256xf32, #tpu.memory_space<any>>) target(%535 : memref<1x256xf32, #tpu.memory_space<vmem>>) target_semaphore(%537 : memref<!tpu.dma_semaphore, #tpu.memory_space<semaphore_mem>>)
    %538 = arith.index_cast %521 : i32 to index
    %c2_389 = arith.constant 2 : index
    %539 = memref.load %arg1[%538, %c2_389] : memref<8x16xi32, #tpu.memory_space<smem>>
    %c0_i32_390 = arith.constant 0 : i32
    %540 = arith.maxsi %539, %c0_i32_390 : i32
    %c1023_i32_391 = arith.constant 1023 : i32
    %541 = arith.minsi %540, %c1023_i32_391 : i32
    %c0_i32_392 = arith.constant 0 : i32
    %c0_i32_393 = arith.constant 0 : i32
    %542 = tpu.memref_slice %arg4[%541, %c0_i32_393] : memref<1024x256xf32, #tpu.memory_space<any>> -> memref<1x256xf32, #tpu.memory_space<any>>
    %c66_i32 = arith.constant 66 : i32
    %c0_i32_394 = arith.constant 0 : i32
    %543 = tpu.memref_slice %arg13[%c66_i32, %c0_i32_394] : memref<128x256xf32, #tpu.memory_space<vmem>> -> memref<1x256xf32, #tpu.memory_space<vmem>>
    %544 = tpu.memref_slice %arg14[%c0_i32_392] : memref<1x!tpu.dma_semaphore, #tpu.memory_space<semaphore_mem>> -> memref<1x!tpu.dma_semaphore, #tpu.memory_space<semaphore_mem>>
    %545 = tpu.memref_squeeze %544 : memref<1x!tpu.dma_semaphore, #tpu.memory_space<semaphore_mem>> -> memref<!tpu.dma_semaphore, #tpu.memory_space<semaphore_mem>>
    tpu.enqueue_dma source(%542 : memref<1x256xf32, #tpu.memory_space<any>>) target(%543 : memref<1x256xf32, #tpu.memory_space<vmem>>) target_semaphore(%545 : memref<!tpu.dma_semaphore, #tpu.memory_space<semaphore_mem>>)
    %546 = arith.index_cast %521 : i32 to index
    %c3_395 = arith.constant 3 : index
    %547 = memref.load %arg1[%546, %c3_395] : memref<8x16xi32, #tpu.memory_space<smem>>
    %c0_i32_396 = arith.constant 0 : i32
    %548 = arith.maxsi %547, %c0_i32_396 : i32
    %c1023_i32_397 = arith.constant 1023 : i32
    %549 = arith.minsi %548, %c1023_i32_397 : i32
    %c0_i32_398 = arith.constant 0 : i32
    %c0_i32_399 = arith.constant 0 : i32
    %550 = tpu.memref_slice %arg4[%549, %c0_i32_399] : memref<1024x256xf32, #tpu.memory_space<any>> -> memref<1x256xf32, #tpu.memory_space<any>>
    %c67_i32 = arith.constant 67 : i32
    %c0_i32_400 = arith.constant 0 : i32
    %551 = tpu.memref_slice %arg13[%c67_i32, %c0_i32_400] : memref<128x256xf32, #tpu.memory_space<vmem>> -> memref<1x256xf32, #tpu.memory_space<vmem>>
    %552 = tpu.memref_slice %arg14[%c0_i32_398] : memref<1x!tpu.dma_semaphore, #tpu.memory_space<semaphore_mem>> -> memref<1x!tpu.dma_semaphore, #tpu.memory_space<semaphore_mem>>
    %553 = tpu.memref_squeeze %552 : memref<1x!tpu.dma_semaphore, #tpu.memory_space<semaphore_mem>> -> memref<!tpu.dma_semaphore, #tpu.memory_space<semaphore_mem>>
    tpu.enqueue_dma source(%550 : memref<1x256xf32, #tpu.memory_space<any>>) target(%551 : memref<1x256xf32, #tpu.memory_space<vmem>>) target_semaphore(%553 : memref<!tpu.dma_semaphore, #tpu.memory_space<semaphore_mem>>)
    %554 = arith.index_cast %521 : i32 to index
    %c4_401 = arith.constant 4 : index
    %555 = memref.load %arg1[%554, %c4_401] : memref<8x16xi32, #tpu.memory_space<smem>>
    %c0_i32_402 = arith.constant 0 : i32
    %556 = arith.maxsi %555, %c0_i32_402 : i32
    %c1023_i32_403 = arith.constant 1023 : i32
    %557 = arith.minsi %556, %c1023_i32_403 : i32
    %c0_i32_404 = arith.constant 0 : i32
    %c0_i32_405 = arith.constant 0 : i32
    %558 = tpu.memref_slice %arg4[%557, %c0_i32_405] : memref<1024x256xf32, #tpu.memory_space<any>> -> memref<1x256xf32, #tpu.memory_space<any>>
    %c68_i32 = arith.constant 68 : i32
    %c0_i32_406 = arith.constant 0 : i32
    %559 = tpu.memref_slice %arg13[%c68_i32, %c0_i32_406] : memref<128x256xf32, #tpu.memory_space<vmem>> -> memref<1x256xf32, #tpu.memory_space<vmem>>
    %560 = tpu.memref_slice %arg14[%c0_i32_404] : memref<1x!tpu.dma_semaphore, #tpu.memory_space<semaphore_mem>> -> memref<1x!tpu.dma_semaphore, #tpu.memory_space<semaphore_mem>>
    %561 = tpu.memref_squeeze %560 : memref<1x!tpu.dma_semaphore, #tpu.memory_space<semaphore_mem>> -> memref<!tpu.dma_semaphore, #tpu.memory_space<semaphore_mem>>
    tpu.enqueue_dma source(%558 : memref<1x256xf32, #tpu.memory_space<any>>) target(%559 : memref<1x256xf32, #tpu.memory_space<vmem>>) target_semaphore(%561 : memref<!tpu.dma_semaphore, #tpu.memory_space<semaphore_mem>>)
    %562 = arith.index_cast %521 : i32 to index
    %c5_407 = arith.constant 5 : index
    %563 = memref.load %arg1[%562, %c5_407] : memref<8x16xi32, #tpu.memory_space<smem>>
    %c0_i32_408 = arith.constant 0 : i32
    %564 = arith.maxsi %563, %c0_i32_408 : i32
    %c1023_i32_409 = arith.constant 1023 : i32
    %565 = arith.minsi %564, %c1023_i32_409 : i32
    %c0_i32_410 = arith.constant 0 : i32
    %c0_i32_411 = arith.constant 0 : i32
    %566 = tpu.memref_slice %arg4[%565, %c0_i32_411] : memref<1024x256xf32, #tpu.memory_space<any>> -> memref<1x256xf32, #tpu.memory_space<any>>
    %c69_i32 = arith.constant 69 : i32
    %c0_i32_412 = arith.constant 0 : i32
    %567 = tpu.memref_slice %arg13[%c69_i32, %c0_i32_412] : memref<128x256xf32, #tpu.memory_space<vmem>> -> memref<1x256xf32, #tpu.memory_space<vmem>>
    %568 = tpu.memref_slice %arg14[%c0_i32_410] : memref<1x!tpu.dma_semaphore, #tpu.memory_space<semaphore_mem>> -> memref<1x!tpu.dma_semaphore, #tpu.memory_space<semaphore_mem>>
    %569 = tpu.memref_squeeze %568 : memref<1x!tpu.dma_semaphore, #tpu.memory_space<semaphore_mem>> -> memref<!tpu.dma_semaphore, #tpu.memory_space<semaphore_mem>>
    tpu.enqueue_dma source(%566 : memref<1x256xf32, #tpu.memory_space<any>>) target(%567 : memref<1x256xf32, #tpu.memory_space<vmem>>) target_semaphore(%569 : memref<!tpu.dma_semaphore, #tpu.memory_space<semaphore_mem>>)
    %570 = arith.index_cast %521 : i32 to index
    %c6_413 = arith.constant 6 : index
    %571 = memref.load %arg1[%570, %c6_413] : memref<8x16xi32, #tpu.memory_space<smem>>
    %c0_i32_414 = arith.constant 0 : i32
    %572 = arith.maxsi %571, %c0_i32_414 : i32
    %c1023_i32_415 = arith.constant 1023 : i32
    %573 = arith.minsi %572, %c1023_i32_415 : i32
    %c0_i32_416 = arith.constant 0 : i32
    %c0_i32_417 = arith.constant 0 : i32
    %574 = tpu.memref_slice %arg4[%573, %c0_i32_417] : memref<1024x256xf32, #tpu.memory_space<any>> -> memref<1x256xf32, #tpu.memory_space<any>>
    %c70_i32 = arith.constant 70 : i32
    %c0_i32_418 = arith.constant 0 : i32
    %575 = tpu.memref_slice %arg13[%c70_i32, %c0_i32_418] : memref<128x256xf32, #tpu.memory_space<vmem>> -> memref<1x256xf32, #tpu.memory_space<vmem>>
    %576 = tpu.memref_slice %arg14[%c0_i32_416] : memref<1x!tpu.dma_semaphore, #tpu.memory_space<semaphore_mem>> -> memref<1x!tpu.dma_semaphore, #tpu.memory_space<semaphore_mem>>
    %577 = tpu.memref_squeeze %576 : memref<1x!tpu.dma_semaphore, #tpu.memory_space<semaphore_mem>> -> memref<!tpu.dma_semaphore, #tpu.memory_space<semaphore_mem>>
    tpu.enqueue_dma source(%574 : memref<1x256xf32, #tpu.memory_space<any>>) target(%575 : memref<1x256xf32, #tpu.memory_space<vmem>>) target_semaphore(%577 : memref<!tpu.dma_semaphore, #tpu.memory_space<semaphore_mem>>)
    %578 = arith.index_cast %521 : i32 to index
    %c7_419 = arith.constant 7 : index
    %579 = memref.load %arg1[%578, %c7_419] : memref<8x16xi32, #tpu.memory_space<smem>>
    %c0_i32_420 = arith.constant 0 : i32
    %580 = arith.maxsi %579, %c0_i32_420 : i32
    %c1023_i32_421 = arith.constant 1023 : i32
    %581 = arith.minsi %580, %c1023_i32_421 : i32
    %c0_i32_422 = arith.constant 0 : i32
    %c0_i32_423 = arith.constant 0 : i32
    %582 = tpu.memref_slice %arg4[%581, %c0_i32_423] : memref<1024x256xf32, #tpu.memory_space<any>> -> memref<1x256xf32, #tpu.memory_space<any>>
    %c71_i32 = arith.constant 71 : i32
    %c0_i32_424 = arith.constant 0 : i32
    %583 = tpu.memref_slice %arg13[%c71_i32, %c0_i32_424] : memref<128x256xf32, #tpu.memory_space<vmem>> -> memref<1x256xf32, #tpu.memory_space<vmem>>
    %584 = tpu.memref_slice %arg14[%c0_i32_422] : memref<1x!tpu.dma_semaphore, #tpu.memory_space<semaphore_mem>> -> memref<1x!tpu.dma_semaphore, #tpu.memory_space<semaphore_mem>>
    %585 = tpu.memref_squeeze %584 : memref<1x!tpu.dma_semaphore, #tpu.memory_space<semaphore_mem>> -> memref<!tpu.dma_semaphore, #tpu.memory_space<semaphore_mem>>
    tpu.enqueue_dma source(%582 : memref<1x256xf32, #tpu.memory_space<any>>) target(%583 : memref<1x256xf32, #tpu.memory_space<vmem>>) target_semaphore(%585 : memref<!tpu.dma_semaphore, #tpu.memory_space<semaphore_mem>>)
    %586 = arith.index_cast %521 : i32 to index
    %c8_425 = arith.constant 8 : index
    %587 = memref.load %arg1[%586, %c8_425] : memref<8x16xi32, #tpu.memory_space<smem>>
    %c0_i32_426 = arith.constant 0 : i32
    %588 = arith.maxsi %587, %c0_i32_426 : i32
    %c1023_i32_427 = arith.constant 1023 : i32
    %589 = arith.minsi %588, %c1023_i32_427 : i32
    %c0_i32_428 = arith.constant 0 : i32
    %c0_i32_429 = arith.constant 0 : i32
    %590 = tpu.memref_slice %arg4[%589, %c0_i32_429] : memref<1024x256xf32, #tpu.memory_space<any>> -> memref<1x256xf32, #tpu.memory_space<any>>
    %c72_i32 = arith.constant 72 : i32
    %c0_i32_430 = arith.constant 0 : i32
    %591 = tpu.memref_slice %arg13[%c72_i32, %c0_i32_430] : memref<128x256xf32, #tpu.memory_space<vmem>> -> memref<1x256xf32, #tpu.memory_space<vmem>>
    %592 = tpu.memref_slice %arg14[%c0_i32_428] : memref<1x!tpu.dma_semaphore, #tpu.memory_space<semaphore_mem>> -> memref<1x!tpu.dma_semaphore, #tpu.memory_space<semaphore_mem>>
    %593 = tpu.memref_squeeze %592 : memref<1x!tpu.dma_semaphore, #tpu.memory_space<semaphore_mem>> -> memref<!tpu.dma_semaphore, #tpu.memory_space<semaphore_mem>>
    tpu.enqueue_dma source(%590 : memref<1x256xf32, #tpu.memory_space<any>>) target(%591 : memref<1x256xf32, #tpu.memory_space<vmem>>) target_semaphore(%593 : memref<!tpu.dma_semaphore, #tpu.memory_space<semaphore_mem>>)
    %594 = arith.index_cast %521 : i32 to index
    %c9_431 = arith.constant 9 : index
    %595 = memref.load %arg1[%594, %c9_431] : memref<8x16xi32, #tpu.memory_space<smem>>
    %c0_i32_432 = arith.constant 0 : i32
    %596 = arith.maxsi %595, %c0_i32_432 : i32
    %c1023_i32_433 = arith.constant 1023 : i32
    %597 = arith.minsi %596, %c1023_i32_433 : i32
    %c0_i32_434 = arith.constant 0 : i32
    %c0_i32_435 = arith.constant 0 : i32
    %598 = tpu.memref_slice %arg4[%597, %c0_i32_435] : memref<1024x256xf32, #tpu.memory_space<any>> -> memref<1x256xf32, #tpu.memory_space<any>>
    %c73_i32 = arith.constant 73 : i32
    %c0_i32_436 = arith.constant 0 : i32
    %599 = tpu.memref_slice %arg13[%c73_i32, %c0_i32_436] : memref<128x256xf32, #tpu.memory_space<vmem>> -> memref<1x256xf32, #tpu.memory_space<vmem>>
    %600 = tpu.memref_slice %arg14[%c0_i32_434] : memref<1x!tpu.dma_semaphore, #tpu.memory_space<semaphore_mem>> -> memref<1x!tpu.dma_semaphore, #tpu.memory_space<semaphore_mem>>
    %601 = tpu.memref_squeeze %600 : memref<1x!tpu.dma_semaphore, #tpu.memory_space<semaphore_mem>> -> memref<!tpu.dma_semaphore, #tpu.memory_space<semaphore_mem>>
    tpu.enqueue_dma source(%598 : memref<1x256xf32, #tpu.memory_space<any>>) target(%599 : memref<1x256xf32, #tpu.memory_space<vmem>>) target_semaphore(%601 : memref<!tpu.dma_semaphore, #tpu.memory_space<semaphore_mem>>)
    %602 = arith.index_cast %521 : i32 to index
    %c10_437 = arith.constant 10 : index
    %603 = memref.load %arg1[%602, %c10_437] : memref<8x16xi32, #tpu.memory_space<smem>>
    %c0_i32_438 = arith.constant 0 : i32
    %604 = arith.maxsi %603, %c0_i32_438 : i32
    %c1023_i32_439 = arith.constant 1023 : i32
    %605 = arith.minsi %604, %c1023_i32_439 : i32
    %c0_i32_440 = arith.constant 0 : i32
    %c0_i32_441 = arith.constant 0 : i32
    %606 = tpu.memref_slice %arg4[%605, %c0_i32_441] : memref<1024x256xf32, #tpu.memory_space<any>> -> memref<1x256xf32, #tpu.memory_space<any>>
    %c74_i32 = arith.constant 74 : i32
    %c0_i32_442 = arith.constant 0 : i32
    %607 = tpu.memref_slice %arg13[%c74_i32, %c0_i32_442] : memref<128x256xf32, #tpu.memory_space<vmem>> -> memref<1x256xf32, #tpu.memory_space<vmem>>
    %608 = tpu.memref_slice %arg14[%c0_i32_440] : memref<1x!tpu.dma_semaphore, #tpu.memory_space<semaphore_mem>> -> memref<1x!tpu.dma_semaphore, #tpu.memory_space<semaphore_mem>>
    %609 = tpu.memref_squeeze %608 : memref<1x!tpu.dma_semaphore, #tpu.memory_space<semaphore_mem>> -> memref<!tpu.dma_semaphore, #tpu.memory_space<semaphore_mem>>
    tpu.enqueue_dma source(%606 : memref<1x256xf32, #tpu.memory_space<any>>) target(%607 : memref<1x256xf32, #tpu.memory_space<vmem>>) target_semaphore(%609 : memref<!tpu.dma_semaphore, #tpu.memory_space<semaphore_mem>>)
    %610 = arith.index_cast %521 : i32 to index
    %c11_443 = arith.constant 11 : index
    %611 = memref.load %arg1[%610, %c11_443] : memref<8x16xi32, #tpu.memory_space<smem>>
    %c0_i32_444 = arith.constant 0 : i32
    %612 = arith.maxsi %611, %c0_i32_444 : i32
    %c1023_i32_445 = arith.constant 1023 : i32
    %613 = arith.minsi %612, %c1023_i32_445 : i32
    %c0_i32_446 = arith.constant 0 : i32
    %c0_i32_447 = arith.constant 0 : i32
    %614 = tpu.memref_slice %arg4[%613, %c0_i32_447] : memref<1024x256xf32, #tpu.memory_space<any>> -> memref<1x256xf32, #tpu.memory_space<any>>
    %c75_i32 = arith.constant 75 : i32
    %c0_i32_448 = arith.constant 0 : i32
    %615 = tpu.memref_slice %arg13[%c75_i32, %c0_i32_448] : memref<128x256xf32, #tpu.memory_space<vmem>> -> memref<1x256xf32, #tpu.memory_space<vmem>>
    %616 = tpu.memref_slice %arg14[%c0_i32_446] : memref<1x!tpu.dma_semaphore, #tpu.memory_space<semaphore_mem>> -> memref<1x!tpu.dma_semaphore, #tpu.memory_space<semaphore_mem>>
    %617 = tpu.memref_squeeze %616 : memref<1x!tpu.dma_semaphore, #tpu.memory_space<semaphore_mem>> -> memref<!tpu.dma_semaphore, #tpu.memory_space<semaphore_mem>>
    tpu.enqueue_dma source(%614 : memref<1x256xf32, #tpu.memory_space<any>>) target(%615 : memref<1x256xf32, #tpu.memory_space<vmem>>) target_semaphore(%617 : memref<!tpu.dma_semaphore, #tpu.memory_space<semaphore_mem>>)
    %618 = arith.index_cast %521 : i32 to index
    %c12_449 = arith.constant 12 : index
    %619 = memref.load %arg1[%618, %c12_449] : memref<8x16xi32, #tpu.memory_space<smem>>
    %c0_i32_450 = arith.constant 0 : i32
    %620 = arith.maxsi %619, %c0_i32_450 : i32
    %c1023_i32_451 = arith.constant 1023 : i32
    %621 = arith.minsi %620, %c1023_i32_451 : i32
    %c0_i32_452 = arith.constant 0 : i32
    %c0_i32_453 = arith.constant 0 : i32
    %622 = tpu.memref_slice %arg4[%621, %c0_i32_453] : memref<1024x256xf32, #tpu.memory_space<any>> -> memref<1x256xf32, #tpu.memory_space<any>>
    %c76_i32 = arith.constant 76 : i32
    %c0_i32_454 = arith.constant 0 : i32
    %623 = tpu.memref_slice %arg13[%c76_i32, %c0_i32_454] : memref<128x256xf32, #tpu.memory_space<vmem>> -> memref<1x256xf32, #tpu.memory_space<vmem>>
    %624 = tpu.memref_slice %arg14[%c0_i32_452] : memref<1x!tpu.dma_semaphore, #tpu.memory_space<semaphore_mem>> -> memref<1x!tpu.dma_semaphore, #tpu.memory_space<semaphore_mem>>
    %625 = tpu.memref_squeeze %624 : memref<1x!tpu.dma_semaphore, #tpu.memory_space<semaphore_mem>> -> memref<!tpu.dma_semaphore, #tpu.memory_space<semaphore_mem>>
    tpu.enqueue_dma source(%622 : memref<1x256xf32, #tpu.memory_space<any>>) target(%623 : memref<1x256xf32, #tpu.memory_space<vmem>>) target_semaphore(%625 : memref<!tpu.dma_semaphore, #tpu.memory_space<semaphore_mem>>)
    %626 = arith.index_cast %521 : i32 to index
    %c13_455 = arith.constant 13 : index
    %627 = memref.load %arg1[%626, %c13_455] : memref<8x16xi32, #tpu.memory_space<smem>>
    %c0_i32_456 = arith.constant 0 : i32
    %628 = arith.maxsi %627, %c0_i32_456 : i32
    %c1023_i32_457 = arith.constant 1023 : i32
    %629 = arith.minsi %628, %c1023_i32_457 : i32
    %c0_i32_458 = arith.constant 0 : i32
    %c0_i32_459 = arith.constant 0 : i32
    %630 = tpu.memref_slice %arg4[%629, %c0_i32_459] : memref<1024x256xf32, #tpu.memory_space<any>> -> memref<1x256xf32, #tpu.memory_space<any>>
    %c77_i32 = arith.constant 77 : i32
    %c0_i32_460 = arith.constant 0 : i32
    %631 = tpu.memref_slice %arg13[%c77_i32, %c0_i32_460] : memref<128x256xf32, #tpu.memory_space<vmem>> -> memref<1x256xf32, #tpu.memory_space<vmem>>
    %632 = tpu.memref_slice %arg14[%c0_i32_458] : memref<1x!tpu.dma_semaphore, #tpu.memory_space<semaphore_mem>> -> memref<1x!tpu.dma_semaphore, #tpu.memory_space<semaphore_mem>>
    %633 = tpu.memref_squeeze %632 : memref<1x!tpu.dma_semaphore, #tpu.memory_space<semaphore_mem>> -> memref<!tpu.dma_semaphore, #tpu.memory_space<semaphore_mem>>
    tpu.enqueue_dma source(%630 : memref<1x256xf32, #tpu.memory_space<any>>) target(%631 : memref<1x256xf32, #tpu.memory_space<vmem>>) target_semaphore(%633 : memref<!tpu.dma_semaphore, #tpu.memory_space<semaphore_mem>>)
    %634 = arith.index_cast %521 : i32 to index
    %c14_461 = arith.constant 14 : index
    %635 = memref.load %arg1[%634, %c14_461] : memref<8x16xi32, #tpu.memory_space<smem>>
    %c0_i32_462 = arith.constant 0 : i32
    %636 = arith.maxsi %635, %c0_i32_462 : i32
    %c1023_i32_463 = arith.constant 1023 : i32
    %637 = arith.minsi %636, %c1023_i32_463 : i32
    %c0_i32_464 = arith.constant 0 : i32
    %c0_i32_465 = arith.constant 0 : i32
    %638 = tpu.memref_slice %arg4[%637, %c0_i32_465] : memref<1024x256xf32, #tpu.memory_space<any>> -> memref<1x256xf32, #tpu.memory_space<any>>
    %c78_i32 = arith.constant 78 : i32
    %c0_i32_466 = arith.constant 0 : i32
    %639 = tpu.memref_slice %arg13[%c78_i32, %c0_i32_466] : memref<128x256xf32, #tpu.memory_space<vmem>> -> memref<1x256xf32, #tpu.memory_space<vmem>>
    %640 = tpu.memref_slice %arg14[%c0_i32_464] : memref<1x!tpu.dma_semaphore, #tpu.memory_space<semaphore_mem>> -> memref<1x!tpu.dma_semaphore, #tpu.memory_space<semaphore_mem>>
    %641 = tpu.memref_squeeze %640 : memref<1x!tpu.dma_semaphore, #tpu.memory_space<semaphore_mem>> -> memref<!tpu.dma_semaphore, #tpu.memory_space<semaphore_mem>>
    tpu.enqueue_dma source(%638 : memref<1x256xf32, #tpu.memory_space<any>>) target(%639 : memref<1x256xf32, #tpu.memory_space<vmem>>) target_semaphore(%641 : memref<!tpu.dma_semaphore, #tpu.memory_space<semaphore_mem>>)
    %642 = arith.index_cast %521 : i32 to index
    %c15_467 = arith.constant 15 : index
    %643 = memref.load %arg1[%642, %c15_467] : memref<8x16xi32, #tpu.memory_space<smem>>
    %c0_i32_468 = arith.constant 0 : i32
    %644 = arith.maxsi %643, %c0_i32_468 : i32
    %c1023_i32_469 = arith.constant 1023 : i32
    %645 = arith.minsi %644, %c1023_i32_469 : i32
    %c0_i32_470 = arith.constant 0 : i32
    %c0_i32_471 = arith.constant 0 : i32
    %646 = tpu.memref_slice %arg4[%645, %c0_i32_471] : memref<1024x256xf32, #tpu.memory_space<any>> -> memref<1x256xf32, #tpu.memory_space<any>>
    %c79_i32 = arith.constant 79 : i32
    %c0_i32_472 = arith.constant 0 : i32
    %647 = tpu.memref_slice %arg13[%c79_i32, %c0_i32_472] : memref<128x256xf32, #tpu.memory_space<vmem>> -> memref<1x256xf32, #tpu.memory_space<vmem>>
    %648 = tpu.memref_slice %arg14[%c0_i32_470] : memref<1x!tpu.dma_semaphore, #tpu.memory_space<semaphore_mem>> -> memref<1x!tpu.dma_semaphore, #tpu.memory_space<semaphore_mem>>
    %649 = tpu.memref_squeeze %648 : memref<1x!tpu.dma_semaphore, #tpu.memory_space<semaphore_mem>> -> memref<!tpu.dma_semaphore, #tpu.memory_space<semaphore_mem>>
    tpu.enqueue_dma source(%646 : memref<1x256xf32, #tpu.memory_space<any>>) target(%647 : memref<1x256xf32, #tpu.memory_space<vmem>>) target_semaphore(%649 : memref<!tpu.dma_semaphore, #tpu.memory_space<semaphore_mem>>)
    %c8_i32_473 = arith.constant 8 : i32
    %650 = arith.muli %arg0, %c8_i32_473 : i32
    %c5_i32_474 = arith.constant 5 : i32
    %651 = arith.addi %650, %c5_i32_474 : i32
    %652 = arith.index_cast %651 : i32 to index
    %c0_475 = arith.constant 0 : index
    %653 = memref.load %arg1[%652, %c0_475] : memref<8x16xi32, #tpu.memory_space<smem>>
    %c0_i32_476 = arith.constant 0 : i32
    %654 = arith.maxsi %653, %c0_i32_476 : i32
    %c1023_i32_477 = arith.constant 1023 : i32
    %655 = arith.minsi %654, %c1023_i32_477 : i32
    %c0_i32_478 = arith.constant 0 : i32
    %c0_i32_479 = arith.constant 0 : i32
    %656 = tpu.memref_slice %arg4[%655, %c0_i32_479] : memref<1024x256xf32, #tpu.memory_space<any>> -> memref<1x256xf32, #tpu.memory_space<any>>
    %c80_i32 = arith.constant 80 : i32
    %c0_i32_480 = arith.constant 0 : i32
    %657 = tpu.memref_slice %arg13[%c80_i32, %c0_i32_480] : memref<128x256xf32, #tpu.memory_space<vmem>> -> memref<1x256xf32, #tpu.memory_space<vmem>>
    %658 = tpu.memref_slice %arg14[%c0_i32_478] : memref<1x!tpu.dma_semaphore, #tpu.memory_space<semaphore_mem>> -> memref<1x!tpu.dma_semaphore, #tpu.memory_space<semaphore_mem>>
    %659 = tpu.memref_squeeze %658 : memref<1x!tpu.dma_semaphore, #tpu.memory_space<semaphore_mem>> -> memref<!tpu.dma_semaphore, #tpu.memory_space<semaphore_mem>>
    tpu.enqueue_dma source(%656 : memref<1x256xf32, #tpu.memory_space<any>>) target(%657 : memref<1x256xf32, #tpu.memory_space<vmem>>) target_semaphore(%659 : memref<!tpu.dma_semaphore, #tpu.memory_space<semaphore_mem>>)
    %660 = arith.index_cast %651 : i32 to index
    %c1_481 = arith.constant 1 : index
    %661 = memref.load %arg1[%660, %c1_481] : memref<8x16xi32, #tpu.memory_space<smem>>
    %c0_i32_482 = arith.constant 0 : i32
    %662 = arith.maxsi %661, %c0_i32_482 : i32
    %c1023_i32_483 = arith.constant 1023 : i32
    %663 = arith.minsi %662, %c1023_i32_483 : i32
    %c0_i32_484 = arith.constant 0 : i32
    %c0_i32_485 = arith.constant 0 : i32
    %664 = tpu.memref_slice %arg4[%663, %c0_i32_485] : memref<1024x256xf32, #tpu.memory_space<any>> -> memref<1x256xf32, #tpu.memory_space<any>>
    %c81_i32 = arith.constant 81 : i32
    %c0_i32_486 = arith.constant 0 : i32
    %665 = tpu.memref_slice %arg13[%c81_i32, %c0_i32_486] : memref<128x256xf32, #tpu.memory_space<vmem>> -> memref<1x256xf32, #tpu.memory_space<vmem>>
    %666 = tpu.memref_slice %arg14[%c0_i32_484] : memref<1x!tpu.dma_semaphore, #tpu.memory_space<semaphore_mem>> -> memref<1x!tpu.dma_semaphore, #tpu.memory_space<semaphore_mem>>
    %667 = tpu.memref_squeeze %666 : memref<1x!tpu.dma_semaphore, #tpu.memory_space<semaphore_mem>> -> memref<!tpu.dma_semaphore, #tpu.memory_space<semaphore_mem>>
    tpu.enqueue_dma source(%664 : memref<1x256xf32, #tpu.memory_space<any>>) target(%665 : memref<1x256xf32, #tpu.memory_space<vmem>>) target_semaphore(%667 : memref<!tpu.dma_semaphore, #tpu.memory_space<semaphore_mem>>)
    %668 = arith.index_cast %651 : i32 to index
    %c2_487 = arith.constant 2 : index
    %669 = memref.load %arg1[%668, %c2_487] : memref<8x16xi32, #tpu.memory_space<smem>>
    %c0_i32_488 = arith.constant 0 : i32
    %670 = arith.maxsi %669, %c0_i32_488 : i32
    %c1023_i32_489 = arith.constant 1023 : i32
    %671 = arith.minsi %670, %c1023_i32_489 : i32
    %c0_i32_490 = arith.constant 0 : i32
    %c0_i32_491 = arith.constant 0 : i32
    %672 = tpu.memref_slice %arg4[%671, %c0_i32_491] : memref<1024x256xf32, #tpu.memory_space<any>> -> memref<1x256xf32, #tpu.memory_space<any>>
    %c82_i32 = arith.constant 82 : i32
    %c0_i32_492 = arith.constant 0 : i32
    %673 = tpu.memref_slice %arg13[%c82_i32, %c0_i32_492] : memref<128x256xf32, #tpu.memory_space<vmem>> -> memref<1x256xf32, #tpu.memory_space<vmem>>
    %674 = tpu.memref_slice %arg14[%c0_i32_490] : memref<1x!tpu.dma_semaphore, #tpu.memory_space<semaphore_mem>> -> memref<1x!tpu.dma_semaphore, #tpu.memory_space<semaphore_mem>>
    %675 = tpu.memref_squeeze %674 : memref<1x!tpu.dma_semaphore, #tpu.memory_space<semaphore_mem>> -> memref<!tpu.dma_semaphore, #tpu.memory_space<semaphore_mem>>
    tpu.enqueue_dma source(%672 : memref<1x256xf32, #tpu.memory_space<any>>) target(%673 : memref<1x256xf32, #tpu.memory_space<vmem>>) target_semaphore(%675 : memref<!tpu.dma_semaphore, #tpu.memory_space<semaphore_mem>>)
    %676 = arith.index_cast %651 : i32 to index
    %c3_493 = arith.constant 3 : index
    %677 = memref.load %arg1[%676, %c3_493] : memref<8x16xi32, #tpu.memory_space<smem>>
    %c0_i32_494 = arith.constant 0 : i32
    %678 = arith.maxsi %677, %c0_i32_494 : i32
    %c1023_i32_495 = arith.constant 1023 : i32
    %679 = arith.minsi %678, %c1023_i32_495 : i32
    %c0_i32_496 = arith.constant 0 : i32
    %c0_i32_497 = arith.constant 0 : i32
    %680 = tpu.memref_slice %arg4[%679, %c0_i32_497] : memref<1024x256xf32, #tpu.memory_space<any>> -> memref<1x256xf32, #tpu.memory_space<any>>
    %c83_i32 = arith.constant 83 : i32
    %c0_i32_498 = arith.constant 0 : i32
    %681 = tpu.memref_slice %arg13[%c83_i32, %c0_i32_498] : memref<128x256xf32, #tpu.memory_space<vmem>> -> memref<1x256xf32, #tpu.memory_space<vmem>>
    %682 = tpu.memref_slice %arg14[%c0_i32_496] : memref<1x!tpu.dma_semaphore, #tpu.memory_space<semaphore_mem>> -> memref<1x!tpu.dma_semaphore, #tpu.memory_space<semaphore_mem>>
    %683 = tpu.memref_squeeze %682 : memref<1x!tpu.dma_semaphore, #tpu.memory_space<semaphore_mem>> -> memref<!tpu.dma_semaphore, #tpu.memory_space<semaphore_mem>>
    tpu.enqueue_dma source(%680 : memref<1x256xf32, #tpu.memory_space<any>>) target(%681 : memref<1x256xf32, #tpu.memory_space<vmem>>) target_semaphore(%683 : memref<!tpu.dma_semaphore, #tpu.memory_space<semaphore_mem>>)
    %684 = arith.index_cast %651 : i32 to index
    %c4_499 = arith.constant 4 : index
    %685 = memref.load %arg1[%684, %c4_499] : memref<8x16xi32, #tpu.memory_space<smem>>
    %c0_i32_500 = arith.constant 0 : i32
    %686 = arith.maxsi %685, %c0_i32_500 : i32
    %c1023_i32_501 = arith.constant 1023 : i32
    %687 = arith.minsi %686, %c1023_i32_501 : i32
    %c0_i32_502 = arith.constant 0 : i32
    %c0_i32_503 = arith.constant 0 : i32
    %688 = tpu.memref_slice %arg4[%687, %c0_i32_503] : memref<1024x256xf32, #tpu.memory_space<any>> -> memref<1x256xf32, #tpu.memory_space<any>>
    %c84_i32 = arith.constant 84 : i32
    %c0_i32_504 = arith.constant 0 : i32
    %689 = tpu.memref_slice %arg13[%c84_i32, %c0_i32_504] : memref<128x256xf32, #tpu.memory_space<vmem>> -> memref<1x256xf32, #tpu.memory_space<vmem>>
    %690 = tpu.memref_slice %arg14[%c0_i32_502] : memref<1x!tpu.dma_semaphore, #tpu.memory_space<semaphore_mem>> -> memref<1x!tpu.dma_semaphore, #tpu.memory_space<semaphore_mem>>
    %691 = tpu.memref_squeeze %690 : memref<1x!tpu.dma_semaphore, #tpu.memory_space<semaphore_mem>> -> memref<!tpu.dma_semaphore, #tpu.memory_space<semaphore_mem>>
    tpu.enqueue_dma source(%688 : memref<1x256xf32, #tpu.memory_space<any>>) target(%689 : memref<1x256xf32, #tpu.memory_space<vmem>>) target_semaphore(%691 : memref<!tpu.dma_semaphore, #tpu.memory_space<semaphore_mem>>)
    %692 = arith.index_cast %651 : i32 to index
    %c5_505 = arith.constant 5 : index
    %693 = memref.load %arg1[%692, %c5_505] : memref<8x16xi32, #tpu.memory_space<smem>>
    %c0_i32_506 = arith.constant 0 : i32
    %694 = arith.maxsi %693, %c0_i32_506 : i32
    %c1023_i32_507 = arith.constant 1023 : i32
    %695 = arith.minsi %694, %c1023_i32_507 : i32
    %c0_i32_508 = arith.constant 0 : i32
    %c0_i32_509 = arith.constant 0 : i32
    %696 = tpu.memref_slice %arg4[%695, %c0_i32_509] : memref<1024x256xf32, #tpu.memory_space<any>> -> memref<1x256xf32, #tpu.memory_space<any>>
    %c85_i32 = arith.constant 85 : i32
    %c0_i32_510 = arith.constant 0 : i32
    %697 = tpu.memref_slice %arg13[%c85_i32, %c0_i32_510] : memref<128x256xf32, #tpu.memory_space<vmem>> -> memref<1x256xf32, #tpu.memory_space<vmem>>
    %698 = tpu.memref_slice %arg14[%c0_i32_508] : memref<1x!tpu.dma_semaphore, #tpu.memory_space<semaphore_mem>> -> memref<1x!tpu.dma_semaphore, #tpu.memory_space<semaphore_mem>>
    %699 = tpu.memref_squeeze %698 : memref<1x!tpu.dma_semaphore, #tpu.memory_space<semaphore_mem>> -> memref<!tpu.dma_semaphore, #tpu.memory_space<semaphore_mem>>
    tpu.enqueue_dma source(%696 : memref<1x256xf32, #tpu.memory_space<any>>) target(%697 : memref<1x256xf32, #tpu.memory_space<vmem>>) target_semaphore(%699 : memref<!tpu.dma_semaphore, #tpu.memory_space<semaphore_mem>>)
    %700 = arith.index_cast %651 : i32 to index
    %c6_511 = arith.constant 6 : index
    %701 = memref.load %arg1[%700, %c6_511] : memref<8x16xi32, #tpu.memory_space<smem>>
    %c0_i32_512 = arith.constant 0 : i32
    %702 = arith.maxsi %701, %c0_i32_512 : i32
    %c1023_i32_513 = arith.constant 1023 : i32
    %703 = arith.minsi %702, %c1023_i32_513 : i32
    %c0_i32_514 = arith.constant 0 : i32
    %c0_i32_515 = arith.constant 0 : i32
    %704 = tpu.memref_slice %arg4[%703, %c0_i32_515] : memref<1024x256xf32, #tpu.memory_space<any>> -> memref<1x256xf32, #tpu.memory_space<any>>
    %c86_i32 = arith.constant 86 : i32
    %c0_i32_516 = arith.constant 0 : i32
    %705 = tpu.memref_slice %arg13[%c86_i32, %c0_i32_516] : memref<128x256xf32, #tpu.memory_space<vmem>> -> memref<1x256xf32, #tpu.memory_space<vmem>>
    %706 = tpu.memref_slice %arg14[%c0_i32_514] : memref<1x!tpu.dma_semaphore, #tpu.memory_space<semaphore_mem>> -> memref<1x!tpu.dma_semaphore, #tpu.memory_space<semaphore_mem>>
    %707 = tpu.memref_squeeze %706 : memref<1x!tpu.dma_semaphore, #tpu.memory_space<semaphore_mem>> -> memref<!tpu.dma_semaphore, #tpu.memory_space<semaphore_mem>>
    tpu.enqueue_dma source(%704 : memref<1x256xf32, #tpu.memory_space<any>>) target(%705 : memref<1x256xf32, #tpu.memory_space<vmem>>) target_semaphore(%707 : memref<!tpu.dma_semaphore, #tpu.memory_space<semaphore_mem>>)
    %708 = arith.index_cast %651 : i32 to index
    %c7_517 = arith.constant 7 : index
    %709 = memref.load %arg1[%708, %c7_517] : memref<8x16xi32, #tpu.memory_space<smem>>
    %c0_i32_518 = arith.constant 0 : i32
    %710 = arith.maxsi %709, %c0_i32_518 : i32
    %c1023_i32_519 = arith.constant 1023 : i32
    %711 = arith.minsi %710, %c1023_i32_519 : i32
    %c0_i32_520 = arith.constant 0 : i32
    %c0_i32_521 = arith.constant 0 : i32
    %712 = tpu.memref_slice %arg4[%711, %c0_i32_521] : memref<1024x256xf32, #tpu.memory_space<any>> -> memref<1x256xf32, #tpu.memory_space<any>>
    %c87_i32 = arith.constant 87 : i32
    %c0_i32_522 = arith.constant 0 : i32
    %713 = tpu.memref_slice %arg13[%c87_i32, %c0_i32_522] : memref<128x256xf32, #tpu.memory_space<vmem>> -> memref<1x256xf32, #tpu.memory_space<vmem>>
    %714 = tpu.memref_slice %arg14[%c0_i32_520] : memref<1x!tpu.dma_semaphore, #tpu.memory_space<semaphore_mem>> -> memref<1x!tpu.dma_semaphore, #tpu.memory_space<semaphore_mem>>
    %715 = tpu.memref_squeeze %714 : memref<1x!tpu.dma_semaphore, #tpu.memory_space<semaphore_mem>> -> memref<!tpu.dma_semaphore, #tpu.memory_space<semaphore_mem>>
    tpu.enqueue_dma source(%712 : memref<1x256xf32, #tpu.memory_space<any>>) target(%713 : memref<1x256xf32, #tpu.memory_space<vmem>>) target_semaphore(%715 : memref<!tpu.dma_semaphore, #tpu.memory_space<semaphore_mem>>)
    %716 = arith.index_cast %651 : i32 to index
    %c8_523 = arith.constant 8 : index
    %717 = memref.load %arg1[%716, %c8_523] : memref<8x16xi32, #tpu.memory_space<smem>>
    %c0_i32_524 = arith.constant 0 : i32
    %718 = arith.maxsi %717, %c0_i32_524 : i32
    %c1023_i32_525 = arith.constant 1023 : i32
    %719 = arith.minsi %718, %c1023_i32_525 : i32
    %c0_i32_526 = arith.constant 0 : i32
    %c0_i32_527 = arith.constant 0 : i32
    %720 = tpu.memref_slice %arg4[%719, %c0_i32_527] : memref<1024x256xf32, #tpu.memory_space<any>> -> memref<1x256xf32, #tpu.memory_space<any>>
    %c88_i32 = arith.constant 88 : i32
    %c0_i32_528 = arith.constant 0 : i32
    %721 = tpu.memref_slice %arg13[%c88_i32, %c0_i32_528] : memref<128x256xf32, #tpu.memory_space<vmem>> -> memref<1x256xf32, #tpu.memory_space<vmem>>
    %722 = tpu.memref_slice %arg14[%c0_i32_526] : memref<1x!tpu.dma_semaphore, #tpu.memory_space<semaphore_mem>> -> memref<1x!tpu.dma_semaphore, #tpu.memory_space<semaphore_mem>>
    %723 = tpu.memref_squeeze %722 : memref<1x!tpu.dma_semaphore, #tpu.memory_space<semaphore_mem>> -> memref<!tpu.dma_semaphore, #tpu.memory_space<semaphore_mem>>
    tpu.enqueue_dma source(%720 : memref<1x256xf32, #tpu.memory_space<any>>) target(%721 : memref<1x256xf32, #tpu.memory_space<vmem>>) target_semaphore(%723 : memref<!tpu.dma_semaphore, #tpu.memory_space<semaphore_mem>>)
    %724 = arith.index_cast %651 : i32 to index
    %c9_529 = arith.constant 9 : index
    %725 = memref.load %arg1[%724, %c9_529] : memref<8x16xi32, #tpu.memory_space<smem>>
    %c0_i32_530 = arith.constant 0 : i32
    %726 = arith.maxsi %725, %c0_i32_530 : i32
    %c1023_i32_531 = arith.constant 1023 : i32
    %727 = arith.minsi %726, %c1023_i32_531 : i32
    %c0_i32_532 = arith.constant 0 : i32
    %c0_i32_533 = arith.constant 0 : i32
    %728 = tpu.memref_slice %arg4[%727, %c0_i32_533] : memref<1024x256xf32, #tpu.memory_space<any>> -> memref<1x256xf32, #tpu.memory_space<any>>
    %c89_i32 = arith.constant 89 : i32
    %c0_i32_534 = arith.constant 0 : i32
    %729 = tpu.memref_slice %arg13[%c89_i32, %c0_i32_534] : memref<128x256xf32, #tpu.memory_space<vmem>> -> memref<1x256xf32, #tpu.memory_space<vmem>>
    %730 = tpu.memref_slice %arg14[%c0_i32_532] : memref<1x!tpu.dma_semaphore, #tpu.memory_space<semaphore_mem>> -> memref<1x!tpu.dma_semaphore, #tpu.memory_space<semaphore_mem>>
    %731 = tpu.memref_squeeze %730 : memref<1x!tpu.dma_semaphore, #tpu.memory_space<semaphore_mem>> -> memref<!tpu.dma_semaphore, #tpu.memory_space<semaphore_mem>>
    tpu.enqueue_dma source(%728 : memref<1x256xf32, #tpu.memory_space<any>>) target(%729 : memref<1x256xf32, #tpu.memory_space<vmem>>) target_semaphore(%731 : memref<!tpu.dma_semaphore, #tpu.memory_space<semaphore_mem>>)
    %732 = arith.index_cast %651 : i32 to index
    %c10_535 = arith.constant 10 : index
    %733 = memref.load %arg1[%732, %c10_535] : memref<8x16xi32, #tpu.memory_space<smem>>
    %c0_i32_536 = arith.constant 0 : i32
    %734 = arith.maxsi %733, %c0_i32_536 : i32
    %c1023_i32_537 = arith.constant 1023 : i32
    %735 = arith.minsi %734, %c1023_i32_537 : i32
    %c0_i32_538 = arith.constant 0 : i32
    %c0_i32_539 = arith.constant 0 : i32
    %736 = tpu.memref_slice %arg4[%735, %c0_i32_539] : memref<1024x256xf32, #tpu.memory_space<any>> -> memref<1x256xf32, #tpu.memory_space<any>>
    %c90_i32 = arith.constant 90 : i32
    %c0_i32_540 = arith.constant 0 : i32
    %737 = tpu.memref_slice %arg13[%c90_i32, %c0_i32_540] : memref<128x256xf32, #tpu.memory_space<vmem>> -> memref<1x256xf32, #tpu.memory_space<vmem>>
    %738 = tpu.memref_slice %arg14[%c0_i32_538] : memref<1x!tpu.dma_semaphore, #tpu.memory_space<semaphore_mem>> -> memref<1x!tpu.dma_semaphore, #tpu.memory_space<semaphore_mem>>
    %739 = tpu.memref_squeeze %738 : memref<1x!tpu.dma_semaphore, #tpu.memory_space<semaphore_mem>> -> memref<!tpu.dma_semaphore, #tpu.memory_space<semaphore_mem>>
    tpu.enqueue_dma source(%736 : memref<1x256xf32, #tpu.memory_space<any>>) target(%737 : memref<1x256xf32, #tpu.memory_space<vmem>>) target_semaphore(%739 : memref<!tpu.dma_semaphore, #tpu.memory_space<semaphore_mem>>)
    %740 = arith.index_cast %651 : i32 to index
    %c11_541 = arith.constant 11 : index
    %741 = memref.load %arg1[%740, %c11_541] : memref<8x16xi32, #tpu.memory_space<smem>>
    %c0_i32_542 = arith.constant 0 : i32
    %742 = arith.maxsi %741, %c0_i32_542 : i32
    %c1023_i32_543 = arith.constant 1023 : i32
    %743 = arith.minsi %742, %c1023_i32_543 : i32
    %c0_i32_544 = arith.constant 0 : i32
    %c0_i32_545 = arith.constant 0 : i32
    %744 = tpu.memref_slice %arg4[%743, %c0_i32_545] : memref<1024x256xf32, #tpu.memory_space<any>> -> memref<1x256xf32, #tpu.memory_space<any>>
    %c91_i32 = arith.constant 91 : i32
    %c0_i32_546 = arith.constant 0 : i32
    %745 = tpu.memref_slice %arg13[%c91_i32, %c0_i32_546] : memref<128x256xf32, #tpu.memory_space<vmem>> -> memref<1x256xf32, #tpu.memory_space<vmem>>
    %746 = tpu.memref_slice %arg14[%c0_i32_544] : memref<1x!tpu.dma_semaphore, #tpu.memory_space<semaphore_mem>> -> memref<1x!tpu.dma_semaphore, #tpu.memory_space<semaphore_mem>>
    %747 = tpu.memref_squeeze %746 : memref<1x!tpu.dma_semaphore, #tpu.memory_space<semaphore_mem>> -> memref<!tpu.dma_semaphore, #tpu.memory_space<semaphore_mem>>
    tpu.enqueue_dma source(%744 : memref<1x256xf32, #tpu.memory_space<any>>) target(%745 : memref<1x256xf32, #tpu.memory_space<vmem>>) target_semaphore(%747 : memref<!tpu.dma_semaphore, #tpu.memory_space<semaphore_mem>>)
    %748 = arith.index_cast %651 : i32 to index
    %c12_547 = arith.constant 12 : index
    %749 = memref.load %arg1[%748, %c12_547] : memref<8x16xi32, #tpu.memory_space<smem>>
    %c0_i32_548 = arith.constant 0 : i32
    %750 = arith.maxsi %749, %c0_i32_548 : i32
    %c1023_i32_549 = arith.constant 1023 : i32
    %751 = arith.minsi %750, %c1023_i32_549 : i32
    %c0_i32_550 = arith.constant 0 : i32
    %c0_i32_551 = arith.constant 0 : i32
    %752 = tpu.memref_slice %arg4[%751, %c0_i32_551] : memref<1024x256xf32, #tpu.memory_space<any>> -> memref<1x256xf32, #tpu.memory_space<any>>
    %c92_i32 = arith.constant 92 : i32
    %c0_i32_552 = arith.constant 0 : i32
    %753 = tpu.memref_slice %arg13[%c92_i32, %c0_i32_552] : memref<128x256xf32, #tpu.memory_space<vmem>> -> memref<1x256xf32, #tpu.memory_space<vmem>>
    %754 = tpu.memref_slice %arg14[%c0_i32_550] : memref<1x!tpu.dma_semaphore, #tpu.memory_space<semaphore_mem>> -> memref<1x!tpu.dma_semaphore, #tpu.memory_space<semaphore_mem>>
    %755 = tpu.memref_squeeze %754 : memref<1x!tpu.dma_semaphore, #tpu.memory_space<semaphore_mem>> -> memref<!tpu.dma_semaphore, #tpu.memory_space<semaphore_mem>>
    tpu.enqueue_dma source(%752 : memref<1x256xf32, #tpu.memory_space<any>>) target(%753 : memref<1x256xf32, #tpu.memory_space<vmem>>) target_semaphore(%755 : memref<!tpu.dma_semaphore, #tpu.memory_space<semaphore_mem>>)
    %756 = arith.index_cast %651 : i32 to index
    %c13_553 = arith.constant 13 : index
    %757 = memref.load %arg1[%756, %c13_553] : memref<8x16xi32, #tpu.memory_space<smem>>
    %c0_i32_554 = arith.constant 0 : i32
    %758 = arith.maxsi %757, %c0_i32_554 : i32
    %c1023_i32_555 = arith.constant 1023 : i32
    %759 = arith.minsi %758, %c1023_i32_555 : i32
    %c0_i32_556 = arith.constant 0 : i32
    %c0_i32_557 = arith.constant 0 : i32
    %760 = tpu.memref_slice %arg4[%759, %c0_i32_557] : memref<1024x256xf32, #tpu.memory_space<any>> -> memref<1x256xf32, #tpu.memory_space<any>>
    %c93_i32 = arith.constant 93 : i32
    %c0_i32_558 = arith.constant 0 : i32
    %761 = tpu.memref_slice %arg13[%c93_i32, %c0_i32_558] : memref<128x256xf32, #tpu.memory_space<vmem>> -> memref<1x256xf32, #tpu.memory_space<vmem>>
    %762 = tpu.memref_slice %arg14[%c0_i32_556] : memref<1x!tpu.dma_semaphore, #tpu.memory_space<semaphore_mem>> -> memref<1x!tpu.dma_semaphore, #tpu.memory_space<semaphore_mem>>
    %763 = tpu.memref_squeeze %762 : memref<1x!tpu.dma_semaphore, #tpu.memory_space<semaphore_mem>> -> memref<!tpu.dma_semaphore, #tpu.memory_space<semaphore_mem>>
    tpu.enqueue_dma source(%760 : memref<1x256xf32, #tpu.memory_space<any>>) target(%761 : memref<1x256xf32, #tpu.memory_space<vmem>>) target_semaphore(%763 : memref<!tpu.dma_semaphore, #tpu.memory_space<semaphore_mem>>)
    %764 = arith.index_cast %651 : i32 to index
    %c14_559 = arith.constant 14 : index
    %765 = memref.load %arg1[%764, %c14_559] : memref<8x16xi32, #tpu.memory_space<smem>>
    %c0_i32_560 = arith.constant 0 : i32
    %766 = arith.maxsi %765, %c0_i32_560 : i32
    %c1023_i32_561 = arith.constant 1023 : i32
    %767 = arith.minsi %766, %c1023_i32_561 : i32
    %c0_i32_562 = arith.constant 0 : i32
    %c0_i32_563 = arith.constant 0 : i32
    %768 = tpu.memref_slice %arg4[%767, %c0_i32_563] : memref<1024x256xf32, #tpu.memory_space<any>> -> memref<1x256xf32, #tpu.memory_space<any>>
    %c94_i32 = arith.constant 94 : i32
    %c0_i32_564 = arith.constant 0 : i32
    %769 = tpu.memref_slice %arg13[%c94_i32, %c0_i32_564] : memref<128x256xf32, #tpu.memory_space<vmem>> -> memref<1x256xf32, #tpu.memory_space<vmem>>
    %770 = tpu.memref_slice %arg14[%c0_i32_562] : memref<1x!tpu.dma_semaphore, #tpu.memory_space<semaphore_mem>> -> memref<1x!tpu.dma_semaphore, #tpu.memory_space<semaphore_mem>>
    %771 = tpu.memref_squeeze %770 : memref<1x!tpu.dma_semaphore, #tpu.memory_space<semaphore_mem>> -> memref<!tpu.dma_semaphore, #tpu.memory_space<semaphore_mem>>
    tpu.enqueue_dma source(%768 : memref<1x256xf32, #tpu.memory_space<any>>) target(%769 : memref<1x256xf32, #tpu.memory_space<vmem>>) target_semaphore(%771 : memref<!tpu.dma_semaphore, #tpu.memory_space<semaphore_mem>>)
    %772 = arith.index_cast %651 : i32 to index
    %c15_565 = arith.constant 15 : index
    %773 = memref.load %arg1[%772, %c15_565] : memref<8x16xi32, #tpu.memory_space<smem>>
    %c0_i32_566 = arith.constant 0 : i32
    %774 = arith.maxsi %773, %c0_i32_566 : i32
    %c1023_i32_567 = arith.constant 1023 : i32
    %775 = arith.minsi %774, %c1023_i32_567 : i32
    %c0_i32_568 = arith.constant 0 : i32
    %c0_i32_569 = arith.constant 0 : i32
    %776 = tpu.memref_slice %arg4[%775, %c0_i32_569] : memref<1024x256xf32, #tpu.memory_space<any>> -> memref<1x256xf32, #tpu.memory_space<any>>
    %c95_i32 = arith.constant 95 : i32
    %c0_i32_570 = arith.constant 0 : i32
    %777 = tpu.memref_slice %arg13[%c95_i32, %c0_i32_570] : memref<128x256xf32, #tpu.memory_space<vmem>> -> memref<1x256xf32, #tpu.memory_space<vmem>>
    %778 = tpu.memref_slice %arg14[%c0_i32_568] : memref<1x!tpu.dma_semaphore, #tpu.memory_space<semaphore_mem>> -> memref<1x!tpu.dma_semaphore, #tpu.memory_space<semaphore_mem>>
    %779 = tpu.memref_squeeze %778 : memref<1x!tpu.dma_semaphore, #tpu.memory_space<semaphore_mem>> -> memref<!tpu.dma_semaphore, #tpu.memory_space<semaphore_mem>>
    tpu.enqueue_dma source(%776 : memref<1x256xf32, #tpu.memory_space<any>>) target(%777 : memref<1x256xf32, #tpu.memory_space<vmem>>) target_semaphore(%779 : memref<!tpu.dma_semaphore, #tpu.memory_space<semaphore_mem>>)
    %c8_i32_571 = arith.constant 8 : i32
    %780 = arith.muli %arg0, %c8_i32_571 : i32
    %c6_i32_572 = arith.constant 6 : i32
    %781 = arith.addi %780, %c6_i32_572 : i32
    %782 = arith.index_cast %781 : i32 to index
    %c0_573 = arith.constant 0 : index
    %783 = memref.load %arg1[%782, %c0_573] : memref<8x16xi32, #tpu.memory_space<smem>>
    %c0_i32_574 = arith.constant 0 : i32
    %784 = arith.maxsi %783, %c0_i32_574 : i32
    %c1023_i32_575 = arith.constant 1023 : i32
    %785 = arith.minsi %784, %c1023_i32_575 : i32
    %c0_i32_576 = arith.constant 0 : i32
    %c0_i32_577 = arith.constant 0 : i32
    %786 = tpu.memref_slice %arg4[%785, %c0_i32_577] : memref<1024x256xf32, #tpu.memory_space<any>> -> memref<1x256xf32, #tpu.memory_space<any>>
    %c96_i32 = arith.constant 96 : i32
    %c0_i32_578 = arith.constant 0 : i32
    %787 = tpu.memref_slice %arg13[%c96_i32, %c0_i32_578] : memref<128x256xf32, #tpu.memory_space<vmem>> -> memref<1x256xf32, #tpu.memory_space<vmem>>
    %788 = tpu.memref_slice %arg14[%c0_i32_576] : memref<1x!tpu.dma_semaphore, #tpu.memory_space<semaphore_mem>> -> memref<1x!tpu.dma_semaphore, #tpu.memory_space<semaphore_mem>>
    %789 = tpu.memref_squeeze %788 : memref<1x!tpu.dma_semaphore, #tpu.memory_space<semaphore_mem>> -> memref<!tpu.dma_semaphore, #tpu.memory_space<semaphore_mem>>
    tpu.enqueue_dma source(%786 : memref<1x256xf32, #tpu.memory_space<any>>) target(%787 : memref<1x256xf32, #tpu.memory_space<vmem>>) target_semaphore(%789 : memref<!tpu.dma_semaphore, #tpu.memory_space<semaphore_mem>>)
    %790 = arith.index_cast %781 : i32 to index
    %c1_579 = arith.constant 1 : index
    %791 = memref.load %arg1[%790, %c1_579] : memref<8x16xi32, #tpu.memory_space<smem>>
    %c0_i32_580 = arith.constant 0 : i32
    %792 = arith.maxsi %791, %c0_i32_580 : i32
    %c1023_i32_581 = arith.constant 1023 : i32
    %793 = arith.minsi %792, %c1023_i32_581 : i32
    %c0_i32_582 = arith.constant 0 : i32
    %c0_i32_583 = arith.constant 0 : i32
    %794 = tpu.memref_slice %arg4[%793, %c0_i32_583] : memref<1024x256xf32, #tpu.memory_space<any>> -> memref<1x256xf32, #tpu.memory_space<any>>
    %c97_i32 = arith.constant 97 : i32
    %c0_i32_584 = arith.constant 0 : i32
    %795 = tpu.memref_slice %arg13[%c97_i32, %c0_i32_584] : memref<128x256xf32, #tpu.memory_space<vmem>> -> memref<1x256xf32, #tpu.memory_space<vmem>>
    %796 = tpu.memref_slice %arg14[%c0_i32_582] : memref<1x!tpu.dma_semaphore, #tpu.memory_space<semaphore_mem>> -> memref<1x!tpu.dma_semaphore, #tpu.memory_space<semaphore_mem>>
    %797 = tpu.memref_squeeze %796 : memref<1x!tpu.dma_semaphore, #tpu.memory_space<semaphore_mem>> -> memref<!tpu.dma_semaphore, #tpu.memory_space<semaphore_mem>>
    tpu.enqueue_dma source(%794 : memref<1x256xf32, #tpu.memory_space<any>>) target(%795 : memref<1x256xf32, #tpu.memory_space<vmem>>) target_semaphore(%797 : memref<!tpu.dma_semaphore, #tpu.memory_space<semaphore_mem>>)
    %798 = arith.index_cast %781 : i32 to index
    %c2_585 = arith.constant 2 : index
    %799 = memref.load %arg1[%798, %c2_585] : memref<8x16xi32, #tpu.memory_space<smem>>
    %c0_i32_586 = arith.constant 0 : i32
    %800 = arith.maxsi %799, %c0_i32_586 : i32
    %c1023_i32_587 = arith.constant 1023 : i32
    %801 = arith.minsi %800, %c1023_i32_587 : i32
    %c0_i32_588 = arith.constant 0 : i32
    %c0_i32_589 = arith.constant 0 : i32
    %802 = tpu.memref_slice %arg4[%801, %c0_i32_589] : memref<1024x256xf32, #tpu.memory_space<any>> -> memref<1x256xf32, #tpu.memory_space<any>>
    %c98_i32 = arith.constant 98 : i32
    %c0_i32_590 = arith.constant 0 : i32
    %803 = tpu.memref_slice %arg13[%c98_i32, %c0_i32_590] : memref<128x256xf32, #tpu.memory_space<vmem>> -> memref<1x256xf32, #tpu.memory_space<vmem>>
    %804 = tpu.memref_slice %arg14[%c0_i32_588] : memref<1x!tpu.dma_semaphore, #tpu.memory_space<semaphore_mem>> -> memref<1x!tpu.dma_semaphore, #tpu.memory_space<semaphore_mem>>
    %805 = tpu.memref_squeeze %804 : memref<1x!tpu.dma_semaphore, #tpu.memory_space<semaphore_mem>> -> memref<!tpu.dma_semaphore, #tpu.memory_space<semaphore_mem>>
    tpu.enqueue_dma source(%802 : memref<1x256xf32, #tpu.memory_space<any>>) target(%803 : memref<1x256xf32, #tpu.memory_space<vmem>>) target_semaphore(%805 : memref<!tpu.dma_semaphore, #tpu.memory_space<semaphore_mem>>)
    %806 = arith.index_cast %781 : i32 to index
    %c3_591 = arith.constant 3 : index
    %807 = memref.load %arg1[%806, %c3_591] : memref<8x16xi32, #tpu.memory_space<smem>>
    %c0_i32_592 = arith.constant 0 : i32
    %808 = arith.maxsi %807, %c0_i32_592 : i32
    %c1023_i32_593 = arith.constant 1023 : i32
    %809 = arith.minsi %808, %c1023_i32_593 : i32
    %c0_i32_594 = arith.constant 0 : i32
    %c0_i32_595 = arith.constant 0 : i32
    %810 = tpu.memref_slice %arg4[%809, %c0_i32_595] : memref<1024x256xf32, #tpu.memory_space<any>> -> memref<1x256xf32, #tpu.memory_space<any>>
    %c99_i32 = arith.constant 99 : i32
    %c0_i32_596 = arith.constant 0 : i32
    %811 = tpu.memref_slice %arg13[%c99_i32, %c0_i32_596] : memref<128x256xf32, #tpu.memory_space<vmem>> -> memref<1x256xf32, #tpu.memory_space<vmem>>
    %812 = tpu.memref_slice %arg14[%c0_i32_594] : memref<1x!tpu.dma_semaphore, #tpu.memory_space<semaphore_mem>> -> memref<1x!tpu.dma_semaphore, #tpu.memory_space<semaphore_mem>>
    %813 = tpu.memref_squeeze %812 : memref<1x!tpu.dma_semaphore, #tpu.memory_space<semaphore_mem>> -> memref<!tpu.dma_semaphore, #tpu.memory_space<semaphore_mem>>
    tpu.enqueue_dma source(%810 : memref<1x256xf32, #tpu.memory_space<any>>) target(%811 : memref<1x256xf32, #tpu.memory_space<vmem>>) target_semaphore(%813 : memref<!tpu.dma_semaphore, #tpu.memory_space<semaphore_mem>>)
    %814 = arith.index_cast %781 : i32 to index
    %c4_597 = arith.constant 4 : index
    %815 = memref.load %arg1[%814, %c4_597] : memref<8x16xi32, #tpu.memory_space<smem>>
    %c0_i32_598 = arith.constant 0 : i32
    %816 = arith.maxsi %815, %c0_i32_598 : i32
    %c1023_i32_599 = arith.constant 1023 : i32
    %817 = arith.minsi %816, %c1023_i32_599 : i32
    %c0_i32_600 = arith.constant 0 : i32
    %c0_i32_601 = arith.constant 0 : i32
    %818 = tpu.memref_slice %arg4[%817, %c0_i32_601] : memref<1024x256xf32, #tpu.memory_space<any>> -> memref<1x256xf32, #tpu.memory_space<any>>
    %c100_i32 = arith.constant 100 : i32
    %c0_i32_602 = arith.constant 0 : i32
    %819 = tpu.memref_slice %arg13[%c100_i32, %c0_i32_602] : memref<128x256xf32, #tpu.memory_space<vmem>> -> memref<1x256xf32, #tpu.memory_space<vmem>>
    %820 = tpu.memref_slice %arg14[%c0_i32_600] : memref<1x!tpu.dma_semaphore, #tpu.memory_space<semaphore_mem>> -> memref<1x!tpu.dma_semaphore, #tpu.memory_space<semaphore_mem>>
    %821 = tpu.memref_squeeze %820 : memref<1x!tpu.dma_semaphore, #tpu.memory_space<semaphore_mem>> -> memref<!tpu.dma_semaphore, #tpu.memory_space<semaphore_mem>>
    tpu.enqueue_dma source(%818 : memref<1x256xf32, #tpu.memory_space<any>>) target(%819 : memref<1x256xf32, #tpu.memory_space<vmem>>) target_semaphore(%821 : memref<!tpu.dma_semaphore, #tpu.memory_space<semaphore_mem>>)
    %822 = arith.index_cast %781 : i32 to index
    %c5_603 = arith.constant 5 : index
    %823 = memref.load %arg1[%822, %c5_603] : memref<8x16xi32, #tpu.memory_space<smem>>
    %c0_i32_604 = arith.constant 0 : i32
    %824 = arith.maxsi %823, %c0_i32_604 : i32
    %c1023_i32_605 = arith.constant 1023 : i32
    %825 = arith.minsi %824, %c1023_i32_605 : i32
    %c0_i32_606 = arith.constant 0 : i32
    %c0_i32_607 = arith.constant 0 : i32
    %826 = tpu.memref_slice %arg4[%825, %c0_i32_607] : memref<1024x256xf32, #tpu.memory_space<any>> -> memref<1x256xf32, #tpu.memory_space<any>>
    %c101_i32 = arith.constant 101 : i32
    %c0_i32_608 = arith.constant 0 : i32
    %827 = tpu.memref_slice %arg13[%c101_i32, %c0_i32_608] : memref<128x256xf32, #tpu.memory_space<vmem>> -> memref<1x256xf32, #tpu.memory_space<vmem>>
    %828 = tpu.memref_slice %arg14[%c0_i32_606] : memref<1x!tpu.dma_semaphore, #tpu.memory_space<semaphore_mem>> -> memref<1x!tpu.dma_semaphore, #tpu.memory_space<semaphore_mem>>
    %829 = tpu.memref_squeeze %828 : memref<1x!tpu.dma_semaphore, #tpu.memory_space<semaphore_mem>> -> memref<!tpu.dma_semaphore, #tpu.memory_space<semaphore_mem>>
    tpu.enqueue_dma source(%826 : memref<1x256xf32, #tpu.memory_space<any>>) target(%827 : memref<1x256xf32, #tpu.memory_space<vmem>>) target_semaphore(%829 : memref<!tpu.dma_semaphore, #tpu.memory_space<semaphore_mem>>)
    %830 = arith.index_cast %781 : i32 to index
    %c6_609 = arith.constant 6 : index
    %831 = memref.load %arg1[%830, %c6_609] : memref<8x16xi32, #tpu.memory_space<smem>>
    %c0_i32_610 = arith.constant 0 : i32
    %832 = arith.maxsi %831, %c0_i32_610 : i32
    %c1023_i32_611 = arith.constant 1023 : i32
    %833 = arith.minsi %832, %c1023_i32_611 : i32
    %c0_i32_612 = arith.constant 0 : i32
    %c0_i32_613 = arith.constant 0 : i32
    %834 = tpu.memref_slice %arg4[%833, %c0_i32_613] : memref<1024x256xf32, #tpu.memory_space<any>> -> memref<1x256xf32, #tpu.memory_space<any>>
    %c102_i32 = arith.constant 102 : i32
    %c0_i32_614 = arith.constant 0 : i32
    %835 = tpu.memref_slice %arg13[%c102_i32, %c0_i32_614] : memref<128x256xf32, #tpu.memory_space<vmem>> -> memref<1x256xf32, #tpu.memory_space<vmem>>
    %836 = tpu.memref_slice %arg14[%c0_i32_612] : memref<1x!tpu.dma_semaphore, #tpu.memory_space<semaphore_mem>> -> memref<1x!tpu.dma_semaphore, #tpu.memory_space<semaphore_mem>>
    %837 = tpu.memref_squeeze %836 : memref<1x!tpu.dma_semaphore, #tpu.memory_space<semaphore_mem>> -> memref<!tpu.dma_semaphore, #tpu.memory_space<semaphore_mem>>
    tpu.enqueue_dma source(%834 : memref<1x256xf32, #tpu.memory_space<any>>) target(%835 : memref<1x256xf32, #tpu.memory_space<vmem>>) target_semaphore(%837 : memref<!tpu.dma_semaphore, #tpu.memory_space<semaphore_mem>>)
    %838 = arith.index_cast %781 : i32 to index
    %c7_615 = arith.constant 7 : index
    %839 = memref.load %arg1[%838, %c7_615] : memref<8x16xi32, #tpu.memory_space<smem>>
    %c0_i32_616 = arith.constant 0 : i32
    %840 = arith.maxsi %839, %c0_i32_616 : i32
    %c1023_i32_617 = arith.constant 1023 : i32
    %841 = arith.minsi %840, %c1023_i32_617 : i32
    %c0_i32_618 = arith.constant 0 : i32
    %c0_i32_619 = arith.constant 0 : i32
    %842 = tpu.memref_slice %arg4[%841, %c0_i32_619] : memref<1024x256xf32, #tpu.memory_space<any>> -> memref<1x256xf32, #tpu.memory_space<any>>
    %c103_i32 = arith.constant 103 : i32
    %c0_i32_620 = arith.constant 0 : i32
    %843 = tpu.memref_slice %arg13[%c103_i32, %c0_i32_620] : memref<128x256xf32, #tpu.memory_space<vmem>> -> memref<1x256xf32, #tpu.memory_space<vmem>>
    %844 = tpu.memref_slice %arg14[%c0_i32_618] : memref<1x!tpu.dma_semaphore, #tpu.memory_space<semaphore_mem>> -> memref<1x!tpu.dma_semaphore, #tpu.memory_space<semaphore_mem>>
    %845 = tpu.memref_squeeze %844 : memref<1x!tpu.dma_semaphore, #tpu.memory_space<semaphore_mem>> -> memref<!tpu.dma_semaphore, #tpu.memory_space<semaphore_mem>>
    tpu.enqueue_dma source(%842 : memref<1x256xf32, #tpu.memory_space<any>>) target(%843 : memref<1x256xf32, #tpu.memory_space<vmem>>) target_semaphore(%845 : memref<!tpu.dma_semaphore, #tpu.memory_space<semaphore_mem>>)
    %846 = arith.index_cast %781 : i32 to index
    %c8_621 = arith.constant 8 : index
    %847 = memref.load %arg1[%846, %c8_621] : memref<8x16xi32, #tpu.memory_space<smem>>
    %c0_i32_622 = arith.constant 0 : i32
    %848 = arith.maxsi %847, %c0_i32_622 : i32
    %c1023_i32_623 = arith.constant 1023 : i32
    %849 = arith.minsi %848, %c1023_i32_623 : i32
    %c0_i32_624 = arith.constant 0 : i32
    %c0_i32_625 = arith.constant 0 : i32
    %850 = tpu.memref_slice %arg4[%849, %c0_i32_625] : memref<1024x256xf32, #tpu.memory_space<any>> -> memref<1x256xf32, #tpu.memory_space<any>>
    %c104_i32 = arith.constant 104 : i32
    %c0_i32_626 = arith.constant 0 : i32
    %851 = tpu.memref_slice %arg13[%c104_i32, %c0_i32_626] : memref<128x256xf32, #tpu.memory_space<vmem>> -> memref<1x256xf32, #tpu.memory_space<vmem>>
    %852 = tpu.memref_slice %arg14[%c0_i32_624] : memref<1x!tpu.dma_semaphore, #tpu.memory_space<semaphore_mem>> -> memref<1x!tpu.dma_semaphore, #tpu.memory_space<semaphore_mem>>
    %853 = tpu.memref_squeeze %852 : memref<1x!tpu.dma_semaphore, #tpu.memory_space<semaphore_mem>> -> memref<!tpu.dma_semaphore, #tpu.memory_space<semaphore_mem>>
    tpu.enqueue_dma source(%850 : memref<1x256xf32, #tpu.memory_space<any>>) target(%851 : memref<1x256xf32, #tpu.memory_space<vmem>>) target_semaphore(%853 : memref<!tpu.dma_semaphore, #tpu.memory_space<semaphore_mem>>)
    %854 = arith.index_cast %781 : i32 to index
    %c9_627 = arith.constant 9 : index
    %855 = memref.load %arg1[%854, %c9_627] : memref<8x16xi32, #tpu.memory_space<smem>>
    %c0_i32_628 = arith.constant 0 : i32
    %856 = arith.maxsi %855, %c0_i32_628 : i32
    %c1023_i32_629 = arith.constant 1023 : i32
    %857 = arith.minsi %856, %c1023_i32_629 : i32
    %c0_i32_630 = arith.constant 0 : i32
    %c0_i32_631 = arith.constant 0 : i32
    %858 = tpu.memref_slice %arg4[%857, %c0_i32_631] : memref<1024x256xf32, #tpu.memory_space<any>> -> memref<1x256xf32, #tpu.memory_space<any>>
    %c105_i32 = arith.constant 105 : i32
    %c0_i32_632 = arith.constant 0 : i32
    %859 = tpu.memref_slice %arg13[%c105_i32, %c0_i32_632] : memref<128x256xf32, #tpu.memory_space<vmem>> -> memref<1x256xf32, #tpu.memory_space<vmem>>
    %860 = tpu.memref_slice %arg14[%c0_i32_630] : memref<1x!tpu.dma_semaphore, #tpu.memory_space<semaphore_mem>> -> memref<1x!tpu.dma_semaphore, #tpu.memory_space<semaphore_mem>>
    %861 = tpu.memref_squeeze %860 : memref<1x!tpu.dma_semaphore, #tpu.memory_space<semaphore_mem>> -> memref<!tpu.dma_semaphore, #tpu.memory_space<semaphore_mem>>
    tpu.enqueue_dma source(%858 : memref<1x256xf32, #tpu.memory_space<any>>) target(%859 : memref<1x256xf32, #tpu.memory_space<vmem>>) target_semaphore(%861 : memref<!tpu.dma_semaphore, #tpu.memory_space<semaphore_mem>>)
    %862 = arith.index_cast %781 : i32 to index
    %c10_633 = arith.constant 10 : index
    %863 = memref.load %arg1[%862, %c10_633] : memref<8x16xi32, #tpu.memory_space<smem>>
    %c0_i32_634 = arith.constant 0 : i32
    %864 = arith.maxsi %863, %c0_i32_634 : i32
    %c1023_i32_635 = arith.constant 1023 : i32
    %865 = arith.minsi %864, %c1023_i32_635 : i32
    %c0_i32_636 = arith.constant 0 : i32
    %c0_i32_637 = arith.constant 0 : i32
    %866 = tpu.memref_slice %arg4[%865, %c0_i32_637] : memref<1024x256xf32, #tpu.memory_space<any>> -> memref<1x256xf32, #tpu.memory_space<any>>
    %c106_i32 = arith.constant 106 : i32
    %c0_i32_638 = arith.constant 0 : i32
    %867 = tpu.memref_slice %arg13[%c106_i32, %c0_i32_638] : memref<128x256xf32, #tpu.memory_space<vmem>> -> memref<1x256xf32, #tpu.memory_space<vmem>>
    %868 = tpu.memref_slice %arg14[%c0_i32_636] : memref<1x!tpu.dma_semaphore, #tpu.memory_space<semaphore_mem>> -> memref<1x!tpu.dma_semaphore, #tpu.memory_space<semaphore_mem>>
    %869 = tpu.memref_squeeze %868 : memref<1x!tpu.dma_semaphore, #tpu.memory_space<semaphore_mem>> -> memref<!tpu.dma_semaphore, #tpu.memory_space<semaphore_mem>>
    tpu.enqueue_dma source(%866 : memref<1x256xf32, #tpu.memory_space<any>>) target(%867 : memref<1x256xf32, #tpu.memory_space<vmem>>) target_semaphore(%869 : memref<!tpu.dma_semaphore, #tpu.memory_space<semaphore_mem>>)
    %870 = arith.index_cast %781 : i32 to index
    %c11_639 = arith.constant 11 : index
    %871 = memref.load %arg1[%870, %c11_639] : memref<8x16xi32, #tpu.memory_space<smem>>
    %c0_i32_640 = arith.constant 0 : i32
    %872 = arith.maxsi %871, %c0_i32_640 : i32
    %c1023_i32_641 = arith.constant 1023 : i32
    %873 = arith.minsi %872, %c1023_i32_641 : i32
    %c0_i32_642 = arith.constant 0 : i32
    %c0_i32_643 = arith.constant 0 : i32
    %874 = tpu.memref_slice %arg4[%873, %c0_i32_643] : memref<1024x256xf32, #tpu.memory_space<any>> -> memref<1x256xf32, #tpu.memory_space<any>>
    %c107_i32 = arith.constant 107 : i32
    %c0_i32_644 = arith.constant 0 : i32
    %875 = tpu.memref_slice %arg13[%c107_i32, %c0_i32_644] : memref<128x256xf32, #tpu.memory_space<vmem>> -> memref<1x256xf32, #tpu.memory_space<vmem>>
    %876 = tpu.memref_slice %arg14[%c0_i32_642] : memref<1x!tpu.dma_semaphore, #tpu.memory_space<semaphore_mem>> -> memref<1x!tpu.dma_semaphore, #tpu.memory_space<semaphore_mem>>
    %877 = tpu.memref_squeeze %876 : memref<1x!tpu.dma_semaphore, #tpu.memory_space<semaphore_mem>> -> memref<!tpu.dma_semaphore, #tpu.memory_space<semaphore_mem>>
    tpu.enqueue_dma source(%874 : memref<1x256xf32, #tpu.memory_space<any>>) target(%875 : memref<1x256xf32, #tpu.memory_space<vmem>>) target_semaphore(%877 : memref<!tpu.dma_semaphore, #tpu.memory_space<semaphore_mem>>)
    %878 = arith.index_cast %781 : i32 to index
    %c12_645 = arith.constant 12 : index
    %879 = memref.load %arg1[%878, %c12_645] : memref<8x16xi32, #tpu.memory_space<smem>>
    %c0_i32_646 = arith.constant 0 : i32
    %880 = arith.maxsi %879, %c0_i32_646 : i32
    %c1023_i32_647 = arith.constant 1023 : i32
    %881 = arith.minsi %880, %c1023_i32_647 : i32
    %c0_i32_648 = arith.constant 0 : i32
    %c0_i32_649 = arith.constant 0 : i32
    %882 = tpu.memref_slice %arg4[%881, %c0_i32_649] : memref<1024x256xf32, #tpu.memory_space<any>> -> memref<1x256xf32, #tpu.memory_space<any>>
    %c108_i32 = arith.constant 108 : i32
    %c0_i32_650 = arith.constant 0 : i32
    %883 = tpu.memref_slice %arg13[%c108_i32, %c0_i32_650] : memref<128x256xf32, #tpu.memory_space<vmem>> -> memref<1x256xf32, #tpu.memory_space<vmem>>
    %884 = tpu.memref_slice %arg14[%c0_i32_648] : memref<1x!tpu.dma_semaphore, #tpu.memory_space<semaphore_mem>> -> memref<1x!tpu.dma_semaphore, #tpu.memory_space<semaphore_mem>>
    %885 = tpu.memref_squeeze %884 : memref<1x!tpu.dma_semaphore, #tpu.memory_space<semaphore_mem>> -> memref<!tpu.dma_semaphore, #tpu.memory_space<semaphore_mem>>
    tpu.enqueue_dma source(%882 : memref<1x256xf32, #tpu.memory_space<any>>) target(%883 : memref<1x256xf32, #tpu.memory_space<vmem>>) target_semaphore(%885 : memref<!tpu.dma_semaphore, #tpu.memory_space<semaphore_mem>>)
    %886 = arith.index_cast %781 : i32 to index
    %c13_651 = arith.constant 13 : index
    %887 = memref.load %arg1[%886, %c13_651] : memref<8x16xi32, #tpu.memory_space<smem>>
    %c0_i32_652 = arith.constant 0 : i32
    %888 = arith.maxsi %887, %c0_i32_652 : i32
    %c1023_i32_653 = arith.constant 1023 : i32
    %889 = arith.minsi %888, %c1023_i32_653 : i32
    %c0_i32_654 = arith.constant 0 : i32
    %c0_i32_655 = arith.constant 0 : i32
    %890 = tpu.memref_slice %arg4[%889, %c0_i32_655] : memref<1024x256xf32, #tpu.memory_space<any>> -> memref<1x256xf32, #tpu.memory_space<any>>
    %c109_i32 = arith.constant 109 : i32
    %c0_i32_656 = arith.constant 0 : i32
    %891 = tpu.memref_slice %arg13[%c109_i32, %c0_i32_656] : memref<128x256xf32, #tpu.memory_space<vmem>> -> memref<1x256xf32, #tpu.memory_space<vmem>>
    %892 = tpu.memref_slice %arg14[%c0_i32_654] : memref<1x!tpu.dma_semaphore, #tpu.memory_space<semaphore_mem>> -> memref<1x!tpu.dma_semaphore, #tpu.memory_space<semaphore_mem>>
    %893 = tpu.memref_squeeze %892 : memref<1x!tpu.dma_semaphore, #tpu.memory_space<semaphore_mem>> -> memref<!tpu.dma_semaphore, #tpu.memory_space<semaphore_mem>>
    tpu.enqueue_dma source(%890 : memref<1x256xf32, #tpu.memory_space<any>>) target(%891 : memref<1x256xf32, #tpu.memory_space<vmem>>) target_semaphore(%893 : memref<!tpu.dma_semaphore, #tpu.memory_space<semaphore_mem>>)
    %894 = arith.index_cast %781 : i32 to index
    %c14_657 = arith.constant 14 : index
    %895 = memref.load %arg1[%894, %c14_657] : memref<8x16xi32, #tpu.memory_space<smem>>
    %c0_i32_658 = arith.constant 0 : i32
    %896 = arith.maxsi %895, %c0_i32_658 : i32
    %c1023_i32_659 = arith.constant 1023 : i32
    %897 = arith.minsi %896, %c1023_i32_659 : i32
    %c0_i32_660 = arith.constant 0 : i32
    %c0_i32_661 = arith.constant 0 : i32
    %898 = tpu.memref_slice %arg4[%897, %c0_i32_661] : memref<1024x256xf32, #tpu.memory_space<any>> -> memref<1x256xf32, #tpu.memory_space<any>>
    %c110_i32 = arith.constant 110 : i32
    %c0_i32_662 = arith.constant 0 : i32
    %899 = tpu.memref_slice %arg13[%c110_i32, %c0_i32_662] : memref<128x256xf32, #tpu.memory_space<vmem>> -> memref<1x256xf32, #tpu.memory_space<vmem>>
    %900 = tpu.memref_slice %arg14[%c0_i32_660] : memref<1x!tpu.dma_semaphore, #tpu.memory_space<semaphore_mem>> -> memref<1x!tpu.dma_semaphore, #tpu.memory_space<semaphore_mem>>
    %901 = tpu.memref_squeeze %900 : memref<1x!tpu.dma_semaphore, #tpu.memory_space<semaphore_mem>> -> memref<!tpu.dma_semaphore, #tpu.memory_space<semaphore_mem>>
    tpu.enqueue_dma source(%898 : memref<1x256xf32, #tpu.memory_space<any>>) target(%899 : memref<1x256xf32, #tpu.memory_space<vmem>>) target_semaphore(%901 : memref<!tpu.dma_semaphore, #tpu.memory_space<semaphore_mem>>)
    %902 = arith.index_cast %781 : i32 to index
    %c15_663 = arith.constant 15 : index
    %903 = memref.load %arg1[%902, %c15_663] : memref<8x16xi32, #tpu.memory_space<smem>>
    %c0_i32_664 = arith.constant 0 : i32
    %904 = arith.maxsi %903, %c0_i32_664 : i32
    %c1023_i32_665 = arith.constant 1023 : i32
    %905 = arith.minsi %904, %c1023_i32_665 : i32
    %c0_i32_666 = arith.constant 0 : i32
    %c0_i32_667 = arith.constant 0 : i32
    %906 = tpu.memref_slice %arg4[%905, %c0_i32_667] : memref<1024x256xf32, #tpu.memory_space<any>> -> memref<1x256xf32, #tpu.memory_space<any>>
    %c111_i32 = arith.constant 111 : i32
    %c0_i32_668 = arith.constant 0 : i32
    %907 = tpu.memref_slice %arg13[%c111_i32, %c0_i32_668] : memref<128x256xf32, #tpu.memory_space<vmem>> -> memref<1x256xf32, #tpu.memory_space<vmem>>
    %908 = tpu.memref_slice %arg14[%c0_i32_666] : memref<1x!tpu.dma_semaphore, #tpu.memory_space<semaphore_mem>> -> memref<1x!tpu.dma_semaphore, #tpu.memory_space<semaphore_mem>>
    %909 = tpu.memref_squeeze %908 : memref<1x!tpu.dma_semaphore, #tpu.memory_space<semaphore_mem>> -> memref<!tpu.dma_semaphore, #tpu.memory_space<semaphore_mem>>
    tpu.enqueue_dma source(%906 : memref<1x256xf32, #tpu.memory_space<any>>) target(%907 : memref<1x256xf32, #tpu.memory_space<vmem>>) target_semaphore(%909 : memref<!tpu.dma_semaphore, #tpu.memory_space<semaphore_mem>>)
    %c8_i32_669 = arith.constant 8 : i32
    %910 = arith.muli %arg0, %c8_i32_669 : i32
    %c7_i32_670 = arith.constant 7 : i32
    %911 = arith.addi %910, %c7_i32_670 : i32
    %912 = arith.index_cast %911 : i32 to index
    %c0_671 = arith.constant 0 : index
    %913 = memref.load %arg1[%912, %c0_671] : memref<8x16xi32, #tpu.memory_space<smem>>
    %c0_i32_672 = arith.constant 0 : i32
    %914 = arith.maxsi %913, %c0_i32_672 : i32
    %c1023_i32_673 = arith.constant 1023 : i32
    %915 = arith.minsi %914, %c1023_i32_673 : i32
    %c0_i32_674 = arith.constant 0 : i32
    %c0_i32_675 = arith.constant 0 : i32
    %916 = tpu.memref_slice %arg4[%915, %c0_i32_675] : memref<1024x256xf32, #tpu.memory_space<any>> -> memref<1x256xf32, #tpu.memory_space<any>>
    %c112_i32 = arith.constant 112 : i32
    %c0_i32_676 = arith.constant 0 : i32
    %917 = tpu.memref_slice %arg13[%c112_i32, %c0_i32_676] : memref<128x256xf32, #tpu.memory_space<vmem>> -> memref<1x256xf32, #tpu.memory_space<vmem>>
    %918 = tpu.memref_slice %arg14[%c0_i32_674] : memref<1x!tpu.dma_semaphore, #tpu.memory_space<semaphore_mem>> -> memref<1x!tpu.dma_semaphore, #tpu.memory_space<semaphore_mem>>
    %919 = tpu.memref_squeeze %918 : memref<1x!tpu.dma_semaphore, #tpu.memory_space<semaphore_mem>> -> memref<!tpu.dma_semaphore, #tpu.memory_space<semaphore_mem>>
    tpu.enqueue_dma source(%916 : memref<1x256xf32, #tpu.memory_space<any>>) target(%917 : memref<1x256xf32, #tpu.memory_space<vmem>>) target_semaphore(%919 : memref<!tpu.dma_semaphore, #tpu.memory_space<semaphore_mem>>)
    %920 = arith.index_cast %911 : i32 to index
    %c1_677 = arith.constant 1 : index
    %921 = memref.load %arg1[%920, %c1_677] : memref<8x16xi32, #tpu.memory_space<smem>>
    %c0_i32_678 = arith.constant 0 : i32
    %922 = arith.maxsi %921, %c0_i32_678 : i32
    %c1023_i32_679 = arith.constant 1023 : i32
    %923 = arith.minsi %922, %c1023_i32_679 : i32
    %c0_i32_680 = arith.constant 0 : i32
    %c0_i32_681 = arith.constant 0 : i32
    %924 = tpu.memref_slice %arg4[%923, %c0_i32_681] : memref<1024x256xf32, #tpu.memory_space<any>> -> memref<1x256xf32, #tpu.memory_space<any>>
    %c113_i32 = arith.constant 113 : i32
    %c0_i32_682 = arith.constant 0 : i32
    %925 = tpu.memref_slice %arg13[%c113_i32, %c0_i32_682] : memref<128x256xf32, #tpu.memory_space<vmem>> -> memref<1x256xf32, #tpu.memory_space<vmem>>
    %926 = tpu.memref_slice %arg14[%c0_i32_680] : memref<1x!tpu.dma_semaphore, #tpu.memory_space<semaphore_mem>> -> memref<1x!tpu.dma_semaphore, #tpu.memory_space<semaphore_mem>>
    %927 = tpu.memref_squeeze %926 : memref<1x!tpu.dma_semaphore, #tpu.memory_space<semaphore_mem>> -> memref<!tpu.dma_semaphore, #tpu.memory_space<semaphore_mem>>
    tpu.enqueue_dma source(%924 : memref<1x256xf32, #tpu.memory_space<any>>) target(%925 : memref<1x256xf32, #tpu.memory_space<vmem>>) target_semaphore(%927 : memref<!tpu.dma_semaphore, #tpu.memory_space<semaphore_mem>>)
    %928 = arith.index_cast %911 : i32 to index
    %c2_683 = arith.constant 2 : index
    %929 = memref.load %arg1[%928, %c2_683] : memref<8x16xi32, #tpu.memory_space<smem>>
    %c0_i32_684 = arith.constant 0 : i32
    %930 = arith.maxsi %929, %c0_i32_684 : i32
    %c1023_i32_685 = arith.constant 1023 : i32
    %931 = arith.minsi %930, %c1023_i32_685 : i32
    %c0_i32_686 = arith.constant 0 : i32
    %c0_i32_687 = arith.constant 0 : i32
    %932 = tpu.memref_slice %arg4[%931, %c0_i32_687] : memref<1024x256xf32, #tpu.memory_space<any>> -> memref<1x256xf32, #tpu.memory_space<any>>
    %c114_i32 = arith.constant 114 : i32
    %c0_i32_688 = arith.constant 0 : i32
    %933 = tpu.memref_slice %arg13[%c114_i32, %c0_i32_688] : memref<128x256xf32, #tpu.memory_space<vmem>> -> memref<1x256xf32, #tpu.memory_space<vmem>>
    %934 = tpu.memref_slice %arg14[%c0_i32_686] : memref<1x!tpu.dma_semaphore, #tpu.memory_space<semaphore_mem>> -> memref<1x!tpu.dma_semaphore, #tpu.memory_space<semaphore_mem>>
    %935 = tpu.memref_squeeze %934 : memref<1x!tpu.dma_semaphore, #tpu.memory_space<semaphore_mem>> -> memref<!tpu.dma_semaphore, #tpu.memory_space<semaphore_mem>>
    tpu.enqueue_dma source(%932 : memref<1x256xf32, #tpu.memory_space<any>>) target(%933 : memref<1x256xf32, #tpu.memory_space<vmem>>) target_semaphore(%935 : memref<!tpu.dma_semaphore, #tpu.memory_space<semaphore_mem>>)
    %936 = arith.index_cast %911 : i32 to index
    %c3_689 = arith.constant 3 : index
    %937 = memref.load %arg1[%936, %c3_689] : memref<8x16xi32, #tpu.memory_space<smem>>
    %c0_i32_690 = arith.constant 0 : i32
    %938 = arith.maxsi %937, %c0_i32_690 : i32
    %c1023_i32_691 = arith.constant 1023 : i32
    %939 = arith.minsi %938, %c1023_i32_691 : i32
    %c0_i32_692 = arith.constant 0 : i32
    %c0_i32_693 = arith.constant 0 : i32
    %940 = tpu.memref_slice %arg4[%939, %c0_i32_693] : memref<1024x256xf32, #tpu.memory_space<any>> -> memref<1x256xf32, #tpu.memory_space<any>>
    %c115_i32 = arith.constant 115 : i32
    %c0_i32_694 = arith.constant 0 : i32
    %941 = tpu.memref_slice %arg13[%c115_i32, %c0_i32_694] : memref<128x256xf32, #tpu.memory_space<vmem>> -> memref<1x256xf32, #tpu.memory_space<vmem>>
    %942 = tpu.memref_slice %arg14[%c0_i32_692] : memref<1x!tpu.dma_semaphore, #tpu.memory_space<semaphore_mem>> -> memref<1x!tpu.dma_semaphore, #tpu.memory_space<semaphore_mem>>
    %943 = tpu.memref_squeeze %942 : memref<1x!tpu.dma_semaphore, #tpu.memory_space<semaphore_mem>> -> memref<!tpu.dma_semaphore, #tpu.memory_space<semaphore_mem>>
    tpu.enqueue_dma source(%940 : memref<1x256xf32, #tpu.memory_space<any>>) target(%941 : memref<1x256xf32, #tpu.memory_space<vmem>>) target_semaphore(%943 : memref<!tpu.dma_semaphore, #tpu.memory_space<semaphore_mem>>)
    %944 = arith.index_cast %911 : i32 to index
    %c4_695 = arith.constant 4 : index
    %945 = memref.load %arg1[%944, %c4_695] : memref<8x16xi32, #tpu.memory_space<smem>>
    %c0_i32_696 = arith.constant 0 : i32
    %946 = arith.maxsi %945, %c0_i32_696 : i32
    %c1023_i32_697 = arith.constant 1023 : i32
    %947 = arith.minsi %946, %c1023_i32_697 : i32
    %c0_i32_698 = arith.constant 0 : i32
    %c0_i32_699 = arith.constant 0 : i32
    %948 = tpu.memref_slice %arg4[%947, %c0_i32_699] : memref<1024x256xf32, #tpu.memory_space<any>> -> memref<1x256xf32, #tpu.memory_space<any>>
    %c116_i32 = arith.constant 116 : i32
    %c0_i32_700 = arith.constant 0 : i32
    %949 = tpu.memref_slice %arg13[%c116_i32, %c0_i32_700] : memref<128x256xf32, #tpu.memory_space<vmem>> -> memref<1x256xf32, #tpu.memory_space<vmem>>
    %950 = tpu.memref_slice %arg14[%c0_i32_698] : memref<1x!tpu.dma_semaphore, #tpu.memory_space<semaphore_mem>> -> memref<1x!tpu.dma_semaphore, #tpu.memory_space<semaphore_mem>>
    %951 = tpu.memref_squeeze %950 : memref<1x!tpu.dma_semaphore, #tpu.memory_space<semaphore_mem>> -> memref<!tpu.dma_semaphore, #tpu.memory_space<semaphore_mem>>
    tpu.enqueue_dma source(%948 : memref<1x256xf32, #tpu.memory_space<any>>) target(%949 : memref<1x256xf32, #tpu.memory_space<vmem>>) target_semaphore(%951 : memref<!tpu.dma_semaphore, #tpu.memory_space<semaphore_mem>>)
    %952 = arith.index_cast %911 : i32 to index
    %c5_701 = arith.constant 5 : index
    %953 = memref.load %arg1[%952, %c5_701] : memref<8x16xi32, #tpu.memory_space<smem>>
    %c0_i32_702 = arith.constant 0 : i32
    %954 = arith.maxsi %953, %c0_i32_702 : i32
    %c1023_i32_703 = arith.constant 1023 : i32
    %955 = arith.minsi %954, %c1023_i32_703 : i32
    %c0_i32_704 = arith.constant 0 : i32
    %c0_i32_705 = arith.constant 0 : i32
    %956 = tpu.memref_slice %arg4[%955, %c0_i32_705] : memref<1024x256xf32, #tpu.memory_space<any>> -> memref<1x256xf32, #tpu.memory_space<any>>
    %c117_i32 = arith.constant 117 : i32
    %c0_i32_706 = arith.constant 0 : i32
    %957 = tpu.memref_slice %arg13[%c117_i32, %c0_i32_706] : memref<128x256xf32, #tpu.memory_space<vmem>> -> memref<1x256xf32, #tpu.memory_space<vmem>>
    %958 = tpu.memref_slice %arg14[%c0_i32_704] : memref<1x!tpu.dma_semaphore, #tpu.memory_space<semaphore_mem>> -> memref<1x!tpu.dma_semaphore, #tpu.memory_space<semaphore_mem>>
    %959 = tpu.memref_squeeze %958 : memref<1x!tpu.dma_semaphore, #tpu.memory_space<semaphore_mem>> -> memref<!tpu.dma_semaphore, #tpu.memory_space<semaphore_mem>>
    tpu.enqueue_dma source(%956 : memref<1x256xf32, #tpu.memory_space<any>>) target(%957 : memref<1x256xf32, #tpu.memory_space<vmem>>) target_semaphore(%959 : memref<!tpu.dma_semaphore, #tpu.memory_space<semaphore_mem>>)
    %960 = arith.index_cast %911 : i32 to index
    %c6_707 = arith.constant 6 : index
    %961 = memref.load %arg1[%960, %c6_707] : memref<8x16xi32, #tpu.memory_space<smem>>
    %c0_i32_708 = arith.constant 0 : i32
    %962 = arith.maxsi %961, %c0_i32_708 : i32
    %c1023_i32_709 = arith.constant 1023 : i32
    %963 = arith.minsi %962, %c1023_i32_709 : i32
    %c0_i32_710 = arith.constant 0 : i32
    %c0_i32_711 = arith.constant 0 : i32
    %964 = tpu.memref_slice %arg4[%963, %c0_i32_711] : memref<1024x256xf32, #tpu.memory_space<any>> -> memref<1x256xf32, #tpu.memory_space<any>>
    %c118_i32 = arith.constant 118 : i32
    %c0_i32_712 = arith.constant 0 : i32
    %965 = tpu.memref_slice %arg13[%c118_i32, %c0_i32_712] : memref<128x256xf32, #tpu.memory_space<vmem>> -> memref<1x256xf32, #tpu.memory_space<vmem>>
    %966 = tpu.memref_slice %arg14[%c0_i32_710] : memref<1x!tpu.dma_semaphore, #tpu.memory_space<semaphore_mem>> -> memref<1x!tpu.dma_semaphore, #tpu.memory_space<semaphore_mem>>
    %967 = tpu.memref_squeeze %966 : memref<1x!tpu.dma_semaphore, #tpu.memory_space<semaphore_mem>> -> memref<!tpu.dma_semaphore, #tpu.memory_space<semaphore_mem>>
    tpu.enqueue_dma source(%964 : memref<1x256xf32, #tpu.memory_space<any>>) target(%965 : memref<1x256xf32, #tpu.memory_space<vmem>>) target_semaphore(%967 : memref<!tpu.dma_semaphore, #tpu.memory_space<semaphore_mem>>)
    %968 = arith.index_cast %911 : i32 to index
    %c7_713 = arith.constant 7 : index
    %969 = memref.load %arg1[%968, %c7_713] : memref<8x16xi32, #tpu.memory_space<smem>>
    %c0_i32_714 = arith.constant 0 : i32
    %970 = arith.maxsi %969, %c0_i32_714 : i32
    %c1023_i32_715 = arith.constant 1023 : i32
    %971 = arith.minsi %970, %c1023_i32_715 : i32
    %c0_i32_716 = arith.constant 0 : i32
    %c0_i32_717 = arith.constant 0 : i32
    %972 = tpu.memref_slice %arg4[%971, %c0_i32_717] : memref<1024x256xf32, #tpu.memory_space<any>> -> memref<1x256xf32, #tpu.memory_space<any>>
    %c119_i32 = arith.constant 119 : i32
    %c0_i32_718 = arith.constant 0 : i32
    %973 = tpu.memref_slice %arg13[%c119_i32, %c0_i32_718] : memref<128x256xf32, #tpu.memory_space<vmem>> -> memref<1x256xf32, #tpu.memory_space<vmem>>
    %974 = tpu.memref_slice %arg14[%c0_i32_716] : memref<1x!tpu.dma_semaphore, #tpu.memory_space<semaphore_mem>> -> memref<1x!tpu.dma_semaphore, #tpu.memory_space<semaphore_mem>>
    %975 = tpu.memref_squeeze %974 : memref<1x!tpu.dma_semaphore, #tpu.memory_space<semaphore_mem>> -> memref<!tpu.dma_semaphore, #tpu.memory_space<semaphore_mem>>
    tpu.enqueue_dma source(%972 : memref<1x256xf32, #tpu.memory_space<any>>) target(%973 : memref<1x256xf32, #tpu.memory_space<vmem>>) target_semaphore(%975 : memref<!tpu.dma_semaphore, #tpu.memory_space<semaphore_mem>>)
    %976 = arith.index_cast %911 : i32 to index
    %c8_719 = arith.constant 8 : index
    %977 = memref.load %arg1[%976, %c8_719] : memref<8x16xi32, #tpu.memory_space<smem>>
    %c0_i32_720 = arith.constant 0 : i32
    %978 = arith.maxsi %977, %c0_i32_720 : i32
    %c1023_i32_721 = arith.constant 1023 : i32
    %979 = arith.minsi %978, %c1023_i32_721 : i32
    %c0_i32_722 = arith.constant 0 : i32
    %c0_i32_723 = arith.constant 0 : i32
    %980 = tpu.memref_slice %arg4[%979, %c0_i32_723] : memref<1024x256xf32, #tpu.memory_space<any>> -> memref<1x256xf32, #tpu.memory_space<any>>
    %c120_i32 = arith.constant 120 : i32
    %c0_i32_724 = arith.constant 0 : i32
    %981 = tpu.memref_slice %arg13[%c120_i32, %c0_i32_724] : memref<128x256xf32, #tpu.memory_space<vmem>> -> memref<1x256xf32, #tpu.memory_space<vmem>>
    %982 = tpu.memref_slice %arg14[%c0_i32_722] : memref<1x!tpu.dma_semaphore, #tpu.memory_space<semaphore_mem>> -> memref<1x!tpu.dma_semaphore, #tpu.memory_space<semaphore_mem>>
    %983 = tpu.memref_squeeze %982 : memref<1x!tpu.dma_semaphore, #tpu.memory_space<semaphore_mem>> -> memref<!tpu.dma_semaphore, #tpu.memory_space<semaphore_mem>>
    tpu.enqueue_dma source(%980 : memref<1x256xf32, #tpu.memory_space<any>>) target(%981 : memref<1x256xf32, #tpu.memory_space<vmem>>) target_semaphore(%983 : memref<!tpu.dma_semaphore, #tpu.memory_space<semaphore_mem>>)
    %984 = arith.index_cast %911 : i32 to index
    %c9_725 = arith.constant 9 : index
    %985 = memref.load %arg1[%984, %c9_725] : memref<8x16xi32, #tpu.memory_space<smem>>
    %c0_i32_726 = arith.constant 0 : i32
    %986 = arith.maxsi %985, %c0_i32_726 : i32
    %c1023_i32_727 = arith.constant 1023 : i32
    %987 = arith.minsi %986, %c1023_i32_727 : i32
    %c0_i32_728 = arith.constant 0 : i32
    %c0_i32_729 = arith.constant 0 : i32
    %988 = tpu.memref_slice %arg4[%987, %c0_i32_729] : memref<1024x256xf32, #tpu.memory_space<any>> -> memref<1x256xf32, #tpu.memory_space<any>>
    %c121_i32 = arith.constant 121 : i32
    %c0_i32_730 = arith.constant 0 : i32
    %989 = tpu.memref_slice %arg13[%c121_i32, %c0_i32_730] : memref<128x256xf32, #tpu.memory_space<vmem>> -> memref<1x256xf32, #tpu.memory_space<vmem>>
    %990 = tpu.memref_slice %arg14[%c0_i32_728] : memref<1x!tpu.dma_semaphore, #tpu.memory_space<semaphore_mem>> -> memref<1x!tpu.dma_semaphore, #tpu.memory_space<semaphore_mem>>
    %991 = tpu.memref_squeeze %990 : memref<1x!tpu.dma_semaphore, #tpu.memory_space<semaphore_mem>> -> memref<!tpu.dma_semaphore, #tpu.memory_space<semaphore_mem>>
    tpu.enqueue_dma source(%988 : memref<1x256xf32, #tpu.memory_space<any>>) target(%989 : memref<1x256xf32, #tpu.memory_space<vmem>>) target_semaphore(%991 : memref<!tpu.dma_semaphore, #tpu.memory_space<semaphore_mem>>)
    %992 = arith.index_cast %911 : i32 to index
    %c10_731 = arith.constant 10 : index
    %993 = memref.load %arg1[%992, %c10_731] : memref<8x16xi32, #tpu.memory_space<smem>>
    %c0_i32_732 = arith.constant 0 : i32
    %994 = arith.maxsi %993, %c0_i32_732 : i32
    %c1023_i32_733 = arith.constant 1023 : i32
    %995 = arith.minsi %994, %c1023_i32_733 : i32
    %c0_i32_734 = arith.constant 0 : i32
    %c0_i32_735 = arith.constant 0 : i32
    %996 = tpu.memref_slice %arg4[%995, %c0_i32_735] : memref<1024x256xf32, #tpu.memory_space<any>> -> memref<1x256xf32, #tpu.memory_space<any>>
    %c122_i32 = arith.constant 122 : i32
    %c0_i32_736 = arith.constant 0 : i32
    %997 = tpu.memref_slice %arg13[%c122_i32, %c0_i32_736] : memref<128x256xf32, #tpu.memory_space<vmem>> -> memref<1x256xf32, #tpu.memory_space<vmem>>
    %998 = tpu.memref_slice %arg14[%c0_i32_734] : memref<1x!tpu.dma_semaphore, #tpu.memory_space<semaphore_mem>> -> memref<1x!tpu.dma_semaphore, #tpu.memory_space<semaphore_mem>>
    %999 = tpu.memref_squeeze %998 : memref<1x!tpu.dma_semaphore, #tpu.memory_space<semaphore_mem>> -> memref<!tpu.dma_semaphore, #tpu.memory_space<semaphore_mem>>
    tpu.enqueue_dma source(%996 : memref<1x256xf32, #tpu.memory_space<any>>) target(%997 : memref<1x256xf32, #tpu.memory_space<vmem>>) target_semaphore(%999 : memref<!tpu.dma_semaphore, #tpu.memory_space<semaphore_mem>>)
    %1000 = arith.index_cast %911 : i32 to index
    %c11_737 = arith.constant 11 : index
    %1001 = memref.load %arg1[%1000, %c11_737] : memref<8x16xi32, #tpu.memory_space<smem>>
    %c0_i32_738 = arith.constant 0 : i32
    %1002 = arith.maxsi %1001, %c0_i32_738 : i32
    %c1023_i32_739 = arith.constant 1023 : i32
    %1003 = arith.minsi %1002, %c1023_i32_739 : i32
    %c0_i32_740 = arith.constant 0 : i32
    %c0_i32_741 = arith.constant 0 : i32
    %1004 = tpu.memref_slice %arg4[%1003, %c0_i32_741] : memref<1024x256xf32, #tpu.memory_space<any>> -> memref<1x256xf32, #tpu.memory_space<any>>
    %c123_i32 = arith.constant 123 : i32
    %c0_i32_742 = arith.constant 0 : i32
    %1005 = tpu.memref_slice %arg13[%c123_i32, %c0_i32_742] : memref<128x256xf32, #tpu.memory_space<vmem>> -> memref<1x256xf32, #tpu.memory_space<vmem>>
    %1006 = tpu.memref_slice %arg14[%c0_i32_740] : memref<1x!tpu.dma_semaphore, #tpu.memory_space<semaphore_mem>> -> memref<1x!tpu.dma_semaphore, #tpu.memory_space<semaphore_mem>>
    %1007 = tpu.memref_squeeze %1006 : memref<1x!tpu.dma_semaphore, #tpu.memory_space<semaphore_mem>> -> memref<!tpu.dma_semaphore, #tpu.memory_space<semaphore_mem>>
    tpu.enqueue_dma source(%1004 : memref<1x256xf32, #tpu.memory_space<any>>) target(%1005 : memref<1x256xf32, #tpu.memory_space<vmem>>) target_semaphore(%1007 : memref<!tpu.dma_semaphore, #tpu.memory_space<semaphore_mem>>)
    %1008 = arith.index_cast %911 : i32 to index
    %c12_743 = arith.constant 12 : index
    %1009 = memref.load %arg1[%1008, %c12_743] : memref<8x16xi32, #tpu.memory_space<smem>>
    %c0_i32_744 = arith.constant 0 : i32
    %1010 = arith.maxsi %1009, %c0_i32_744 : i32
    %c1023_i32_745 = arith.constant 1023 : i32
    %1011 = arith.minsi %1010, %c1023_i32_745 : i32
    %c0_i32_746 = arith.constant 0 : i32
    %c0_i32_747 = arith.constant 0 : i32
    %1012 = tpu.memref_slice %arg4[%1011, %c0_i32_747] : memref<1024x256xf32, #tpu.memory_space<any>> -> memref<1x256xf32, #tpu.memory_space<any>>
    %c124_i32 = arith.constant 124 : i32
    %c0_i32_748 = arith.constant 0 : i32
    %1013 = tpu.memref_slice %arg13[%c124_i32, %c0_i32_748] : memref<128x256xf32, #tpu.memory_space<vmem>> -> memref<1x256xf32, #tpu.memory_space<vmem>>
    %1014 = tpu.memref_slice %arg14[%c0_i32_746] : memref<1x!tpu.dma_semaphore, #tpu.memory_space<semaphore_mem>> -> memref<1x!tpu.dma_semaphore, #tpu.memory_space<semaphore_mem>>
    %1015 = tpu.memref_squeeze %1014 : memref<1x!tpu.dma_semaphore, #tpu.memory_space<semaphore_mem>> -> memref<!tpu.dma_semaphore, #tpu.memory_space<semaphore_mem>>
    tpu.enqueue_dma source(%1012 : memref<1x256xf32, #tpu.memory_space<any>>) target(%1013 : memref<1x256xf32, #tpu.memory_space<vmem>>) target_semaphore(%1015 : memref<!tpu.dma_semaphore, #tpu.memory_space<semaphore_mem>>)
    %1016 = arith.index_cast %911 : i32 to index
    %c13_749 = arith.constant 13 : index
    %1017 = memref.load %arg1[%1016, %c13_749] : memref<8x16xi32, #tpu.memory_space<smem>>
    %c0_i32_750 = arith.constant 0 : i32
    %1018 = arith.maxsi %1017, %c0_i32_750 : i32
    %c1023_i32_751 = arith.constant 1023 : i32
    %1019 = arith.minsi %1018, %c1023_i32_751 : i32
    %c0_i32_752 = arith.constant 0 : i32
    %c0_i32_753 = arith.constant 0 : i32
    %1020 = tpu.memref_slice %arg4[%1019, %c0_i32_753] : memref<1024x256xf32, #tpu.memory_space<any>> -> memref<1x256xf32, #tpu.memory_space<any>>
    %c125_i32 = arith.constant 125 : i32
    %c0_i32_754 = arith.constant 0 : i32
    %1021 = tpu.memref_slice %arg13[%c125_i32, %c0_i32_754] : memref<128x256xf32, #tpu.memory_space<vmem>> -> memref<1x256xf32, #tpu.memory_space<vmem>>
    %1022 = tpu.memref_slice %arg14[%c0_i32_752] : memref<1x!tpu.dma_semaphore, #tpu.memory_space<semaphore_mem>> -> memref<1x!tpu.dma_semaphore, #tpu.memory_space<semaphore_mem>>
    %1023 = tpu.memref_squeeze %1022 : memref<1x!tpu.dma_semaphore, #tpu.memory_space<semaphore_mem>> -> memref<!tpu.dma_semaphore, #tpu.memory_space<semaphore_mem>>
    tpu.enqueue_dma source(%1020 : memref<1x256xf32, #tpu.memory_space<any>>) target(%1021 : memref<1x256xf32, #tpu.memory_space<vmem>>) target_semaphore(%1023 : memref<!tpu.dma_semaphore, #tpu.memory_space<semaphore_mem>>)
    %1024 = arith.index_cast %911 : i32 to index
    %c14_755 = arith.constant 14 : index
    %1025 = memref.load %arg1[%1024, %c14_755] : memref<8x16xi32, #tpu.memory_space<smem>>
    %c0_i32_756 = arith.constant 0 : i32
    %1026 = arith.maxsi %1025, %c0_i32_756 : i32
    %c1023_i32_757 = arith.constant 1023 : i32
    %1027 = arith.minsi %1026, %c1023_i32_757 : i32
    %c0_i32_758 = arith.constant 0 : i32
    %c0_i32_759 = arith.constant 0 : i32
    %1028 = tpu.memref_slice %arg4[%1027, %c0_i32_759] : memref<1024x256xf32, #tpu.memory_space<any>> -> memref<1x256xf32, #tpu.memory_space<any>>
    %c126_i32 = arith.constant 126 : i32
    %c0_i32_760 = arith.constant 0 : i32
    %1029 = tpu.memref_slice %arg13[%c126_i32, %c0_i32_760] : memref<128x256xf32, #tpu.memory_space<vmem>> -> memref<1x256xf32, #tpu.memory_space<vmem>>
    %1030 = tpu.memref_slice %arg14[%c0_i32_758] : memref<1x!tpu.dma_semaphore, #tpu.memory_space<semaphore_mem>> -> memref<1x!tpu.dma_semaphore, #tpu.memory_space<semaphore_mem>>
    %1031 = tpu.memref_squeeze %1030 : memref<1x!tpu.dma_semaphore, #tpu.memory_space<semaphore_mem>> -> memref<!tpu.dma_semaphore, #tpu.memory_space<semaphore_mem>>
    tpu.enqueue_dma source(%1028 : memref<1x256xf32, #tpu.memory_space<any>>) target(%1029 : memref<1x256xf32, #tpu.memory_space<vmem>>) target_semaphore(%1031 : memref<!tpu.dma_semaphore, #tpu.memory_space<semaphore_mem>>)
    %1032 = arith.index_cast %911 : i32 to index
    %c15_761 = arith.constant 15 : index
    %1033 = memref.load %arg1[%1032, %c15_761] : memref<8x16xi32, #tpu.memory_space<smem>>
    %c0_i32_762 = arith.constant 0 : i32
    %1034 = arith.maxsi %1033, %c0_i32_762 : i32
    %c1023_i32_763 = arith.constant 1023 : i32
    %1035 = arith.minsi %1034, %c1023_i32_763 : i32
    %c0_i32_764 = arith.constant 0 : i32
    %c0_i32_765 = arith.constant 0 : i32
    %1036 = tpu.memref_slice %arg4[%1035, %c0_i32_765] : memref<1024x256xf32, #tpu.memory_space<any>> -> memref<1x256xf32, #tpu.memory_space<any>>
    %c127_i32 = arith.constant 127 : i32
    %c0_i32_766 = arith.constant 0 : i32
    %1037 = tpu.memref_slice %arg13[%c127_i32, %c0_i32_766] : memref<128x256xf32, #tpu.memory_space<vmem>> -> memref<1x256xf32, #tpu.memory_space<vmem>>
    %1038 = tpu.memref_slice %arg14[%c0_i32_764] : memref<1x!tpu.dma_semaphore, #tpu.memory_space<semaphore_mem>> -> memref<1x!tpu.dma_semaphore, #tpu.memory_space<semaphore_mem>>
    %1039 = tpu.memref_squeeze %1038 : memref<1x!tpu.dma_semaphore, #tpu.memory_space<semaphore_mem>> -> memref<!tpu.dma_semaphore, #tpu.memory_space<semaphore_mem>>
    tpu.enqueue_dma source(%1036 : memref<1x256xf32, #tpu.memory_space<any>>) target(%1037 : memref<1x256xf32, #tpu.memory_space<vmem>>) target_semaphore(%1039 : memref<!tpu.dma_semaphore, #tpu.memory_space<semaphore_mem>>)
    %c0_767 = arith.constant 0 : index
    %c0_768 = arith.constant 0 : index
    %1040 = vector.load %arg3[%c0_767, %c0_768] : memref<8x16xf32, #tpu.memory_space<vmem>>, vector<8x16xf32>
    %c0_769 = arith.constant 0 : index
    %c0_770 = arith.constant 0 : index
    %1041 = vector.load %arg7[%c0_769, %c0_770] : memref<16x128xf32, #tpu.memory_space<vmem>>, vector<16x128xf32>
    %cst = arith.constant dense<0.000000e+00> : vector<8x128xf32>
    %1042 = tpu.matmul %1040, %1041, %cst {dimension_numbers = #tpu.dot_dimension_numbers<[1], [0], [0], [1], [0, 0, 1, 1], [], []>} : vector<8x16xf32>, vector<16x128xf32>, vector<8x128xf32> -> vector<8x128xf32>
    %c0_771 = arith.constant 0 : index
    %c0_772 = arith.constant 0 : index
    %1043 = vector.load %arg8[%c0_771, %c0_772] : memref<1x128xf32, #tpu.memory_space<vmem>>, vector<1x128xf32>
    %1044 = vector.broadcast %1043 : vector<1x128xf32> to vector<8x128xf32>
    %1045 = arith.addf %1042, %1044 : vector<8x128xf32>
    %cst_773 = arith.constant 0.000000e+00 : f32
    %1046 = vector.broadcast %cst_773 : f32 to vector<8x128xf32>
    %1047 = arith.maximumf %1045, %1046 : vector<8x128xf32>
    %1048 = arith.truncf %1047 : vector<8x128xf32> to vector<8x128xbf16>
    %c0_774 = arith.constant 0 : index
    %c0_775 = arith.constant 0 : index
    %1049 = vector.load %arg10[%c0_774, %c0_775] : memref<128x128xbf16, #tpu.memory_space<vmem>>, vector<128x128xbf16>
    %cst_776 = arith.constant dense<0.000000e+00> : vector<8x128xf32>
    %1050 = tpu.matmul %1048, %1049, %cst_776 {dimension_numbers = #tpu.dot_dimension_numbers<[1], [0], [0], [1], [0, 0, 1, 1], [], []>} : vector<8x128xbf16>, vector<128x128xbf16>, vector<8x128xf32> -> vector<8x128xf32>
    %c0_777 = arith.constant 0 : index
    %c0_778 = arith.constant 0 : index
    %1051 = vector.load %arg11[%c0_777, %c0_778] : memref<1x128xf32, #tpu.memory_space<vmem>>, vector<1x128xf32>
    %1052 = vector.broadcast %1051 : vector<1x128xf32> to vector<8x128xf32>
    %1053 = arith.addf %1050, %1052 : vector<8x128xf32>
    %c0_779 = arith.constant 0 : index
    %c0_780 = arith.constant 0 : index
    %1054 = vector.load %arg2[%c0_779, %c0_780] : memref<8x16xf32, #tpu.memory_space<vmem>>, vector<8x16xf32>
    %cst_781 = arith.constant dense<0.000000e+00> : vector<8xf32>
    %1055 = vector.multi_reduction <add>, %1054, %cst_781 [1] : vector<8x16xf32> to vector<8xf32>
    %1056 = vector.shape_cast %1055 : vector<8xf32> to vector<8x1xf32>
    %cst_782 = arith.constant 1.000000e+00 : f32
    %1057 = vector.broadcast %cst_782 : f32 to vector<8x1xf32>
    %1058 = arith.maximumf %1056, %1057 : vector<8x1xf32>
    %cst_783 = arith.constant 1.000000e+00 : f32
    %1059 = vector.broadcast %cst_783 : f32 to vector<8x1xf32>
    %1060 = arith.divf %1059, %1058 : vector<8x1xf32>
    %c0_i32_784 = arith.constant 0 : i32
    %c0_i32_785 = arith.constant 0 : i32
    %c0_i32_786 = arith.constant 0 : i32
    %1061 = tpu.memref_slice %arg4[%c0_i32_785, %c0_i32_786] : memref<1024x256xf32, #tpu.memory_space<any>> -> memref<128x256xf32, #tpu.memory_space<any>>
    %1062 = tpu.memref_slice %arg14[%c0_i32_784] : memref<1x!tpu.dma_semaphore, #tpu.memory_space<semaphore_mem>> -> memref<1x!tpu.dma_semaphore, #tpu.memory_space<semaphore_mem>>
    %1063 = tpu.memref_squeeze %1062 : memref<1x!tpu.dma_semaphore, #tpu.memory_space<semaphore_mem>> -> memref<!tpu.dma_semaphore, #tpu.memory_space<semaphore_mem>>
    tpu.wait_dma2 semaphore(%1063 : memref<!tpu.dma_semaphore, #tpu.memory_space<semaphore_mem>>) src(%1061 : memref<128x256xf32, #tpu.memory_space<any>>) dst(%arg13 : memref<128x256xf32, #tpu.memory_space<vmem>>)
    %c0_787 = arith.constant 0 : index
    %c0_788 = arith.constant 0 : index
    %1064 = vector.load %arg13[%c0_787, %c0_788] : memref<128x256xf32, #tpu.memory_space<vmem>>, vector<128x256xf32>
    %1065 = vector.shape_cast %1064 : vector<128x256xf32> to vector<8x16x256xf32>
    %1066 = vector.shape_cast %1054 : vector<8x16xf32> to vector<8x16x1xf32>
    %1067 = vector.broadcast %1066 : vector<8x16x1xf32> to vector<8x16x256xf32>
    %1068 = arith.mulf %1065, %1067 : vector<8x16x256xf32>
    %cst_789 = arith.constant dense<0.000000e+00> : vector<8x256xf32>
    %1069 = vector.multi_reduction <add>, %1068, %cst_789 [1] : vector<8x16x256xf32> to vector<8x256xf32>
    %1070 = vector.broadcast %1060 : vector<8x1xf32> to vector<8x256xf32>
    %1071 = arith.mulf %1069, %1070 : vector<8x256xf32>
    %1072 = arith.truncf %1071 : vector<8x256xf32> to vector<8x256xbf16>
    %c0_790 = arith.constant 0 : index
    %c0_791 = arith.constant 0 : index
    %1073 = vector.load %arg5[%c0_790, %c0_791] : memref<256x256xbf16, #tpu.memory_space<vmem>>, vector<256x256xbf16>
    %cst_792 = arith.constant dense<0.000000e+00> : vector<8x256xf32>
    %1074 = tpu.matmul %1072, %1073, %cst_792 {dimension_numbers = #tpu.dot_dimension_numbers<[1], [0], [0], [1], [0, 0, 1, 1], [], []>} : vector<8x256xbf16>, vector<256x256xbf16>, vector<8x256xf32> -> vector<8x256xf32>
    %c0_793 = arith.constant 0 : index
    %c0_794 = arith.constant 0 : index
    %1075 = vector.load %arg6[%c0_793, %c0_794] : memref<1x256xf32, #tpu.memory_space<vmem>>, vector<1x256xf32>
    %1076 = vector.broadcast %1075 : vector<1x256xf32> to vector<8x256xf32>
    %1077 = arith.addf %1074, %1076 : vector<8x256xf32>
    %1078 = math.tanh %1077 : vector<8x256xf32>
    %1079 = arith.truncf %1078 : vector<8x256xf32> to vector<8x256xbf16>
    %c0_795 = arith.constant 0 : index
    %c0_796 = arith.constant 0 : index
    %1080 = vector.load %arg9[%c0_795, %c0_796] : memref<256x128xbf16, #tpu.memory_space<vmem>>, vector<256x128xbf16>
    %cst_797 = arith.constant dense<0.000000e+00> : vector<8x128xf32>
    %1081 = tpu.matmul %1079, %1080, %cst_797 {dimension_numbers = #tpu.dot_dimension_numbers<[1], [0], [0], [1], [0, 0, 1, 1], [], []>} : vector<8x256xbf16>, vector<256x128xbf16>, vector<8x128xf32> -> vector<8x128xf32>
    %1082 = arith.addf %1053, %1081 : vector<8x128xf32>
    %c0_798 = arith.constant 0 : index
    %c0_799 = arith.constant 0 : index
    %1083 = vector.load %arg12[%c0_798, %c0_799] : memref<8x128xf32, #tpu.memory_space<vmem>>, vector<8x128xf32>
    tpu.vector_store %arg12[%c0_798, %c0_799], %1082 {strides = array<i32>} : memref<8x128xf32, #tpu.memory_space<vmem>>, vector<8x128xf32>,
    return
  }
  func.func @transform_0(%arg0: i32, %arg1: memref<8x16xi32, #tpu.memory_space<smem>>) -> (i32, i32) {
    %c0_i32 = arith.constant 0 : i32
    %c0_i32_0 = arith.constant 0 : i32
    return %arg0, %c0_i32 : i32, i32
  }
  func.func @transform_1(%arg0: i32, %arg1: memref<8x16xi32, #tpu.memory_space<smem>>) -> (i32, i32) {
    %c0_i32 = arith.constant 0 : i32
    %c0_i32_0 = arith.constant 0 : i32
    return %arg0, %c0_i32 : i32, i32
  }
  func.func @transform_3(%arg0: i32, %arg1: memref<8x16xi32, #tpu.memory_space<smem>>) -> (i32, i32) {
    %c0_i32 = arith.constant 0 : i32
    %c0_i32_0 = arith.constant 0 : i32
    %c0_i32_1 = arith.constant 0 : i32
    return %c0_i32, %c0_i32_0 : i32, i32
  }
  func.func @transform_4(%arg0: i32, %arg1: memref<8x16xi32, #tpu.memory_space<smem>>) -> (i32, i32) {
    %c0_i32 = arith.constant 0 : i32
    %c0_i32_0 = arith.constant 0 : i32
    %c0_i32_1 = arith.constant 0 : i32
    return %c0_i32, %c0_i32_0 : i32, i32
  }
  func.func @transform_5(%arg0: i32, %arg1: memref<8x16xi32, #tpu.memory_space<smem>>) -> (i32, i32) {
    %c0_i32 = arith.constant 0 : i32
    %c0_i32_0 = arith.constant 0 : i32
    %c0_i32_1 = arith.constant 0 : i32
    return %c0_i32, %c0_i32_0 : i32, i32
  }
  func.func @transform_6(%arg0: i32, %arg1: memref<8x16xi32, #tpu.memory_space<smem>>) -> (i32, i32) {
    %c0_i32 = arith.constant 0 : i32
    %c0_i32_0 = arith.constant 0 : i32
    %c0_i32_1 = arith.constant 0 : i32
    return %c0_i32, %c0_i32_0 : i32, i32
  }
  func.func @transform_7(%arg0: i32, %arg1: memref<8x16xi32, #tpu.memory_space<smem>>) -> (i32, i32) {
    %c0_i32 = arith.constant 0 : i32
    %c0_i32_0 = arith.constant 0 : i32
    %c0_i32_1 = arith.constant 0 : i32
    return %c0_i32, %c0_i32_0 : i32, i32
  }
  func.func @transform_8(%arg0: i32, %arg1: memref<8x16xi32, #tpu.memory_space<smem>>) -> (i32, i32) {
    %c0_i32 = arith.constant 0 : i32
    %c0_i32_0 = arith.constant 0 : i32
    %c0_i32_1 = arith.constant 0 : i32
    return %c0_i32, %c0_i32_0 : i32, i32
  }
  func.func @transform_9(%arg0: i32, %arg1: memref<8x16xi32, #tpu.memory_space<smem>>) -> (i32, i32) {
    %c0_i32 = arith.constant 0 : i32
    %c0_i32_0 = arith.constant 0 : i32
    %c0_i32_1 = arith.constant 0 : i32
    return %c0_i32, %c0_i32_0 : i32, i32
  }
  func.func @transform_10(%arg0: i32, %arg1: memref<8x16xi32, #tpu.memory_space<smem>>) -> (i32, i32) {
    %c0_i32 = arith.constant 0 : i32
    %c0_i32_0 = arith.constant 0 : i32
    return %arg0, %c0_i32 : i32, i32
  }
}

</mosaic_0001>

<llo_original>
// kernel: tpu_custom_call.1
$region0: #{tpu_custom_call.1}
  #allocation0 [shape = 'u32[]', space=smem, size = 0x4, offset = 0x4, fixed_abs, tag = 'smem constant byte address 0x4 - core index']
  #allocation1 [shape = 'u32[72,128]{1,0:T(1,128)}', space=vmem, size = 0x9000, scoped, tag = 'internal scratch']
  #allocation2 [shape = 'f32[128,256]{1,0:T(8,128)}', space=vmem, size = 0x20000, scoped, tag = 'scratch operand']
  #allocation3 [shape = 's32[1]{0}', space=sflag, size = 0x4, scoped, tag = 'scratch operand']
  #allocation4 [shape = 's32[1]{0}', space=sflag, size = 0x4, scoped, tag = 'scoped memory for tpu_custom_call.1']
  #allocation5 [shape = 'u8[4096]{0}', space=smem, size = 0x1000, scoped, tag = 'prefetched SMEM operand 0']
  #allocation18 [shape = 's32[]', space=sflag, size = 0x4, offset = 0, fixed_abs, tag = 'sflag constant byte address 0x0 - dummy sync flag']
  #allocation19 [shape = 's32[]', space=sflag, size = 0x4, offset = 0, fixed_abs, tag = 'sflag constant byte address 0x0 - dummy sync flag']
  #allocation20 [shape = 's32[]', space=sflag, size = 0x4, offset = 0, fixed_abs, tag = 'sflag constant byte address 0x0 - dummy sync flag']
  #allocation21 [shape = 's32[]', space=sflag, size = 0x4, offset = 0, fixed_abs, tag = 'sflag constant byte address 0x0 - dummy sync flag']
  #allocation22 [shape = 's32[]', space=sflag, size = 0x4, offset = 0, fixed_abs, tag = 'sflag constant byte address 0x0 - dummy sync flag']
  #allocation23 [shape = 's32[]', space=sflag, size = 0x4, offset = 0, fixed_abs, tag = 'sflag constant byte address 0x0 - dummy sync flag']
  #allocation24 [shape = 's32[]', space=sflag, size = 0x4, offset = 0, fixed_abs, tag = 'sflag constant byte address 0x0 - dummy sync flag']
  #allocation25 [shape = 's32[]', space=sflag, size = 0x4, offset = 0, fixed_abs, tag = 'sflag constant byte address 0x0 - dummy sync flag']
  #allocation26 [shape = 's32[]', space=sflag, size = 0x4, offset = 0, fixed_abs, tag = 'sflag constant byte address 0x0 - dummy sync flag']
  #allocation27 [shape = 's32[]', space=sflag, size = 0x4, offset = 0, fixed_abs, tag = 'sflag constant byte address 0x0 - dummy sync flag']
  #allocation28 [shape = 's32[]', space=sflag, size = 0x4, offset = 0, fixed_abs, tag = 'sflag constant byte address 0x0 - dummy sync flag']
  #allocation29 [shape = 's32[]', space=sflag, size = 0x4, offset = 0, fixed_abs, tag = 'sflag constant byte address 0x0 - dummy sync flag']
  #allocation30 [shape = 's32[]', space=sflag, size = 0x4, offset = 0, fixed_abs, tag = 'sflag constant byte address 0x0 - dummy sync flag']
  #allocation31 [shape = 's32[]', space=sflag, size = 0x4, offset = 0, fixed_abs, tag = 'sflag constant byte address 0x0 - dummy sync flag']
  #allocation32 [shape = 's32[]', space=sflag, size = 0x4, offset = 0, fixed_abs, tag = 'sflag constant byte address 0x0 - dummy sync flag']
  #allocation33 [shape = 's32[]', space=sflag, size = 0x4, offset = 0, fixed_abs, tag = 'sflag constant byte address 0x0 - dummy sync flag']
  #allocation34 [shape = 's32[]', space=sflag, size = 0x4, offset = 0, fixed_abs, tag = 'sflag constant byte address 0x0 - dummy sync flag']
  #allocation35 [shape = 's32[]', space=sflag, size = 0x4, offset = 0, fixed_abs, tag = 'sflag constant byte address 0x0 - dummy sync flag']
  #allocation36 [shape = 's32[]', space=sflag, size = 0x4, offset = 0, fixed_abs, tag = 'sflag constant byte address 0x0 - dummy sync flag']
  #allocation37 [shape = 's32[]', space=sflag, size = 0x4, offset = 0, fixed_abs, tag = 'sflag constant byte address 0x0 - dummy sync flag']
  #allocation38 [shape = 's32[]', space=sflag, size = 0x4, offset = 0, fixed_abs, tag = 'sflag constant byte address 0x0 - dummy sync flag']
  #allocation39 [shape = 's32[]', space=sflag, size = 0x4, offset = 0, fixed_abs, tag = 'sflag constant byte address 0x0 - dummy sync flag']
  #allocation40 [shape = 's32[]', space=sflag, size = 0x4, offset = 0, fixed_abs, tag = 'sflag constant byte address 0x0 - dummy sync flag']
  #allocation41 [shape = 's32[]', space=sflag, size = 0x4, offset = 0, fixed_abs, tag = 'sflag constant byte address 0x0 - dummy sync flag']
  #allocation42 [shape = 's32[]', space=sflag, size = 0x4, offset = 0, fixed_abs, tag = 'sflag constant byte address 0x0 - dummy sync flag']
  #allocation43 [shape = 's32[]', space=sflag, size = 0x4, offset = 0, fixed_abs, tag = 'sflag constant byte address 0x0 - dummy sync flag']
  #allocation44 [shape = 's32[]', space=sflag, size = 0x4, offset = 0, fixed_abs, tag = 'sflag constant byte address 0x0 - dummy sync flag']
  #allocation45 [shape = 's32[]', space=sflag, size = 0x4, offset = 0, fixed_abs, tag = 'sflag constant byte address 0x0 - dummy sync flag']
  #allocation46 [shape = 's32[]', space=sflag, size = 0x4, offset = 0, fixed_abs, tag = 'sflag constant byte address 0x0 - dummy sync flag']
  #allocation47 [shape = 's32[]', space=sflag, size = 0x4, offset = 0, fixed_abs, tag = 'sflag constant byte address 0x0 - dummy sync flag']
  #allocation48 [shape = 's32[]', space=sflag, size = 0x4, offset = 0, fixed_abs, tag = 'sflag constant byte address 0x0 - dummy sync flag']
  #allocation49 [shape = 's32[]', space=sflag, size = 0x4, offset = 0, fixed_abs, tag = 'sflag constant byte address 0x0 - dummy sync flag']
  #allocation50 [shape = 's32[]', space=sflag, size = 0x4, offset = 0, fixed_abs, tag = 'sflag constant byte address 0x0 - dummy sync flag']
  #allocation51 [shape = 's32[]', space=sflag, size = 0x4, offset = 0, fixed_abs, tag = 'sflag constant byte address 0x0 - dummy sync flag']
  #allocation52 [shape = 's32[]', space=sflag, size = 0x4, offset = 0, fixed_abs, tag = 'sflag constant byte address 0x0 - dummy sync flag']
  #allocation53 [shape = 's32[]', space=sflag, size = 0x4, offset = 0, fixed_abs, tag = 'sflag constant byte address 0x0 - dummy sync flag']
  #allocation54 [shape = 's32[]', space=sflag, size = 0x4, offset = 0, fixed_abs, tag = 'sflag constant byte address 0x0 - dummy sync flag']
  #allocation55 [shape = 's32[]', space=sflag, size = 0x4, offset = 0, fixed_abs, tag = 'sflag constant byte address 0x0 - dummy sync flag']
  #allocation56 [shape = 's32[]', space=sflag, size = 0x4, offset = 0, fixed_abs, tag = 'sflag constant byte address 0x0 - dummy sync flag']
  #allocation57 [shape = 's32[]', space=sflag, size = 0x4, offset = 0, fixed_abs, tag = 'sflag constant byte address 0x0 - dummy sync flag']
  #allocation58 [shape = 's32[]', space=sflag, size = 0x4, offset = 0, fixed_abs, tag = 'sflag constant byte address 0x0 - dummy sync flag']
  #allocation59 [shape = 's32[]', space=sflag, size = 0x4, offset = 0, fixed_abs, tag = 'sflag constant byte address 0x0 - dummy sync flag']
  #allocation60 [shape = 's32[]', space=sflag, size = 0x4, offset = 0, fixed_abs, tag = 'sflag constant byte address 0x0 - dummy sync flag']
  #allocation61 [shape = 's32[]', space=sflag, size = 0x4, offset = 0, fixed_abs, tag = 'sflag constant byte address 0x0 - dummy sync flag']
  #allocation62 [shape = 's32[]', space=sflag, size = 0x4, offset = 0, fixed_abs, tag = 'sflag constant byte address 0x0 - dummy sync flag']
  #allocation63 [shape = 's32[]', space=sflag, size = 0x4, offset = 0, fixed_abs, tag = 'sflag constant byte address 0x0 - dummy sync flag']
  #allocation64 [shape = 's32[]', space=sflag, size = 0x4, offset = 0, fixed_abs, tag = 'sflag constant byte address 0x0 - dummy sync flag']
  #allocation65 [shape = 's32[]', space=sflag, size = 0x4, offset = 0, fixed_abs, tag = 'sflag constant byte address 0x0 - dummy sync flag']
  #allocation66 [shape = 's32[]', space=sflag, size = 0x4, offset = 0, fixed_abs, tag = 'sflag constant byte address 0x0 - dummy sync flag']
  #allocation67 [shape = 's32[]', space=sflag, size = 0x4, offset = 0, fixed_abs, tag = 'sflag constant byte address 0x0 - dummy sync flag']
  #allocation68 [shape = 's32[]', space=sflag, size = 0x4, offset = 0, fixed_abs, tag = 'sflag constant byte address 0x0 - dummy sync flag']
  #allocation69 [shape = 's32[]', space=sflag, size = 0x4, offset = 0, fixed_abs, tag = 'sflag constant byte address 0x0 - dummy sync flag']
  #allocation70 [shape = 's32[]', space=sflag, size = 0x4, offset = 0, fixed_abs, tag = 'sflag constant byte address 0x0 - dummy sync flag']
  #allocation71 [shape = 's32[]', space=sflag, size = 0x4, offset = 0, fixed_abs, tag = 'sflag constant byte address 0x0 - dummy sync flag']
  #allocation72 [shape = 's32[]', space=sflag, size = 0x4, offset = 0, fixed_abs, tag = 'sflag constant byte address 0x0 - dummy sync flag']
  #allocation73 [shape = 's32[]', space=sflag, size = 0x4, offset = 0, fixed_abs, tag = 'sflag constant byte address 0x0 - dummy sync flag']
  #allocation74 [shape = 's32[]', space=sflag, size = 0x4, offset = 0, fixed_abs, tag = 'sflag constant byte address 0x0 - dummy sync flag']
  #allocation75 [shape = 's32[]', space=sflag, size = 0x4, offset = 0, fixed_abs, tag = 'sflag constant byte address 0x0 - dummy sync flag']
  #allocation76 [shape = 's32[]', space=sflag, size = 0x4, offset = 0, fixed_abs, tag = 'sflag constant byte address 0x0 - dummy sync flag']
  #allocation77 [shape = 's32[]', space=sflag, size = 0x4, offset = 0, fixed_abs, tag = 'sflag constant byte address 0x0 - dummy sync flag']
  #allocation78 [shape = 's32[]', space=sflag, size = 0x4, offset = 0, fixed_abs, tag = 'sflag constant byte address 0x0 - dummy sync flag']
  #allocation79 [shape = 's32[]', space=sflag, size = 0x4, offset = 0, fixed_abs, tag = 'sflag constant byte address 0x0 - dummy sync flag']
  #allocation80 [shape = 's32[]', space=sflag, size = 0x4, offset = 0, fixed_abs, tag = 'sflag constant byte address 0x0 - dummy sync flag']
  #allocation81 [shape = 's32[]', space=sflag, size = 0x4, offset = 0, fixed_abs, tag = 'sflag constant byte address 0x0 - dummy sync flag']
  #allocation82 [shape = 's32[]', space=sflag, size = 0x4, offset = 0, fixed_abs, tag = 'sflag constant byte address 0x0 - dummy sync flag']
  #allocation83 [shape = 's32[]', space=sflag, size = 0x4, offset = 0, fixed_abs, tag = 'sflag constant byte address 0x0 - dummy sync flag']
  #allocation84 [shape = 's32[]', space=sflag, size = 0x4, offset = 0, fixed_abs, tag = 'sflag constant byte address 0x0 - dummy sync flag']
  #allocation85 [shape = 's32[]', space=sflag, size = 0x4, offset = 0, fixed_abs, tag = 'sflag constant byte address 0x0 - dummy sync flag']
  #allocation86 [shape = 's32[]', space=sflag, size = 0x4, offset = 0, fixed_abs, tag = 'sflag constant byte address 0x0 - dummy sync flag']
  #allocation87 [shape = 's32[]', space=sflag, size = 0x4, offset = 0, fixed_abs, tag = 'sflag constant byte address 0x0 - dummy sync flag']
  #allocation88 [shape = 's32[]', space=sflag, size = 0x4, offset = 0, fixed_abs, tag = 'sflag constant byte address 0x0 - dummy sync flag']
  #allocation89 [shape = 's32[]', space=sflag, size = 0x4, offset = 0, fixed_abs, tag = 'sflag constant byte address 0x0 - dummy sync flag']
  #allocation90 [shape = 's32[]', space=sflag, size = 0x4, offset = 0, fixed_abs, tag = 'sflag constant byte address 0x0 - dummy sync flag']
  #allocation91 [shape = 's32[]', space=sflag, size = 0x4, offset = 0, fixed_abs, tag = 'sflag constant byte address 0x0 - dummy sync flag']
  #allocation92 [shape = 's32[]', space=sflag, size = 0x4, offset = 0, fixed_abs, tag = 'sflag constant byte address 0x0 - dummy sync flag']
  #allocation93 [shape = 's32[]', space=sflag, size = 0x4, offset = 0, fixed_abs, tag = 'sflag constant byte address 0x0 - dummy sync flag']
  #allocation94 [shape = 's32[]', space=sflag, size = 0x4, offset = 0, fixed_abs, tag = 'sflag constant byte address 0x0 - dummy sync flag']
  #allocation95 [shape = 's32[]', space=sflag, size = 0x4, offset = 0, fixed_abs, tag = 'sflag constant byte address 0x0 - dummy sync flag']
  #allocation96 [shape = 's32[]', space=sflag, size = 0x4, offset = 0, fixed_abs, tag = 'sflag constant byte address 0x0 - dummy sync flag']
  #allocation97 [shape = 's32[]', space=sflag, size = 0x4, offset = 0, fixed_abs, tag = 'sflag constant byte address 0x0 - dummy sync flag']
  #allocation98 [shape = 's32[]', space=sflag, size = 0x4, offset = 0, fixed_abs, tag = 'sflag constant byte address 0x0 - dummy sync flag']
  #allocation99 [shape = 's32[]', space=sflag, size = 0x4, offset = 0, fixed_abs, tag = 'sflag constant byte address 0x0 - dummy sync flag']
  #allocation100 [shape = 's32[]', space=sflag, size = 0x4, offset = 0, fixed_abs, tag = 'sflag constant byte address 0x0 - dummy sync flag']
  #allocation101 [shape = 's32[]', space=sflag, size = 0x4, offset = 0, fixed_abs, tag = 'sflag constant byte address 0x0 - dummy sync flag']
  #allocation102 [shape = 's32[]', space=sflag, size = 0x4, offset = 0, fixed_abs, tag = 'sflag constant byte address 0x0 - dummy sync flag']
  #allocation103 [shape = 's32[]', space=sflag, size = 0x4, offset = 0, fixed_abs, tag = 'sflag constant byte address 0x0 - dummy sync flag']
  #allocation104 [shape = 's32[]', space=sflag, size = 0x4, offset = 0, fixed_abs, tag = 'sflag constant byte address 0x0 - dummy sync flag']
  #allocation105 [shape = 's32[]', space=sflag, size = 0x4, offset = 0, fixed_abs, tag = 'sflag constant byte address 0x0 - dummy sync flag']
  #allocation106 [shape = 's32[]', space=sflag, size = 0x4, offset = 0, fixed_abs, tag = 'sflag constant byte address 0x0 - dummy sync flag']
  #allocation107 [shape = 's32[]', space=sflag, size = 0x4, offset = 0, fixed_abs, tag = 'sflag constant byte address 0x0 - dummy sync flag']
  #allocation108 [shape = 's32[]', space=sflag, size = 0x4, offset = 0, fixed_abs, tag = 'sflag constant byte address 0x0 - dummy sync flag']
  #allocation109 [shape = 's32[]', space=sflag, size = 0x4, offset = 0, fixed_abs, tag = 'sflag constant byte address 0x0 - dummy sync flag']
  #allocation110 [shape = 's32[]', space=sflag, size = 0x4, offset = 0, fixed_abs, tag = 'sflag constant byte address 0x0 - dummy sync flag']
  #allocation111 [shape = 's32[]', space=sflag, size = 0x4, offset = 0, fixed_abs, tag = 'sflag constant byte address 0x0 - dummy sync flag']
  #allocation112 [shape = 's32[]', space=sflag, size = 0x4, offset = 0, fixed_abs, tag = 'sflag constant byte address 0x0 - dummy sync flag']
  #allocation113 [shape = 's32[]', space=sflag, size = 0x4, offset = 0, fixed_abs, tag = 'sflag constant byte address 0x0 - dummy sync flag']
  #allocation114 [shape = 's32[]', space=sflag, size = 0x4, offset = 0, fixed_abs, tag = 'sflag constant byte address 0x0 - dummy sync flag']
  #allocation115 [shape = 's32[]', space=sflag, size = 0x4, offset = 0, fixed_abs, tag = 'sflag constant byte address 0x0 - dummy sync flag']
  #allocation116 [shape = 's32[]', space=sflag, size = 0x4, offset = 0, fixed_abs, tag = 'sflag constant byte address 0x0 - dummy sync flag']
  #allocation117 [shape = 's32[]', space=sflag, size = 0x4, offset = 0, fixed_abs, tag = 'sflag constant byte address 0x0 - dummy sync flag']
  #allocation118 [shape = 's32[]', space=sflag, size = 0x4, offset = 0, fixed_abs, tag = 'sflag constant byte address 0x0 - dummy sync flag']
  #allocation119 [shape = 's32[]', space=sflag, size = 0x4, offset = 0, fixed_abs, tag = 'sflag constant byte address 0x0 - dummy sync flag']
  #allocation120 [shape = 's32[]', space=sflag, size = 0x4, offset = 0, fixed_abs, tag = 'sflag constant byte address 0x0 - dummy sync flag']
  #allocation121 [shape = 's32[]', space=sflag, size = 0x4, offset = 0, fixed_abs, tag = 'sflag constant byte address 0x0 - dummy sync flag']
  #allocation122 [shape = 's32[]', space=sflag, size = 0x4, offset = 0, fixed_abs, tag = 'sflag constant byte address 0x0 - dummy sync flag']
  #allocation123 [shape = 's32[]', space=sflag, size = 0x4, offset = 0, fixed_abs, tag = 'sflag constant byte address 0x0 - dummy sync flag']
  #allocation124 [shape = 's32[]', space=sflag, size = 0x4, offset = 0, fixed_abs, tag = 'sflag constant byte address 0x0 - dummy sync flag']
  #allocation125 [shape = 's32[]', space=sflag, size = 0x4, offset = 0, fixed_abs, tag = 'sflag constant byte address 0x0 - dummy sync flag']
  #allocation126 [shape = 's32[]', space=sflag, size = 0x4, offset = 0, fixed_abs, tag = 'sflag constant byte address 0x0 - dummy sync flag']
  #allocation127 [shape = 's32[]', space=sflag, size = 0x4, offset = 0, fixed_abs, tag = 'sflag constant byte address 0x0 - dummy sync flag']
  #allocation128 [shape = 's32[]', space=sflag, size = 0x4, offset = 0, fixed_abs, tag = 'sflag constant byte address 0x0 - dummy sync flag']
  #allocation129 [shape = 's32[]', space=sflag, size = 0x4, offset = 0, fixed_abs, tag = 'sflag constant byte address 0x0 - dummy sync flag']
  #allocation130 [shape = 's32[]', space=sflag, size = 0x4, offset = 0, fixed_abs, tag = 'sflag constant byte address 0x0 - dummy sync flag']
  #allocation131 [shape = 's32[]', space=sflag, size = 0x4, offset = 0, fixed_abs, tag = 'sflag constant byte address 0x0 - dummy sync flag']
  #allocation132 [shape = 's32[]', space=sflag, size = 0x4, offset = 0, fixed_abs, tag = 'sflag constant byte address 0x0 - dummy sync flag']
  #allocation133 [shape = 's32[]', space=sflag, size = 0x4, offset = 0, fixed_abs, tag = 'sflag constant byte address 0x0 - dummy sync flag']
  #allocation134 [shape = 's32[]', space=sflag, size = 0x4, offset = 0, fixed_abs, tag = 'sflag constant byte address 0x0 - dummy sync flag']
  #allocation135 [shape = 's32[]', space=sflag, size = 0x4, offset = 0, fixed_abs, tag = 'sflag constant byte address 0x0 - dummy sync flag']
  #allocation136 [shape = 's32[]', space=sflag, size = 0x4, offset = 0, fixed_abs, tag = 'sflag constant byte address 0x0 - dummy sync flag']
  #allocation137 [shape = 's32[]', space=sflag, size = 0x4, offset = 0, fixed_abs, tag = 'sflag constant byte address 0x0 - dummy sync flag']
  #allocation138 [shape = 's32[]', space=sflag, size = 0x4, offset = 0, fixed_abs, tag = 'sflag constant byte address 0x0 - dummy sync flag']
  #allocation139 [shape = 's32[]', space=sflag, size = 0x4, offset = 0, fixed_abs, tag = 'sflag constant byte address 0x0 - dummy sync flag']
  #allocation140 [shape = 's32[]', space=sflag, size = 0x4, offset = 0, fixed_abs, tag = 'sflag constant byte address 0x0 - dummy sync flag']
  #allocation141 [shape = 's32[]', space=sflag, size = 0x4, offset = 0, fixed_abs, tag = 'sflag constant byte address 0x0 - dummy sync flag']
  #allocation142 [shape = 's32[]', space=sflag, size = 0x4, offset = 0, fixed_abs, tag = 'sflag constant byte address 0x0 - dummy sync flag']
  #allocation143 [shape = 's32[]', space=sflag, size = 0x4, offset = 0, fixed_abs, tag = 'sflag constant byte address 0x0 - dummy sync flag']
  #allocation144 [shape = 's32[]', space=sflag, size = 0x4, offset = 0, fixed_abs, tag = 'sflag constant byte address 0x0 - dummy sync flag']
  #allocation145 [shape = 's32[]', space=sflag, size = 0x4, offset = 0, fixed_abs, tag = 'sflag constant byte address 0x0 - dummy sync flag']
  %s0 = inlined_call_operand.hbm [shape: s32[8,16], index: 0, kind: input, shape index: {}]
  %s1 = inlined_call_operand.hbm [shape: f32[8,16], index: 1, kind: input, shape index: {}]
  %s2 = inlined_call_operand.hbm [shape: f32[8,16], index: 2, kind: input, shape index: {}]
  %s3 = inlined_call_operand.hbm [shape: f32[1024,256], index: 3, kind: input, shape index: {}]
  %s4 = inlined_call_operand.hbm [shape: bf16[256,256], index: 4, kind: input, shape index: {}]
  %s5 = inlined_call_operand.vmem [shape: f32[1,256], index: 5, kind: input, shape index: {}]
  %s6 = inlined_call_operand.hbm [shape: f32[16,128], index: 6, kind: input, shape index: {}]
  %s7 = inlined_call_operand.vmem [shape: f32[1,128], index: 7, kind: input, shape index: {}]
  %s8 = inlined_call_operand.hbm [shape: bf16[256,128], index: 8, kind: input, shape index: {}]
  %s9 = inlined_call_operand.hbm [shape: bf16[128,128], index: 9, kind: input, shape index: {}]
  %s10 = inlined_call_operand.vmem [shape: f32[1,128], index: 10, kind: input, shape index: {}]
  %s11 = inlined_call_operand.hbm [shape: f32[8,128], index: 11, kind: output, shape index: {}]
  %s12 = sld [smem:[#allocation0]]
  $region70: #{tpu_custom_call.1} parent=0
    _
  %s14 = ssub.s32 1, %s12
  %s15 = scalar_select 0, %s14, %s12
  %s17 = sshll.u32 %s0, 4
  %s18 = int_to_ptr.hbm [resolvable:$true] %s17
  %20 = dma.hbm_to_smem %s18, 128, [#allocation5], [#allocation4]
  %22 = dma.done [#allocation4], 128
  %23 = sfence
  $region1: #{tpu_custom_call.1} parent=0
    #allocation6 [shape = 'u8[4096]{0}', space=vmem, size = 0x1000, scoped, tag = 'input window, operand 1, single buffered']
    #allocation7 [shape = 's32[1]{0}', space=sflag, size = 0x4, scoped, tag = 'scoped memory for tpu_custom_call.1']
    #allocation8 [shape = 's32[1]{0}', space=sflag, size = 0x4, scoped, tag = 'scoped memory for tpu_custom_call.1']
    #allocation9 [shape = 'u8[4096]{0}', space=vmem, size = 0x1000, scoped, tag = 'input window, operand 2, single buffered']
    #allocation10 [shape = 's32[1]{0}', space=sflag, size = 0x4, scoped, tag = 'scoped memory for tpu_custom_call.1']
    #allocation11 [shape = 'u8[131072]{0}', space=vmem, size = 0x20000, scoped, tag = 'input window, operand 4, single buffered']
    #allocation12 [shape = 'u8[8192]{0}', space=vmem, size = 0x2000, scoped, tag = 'input window, operand 6, single buffered']
    #allocation13 [shape = 's32[1]{0}', space=sflag, size = 0x4, scoped, tag = 'scoped memory for tpu_custom_call.1']
    #allocation14 [shape = 'u8[65536]{0}', space=vmem, size = 0x10000, scoped, tag = 'input window, operand 8, single buffered']
    #allocation15 [shape = 'u8[32768]{0}', space=vmem, size = 0x8000, scoped, tag = 'input window, operand 9, single buffered']
    #allocation16 [shape = 's32[1]{0}', space=sflag, size = 0x4, scoped, tag = 'scoped memory for tpu_custom_call.1']
    #allocation17 [shape = 'u8[4096]{0}', space=vmem, size = 0x1000, scoped, tag = 'output window, operand 0, single buffered']
    %24 = vsyncpa [#allocation7], 0
    %25 = vsyncpa [#allocation10], 0
    %26 = vsyncpa [#allocation13], 0
    %27 = vsyncpa [#allocation16], 0
    %28 = vsyncpa [#allocation8], 0
    // Predicated region
    $region2: #{tpu_custom_call.1} parent=1 // pred_check
      _
    $region3: #{tpu_custom_call.1} parent=1 // pred_check_branch
      %30 = sbr.rel (0) target = $region5
    $region4: #{tpu_custom_call.1} parent=1 // pred_region
      %32 = vsyncadd [#allocation7], 0
      %s34 = sshll.u32 %s1, 4
      %s35 = int_to_ptr.hbm [resolvable:$true] %s34
      %s36 = sshll.u32 [#allocation6], 4
      %s37 = int_to_ptr.vmem [resolvable:$true] %s36
      %39 = dma.hbm_to_vmem [thread:$0]  %s35, 128, %s37, [#allocation7]
    $region5: #{tpu_custom_call.1} parent=1 // pred_fallthru
      _
    // Predicated region
    $region6: #{tpu_custom_call.1} parent=1 // pred_check
      _
    $region7: #{tpu_custom_call.1} parent=1 // pred_check_branch
      %41 = sbr.rel (0) target = $region9
    $region8: #{tpu_custom_call.1} parent=1 // pred_region
      %43 = vsyncadd [#allocation10], 0
      %s45 = sshll.u32 %s2, 4
      %s46 = int_to_ptr.hbm [resolvable:$true] %s45
      %s47 = sshll.u32 [#allocation9], 4
      %s48 = int_to_ptr.vmem [resolvable:$true] %s47
      %50 = dma.hbm_to_vmem [thread:$0]  %s46, 128, %s48, [#allocation10]
    $region9: #{tpu_custom_call.1} parent=1 // pred_fallthru
      _
    // Predicated region
    $region10: #{tpu_custom_call.1} parent=1 // pred_check
      _
    $region11: #{tpu_custom_call.1} parent=1 // pred_check_branch
      %52 = sbr.rel (0) target = $region13
    $region12: #{tpu_custom_call.1} parent=1 // pred_region
      %54 = vsyncadd [#allocation10], 0
      %s55 = sshll.u32 %s4, 4
      %s56 = int_to_ptr.hbm [resolvable:$true] %s55
      %s57 = sshll.u32 [#allocation11], 4
      %s58 = int_to_ptr.vmem [resolvable:$true] %s57
      %63 = dma.hbm_to_vmem [thread:$0]  %s56, 4096, %s58, [#allocation10], 128, 128, 8
    $region13: #{tpu_custom_call.1} parent=1 // pred_fallthru
      _
    // Predicated region
    $region14: #{tpu_custom_call.1} parent=1 // pred_check
      _
    $region15: #{tpu_custom_call.1} parent=1 // pred_check_branch
      %65 = sbr.rel (0) target = $region17
    $region16: #{tpu_custom_call.1} parent=1 // pred_region
      _
    $region17: #{tpu_custom_call.1} parent=1 // pred_fallthru
      _
    // Predicated region
    $region18: #{tpu_custom_call.1} parent=1 // pred_check
      _
    $region19: #{tpu_custom_call.1} parent=1 // pred_check_branch
      %67 = sbr.rel (0) target = $region21
    $region20: #{tpu_custom_call.1} parent=1 // pred_region
      %69 = vsyncadd [#allocation13], 0
      %s70 = sshll.u32 %s6, 4
      %s71 = int_to_ptr.hbm [resolvable:$true] %s70
      %s72 = sshll.u32 [#allocation12], 4
      %s73 = int_to_ptr.vmem [resolvable:$true] %s72
      %78 = dma.hbm_to_vmem [thread:$0]  %s71, 256, %s73, [#allocation13], 128, 128, 8
    $region21: #{tpu_custom_call.1} parent=1 // pred_fallthru
      _
    // Predicated region
    $region22: #{tpu_custom_call.1} parent=1 // pred_check
      _
    $region23: #{tpu_custom_call.1} parent=1 // pred_check_branch
      %80 = sbr.rel (0) target = $region25
    $region24: #{tpu_custom_call.1} parent=1 // pred_region
      _
    $region25: #{tpu_custom_call.1} parent=1 // pred_fallthru
      _
    // Predicated region
    $region26: #{tpu_custom_call.1} parent=1 // pred_check
      _
    $region27: #{tpu_custom_call.1} parent=1 // pred_check_branch
      %82 = sbr.rel (0) target = $region29
    $region28: #{tpu_custom_call.1} parent=1 // pred_region
      %84 = vsyncadd [#allocation13], 0
      %s85 = sshll.u32 %s8, 4
      %s86 = int_to_ptr.hbm [resolvable:$true] %s85
      %s87 = sshll.u32 [#allocation14], 4
      %s88 = int_to_ptr.vmem [resolvable:$true] %s87
      %93 = dma.hbm_to_vmem [thread:$0]  %s86, 2048, %s88, [#allocation13], 64, 64, 4
    $region29: #{tpu_custom_call.1} parent=1 // pred_fallthru
      _
    // Predicated region
    $region30: #{tpu_custom_call.1} parent=1 // pred_check
      _
    $region31: #{tpu_custom_call.1} parent=1 // pred_check_branch
      %95 = sbr.rel (0) target = $region33
    $region32: #{tpu_custom_call.1} parent=1 // pred_region
      %97 = vsyncadd [#allocation16], 0
      %s98 = sshll.u32 %s9, 4
      %s99 = int_to_ptr.hbm [resolvable:$true] %s98
      %s100 = sshll.u32 [#allocation15], 4
      %s101 = int_to_ptr.vmem [resolvable:$true] %s100
      %106 = dma.hbm_to_vmem [thread:$0]  %s99, 1024, %s101, [#allocation16], 64, 64, 4
    $region33: #{tpu_custom_call.1} parent=1 // pred_fallthru
      _
    // Predicated region
    $region34: #{tpu_custom_call.1} parent=1 // pred_check
      _
    $region35: #{tpu_custom_call.1} parent=1 // pred_check_branch
      %108 = sbr.rel (0) target = $region37
    $region36: #{tpu_custom_call.1} parent=1 // pred_region
      _
    $region37: #{tpu_custom_call.1} parent=1 // pred_fallthru
      _
    // Predicated region
    $region38: #{tpu_custom_call.1} parent=1 // pred_check
      _
    $region39: #{tpu_custom_call.1} parent=1 // pred_check_branch
      %110 = sbr.rel (0) target = $region41
    $region40: #{tpu_custom_call.1} parent=1 // pred_region
      %112 = dma.done [#allocation7], 128
    $region41: #{tpu_custom_call.1} parent=1 // pred_fallthru
      _
    // Predicated region
    $region42: #{tpu_custom_call.1} parent=1 // pred_check
      _
    $region43: #{tpu_custom_call.1} parent=1 // pred_check_branch
      %114 = sbr.rel (0) target = $region45
    $region44: #{tpu_custom_call.1} parent=1 // pred_region
      %116 = dma.done [#allocation10], 128
    $region45: #{tpu_custom_call.1} parent=1 // pred_fallthru
      _
    // Predicated region
    $region46: #{tpu_custom_call.1} parent=1 // pred_check
      _
    $region47: #{tpu_custom_call.1} parent=1 // pred_check_branch
      %118 = sbr.rel (0) target = $region49
    $region48: #{tpu_custom_call.1} parent=1 // pred_region
      %120 = dma.done [#allocation10], 4096
    $region49: #{tpu_custom_call.1} parent=1 // pred_fallthru
      _
    // Predicated region
    $region50: #{tpu_custom_call.1} parent=1 // pred_check
      _
    $region51: #{tpu_custom_call.1} parent=1 // pred_check_branch
      %122 = sbr.rel (0) target = $region53
    $region52: #{tpu_custom_call.1} parent=1 // pred_region
      %124 = dma.done [#allocation13], 256
    $region53: #{tpu_custom_call.1} parent=1 // pred_fallthru
      _
    // Predicated region
    $region54: #{tpu_custom_call.1} parent=1 // pred_check
      _
    $region55: #{tpu_custom_call.1} parent=1 // pred_check_branch
      %126 = sbr.rel (0) target = $region57
    $region56: #{tpu_custom_call.1} parent=1 // pred_region
      %128 = dma.done [#allocation13], 2048
    $region57: #{tpu_custom_call.1} parent=1 // pred_fallthru
      _
    // Predicated region
    $region58: #{tpu_custom_call.1} parent=1 // pred_check
      _
    $region59: #{tpu_custom_call.1} parent=1 // pred_check_branch
      %130 = sbr.rel (0) target = $region61
    $region60: #{tpu_custom_call.1} parent=1 // pred_region
      %132 = dma.done [#allocation16], 1024
    $region61: #{tpu_custom_call.1} parent=1 // pred_fallthru
      _
    %s133 = smul.u32 0, 8
    %s134 = smul.u32 %s133, 128
    %s135 = sld [smem:[#allocation5 + %s134]]
    %p136 = scmp.gt.s32.totalorder %s135, 0
    %s137 = scalar_select %p136, %s135, 0
    %p138 = scmp.lt.s32.totalorder %s137, 1023
    %s139 = scalar_select %p138, %s137, 1023
    %s140 = sshrl.u32 %s139, 3
    %s141 = sand.u32 %s139, 7
    %s142 = smul.u32 %s140, 16
    %s143 = sadd.s32 %s141, %s142
    %s144 = scalar_lea.hbm %s3, %s143
    %s145 = sshll.u32 %s144, 4
    %s146 = int_to_ptr.hbm [resolvable:$true] %s145
    %s147 = sshll.u32 [#allocation2], 4
    %s148 = int_to_ptr.vmem [resolvable:$true] %s147
    %152 = dma.hbm_to_vmem [thread:$0]  %s146, 32, %s148, [#allocation3], 128, 128, 1
    %s153 = sadd.s32 %s134, 1
    %s154 = sld [smem:[#allocation5 + %s153]]
    %p155 = scmp.gt.s32.totalorder %s154, 0
    %s156 = scalar_select %p155, %s154, 0
    %p157 = scmp.lt.s32.totalorder %s156, 1023
    %s158 = scalar_select %p157, %s156, 1023
    %s159 = sshrl.u32 %s158, 3
    %s160 = sand.u32 %s158, 7
    %s161 = smul.u32 %s159, 16
    %s162 = sadd.s32 %s160, %s161
    %s163 = scalar_lea.hbm %s3, %s162
    %s164 = scalar_lea.vmem [#allocation2], 1
    %s165 = sshll.u32 %s163, 4
    %s166 = int_to_ptr.hbm [resolvable:$true] %s165
    %s167 = sshll.u32 %s164, 4
    %s168 = int_to_ptr.vmem [resolvable:$true] %s167
    %172 = dma.hbm_to_vmem [thread:$0]  %s166, 32, %s168, [#allocation3], 128, 128, 1
    %s173 = sadd.s32 %s134, 2
    %s174 = sld [smem:[#allocation5 + %s173]]
    %p175 = scmp.gt.s32.totalorder %s174, 0
    %s176 = scalar_select %p175, %s174, 0
    %p177 = scmp.lt.s32.totalorder %s176, 1023
    %s178 = scalar_select %p177, %s176, 1023
    %s179 = sshrl.u32 %s178, 3
    %s180 = sand.u32 %s178, 7
    %s181 = smul.u32 %s179, 16
    %s182 = sadd.s32 %s180, %s181
    %s183 = scalar_lea.hbm %s3, %s182
    %s184 = scalar_lea.vmem [#allocation2], 2
    %s185 = sshll.u32 %s183, 4
    %s186 = int_to_ptr.hbm [resolvable:$true] %s185
    %s187 = sshll.u32 %s184, 4
    %s188 = int_to_ptr.vmem [resolvable:$true] %s187
    %192 = dma.hbm_to_vmem [thread:$0]  %s186, 32, %s188, [#allocation3], 128, 128, 1
    %s193 = sadd.s32 %s134, 3
    %s194 = sld [smem:[#allocation5 + %s193]]
    %p195 = scmp.gt.s32.totalorder %s194, 0
    %s196 = scalar_select %p195, %s194, 0
    %p197 = scmp.lt.s32.totalorder %s196, 1023
    %s198 = scalar_select %p197, %s196, 1023
    %s199 = sshrl.u32 %s198, 3
    %s200 = sand.u32 %s198, 7
    %s201 = smul.u32 %s199, 16
    %s202 = sadd.s32 %s200, %s201
    %s203 = scalar_lea.hbm %s3, %s202
    %s204 = scalar_lea.vmem [#allocation2], 3
    %s205 = sshll.u32 %s203, 4
    %s206 = int_to_ptr.hbm [resolvable:$true] %s205
    %s207 = sshll.u32 %s204, 4
    %s208 = int_to_ptr.vmem [resolvable:$true] %s207
    %212 = dma.hbm_to_vmem [thread:$0]  %s206, 32, %s208, [#allocation3], 128, 128, 1
    %s213 = sadd.s32 %s134, 4
    %s214 = sld [smem:[#allocation5 + %s213]]
    %p215 = scmp.gt.s32.totalorder %s214, 0
    %s216 = scalar_select %p215, %s214, 0
    %p217 = scmp.lt.s32.totalorder %s216, 1023
    %s218 = scalar_select %p217, %s216, 1023
    %s219 = sshrl.u32 %s218, 3
    %s220 = sand.u32 %s218, 7
    %s221 = smul.u32 %s219, 16
    %s222 = sadd.s32 %s220, %s221
    %s223 = scalar_lea.hbm %s3, %s222
    %s224 = scalar_lea.vmem [#allocation2], 4
    %s225 = sshll.u32 %s223, 4
    %s226 = int_to_ptr.hbm [resolvable:$true] %s225
    %s227 = sshll.u32 %s224, 4
    %s228 = int_to_ptr.vmem [resolvable:$true] %s227
    %232 = dma.hbm_to_vmem [thread:$0]  %s226, 32, %s228, [#allocation3], 128, 128, 1
    %s233 = sadd.s32 %s134, 5
    %s234 = sld [smem:[#allocation5 + %s233]]
    %p235 = scmp.gt.s32.totalorder %s234, 0
    %s236 = scalar_select %p235, %s234, 0
    %p237 = scmp.lt.s32.totalorder %s236, 1023
    %s238 = scalar_select %p237, %s236, 1023
    %s239 = sshrl.u32 %s238, 3
    %s240 = sand.u32 %s238, 7
    %s241 = smul.u32 %s239, 16
    %s242 = sadd.s32 %s240, %s241
    %s243 = scalar_lea.hbm %s3, %s242
    %s244 = scalar_lea.vmem [#allocation2], 5
    %s245 = sshll.u32 %s243, 4
    %s246 = int_to_ptr.hbm [resolvable:$true] %s245
    %s247 = sshll.u32 %s244, 4
    %s248 = int_to_ptr.vmem [resolvable:$true] %s247
    %252 = dma.hbm_to_vmem [thread:$0]  %s246, 32, %s248, [#allocation3], 128, 128, 1
    %s253 = sadd.s32 %s134, 6
    %s254 = sld [smem:[#allocation5 + %s253]]
    %p255 = scmp.gt.s32.totalorder %s254, 0
    %s256 = scalar_select %p255, %s254, 0
    %p257 = scmp.lt.s32.totalorder %s256, 1023
    %s258 = scalar_select %p257, %s256, 1023
    %s259 = sshrl.u32 %s258, 3
    %s260 = sand.u32 %s258, 7
    %s261 = smul.u32 %s259, 16
    %s262 = sadd.s32 %s260, %s261
    %s263 = scalar_lea.hbm %s3, %s262
    %s264 = scalar_lea.vmem [#allocation2], 6
    %s265 = sshll.u32 %s263, 4
    %s266 = int_to_ptr.hbm [resolvable:$true] %s265
    %s267 = sshll.u32 %s264, 4
    %s268 = int_to_ptr.vmem [resolvable:$true] %s267
    %272 = dma.hbm_to_vmem [thread:$0]  %s266, 32, %s268, [#allocation3], 128, 128, 1
    %s273 = sadd.s32 %s134, 7
    %s274 = sld [smem:[#allocation5 + %s273]]
    %p275 = scmp.gt.s32.totalorder %s274, 0
    %s276 = scalar_select %p275, %s274, 0
    %p277 = scmp.lt.s32.totalorder %s276, 1023
    %s278 = scalar_select %p277, %s276, 1023
    %s279 = sshrl.u32 %s278, 3
    %s280 = sand.u32 %s278, 7
    %s281 = smul.u32 %s279, 16
    %s282 = sadd.s32 %s280, %s281
    %s283 = scalar_lea.hbm %s3, %s282
    %s284 = scalar_lea.vmem [#allocation2], 7
    %s285 = sshll.u32 %s283, 4
    %s286 = int_to_ptr.hbm [resolvable:$true] %s285
    %s287 = sshll.u32 %s284, 4
    %s288 = int_to_ptr.vmem [resolvable:$true] %s287
    %292 = dma.hbm_to_vmem [thread:$0]  %s286, 32, %s288, [#allocation3], 128, 128, 1
    %s293 = sadd.s32 %s134, 8
    %s294 = sld [smem:[#allocation5 + %s293]]
    %p295 = scmp.gt.s32.totalorder %s294, 0
    %s296 = scalar_select %p295, %s294, 0
    %p297 = scmp.lt.s32.totalorder %s296, 1023
    %s298 = scalar_select %p297, %s296, 1023
    %s299 = sshrl.u32 %s298, 3
    %s300 = sand.u32 %s298, 7
    %s301 = smul.u32 %s299, 16
    %s302 = sadd.s32 %s300, %s301
    %s303 = scalar_lea.hbm %s3, %s302
    %s304 = scalar_lea.vmem [#allocation2], 16
    %s305 = sshll.u32 %s303, 4
    %s306 = int_to_ptr.hbm [resolvable:$true] %s305
    %s307 = sshll.u32 %s304, 4
    %s308 = int_to_ptr.vmem [resolvable:$true] %s307
    %312 = dma.hbm_to_vmem [thread:$0]  %s306, 32, %s308, [#allocation3], 128, 128, 1
    %s313 = sadd.s32 %s134, 9
    %s314 = sld [smem:[#allocation5 + %s313]]
    %p315 = scmp.gt.s32.totalorder %s314, 0
    %s316 = scalar_select %p315, %s314, 0
    %p317 = scmp.lt.s32.totalorder %s316, 1023
    %s318 = scalar_select %p317, %s316, 1023
    %s319 = sshrl.u32 %s318, 3
    %s320 = sand.u32 %s318, 7
    %s321 = smul.u32 %s319, 16
    %s322 = sadd.s32 %s320, %s321
    %s323 = scalar_lea.hbm %s3, %s322
    %s324 = scalar_lea.vmem [#allocation2], 17
    %s325 = sshll.u32 %s323, 4
    %s326 = int_to_ptr.hbm [resolvable:$true] %s325
    %s327 = sshll.u32 %s324, 4
    %s328 = int_to_ptr.vmem [resolvable:$true] %s327
    %332 = dma.hbm_to_vmem [thread:$0]  %s326, 32, %s328, [#allocation3], 128, 128, 1
    %s333 = sadd.s32 %s134, 10
    %s334 = sld [smem:[#allocation5 + %s333]]
    %p335 = scmp.gt.s32.totalorder %s334, 0
    %s336 = scalar_select %p335, %s334, 0
    %p337 = scmp.lt.s32.totalorder %s336, 1023
    %s338 = scalar_select %p337, %s336, 1023
    %s339 = sshrl.u32 %s338, 3
    %s340 = sand.u32 %s338, 7
    %s341 = smul.u32 %s339, 16
    %s342 = sadd.s32 %s340, %s341
    %s343 = scalar_lea.hbm %s3, %s342
    %s344 = scalar_lea.vmem [#allocation2], 18
    %s345 = sshll.u32 %s343, 4
    %s346 = int_to_ptr.hbm [resolvable:$true] %s345
    %s347 = sshll.u32 %s344, 4
    %s348 = int_to_ptr.vmem [resolvable:$true] %s347
    %352 = dma.hbm_to_vmem [thread:$0]  %s346, 32, %s348, [#allocation3], 128, 128, 1
    %s353 = sadd.s32 %s134, 11
    %s354 = sld [smem:[#allocation5 + %s353]]
    %p355 = scmp.gt.s32.totalorder %s354, 0
    %s356 = scalar_select %p355, %s354, 0
    %p357 = scmp.lt.s32.totalorder %s356, 1023
    %s358 = scalar_select %p357, %s356, 1023
    %s359 = sshrl.u32 %s358, 3
    %s360 = sand.u32 %s358, 7
    %s361 = smul.u32 %s359, 16
    %s362 = sadd.s32 %s360, %s361
    %s363 = scalar_lea.hbm %s3, %s362
    %s364 = scalar_lea.vmem [#allocation2], 19
    %s365 = sshll.u32 %s363, 4
    %s366 = int_to_ptr.hbm [resolvable:$true] %s365
    %s367 = sshll.u32 %s364, 4
    %s368 = int_to_ptr.vmem [resolvable:$true] %s367
    %372 = dma.hbm_to_vmem [thread:$0]  %s366, 32, %s368, [#allocation3], 128, 128, 1
    %s373 = sadd.s32 %s134, 12
    %s374 = sld [smem:[#allocation5 + %s373]]
    %p375 = scmp.gt.s32.totalorder %s374, 0
    %s376 = scalar_select %p375, %s374, 0
    %p377 = scmp.lt.s32.totalorder %s376, 1023
    %s378 = scalar_select %p377, %s376, 1023
    %s379 = sshrl.u32 %s378, 3
    %s380 = sand.u32 %s378, 7
    %s381 = smul.u32 %s379, 16
    %s382 = sadd.s32 %s380, %s381
    %s383 = scalar_lea.hbm %s3, %s382
    %s384 = scalar_lea.vmem [#allocation2], 20
    %s385 = sshll.u32 %s383, 4
    %s386 = int_to_ptr.hbm [resolvable:$true] %s385
    %s387 = sshll.u32 %s384, 4
    %s388 = int_to_ptr.vmem [resolvable:$true] %s387
    %392 = dma.hbm_to_vmem [thread:$0]  %s386, 32, %s388, [#allocation3], 128, 128, 1
    %s393 = sadd.s32 %s134, 13
    %s394 = sld [smem:[#allocation5 + %s393]]
    %p395 = scmp.gt.s32.totalorder %s394, 0
    %s396 = scalar_select %p395, %s394, 0
    %p397 = scmp.lt.s32.totalorder %s396, 1023
    %s398 = scalar_select %p397, %s396, 1023
    %s399 = sshrl.u32 %s398, 3
    %s400 = sand.u32 %s398, 7
    %s401 = smul.u32 %s399, 16
    %s402 = sadd.s32 %s400, %s401
    %s403 = scalar_lea.hbm %s3, %s402
    %s404 = scalar_lea.vmem [#allocation2], 21
    %s405 = sshll.u32 %s403, 4
    %s406 = int_to_ptr.hbm [resolvable:$true] %s405
    %s407 = sshll.u32 %s404, 4
    %s408 = int_to_ptr.vmem [resolvable:$true] %s407
    %412 = dma.hbm_to_vmem [thread:$0]  %s406, 32, %s408, [#allocation3], 128, 128, 1
    %s413 = sadd.s32 %s134, 14
    %s414 = sld [smem:[#allocation5 + %s413]]
    %p415 = scmp.gt.s32.totalorder %s414, 0
    %s416 = scalar_select %p415, %s414, 0
    %p417 = scmp.lt.s32.totalorder %s416, 1023
    %s418 = scalar_select %p417, %s416, 1023
    %s419 = sshrl.u32 %s418, 3
    %s420 = sand.u32 %s418, 7
    %s421 = smul.u32 %s419, 16
    %s422 = sadd.s32 %s420, %s421
    %s423 = scalar_lea.hbm %s3, %s422
    %s424 = scalar_lea.vmem [#allocation2], 22
    %s425 = sshll.u32 %s423, 4
    %s426 = int_to_ptr.hbm [resolvable:$true] %s425
    %s427 = sshll.u32 %s424, 4
    %s428 = int_to_ptr.vmem [resolvable:$true] %s427
    %432 = dma.hbm_to_vmem [thread:$0]  %s426, 32, %s428, [#allocation3], 128, 128, 1
    %s433 = sadd.s32 %s134, 15
    %s434 = sld [smem:[#allocation5 + %s433]]
    %p435 = scmp.gt.s32.totalorder %s434, 0
    %s436 = scalar_select %p435, %s434, 0
    %p437 = scmp.lt.s32.totalorder %s436, 1023
    %s438 = scalar_select %p437, %s436, 1023
    %s439 = sshrl.u32 %s438, 3
    %s440 = sand.u32 %s438, 7
    %s441 = smul.u32 %s439, 16
    %s442 = sadd.s32 %s440, %s441
    %s443 = scalar_lea.hbm %s3, %s442
    %s444 = scalar_lea.vmem [#allocation2], 23
    %s445 = sshll.u32 %s443, 4
    %s446 = int_to_ptr.hbm [resolvable:$true] %s445
    %s447 = sshll.u32 %s444, 4
    %s448 = int_to_ptr.vmem [resolvable:$true] %s447
    %452 = dma.hbm_to_vmem [thread:$0]  %s446, 32, %s448, [#allocation3], 128, 128, 1
    %s453 = sadd.s32 %s133, 1
    %s454 = smul.u32 %s453, 128
    %s455 = sld [smem:[#allocation5 + %s454]]
    %p456 = scmp.gt.s32.totalorder %s455, 0
    %s457 = scalar_select %p456, %s455, 0
    %p458 = scmp.lt.s32.totalorder %s457, 1023
    %s459 = scalar_select %p458, %s457, 1023
    %s460 = sshrl.u32 %s459, 3
    %s461 = sand.u32 %s459, 7
    %s462 = smul.u32 %s460, 16
    %s463 = sadd.s32 %s461, %s462
    %s464 = scalar_lea.hbm %s3, %s463
    %s465 = scalar_lea.vmem [#allocation2], 32
    %s466 = sshll.u32 %s464, 4
    %s467 = int_to_ptr.hbm [resolvable:$true] %s466
    %s468 = sshll.u32 %s465, 4
    %s469 = int_to_ptr.vmem [resolvable:$true] %s468
    %473 = dma.hbm_to_vmem [thread:$0]  %s467, 32, %s469, [#allocation3], 128, 128, 1
    %s474 = sadd.s32 %s454, 1
    %s475 = sld [smem:[#allocation5 + %s474]]
    %p476 = scmp.gt.s32.totalorder %s475, 0
    %s477 = scalar_select %p476, %s475, 0
    %p478 = scmp.lt.s32.totalorder %s477, 1023
    %s479 = scalar_select %p478, %s477, 1023
    %s480 = sshrl.u32 %s479, 3
    %s481 = sand.u32 %s479, 7
    %s482 = smul.u32 %s480, 16
    %s483 = sadd.s32 %s481, %s482
    %s484 = scalar_lea.hbm %s3, %s483
    %s485 = scalar_lea.vmem [#allocation2], 33
    %s486 = sshll.u32 %s484, 4
    %s487 = int_to_ptr.hbm [resolvable:$true] %s486
    %s488 = sshll.u32 %s485, 4
    %s489 = int_to_ptr.vmem [resolvable:$true] %s488
    %493 = dma.hbm_to_vmem [thread:$0]  %s487, 32, %s489, [#allocation3], 128, 128, 1
    %s494 = sadd.s32 %s454, 2
    %s495 = sld [smem:[#allocation5 + %s494]]
    %p496 = scmp.gt.s32.totalorder %s495, 0
    %s497 = scalar_select %p496, %s495, 0
    %p498 = scmp.lt.s32.totalorder %s497, 1023
    %s499 = scalar_select %p498, %s497, 1023
    %s500 = sshrl.u32 %s499, 3
    %s501 = sand.u32 %s499, 7
    %s502 = smul.u32 %s500, 16
    %s503 = sadd.s32 %s501, %s502
    %s504 = scalar_lea.hbm %s3, %s503
    %s505 = scalar_lea.vmem [#allocation2], 34
    %s506 = sshll.u32 %s504, 4
    %s507 = int_to_ptr.hbm [resolvable:$true] %s506
    %s508 = sshll.u32 %s505, 4
    %s509 = int_to_ptr.vmem [resolvable:$true] %s508
    %513 = dma.hbm_to_vmem [thread:$0]  %s507, 32, %s509, [#allocation3], 128, 128, 1
    %s514 = sadd.s32 %s454, 3
    %s515 = sld [smem:[#allocation5 + %s514]]
    %p516 = scmp.gt.s32.totalorder %s515, 0
    %s517 = scalar_select %p516, %s515, 0
    %p518 = scmp.lt.s32.totalorder %s517, 1023
    %s519 = scalar_select %p518, %s517, 1023
    %s520 = sshrl.u32 %s519, 3
    %s521 = sand.u32 %s519, 7
    %s522 = smul.u32 %s520, 16
    %s523 = sadd.s32 %s521, %s522
    %s524 = scalar_lea.hbm %s3, %s523
    %s525 = scalar_lea.vmem [#allocation2], 35
    %s526 = sshll.u32 %s524, 4
    %s527 = int_to_ptr.hbm [resolvable:$true] %s526
    %s528 = sshll.u32 %s525, 4
    %s529 = int_to_ptr.vmem [resolvable:$true] %s528
    %533 = dma.hbm_to_vmem [thread:$0]  %s527, 32, %s529, [#allocation3], 128, 128, 1
    %s534 = sadd.s32 %s454, 4
    %s535 = sld [smem:[#allocation5 + %s534]]
    %p536 = scmp.gt.s32.totalorder %s535, 0
    %s537 = scalar_select %p536, %s535, 0
    %p538 = scmp.lt.s32.totalorder %s537, 1023
    %s539 = scalar_select %p538, %s537, 1023
    %s540 = sshrl.u32 %s539, 3
    %s541 = sand.u32 %s539, 7
    %s542 = smul.u32 %s540, 16
    %s543 = sadd.s32 %s541, %s542
    %s544 = scalar_lea.hbm %s3, %s543
    %s545 = scalar_lea.vmem [#allocation2], 36
    %s546 = sshll.u32 %s544, 4
    %s547 = int_to_ptr.hbm [resolvable:$true] %s546
    %s548 = sshll.u32 %s545, 4
    %s549 = int_to_ptr.vmem [resolvable:$true] %s548
    %553 = dma.hbm_to_vmem [thread:$0]  %s547, 32, %s549, [#allocation3], 128, 128, 1
    %s554 = sadd.s32 %s454, 5
    %s555 = sld [smem:[#allocation5 + %s554]]
    %p556 = scmp.gt.s32.totalorder %s555, 0
    %s557 = scalar_select %p556, %s555, 0
    %p558 = scmp.lt.s32.totalorder %s557, 1023
    %s559 = scalar_select %p558, %s557, 1023
    %s560 = sshrl.u32 %s559, 3
    %s561 = sand.u32 %s559, 7
    %s562 = smul.u32 %s560, 16
    %s563 = sadd.s32 %s561, %s562
    %s564 = scalar_lea.hbm %s3, %s563
    %s565 = scalar_lea.vmem [#allocation2], 37
    %s566 = sshll.u32 %s564, 4
    %s567 = int_to_ptr.hbm [resolvable:$true] %s566
    %s568 = sshll.u32 %s565, 4
    %s569 = int_to_ptr.vmem [resolvable:$true] %s568
    %573 = dma.hbm_to_vmem [thread:$0]  %s567, 32, %s569, [#allocation3], 128, 128, 1
    %s574 = sadd.s32 %s454, 6
    %s575 = sld [smem:[#allocation5 + %s574]]
    %p576 = scmp.gt.s32.totalorder %s575, 0
    %s577 = scalar_select %p576, %s575, 0
    %p578 = scmp.lt.s32.totalorder %s577, 1023
    %s579 = scalar_select %p578, %s577, 1023
    %s580 = sshrl.u32 %s579, 3
    %s581 = sand.u32 %s579, 7
    %s582 = smul.u32 %s580, 16
    %s583 = sadd.s32 %s581, %s582
    %s584 = scalar_lea.hbm %s3, %s583
    %s585 = scalar_lea.vmem [#allocation2], 38
    %s586 = sshll.u32 %s584, 4
    %s587 = int_to_ptr.hbm [resolvable:$true] %s586
    %s588 = sshll.u32 %s585, 4
    %s589 = int_to_ptr.vmem [resolvable:$true] %s588
    %593 = dma.hbm_to_vmem [thread:$0]  %s587, 32, %s589, [#allocation3], 128, 128, 1
    %s594 = sadd.s32 %s454, 7
    %s595 = sld [smem:[#allocation5 + %s594]]
    %p596 = scmp.gt.s32.totalorder %s595, 0
    %s597 = scalar_select %p596, %s595, 0
    %p598 = scmp.lt.s32.totalorder %s597, 1023
    %s599 = scalar_select %p598, %s597, 1023
    %s600 = sshrl.u32 %s599, 3
    %s601 = sand.u32 %s599, 7
    %s602 = smul.u32 %s600, 16
    %s603 = sadd.s32 %s601, %s602
    %s604 = scalar_lea.hbm %s3, %s603
    %s605 = scalar_lea.vmem [#allocation2], 39
    %s606 = sshll.u32 %s604, 4
    %s607 = int_to_ptr.hbm [resolvable:$true] %s606
    %s608 = sshll.u32 %s605, 4
    %s609 = int_to_ptr.vmem [resolvable:$true] %s608
    %613 = dma.hbm_to_vmem [thread:$0]  %s607, 32, %s609, [#allocation3], 128, 128, 1
    %s614 = sadd.s32 %s454, 8
    %s615 = sld [smem:[#allocation5 + %s614]]
    %p616 = scmp.gt.s32.totalorder %s615, 0
    %s617 = scalar_select %p616, %s615, 0
    %p618 = scmp.lt.s32.totalorder %s617, 1023
    %s619 = scalar_select %p618, %s617, 1023
    %s620 = sshrl.u32 %s619, 3
    %s621 = sand.u32 %s619, 7
    %s622 = smul.u32 %s620, 16
    %s623 = sadd.s32 %s621, %s622
    %s624 = scalar_lea.hbm %s3, %s623
    %s625 = scalar_lea.vmem [#allocation2], 48
    %s626 = sshll.u32 %s624, 4
    %s627 = int_to_ptr.hbm [resolvable:$true] %s626
    %s628 = sshll.u32 %s625, 4
    %s629 = int_to_ptr.vmem [resolvable:$true] %s628
    %633 = dma.hbm_to_vmem [thread:$0]  %s627, 32, %s629, [#allocation3], 128, 128, 1
    %s634 = sadd.s32 %s454, 9
    %s635 = sld [smem:[#allocation5 + %s634]]
    %p636 = scmp.gt.s32.totalorder %s635, 0
    %s637 = scalar_select %p636, %s635, 0
    %p638 = scmp.lt.s32.totalorder %s637, 1023
    %s639 = scalar_select %p638, %s637, 1023
    %s640 = sshrl.u32 %s639, 3
    %s641 = sand.u32 %s639, 7
    %s642 = smul.u32 %s640, 16
    %s643 = sadd.s32 %s641, %s642
    %s644 = scalar_lea.hbm %s3, %s643
    %s645 = scalar_lea.vmem [#allocation2], 49
    %s646 = sshll.u32 %s644, 4
    %s647 = int_to_ptr.hbm [resolvable:$true] %s646
    %s648 = sshll.u32 %s645, 4
    %s649 = int_to_ptr.vmem [resolvable:$true] %s648
    %653 = dma.hbm_to_vmem [thread:$0]  %s647, 32, %s649, [#allocation3], 128, 128, 1
    %s654 = sadd.s32 %s454, 10
    %s655 = sld [smem:[#allocation5 + %s654]]
    %p656 = scmp.gt.s32.totalorder %s655, 0
    %s657 = scalar_select %p656, %s655, 0
    %p658 = scmp.lt.s32.totalorder %s657, 1023
    %s659 = scalar_select %p658, %s657, 1023
    %s660 = sshrl.u32 %s659, 3
    %s661 = sand.u32 %s659, 7
    %s662 = smul.u32 %s660, 16
    %s663 = sadd.s32 %s661, %s662
    %s664 = scalar_lea.hbm %s3, %s663
    %s665 = scalar_lea.vmem [#allocation2], 50
    %s666 = sshll.u32 %s664, 4
    %s667 = int_to_ptr.hbm [resolvable:$true] %s666
    %s668 = sshll.u32 %s665, 4
    %s669 = int_to_ptr.vmem [resolvable:$true] %s668
    %673 = dma.hbm_to_vmem [thread:$0]  %s667, 32, %s669, [#allocation3], 128, 128, 1
    %s674 = sadd.s32 %s454, 11
    %s675 = sld [smem:[#allocation5 + %s674]]
    %p676 = scmp.gt.s32.totalorder %s675, 0
    %s677 = scalar_select %p676, %s675, 0
    %p678 = scmp.lt.s32.totalorder %s677, 1023
    %s679 = scalar_select %p678, %s677, 1023
    %s680 = sshrl.u32 %s679, 3
    %s681 = sand.u32 %s679, 7
    %s682 = smul.u32 %s680, 16
    %s683 = sadd.s32 %s681, %s682
    %s684 = scalar_lea.hbm %s3, %s683
    %s685 = scalar_lea.vmem [#allocation2], 51
    %s686 = sshll.u32 %s684, 4
    %s687 = int_to_ptr.hbm [resolvable:$true] %s686
    %s688 = sshll.u32 %s685, 4
    %s689 = int_to_ptr.vmem [resolvable:$true] %s688
    %693 = dma.hbm_to_vmem [thread:$0]  %s687, 32, %s689, [#allocation3], 128, 128, 1
    %s694 = sadd.s32 %s454, 12
    %s695 = sld [smem:[#allocation5 + %s694]]
    %p696 = scmp.gt.s32.totalorder %s695, 0
    %s697 = scalar_select %p696, %s695, 0
    %p698 = scmp.lt.s32.totalorder %s697, 1023
    %s699 = scalar_select %p698, %s697, 1023
    %s700 = sshrl.u32 %s699, 3
    %s701 = sand.u32 %s699, 7
    %s702 = smul.u32 %s700, 16
    %s703 = sadd.s32 %s701, %s702
    %s704 = scalar_lea.hbm %s3, %s703
    %s705 = scalar_lea.vmem [#allocation2], 52
    %s706 = sshll.u32 %s704, 4
    %s707 = int_to_ptr.hbm [resolvable:$true] %s706
    %s708 = sshll.u32 %s705, 4
    %s709 = int_to_ptr.vmem [resolvable:$true] %s708
    %713 = dma.hbm_to_vmem [thread:$0]  %s707, 32, %s709, [#allocation3], 128, 128, 1
    %s714 = sadd.s32 %s454, 13
    %s715 = sld [smem:[#allocation5 + %s714]]
    %p716 = scmp.gt.s32.totalorder %s715, 0
    %s717 = scalar_select %p716, %s715, 0
    %p718 = scmp.lt.s32.totalorder %s717, 1023
    %s719 = scalar_select %p718, %s717, 1023
    %s720 = sshrl.u32 %s719, 3
    %s721 = sand.u32 %s719, 7
    %s722 = smul.u32 %s720, 16
    %s723 = sadd.s32 %s721, %s722
    %s724 = scalar_lea.hbm %s3, %s723
    %s725 = scalar_lea.vmem [#allocation2], 53
    %s726 = sshll.u32 %s724, 4
    %s727 = int_to_ptr.hbm [resolvable:$true] %s726
    %s728 = sshll.u32 %s725, 4
    %s729 = int_to_ptr.vmem [resolvable:$true] %s728
    %733 = dma.hbm_to_vmem [thread:$0]  %s727, 32, %s729, [#allocation3], 128, 128, 1
    %s734 = sadd.s32 %s454, 14
    %s735 = sld [smem:[#allocation5 + %s734]]
    %p736 = scmp.gt.s32.totalorder %s735, 0
    %s737 = scalar_select %p736, %s735, 0
    %p738 = scmp.lt.s32.totalorder %s737, 1023
    %s739 = scalar_select %p738, %s737, 1023
    %s740 = sshrl.u32 %s739, 3
    %s741 = sand.u32 %s739, 7
    %s742 = smul.u32 %s740, 16
    %s743 = sadd.s32 %s741, %s742
    %s744 = scalar_lea.hbm %s3, %s743
    %s745 = scalar_lea.vmem [#allocation2], 54
    %s746 = sshll.u32 %s744, 4
    %s747 = int_to_ptr.hbm [resolvable:$true] %s746
    %s748 = sshll.u32 %s745, 4
    %s749 = int_to_ptr.vmem [resolvable:$true] %s748
    %753 = dma.hbm_to_vmem [thread:$0]  %s747, 32, %s749, [#allocation3], 128, 128, 1
    %s754 = sadd.s32 %s454, 15
    %s755 = sld [smem:[#allocation5 + %s754]]
    %p756 = scmp.gt.s32.totalorder %s755, 0
    %s757 = scalar_select %p756, %s755, 0
    %p758 = scmp.lt.s32.totalorder %s757, 1023
    %s759 = scalar_select %p758, %s757, 1023
    %s760 = sshrl.u32 %s759, 3
    %s761 = sand.u32 %s759, 7
    %s762 = smul.u32 %s760, 16
    %s763 = sadd.s32 %s761, %s762
    %s764 = scalar_lea.hbm %s3, %s763
    %s765 = scalar_lea.vmem [#allocation2], 55
    %s766 = sshll.u32 %s764, 4
    %s767 = int_to_ptr.hbm [resolvable:$true] %s766
    %s768 = sshll.u32 %s765, 4
    %s769 = int_to_ptr.vmem [resolvable:$true] %s768
    %773 = dma.hbm_to_vmem [thread:$0]  %s767, 32, %s769, [#allocation3], 128, 128, 1
    %s774 = sadd.s32 %s133, 2
    %s775 = smul.u32 %s774, 128
    %s776 = sld [smem:[#allocation5 + %s775]]
    %p777 = scmp.gt.s32.totalorder %s776, 0
    %s778 = scalar_select %p777, %s776, 0
    %p779 = scmp.lt.s32.totalorder %s778, 1023
    %s780 = scalar_select %p779, %s778, 1023
    %s781 = sshrl.u32 %s780, 3
    %s782 = sand.u32 %s780, 7
    %s783 = smul.u32 %s781, 16
    %s784 = sadd.s32 %s782, %s783
    %s785 = scalar_lea.hbm %s3, %s784
    %s786 = scalar_lea.vmem [#allocation2], 64
    %s787 = sshll.u32 %s785, 4
    %s788 = int_to_ptr.hbm [resolvable:$true] %s787
    %s789 = sshll.u32 %s786, 4
    %s790 = int_to_ptr.vmem [resolvable:$true] %s789
    %794 = dma.hbm_to_vmem [thread:$0]  %s788, 32, %s790, [#allocation3], 128, 128, 1
    %s795 = sadd.s32 %s775, 1
    %s796 = sld [smem:[#allocation5 + %s795]]
    %p797 = scmp.gt.s32.totalorder %s796, 0
    %s798 = scalar_select %p797, %s796, 0
    %p799 = scmp.lt.s32.totalorder %s798, 1023
    %s800 = scalar_select %p799, %s798, 1023
    %s801 = sshrl.u32 %s800, 3
    %s802 = sand.u32 %s800, 7
    %s803 = smul.u32 %s801, 16
    %s804 = sadd.s32 %s802, %s803
    %s805 = scalar_lea.hbm %s3, %s804
    %s806 = scalar_lea.vmem [#allocation2], 65
    %s807 = sshll.u32 %s805, 4
    %s808 = int_to_ptr.hbm [resolvable:$true] %s807
    %s809 = sshll.u32 %s806, 4
    %s810 = int_to_ptr.vmem [resolvable:$true] %s809
    %814 = dma.hbm_to_vmem [thread:$0]  %s808, 32, %s810, [#allocation3], 128, 128, 1
    %s815 = sadd.s32 %s775, 2
    %s816 = sld [smem:[#allocation5 + %s815]]
    %p817 = scmp.gt.s32.totalorder %s816, 0
    %s818 = scalar_select %p817, %s816, 0
    %p819 = scmp.lt.s32.totalorder %s818, 1023
    %s820 = scalar_select %p819, %s818, 1023
    %s821 = sshrl.u32 %s820, 3
    %s822 = sand.u32 %s820, 7
    %s823 = smul.u32 %s821, 16
    %s824 = sadd.s32 %s822, %s823
    %s825 = scalar_lea.hbm %s3, %s824
    %s826 = scalar_lea.vmem [#allocation2], 66
    %s827 = sshll.u32 %s825, 4
    %s828 = int_to_ptr.hbm [resolvable:$true] %s827
    %s829 = sshll.u32 %s826, 4
    %s830 = int_to_ptr.vmem [resolvable:$true] %s829
    %834 = dma.hbm_to_vmem [thread:$0]  %s828, 32, %s830, [#allocation3], 128, 128, 1
    %s835 = sadd.s32 %s775, 3
    %s836 = sld [smem:[#allocation5 + %s835]]
    %p837 = scmp.gt.s32.totalorder %s836, 0
    %s838 = scalar_select %p837, %s836, 0
    %p839 = scmp.lt.s32.totalorder %s838, 1023
    %s840 = scalar_select %p839, %s838, 1023
    %s841 = sshrl.u32 %s840, 3
    %s842 = sand.u32 %s840, 7
    %s843 = smul.u32 %s841, 16
    %s844 = sadd.s32 %s842, %s843
    %s845 = scalar_lea.hbm %s3, %s844
    %s846 = scalar_lea.vmem [#allocation2], 67
    %s847 = sshll.u32 %s845, 4
    %s848 = int_to_ptr.hbm [resolvable:$true] %s847
    %s849 = sshll.u32 %s846, 4
    %s850 = int_to_ptr.vmem [resolvable:$true] %s849
    %854 = dma.hbm_to_vmem [thread:$0]  %s848, 32, %s850, [#allocation3], 128, 128, 1
    %s855 = sadd.s32 %s775, 4
    %s856 = sld [smem:[#allocation5 + %s855]]
    %p857 = scmp.gt.s32.totalorder %s856, 0
    %s858 = scalar_select %p857, %s856, 0
    %p859 = scmp.lt.s32.totalorder %s858, 1023
    %s860 = scalar_select %p859, %s858, 1023
    %s861 = sshrl.u32 %s860, 3
    %s862 = sand.u32 %s860, 7
    %s863 = smul.u32 %s861, 16
    %s864 = sadd.s32 %s862, %s863
    %s865 = scalar_lea.hbm %s3, %s864
    %s866 = scalar_lea.vmem [#allocation2], 68
    %s867 = sshll.u32 %s865, 4
    %s868 = int_to_ptr.hbm [resolvable:$true] %s867
    %s869 = sshll.u32 %s866, 4
    %s870 = int_to_ptr.vmem [resolvable:$true] %s869
    %874 = dma.hbm_to_vmem [thread:$0]  %s868, 32, %s870, [#allocation3], 128, 128, 1
    %s875 = sadd.s32 %s775, 5
    %s876 = sld [smem:[#allocation5 + %s875]]
    %p877 = scmp.gt.s32.totalorder %s876, 0
    %s878 = scalar_select %p877, %s876, 0
    %p879 = scmp.lt.s32.totalorder %s878, 1023
    %s880 = scalar_select %p879, %s878, 1023
    %s881 = sshrl.u32 %s880, 3
    %s882 = sand.u32 %s880, 7
    %s883 = smul.u32 %s881, 16
    %s884 = sadd.s32 %s882, %s883
    %s885 = scalar_lea.hbm %s3, %s884
    %s886 = scalar_lea.vmem [#allocation2], 69
    %s887 = sshll.u32 %s885, 4
    %s888 = int_to_ptr.hbm [resolvable:$true] %s887
    %s889 = sshll.u32 %s886, 4
    %s890 = int_to_ptr.vmem [resolvable:$true] %s889
    %894 = dma.hbm_to_vmem [thread:$0]  %s888, 32, %s890, [#allocation3], 128, 128, 1
    %s895 = sadd.s32 %s775, 6
    %s896 = sld [smem:[#allocation5 + %s895]]
    %p897 = scmp.gt.s32.totalorder %s896, 0
    %s898 = scalar_select %p897, %s896, 0
    %p899 = scmp.lt.s32.totalorder %s898, 1023
    %s900 = scalar_select %p899, %s898, 1023
    %s901 = sshrl.u32 %s900, 3
    %s902 = sand.u32 %s900, 7
    %s903 = smul.u32 %s901, 16
    %s904 = sadd.s32 %s902, %s903
    %s905 = scalar_lea.hbm %s3, %s904
    %s906 = scalar_lea.vmem [#allocation2], 70
    %s907 = sshll.u32 %s905, 4
    %s908 = int_to_ptr.hbm [resolvable:$true] %s907
    %s909 = sshll.u32 %s906, 4
    %s910 = int_to_ptr.vmem [resolvable:$true] %s909
    %914 = dma.hbm_to_vmem [thread:$0]  %s908, 32, %s910, [#allocation3], 128, 128, 1
    %s915 = sadd.s32 %s775, 7
    %s916 = sld [smem:[#allocation5 + %s915]]
    %p917 = scmp.gt.s32.totalorder %s916, 0
    %s918 = scalar_select %p917, %s916, 0
    %p919 = scmp.lt.s32.totalorder %s918, 1023
    %s920 = scalar_select %p919, %s918, 1023
    %s921 = sshrl.u32 %s920, 3
    %s922 = sand.u32 %s920, 7
    %s923 = smul.u32 %s921, 16
    %s924 = sadd.s32 %s922, %s923
    %s925 = scalar_lea.hbm %s3, %s924
    %s926 = scalar_lea.vmem [#allocation2], 71
    %s927 = sshll.u32 %s925, 4
    %s928 = int_to_ptr.hbm [resolvable:$true] %s927
    %s929 = sshll.u32 %s926, 4
    %s930 = int_to_ptr.vmem [resolvable:$true] %s929
    %934 = dma.hbm_to_vmem [thread:$0]  %s928, 32, %s930, [#allocation3], 128, 128, 1
    %s935 = sadd.s32 %s775, 8
    %s936 = sld [smem:[#allocation5 + %s935]]
    %p937 = scmp.gt.s32.totalorder %s936, 0
    %s938 = scalar_select %p937, %s936, 0
    %p939 = scmp.lt.s32.totalorder %s938, 1023
    %s940 = scalar_select %p939, %s938, 1023
    %s941 = sshrl.u32 %s940, 3
    %s942 = sand.u32 %s940, 7
    %s943 = smul.u32 %s941, 16
    %s944 = sadd.s32 %s942, %s943
    %s945 = scalar_lea.hbm %s3, %s944
    %s946 = scalar_lea.vmem [#allocation2], 80
    %s947 = sshll.u32 %s945, 4
    %s948 = int_to_ptr.hbm [resolvable:$true] %s947
    %s949 = sshll.u32 %s946, 4
    %s950 = int_to_ptr.vmem [resolvable:$true] %s949
    %954 = dma.hbm_to_vmem [thread:$0]  %s948, 32, %s950, [#allocation3], 128, 128, 1
    %s955 = sadd.s32 %s775, 9
    %s956 = sld [smem:[#allocation5 + %s955]]
    %p957 = scmp.gt.s32.totalorder %s956, 0
    %s958 = scalar_select %p957, %s956, 0
    %p959 = scmp.lt.s32.totalorder %s958, 1023
    %s960 = scalar_select %p959, %s958, 1023
    %s961 = sshrl.u32 %s960, 3
    %s962 = sand.u32 %s960, 7
    %s963 = smul.u32 %s961, 16
    %s964 = sadd.s32 %s962, %s963
    %s965 = scalar_lea.hbm %s3, %s964
    %s966 = scalar_lea.vmem [#allocation2], 81
    %s967 = sshll.u32 %s965, 4
    %s968 = int_to_ptr.hbm [resolvable:$true] %s967
    %s969 = sshll.u32 %s966, 4
    %s970 = int_to_ptr.vmem [resolvable:$true] %s969
    %974 = dma.hbm_to_vmem [thread:$0]  %s968, 32, %s970, [#allocation3], 128, 128, 1
    %s975 = sadd.s32 %s775, 10
    %s976 = sld [smem:[#allocation5 + %s975]]
    %p977 = scmp.gt.s32.totalorder %s976, 0
    %s978 = scalar_select %p977, %s976, 0
    %p979 = scmp.lt.s32.totalorder %s978, 1023
    %s980 = scalar_select %p979, %s978, 1023
    %s981 = sshrl.u32 %s980, 3
    %s982 = sand.u32 %s980, 7
    %s983 = smul.u32 %s981, 16
    %s984 = sadd.s32 %s982, %s983
    %s985 = scalar_lea.hbm %s3, %s984
    %s986 = scalar_lea.vmem [#allocation2], 82
    %s987 = sshll.u32 %s985, 4
    %s988 = int_to_ptr.hbm [resolvable:$true] %s987
    %s989 = sshll.u32 %s986, 4
    %s990 = int_to_ptr.vmem [resolvable:$true] %s989
    %994 = dma.hbm_to_vmem [thread:$0]  %s988, 32, %s990, [#allocation3], 128, 128, 1
    %s995 = sadd.s32 %s775, 11
    %s996 = sld [smem:[#allocation5 + %s995]]
    %p997 = scmp.gt.s32.totalorder %s996, 0
    %s998 = scalar_select %p997, %s996, 0
    %p999 = scmp.lt.s32.totalorder %s998, 1023
    %s1000 = scalar_select %p999, %s998, 1023
    %s1001 = sshrl.u32 %s1000, 3
    %s1002 = sand.u32 %s1000, 7
    %s1003 = smul.u32 %s1001, 16
    %s1004 = sadd.s32 %s1002, %s1003
    %s1005 = scalar_lea.hbm %s3, %s1004
    %s1006 = scalar_lea.vmem [#allocation2], 83
    %s1007 = sshll.u32 %s1005, 4
    %s1008 = int_to_ptr.hbm [resolvable:$true] %s1007
    %s1009 = sshll.u32 %s1006, 4
    %s1010 = int_to_ptr.vmem [resolvable:$true] %s1009
    %1014 = dma.hbm_to_vmem [thread:$0]  %s1008, 32, %s1010, [#allocation3], 128, 128, 1
    %s1015 = sadd.s32 %s775, 12
    %s1016 = sld [smem:[#allocation5 + %s1015]]
    %p1017 = scmp.gt.s32.totalorder %s1016, 0
    %s1018 = scalar_select %p1017, %s1016, 0
    %p1019 = scmp.lt.s32.totalorder %s1018, 1023
    %s1020 = scalar_select %p1019, %s1018, 1023
    %s1021 = sshrl.u32 %s1020, 3
    %s1022 = sand.u32 %s1020, 7
    %s1023 = smul.u32 %s1021, 16
    %s1024 = sadd.s32 %s1022, %s1023
    %s1025 = scalar_lea.hbm %s3, %s1024
    %s1026 = scalar_lea.vmem [#allocation2], 84
    %s1027 = sshll.u32 %s1025, 4
    %s1028 = int_to_ptr.hbm [resolvable:$true] %s1027
    %s1029 = sshll.u32 %s1026, 4
    %s1030 = int_to_ptr.vmem [resolvable:$true] %s1029
    %1034 = dma.hbm_to_vmem [thread:$0]  %s1028, 32, %s1030, [#allocation3], 128, 128, 1
    %s1035 = sadd.s32 %s775, 13
    %s1036 = sld [smem:[#allocation5 + %s1035]]
    %p1037 = scmp.gt.s32.totalorder %s1036, 0
    %s1038 = scalar_select %p1037, %s1036, 0
    %p1039 = scmp.lt.s32.totalorder %s1038, 1023
    %s1040 = scalar_select %p1039, %s1038, 1023
    %s1041 = sshrl.u32 %s1040, 3
    %s1042 = sand.u32 %s1040, 7
    %s1043 = smul.u32 %s1041, 16
    %s1044 = sadd.s32 %s1042, %s1043
    %s1045 = scalar_lea.hbm %s3, %s1044
    %s1046 = scalar_lea.vmem [#allocation2], 85
    %s1047 = sshll.u32 %s1045, 4
    %s1048 = int_to_ptr.hbm [resolvable:$true] %s1047
    %s1049 = sshll.u32 %s1046, 4
    %s1050 = int_to_ptr.vmem [resolvable:$true] %s1049
    %1054 = dma.hbm_to_vmem [thread:$0]  %s1048, 32, %s1050, [#allocation3], 128, 128, 1
    %s1055 = sadd.s32 %s775, 14
    %s1056 = sld [smem:[#allocation5 + %s1055]]
    %p1057 = scmp.gt.s32.totalorder %s1056, 0
    %s1058 = scalar_select %p1057, %s1056, 0
    %p1059 = scmp.lt.s32.totalorder %s1058, 1023
    %s1060 = scalar_select %p1059, %s1058, 1023
    %s1061 = sshrl.u32 %s1060, 3
    %s1062 = sand.u32 %s1060, 7
    %s1063 = smul.u32 %s1061, 16
    %s1064 = sadd.s32 %s1062, %s1063
    %s1065 = scalar_lea.hbm %s3, %s1064
    %s1066 = scalar_lea.vmem [#allocation2], 86
    %s1067 = sshll.u32 %s1065, 4
    %s1068 = int_to_ptr.hbm [resolvable:$true] %s1067
    %s1069 = sshll.u32 %s1066, 4
    %s1070 = int_to_ptr.vmem [resolvable:$true] %s1069
    %1074 = dma.hbm_to_vmem [thread:$0]  %s1068, 32, %s1070, [#allocation3], 128, 128, 1
    %s1075 = sadd.s32 %s775, 15
    %s1076 = sld [smem:[#allocation5 + %s1075]]
    %p1077 = scmp.gt.s32.totalorder %s1076, 0
    %s1078 = scalar_select %p1077, %s1076, 0
    %p1079 = scmp.lt.s32.totalorder %s1078, 1023
    %s1080 = scalar_select %p1079, %s1078, 1023
    %s1081 = sshrl.u32 %s1080, 3
    %s1082 = sand.u32 %s1080, 7
    %s1083 = smul.u32 %s1081, 16
    %s1084 = sadd.s32 %s1082, %s1083
    %s1085 = scalar_lea.hbm %s3, %s1084
    %s1086 = scalar_lea.vmem [#allocation2], 87
    %s1087 = sshll.u32 %s1085, 4
    %s1088 = int_to_ptr.hbm [resolvable:$true] %s1087
    %s1089 = sshll.u32 %s1086, 4
    %s1090 = int_to_ptr.vmem [resolvable:$true] %s1089
    %1094 = dma.hbm_to_vmem [thread:$0]  %s1088, 32, %s1090, [#allocation3], 128, 128, 1
    %s1095 = sadd.s32 %s133, 3
    %s1096 = smul.u32 %s1095, 128
    %s1097 = sld [smem:[#allocation5 + %s1096]]
    %p1098 = scmp.gt.s32.totalorder %s1097, 0
    %s1099 = scalar_select %p1098, %s1097, 0
    %p1100 = scmp.lt.s32.totalorder %s1099, 1023
    %s1101 = scalar_select %p1100, %s1099, 1023
    %s1102 = sshrl.u32 %s1101, 3
    %s1103 = sand.u32 %s1101, 7
    %s1104 = smul.u32 %s1102, 16
    %s1105 = sadd.s32 %s1103, %s1104
    %s1106 = scalar_lea.hbm %s3, %s1105
    %s1107 = scalar_lea.vmem [#allocation2], 96
    %s1108 = sshll.u32 %s1106, 4
    %s1109 = int_to_ptr.hbm [resolvable:$true] %s1108
    %s1110 = sshll.u32 %s1107, 4
    %s1111 = int_to_ptr.vmem [resolvable:$true] %s1110
    %1115 = dma.hbm_to_vmem [thread:$0]  %s1109, 32, %s1111, [#allocation3], 128, 128, 1
    %s1116 = sadd.s32 %s1096, 1
    %s1117 = sld [smem:[#allocation5 + %s1116]]
    %p1118 = scmp.gt.s32.totalorder %s1117, 0
    %s1119 = scalar_select %p1118, %s1117, 0
    %p1120 = scmp.lt.s32.totalorder %s1119, 1023
    %s1121 = scalar_select %p1120, %s1119, 1023
    %s1122 = sshrl.u32 %s1121, 3
    %s1123 = sand.u32 %s1121, 7
    %s1124 = smul.u32 %s1122, 16
    %s1125 = sadd.s32 %s1123, %s1124
    %s1126 = scalar_lea.hbm %s3, %s1125
    %s1127 = scalar_lea.vmem [#allocation2], 97
    %s1128 = sshll.u32 %s1126, 4
    %s1129 = int_to_ptr.hbm [resolvable:$true] %s1128
    %s1130 = sshll.u32 %s1127, 4
    %s1131 = int_to_ptr.vmem [resolvable:$true] %s1130
    %1135 = dma.hbm_to_vmem [thread:$0]  %s1129, 32, %s1131, [#allocation3], 128, 128, 1
    %s1136 = sadd.s32 %s1096, 2
    %s1137 = sld [smem:[#allocation5 + %s1136]]
    %p1138 = scmp.gt.s32.totalorder %s1137, 0
    %s1139 = scalar_select %p1138, %s1137, 0
    %p1140 = scmp.lt.s32.totalorder %s1139, 1023
    %s1141 = scalar_select %p1140, %s1139, 1023
    %s1142 = sshrl.u32 %s1141, 3
    %s1143 = sand.u32 %s1141, 7
    %s1144 = smul.u32 %s1142, 16
    %s1145 = sadd.s32 %s1143, %s1144
    %s1146 = scalar_lea.hbm %s3, %s1145
    %s1147 = scalar_lea.vmem [#allocation2], 98
    %s1148 = sshll.u32 %s1146, 4
    %s1149 = int_to_ptr.hbm [resolvable:$true] %s1148
    %s1150 = sshll.u32 %s1147, 4
    %s1151 = int_to_ptr.vmem [resolvable:$true] %s1150
    %1155 = dma.hbm_to_vmem [thread:$0]  %s1149, 32, %s1151, [#allocation3], 128, 128, 1
    %s1156 = sadd.s32 %s1096, 3
    %s1157 = sld [smem:[#allocation5 + %s1156]]
    %p1158 = scmp.gt.s32.totalorder %s1157, 0
    %s1159 = scalar_select %p1158, %s1157, 0
    %p1160 = scmp.lt.s32.totalorder %s1159, 1023
    %s1161 = scalar_select %p1160, %s1159, 1023
    %s1162 = sshrl.u32 %s1161, 3
    %s1163 = sand.u32 %s1161, 7
    %s1164 = smul.u32 %s1162, 16
    %s1165 = sadd.s32 %s1163, %s1164
    %s1166 = scalar_lea.hbm %s3, %s1165
    %s1167 = scalar_lea.vmem [#allocation2], 99
    %s1168 = sshll.u32 %s1166, 4
    %s1169 = int_to_ptr.hbm [resolvable:$true] %s1168
    %s1170 = sshll.u32 %s1167, 4
    %s1171 = int_to_ptr.vmem [resolvable:$true] %s1170
    %1175 = dma.hbm_to_vmem [thread:$0]  %s1169, 32, %s1171, [#allocation3], 128, 128, 1
    %s1176 = sadd.s32 %s1096, 4
    %s1177 = sld [smem:[#allocation5 + %s1176]]
    %p1178 = scmp.gt.s32.totalorder %s1177, 0
    %s1179 = scalar_select %p1178, %s1177, 0
    %p1180 = scmp.lt.s32.totalorder %s1179, 1023
    %s1181 = scalar_select %p1180, %s1179, 1023
    %s1182 = sshrl.u32 %s1181, 3
    %s1183 = sand.u32 %s1181, 7
    %s1184 = smul.u32 %s1182, 16
    %s1185 = sadd.s32 %s1183, %s1184
    %s1186 = scalar_lea.hbm %s3, %s1185
    %s1187 = scalar_lea.vmem [#allocation2], 100
    %s1188 = sshll.u32 %s1186, 4
    %s1189 = int_to_ptr.hbm [resolvable:$true] %s1188
    %s1190 = sshll.u32 %s1187, 4
    %s1191 = int_to_ptr.vmem [resolvable:$true] %s1190
    %1195 = dma.hbm_to_vmem [thread:$0]  %s1189, 32, %s1191, [#allocation3], 128, 128, 1
    %s1196 = sadd.s32 %s1096, 5
    %s1197 = sld [smem:[#allocation5 + %s1196]]
    %p1198 = scmp.gt.s32.totalorder %s1197, 0
    %s1199 = scalar_select %p1198, %s1197, 0
    %p1200 = scmp.lt.s32.totalorder %s1199, 1023
    %s1201 = scalar_select %p1200, %s1199, 1023
    %s1202 = sshrl.u32 %s1201, 3
    %s1203 = sand.u32 %s1201, 7
    %s1204 = smul.u32 %s1202, 16
    %s1205 = sadd.s32 %s1203, %s1204
    %s1206 = scalar_lea.hbm %s3, %s1205
    %s1207 = scalar_lea.vmem [#allocation2], 101
    %s1208 = sshll.u32 %s1206, 4
    %s1209 = int_to_ptr.hbm [resolvable:$true] %s1208
    %s1210 = sshll.u32 %s1207, 4
    %s1211 = int_to_ptr.vmem [resolvable:$true] %s1210
    %1215 = dma.hbm_to_vmem [thread:$0]  %s1209, 32, %s1211, [#allocation3], 128, 128, 1
    %s1216 = sadd.s32 %s1096, 6
    %s1217 = sld [smem:[#allocation5 + %s1216]]
    %p1218 = scmp.gt.s32.totalorder %s1217, 0
    %s1219 = scalar_select %p1218, %s1217, 0
    %p1220 = scmp.lt.s32.totalorder %s1219, 1023
    %s1221 = scalar_select %p1220, %s1219, 1023
    %s1222 = sshrl.u32 %s1221, 3
    %s1223 = sand.u32 %s1221, 7
    %s1224 = smul.u32 %s1222, 16
    %s1225 = sadd.s32 %s1223, %s1224
    %s1226 = scalar_lea.hbm %s3, %s1225
    %s1227 = scalar_lea.vmem [#allocation2], 102
    %s1228 = sshll.u32 %s1226, 4
    %s1229 = int_to_ptr.hbm [resolvable:$true] %s1228
    %s1230 = sshll.u32 %s1227, 4
    %s1231 = int_to_ptr.vmem [resolvable:$true] %s1230
    %1235 = dma.hbm_to_vmem [thread:$0]  %s1229, 32, %s1231, [#allocation3], 128, 128, 1
    %s1236 = sadd.s32 %s1096, 7
    %s1237 = sld [smem:[#allocation5 + %s1236]]
    %p1238 = scmp.gt.s32.totalorder %s1237, 0
    %s1239 = scalar_select %p1238, %s1237, 0
    %p1240 = scmp.lt.s32.totalorder %s1239, 1023
    %s1241 = scalar_select %p1240, %s1239, 1023
    %s1242 = sshrl.u32 %s1241, 3
    %s1243 = sand.u32 %s1241, 7
    %s1244 = smul.u32 %s1242, 16
    %s1245 = sadd.s32 %s1243, %s1244
    %s1246 = scalar_lea.hbm %s3, %s1245
    %s1247 = scalar_lea.vmem [#allocation2], 103
    %s1248 = sshll.u32 %s1246, 4
    %s1249 = int_to_ptr.hbm [resolvable:$true] %s1248
    %s1250 = sshll.u32 %s1247, 4
    %s1251 = int_to_ptr.vmem [resolvable:$true] %s1250
    %1255 = dma.hbm_to_vmem [thread:$0]  %s1249, 32, %s1251, [#allocation3], 128, 128, 1
    %s1256 = sadd.s32 %s1096, 8
    %s1257 = sld [smem:[#allocation5 + %s1256]]
    %p1258 = scmp.gt.s32.totalorder %s1257, 0
    %s1259 = scalar_select %p1258, %s1257, 0
    %p1260 = scmp.lt.s32.totalorder %s1259, 1023
    %s1261 = scalar_select %p1260, %s1259, 1023
    %s1262 = sshrl.u32 %s1261, 3
    %s1263 = sand.u32 %s1261, 7
    %s1264 = smul.u32 %s1262, 16
    %s1265 = sadd.s32 %s1263, %s1264
    %s1266 = scalar_lea.hbm %s3, %s1265
    %s1267 = scalar_lea.vmem [#allocation2], 112
    %s1268 = sshll.u32 %s1266, 4
    %s1269 = int_to_ptr.hbm [resolvable:$true] %s1268
    %s1270 = sshll.u32 %s1267, 4
    %s1271 = int_to_ptr.vmem [resolvable:$true] %s1270
    %1275 = dma.hbm_to_vmem [thread:$0]  %s1269, 32, %s1271, [#allocation3], 128, 128, 1
    %s1276 = sadd.s32 %s1096, 9
    %s1277 = sld [smem:[#allocation5 + %s1276]]
    %p1278 = scmp.gt.s32.totalorder %s1277, 0
    %s1279 = scalar_select %p1278, %s1277, 0
    %p1280 = scmp.lt.s32.totalorder %s1279, 1023
    %s1281 = scalar_select %p1280, %s1279, 1023
    %s1282 = sshrl.u32 %s1281, 3
    %s1283 = sand.u32 %s1281, 7
    %s1284 = smul.u32 %s1282, 16
    %s1285 = sadd.s32 %s1283, %s1284
    %s1286 = scalar_lea.hbm %s3, %s1285
    %s1287 = scalar_lea.vmem [#allocation2], 113
    %s1288 = sshll.u32 %s1286, 4
    %s1289 = int_to_ptr.hbm [resolvable:$true] %s1288
    %s1290 = sshll.u32 %s1287, 4
    %s1291 = int_to_ptr.vmem [resolvable:$true] %s1290
    %1295 = dma.hbm_to_vmem [thread:$0]  %s1289, 32, %s1291, [#allocation3], 128, 128, 1
    %s1296 = sadd.s32 %s1096, 10
    %s1297 = sld [smem:[#allocation5 + %s1296]]
    %p1298 = scmp.gt.s32.totalorder %s1297, 0
    %s1299 = scalar_select %p1298, %s1297, 0
    %p1300 = scmp.lt.s32.totalorder %s1299, 1023
    %s1301 = scalar_select %p1300, %s1299, 1023
    %s1302 = sshrl.u32 %s1301, 3
    %s1303 = sand.u32 %s1301, 7
    %s1304 = smul.u32 %s1302, 16
    %s1305 = sadd.s32 %s1303, %s1304
    %s1306 = scalar_lea.hbm %s3, %s1305
    %s1307 = scalar_lea.vmem [#allocation2], 114
    %s1308 = sshll.u32 %s1306, 4
    %s1309 = int_to_ptr.hbm [resolvable:$true] %s1308
    %s1310 = sshll.u32 %s1307, 4
    %s1311 = int_to_ptr.vmem [resolvable:$true] %s1310
    %1315 = dma.hbm_to_vmem [thread:$0]  %s1309, 32, %s1311, [#allocation3], 128, 128, 1
    %s1316 = sadd.s32 %s1096, 11
    %s1317 = sld [smem:[#allocation5 + %s1316]]
    %p1318 = scmp.gt.s32.totalorder %s1317, 0
    %s1319 = scalar_select %p1318, %s1317, 0
    %p1320 = scmp.lt.s32.totalorder %s1319, 1023
    %s1321 = scalar_select %p1320, %s1319, 1023
    %s1322 = sshrl.u32 %s1321, 3
    %s1323 = sand.u32 %s1321, 7
    %s1324 = smul.u32 %s1322, 16
    %s1325 = sadd.s32 %s1323, %s1324
    %s1326 = scalar_lea.hbm %s3, %s1325
    %s1327 = scalar_lea.vmem [#allocation2], 115
    %s1328 = sshll.u32 %s1326, 4
    %s1329 = int_to_ptr.hbm [resolvable:$true] %s1328
    %s1330 = sshll.u32 %s1327, 4
    %s1331 = int_to_ptr.vmem [resolvable:$true] %s1330
    %1335 = dma.hbm_to_vmem [thread:$0]  %s1329, 32, %s1331, [#allocation3], 128, 128, 1
    %s1336 = sadd.s32 %s1096, 12
    %s1337 = sld [smem:[#allocation5 + %s1336]]
    %p1338 = scmp.gt.s32.totalorder %s1337, 0
    %s1339 = scalar_select %p1338, %s1337, 0
    %p1340 = scmp.lt.s32.totalorder %s1339, 1023
    %s1341 = scalar_select %p1340, %s1339, 1023
    %s1342 = sshrl.u32 %s1341, 3
    %s1343 = sand.u32 %s1341, 7
    %s1344 = smul.u32 %s1342, 16
    %s1345 = sadd.s32 %s1343, %s1344
    %s1346 = scalar_lea.hbm %s3, %s1345
    %s1347 = scalar_lea.vmem [#allocation2], 116
    %s1348 = sshll.u32 %s1346, 4
    %s1349 = int_to_ptr.hbm [resolvable:$true] %s1348
    %s1350 = sshll.u32 %s1347, 4
    %s1351 = int_to_ptr.vmem [resolvable:$true] %s1350
    %1355 = dma.hbm_to_vmem [thread:$0]  %s1349, 32, %s1351, [#allocation3], 128, 128, 1
    %s1356 = sadd.s32 %s1096, 13
    %s1357 = sld [smem:[#allocation5 + %s1356]]
    %p1358 = scmp.gt.s32.totalorder %s1357, 0
    %s1359 = scalar_select %p1358, %s1357, 0
    %p1360 = scmp.lt.s32.totalorder %s1359, 1023
    %s1361 = scalar_select %p1360, %s1359, 1023
    %s1362 = sshrl.u32 %s1361, 3
    %s1363 = sand.u32 %s1361, 7
    %s1364 = smul.u32 %s1362, 16
    %s1365 = sadd.s32 %s1363, %s1364
    %s1366 = scalar_lea.hbm %s3, %s1365
    %s1367 = scalar_lea.vmem [#allocation2], 117
    %s1368 = sshll.u32 %s1366, 4
    %s1369 = int_to_ptr.hbm [resolvable:$true] %s1368
    %s1370 = sshll.u32 %s1367, 4
    %s1371 = int_to_ptr.vmem [resolvable:$true] %s1370
    %1375 = dma.hbm_to_vmem [thread:$0]  %s1369, 32, %s1371, [#allocation3], 128, 128, 1
    %s1376 = sadd.s32 %s1096, 14
    %s1377 = sld [smem:[#allocation5 + %s1376]]
    %p1378 = scmp.gt.s32.totalorder %s1377, 0
    %s1379 = scalar_select %p1378, %s1377, 0
    %p1380 = scmp.lt.s32.totalorder %s1379, 1023
    %s1381 = scalar_select %p1380, %s1379, 1023
    %s1382 = sshrl.u32 %s1381, 3
    %s1383 = sand.u32 %s1381, 7
    %s1384 = smul.u32 %s1382, 16
    %s1385 = sadd.s32 %s1383, %s1384
    %s1386 = scalar_lea.hbm %s3, %s1385
    %s1387 = scalar_lea.vmem [#allocation2], 118
    %s1388 = sshll.u32 %s1386, 4
    %s1389 = int_to_ptr.hbm [resolvable:$true] %s1388
    %s1390 = sshll.u32 %s1387, 4
    %s1391 = int_to_ptr.vmem [resolvable:$true] %s1390
    %1395 = dma.hbm_to_vmem [thread:$0]  %s1389, 32, %s1391, [#allocation3], 128, 128, 1
    %s1396 = sadd.s32 %s1096, 15
    %s1397 = sld [smem:[#allocation5 + %s1396]]
    %p1398 = scmp.gt.s32.totalorder %s1397, 0
    %s1399 = scalar_select %p1398, %s1397, 0
    %p1400 = scmp.lt.s32.totalorder %s1399, 1023
    %s1401 = scalar_select %p1400, %s1399, 1023
    %s1402 = sshrl.u32 %s1401, 3
    %s1403 = sand.u32 %s1401, 7
    %s1404 = smul.u32 %s1402, 16
    %s1405 = sadd.s32 %s1403, %s1404
    %s1406 = scalar_lea.hbm %s3, %s1405
    %s1407 = scalar_lea.vmem [#allocation2], 119
    %s1408 = sshll.u32 %s1406, 4
    %s1409 = int_to_ptr.hbm [resolvable:$true] %s1408
    %s1410 = sshll.u32 %s1407, 4
    %s1411 = int_to_ptr.vmem [resolvable:$true] %s1410
    %1415 = dma.hbm_to_vmem [thread:$0]  %s1409, 32, %s1411, [#allocation3], 128, 128, 1
    %s1416 = sadd.s32 %s133, 4
    %s1417 = smul.u32 %s1416, 128
    %s1418 = sld [smem:[#allocation5 + %s1417]]
    %p1419 = scmp.gt.s32.totalorder %s1418, 0
    %s1420 = scalar_select %p1419, %s1418, 0
    %p1421 = scmp.lt.s32.totalorder %s1420, 1023
    %s1422 = scalar_select %p1421, %s1420, 1023
    %s1423 = sshrl.u32 %s1422, 3
    %s1424 = sand.u32 %s1422, 7
    %s1425 = smul.u32 %s1423, 16
    %s1426 = sadd.s32 %s1424, %s1425
    %s1427 = scalar_lea.hbm %s3, %s1426
    %s1428 = scalar_lea.vmem [#allocation2], 128
    %s1429 = sshll.u32 %s1427, 4
    %s1430 = int_to_ptr.hbm [resolvable:$true] %s1429
    %s1431 = sshll.u32 %s1428, 4
    %s1432 = int_to_ptr.vmem [resolvable:$true] %s1431
    %1436 = dma.hbm_to_vmem [thread:$0]  %s1430, 32, %s1432, [#allocation3], 128, 128, 1
    %s1437 = sadd.s32 %s1417, 1
    %s1438 = sld [smem:[#allocation5 + %s1437]]
    %p1439 = scmp.gt.s32.totalorder %s1438, 0
    %s1440 = scalar_select %p1439, %s1438, 0
    %p1441 = scmp.lt.s32.totalorder %s1440, 1023
    %s1442 = scalar_select %p1441, %s1440, 1023
    %s1443 = sshrl.u32 %s1442, 3
    %s1444 = sand.u32 %s1442, 7
    %s1445 = smul.u32 %s1443, 16
    %s1446 = sadd.s32 %s1444, %s1445
    %s1447 = scalar_lea.hbm %s3, %s1446
    %s1448 = scalar_lea.vmem [#allocation2], 129
    %s1449 = sshll.u32 %s1447, 4
    %s1450 = int_to_ptr.hbm [resolvable:$true] %s1449
    %s1451 = sshll.u32 %s1448, 4
    %s1452 = int_to_ptr.vmem [resolvable:$true] %s1451
    %1456 = dma.hbm_to_vmem [thread:$0]  %s1450, 32, %s1452, [#allocation3], 128, 128, 1
    %s1457 = sadd.s32 %s1417, 2
    %s1458 = sld [smem:[#allocation5 + %s1457]]
    %p1459 = scmp.gt.s32.totalorder %s1458, 0
    %s1460 = scalar_select %p1459, %s1458, 0
    %p1461 = scmp.lt.s32.totalorder %s1460, 1023
    %s1462 = scalar_select %p1461, %s1460, 1023
    %s1463 = sshrl.u32 %s1462, 3
    %s1464 = sand.u32 %s1462, 7
    %s1465 = smul.u32 %s1463, 16
    %s1466 = sadd.s32 %s1464, %s1465
    %s1467 = scalar_lea.hbm %s3, %s1466
    %s1468 = scalar_lea.vmem [#allocation2], 130
    %s1469 = sshll.u32 %s1467, 4
    %s1470 = int_to_ptr.hbm [resolvable:$true] %s1469
    %s1471 = sshll.u32 %s1468, 4
    %s1472 = int_to_ptr.vmem [resolvable:$true] %s1471
    %1476 = dma.hbm_to_vmem [thread:$0]  %s1470, 32, %s1472, [#allocation3], 128, 128, 1
    %s1477 = sadd.s32 %s1417, 3
    %s1478 = sld [smem:[#allocation5 + %s1477]]
    %p1479 = scmp.gt.s32.totalorder %s1478, 0
    %s1480 = scalar_select %p1479, %s1478, 0
    %p1481 = scmp.lt.s32.totalorder %s1480, 1023
    %s1482 = scalar_select %p1481, %s1480, 1023
    %s1483 = sshrl.u32 %s1482, 3
    %s1484 = sand.u32 %s1482, 7
    %s1485 = smul.u32 %s1483, 16
    %s1486 = sadd.s32 %s1484, %s1485
    %s1487 = scalar_lea.hbm %s3, %s1486
    %s1488 = scalar_lea.vmem [#allocation2], 131
    %s1489 = sshll.u32 %s1487, 4
    %s1490 = int_to_ptr.hbm [resolvable:$true] %s1489
    %s1491 = sshll.u32 %s1488, 4
    %s1492 = int_to_ptr.vmem [resolvable:$true] %s1491
    %1496 = dma.hbm_to_vmem [thread:$0]  %s1490, 32, %s1492, [#allocation3], 128, 128, 1
    %s1497 = sadd.s32 %s1417, 4
    %s1498 = sld [smem:[#allocation5 + %s1497]]
    %p1499 = scmp.gt.s32.totalorder %s1498, 0
    %s1500 = scalar_select %p1499, %s1498, 0
    %p1501 = scmp.lt.s32.totalorder %s1500, 1023
    %s1502 = scalar_select %p1501, %s1500, 1023
    %s1503 = sshrl.u32 %s1502, 3
    %s1504 = sand.u32 %s1502, 7
    %s1505 = smul.u32 %s1503, 16
    %s1506 = sadd.s32 %s1504, %s1505
    %s1507 = scalar_lea.hbm %s3, %s1506
    %s1508 = scalar_lea.vmem [#allocation2], 132
    %s1509 = sshll.u32 %s1507, 4
    %s1510 = int_to_ptr.hbm [resolvable:$true] %s1509
    %s1511 = sshll.u32 %s1508, 4
    %s1512 = int_to_ptr.vmem [resolvable:$true] %s1511
    %1516 = dma.hbm_to_vmem [thread:$0]  %s1510, 32, %s1512, [#allocation3], 128, 128, 1
    %s1517 = sadd.s32 %s1417, 5
    %s1518 = sld [smem:[#allocation5 + %s1517]]
    %p1519 = scmp.gt.s32.totalorder %s1518, 0
    %s1520 = scalar_select %p1519, %s1518, 0
    %p1521 = scmp.lt.s32.totalorder %s1520, 1023
    %s1522 = scalar_select %p1521, %s1520, 1023
    %s1523 = sshrl.u32 %s1522, 3
    %s1524 = sand.u32 %s1522, 7
    %s1525 = smul.u32 %s1523, 16
    %s1526 = sadd.s32 %s1524, %s1525
    %s1527 = scalar_lea.hbm %s3, %s1526
    %s1528 = scalar_lea.vmem [#allocation2], 133
    %s1529 = sshll.u32 %s1527, 4
    %s1530 = int_to_ptr.hbm [resolvable:$true] %s1529
    %s1531 = sshll.u32 %s1528, 4
    %s1532 = int_to_ptr.vmem [resolvable:$true] %s1531
    %1536 = dma.hbm_to_vmem [thread:$0]  %s1530, 32, %s1532, [#allocation3], 128, 128, 1
    %s1537 = sadd.s32 %s1417, 6
    %s1538 = sld [smem:[#allocation5 + %s1537]]
    %p1539 = scmp.gt.s32.totalorder %s1538, 0
    %s1540 = scalar_select %p1539, %s1538, 0
    %p1541 = scmp.lt.s32.totalorder %s1540, 1023
    %s1542 = scalar_select %p1541, %s1540, 1023
    %s1543 = sshrl.u32 %s1542, 3
    %s1544 = sand.u32 %s1542, 7
    %s1545 = smul.u32 %s1543, 16
    %s1546 = sadd.s32 %s1544, %s1545
    %s1547 = scalar_lea.hbm %s3, %s1546
    %s1548 = scalar_lea.vmem [#allocation2], 134
    %s1549 = sshll.u32 %s1547, 4
    %s1550 = int_to_ptr.hbm [resolvable:$true] %s1549
    %s1551 = sshll.u32 %s1548, 4
    %s1552 = int_to_ptr.vmem [resolvable:$true] %s1551
    %1556 = dma.hbm_to_vmem [thread:$0]  %s1550, 32, %s1552, [#allocation3], 128, 128, 1
    %s1557 = sadd.s32 %s1417, 7
    %s1558 = sld [smem:[#allocation5 + %s1557]]
    %p1559 = scmp.gt.s32.totalorder %s1558, 0
    %s1560 = scalar_select %p1559, %s1558, 0
    %p1561 = scmp.lt.s32.totalorder %s1560, 1023
    %s1562 = scalar_select %p1561, %s1560, 1023
    %s1563 = sshrl.u32 %s1562, 3
    %s1564 = sand.u32 %s1562, 7
    %s1565 = smul.u32 %s1563, 16
    %s1566 = sadd.s32 %s1564, %s1565
    %s1567 = scalar_lea.hbm %s3, %s1566
    %s1568 = scalar_lea.vmem [#allocation2], 135
    %s1569 = sshll.u32 %s1567, 4
    %s1570 = int_to_ptr.hbm [resolvable:$true] %s1569
    %s1571 = sshll.u32 %s1568, 4
    %s1572 = int_to_ptr.vmem [resolvable:$true] %s1571
    %1576 = dma.hbm_to_vmem [thread:$0]  %s1570, 32, %s1572, [#allocation3], 128, 128, 1
    %s1577 = sadd.s32 %s1417, 8
    %s1578 = sld [smem:[#allocation5 + %s1577]]
    %p1579 = scmp.gt.s32.totalorder %s1578, 0
    %s1580 = scalar_select %p1579, %s1578, 0
    %p1581 = scmp.lt.s32.totalorder %s1580, 1023
    %s1582 = scalar_select %p1581, %s1580, 1023
    %s1583 = sshrl.u32 %s1582, 3
    %s1584 = sand.u32 %s1582, 7
    %s1585 = smul.u32 %s1583, 16
    %s1586 = sadd.s32 %s1584, %s1585
    %s1587 = scalar_lea.hbm %s3, %s1586
    %s1588 = scalar_lea.vmem [#allocation2], 144
    %s1589 = sshll.u32 %s1587, 4
    %s1590 = int_to_ptr.hbm [resolvable:$true] %s1589
    %s1591 = sshll.u32 %s1588, 4
    %s1592 = int_to_ptr.vmem [resolvable:$true] %s1591
    %1596 = dma.hbm_to_vmem [thread:$0]  %s1590, 32, %s1592, [#allocation3], 128, 128, 1
    %s1597 = sadd.s32 %s1417, 9
    %s1598 = sld [smem:[#allocation5 + %s1597]]
    %p1599 = scmp.gt.s32.totalorder %s1598, 0
    %s1600 = scalar_select %p1599, %s1598, 0
    %p1601 = scmp.lt.s32.totalorder %s1600, 1023
    %s1602 = scalar_select %p1601, %s1600, 1023
    %s1603 = sshrl.u32 %s1602, 3
    %s1604 = sand.u32 %s1602, 7
    %s1605 = smul.u32 %s1603, 16
    %s1606 = sadd.s32 %s1604, %s1605
    %s1607 = scalar_lea.hbm %s3, %s1606
    %s1608 = scalar_lea.vmem [#allocation2], 145
    %s1609 = sshll.u32 %s1607, 4
    %s1610 = int_to_ptr.hbm [resolvable:$true] %s1609
    %s1611 = sshll.u32 %s1608, 4
    %s1612 = int_to_ptr.vmem [resolvable:$true] %s1611
    %1616 = dma.hbm_to_vmem [thread:$0]  %s1610, 32, %s1612, [#allocation3], 128, 128, 1
    %s1617 = sadd.s32 %s1417, 10
    %s1618 = sld [smem:[#allocation5 + %s1617]]
    %p1619 = scmp.gt.s32.totalorder %s1618, 0
    %s1620 = scalar_select %p1619, %s1618, 0
    %p1621 = scmp.lt.s32.totalorder %s1620, 1023
    %s1622 = scalar_select %p1621, %s1620, 1023
    %s1623 = sshrl.u32 %s1622, 3
    %s1624 = sand.u32 %s1622, 7
    %s1625 = smul.u32 %s1623, 16
    %s1626 = sadd.s32 %s1624, %s1625
    %s1627 = scalar_lea.hbm %s3, %s1626
    %s1628 = scalar_lea.vmem [#allocation2], 146
    %s1629 = sshll.u32 %s1627, 4
    %s1630 = int_to_ptr.hbm [resolvable:$true] %s1629
    %s1631 = sshll.u32 %s1628, 4
    %s1632 = int_to_ptr.vmem [resolvable:$true] %s1631
    %1636 = dma.hbm_to_vmem [thread:$0]  %s1630, 32, %s1632, [#allocation3], 128, 128, 1
    %s1637 = sadd.s32 %s1417, 11
    %s1638 = sld [smem:[#allocation5 + %s1637]]
    %p1639 = scmp.gt.s32.totalorder %s1638, 0
    %s1640 = scalar_select %p1639, %s1638, 0
    %p1641 = scmp.lt.s32.totalorder %s1640, 1023
    %s1642 = scalar_select %p1641, %s1640, 1023
    %s1643 = sshrl.u32 %s1642, 3
    %s1644 = sand.u32 %s1642, 7
    %s1645 = smul.u32 %s1643, 16
    %s1646 = sadd.s32 %s1644, %s1645
    %s1647 = scalar_lea.hbm %s3, %s1646
    %s1648 = scalar_lea.vmem [#allocation2], 147
    %s1649 = sshll.u32 %s1647, 4
    %s1650 = int_to_ptr.hbm [resolvable:$true] %s1649
    %s1651 = sshll.u32 %s1648, 4
    %s1652 = int_to_ptr.vmem [resolvable:$true] %s1651
    %1656 = dma.hbm_to_vmem [thread:$0]  %s1650, 32, %s1652, [#allocation3], 128, 128, 1
    %s1657 = sadd.s32 %s1417, 12
    %s1658 = sld [smem:[#allocation5 + %s1657]]
    %p1659 = scmp.gt.s32.totalorder %s1658, 0
    %s1660 = scalar_select %p1659, %s1658, 0
    %p1661 = scmp.lt.s32.totalorder %s1660, 1023
    %s1662 = scalar_select %p1661, %s1660, 1023
    %s1663 = sshrl.u32 %s1662, 3
    %s1664 = sand.u32 %s1662, 7
    %s1665 = smul.u32 %s1663, 16
    %s1666 = sadd.s32 %s1664, %s1665
    %s1667 = scalar_lea.hbm %s3, %s1666
    %s1668 = scalar_lea.vmem [#allocation2], 148
    %s1669 = sshll.u32 %s1667, 4
    %s1670 = int_to_ptr.hbm [resolvable:$true] %s1669
    %s1671 = sshll.u32 %s1668, 4
    %s1672 = int_to_ptr.vmem [resolvable:$true] %s1671
    %1676 = dma.hbm_to_vmem [thread:$0]  %s1670, 32, %s1672, [#allocation3], 128, 128, 1
    %s1677 = sadd.s32 %s1417, 13
    %s1678 = sld [smem:[#allocation5 + %s1677]]
    %p1679 = scmp.gt.s32.totalorder %s1678, 0
    %s1680 = scalar_select %p1679, %s1678, 0
    %p1681 = scmp.lt.s32.totalorder %s1680, 1023
    %s1682 = scalar_select %p1681, %s1680, 1023
    %s1683 = sshrl.u32 %s1682, 3
    %s1684 = sand.u32 %s1682, 7
    %s1685 = smul.u32 %s1683, 16
    %s1686 = sadd.s32 %s1684, %s1685
    %s1687 = scalar_lea.hbm %s3, %s1686
    %s1688 = scalar_lea.vmem [#allocation2], 149
    %s1689 = sshll.u32 %s1687, 4
    %s1690 = int_to_ptr.hbm [resolvable:$true] %s1689
    %s1691 = sshll.u32 %s1688, 4
    %s1692 = int_to_ptr.vmem [resolvable:$true] %s1691
    %1696 = dma.hbm_to_vmem [thread:$0]  %s1690, 32, %s1692, [#allocation3], 128, 128, 1
    %s1697 = sadd.s32 %s1417, 14
    %s1698 = sld [smem:[#allocation5 + %s1697]]
    %p1699 = scmp.gt.s32.totalorder %s1698, 0
    %s1700 = scalar_select %p1699, %s1698, 0
    %p1701 = scmp.lt.s32.totalorder %s1700, 1023
    %s1702 = scalar_select %p1701, %s1700, 1023
    %s1703 = sshrl.u32 %s1702, 3
    %s1704 = sand.u32 %s1702, 7
    %s1705 = smul.u32 %s1703, 16
    %s1706 = sadd.s32 %s1704, %s1705
    %s1707 = scalar_lea.hbm %s3, %s1706
    %s1708 = scalar_lea.vmem [#allocation2], 150
    %s1709 = sshll.u32 %s1707, 4
    %s1710 = int_to_ptr.hbm [resolvable:$true] %s1709
    %s1711 = sshll.u32 %s1708, 4
    %s1712 = int_to_ptr.vmem [resolvable:$true] %s1711
    %1716 = dma.hbm_to_vmem [thread:$0]  %s1710, 32, %s1712, [#allocation3], 128, 128, 1
    %s1717 = sadd.s32 %s1417, 15
    %s1718 = sld [smem:[#allocation5 + %s1717]]
    %p1719 = scmp.gt.s32.totalorder %s1718, 0
    %s1720 = scalar_select %p1719, %s1718, 0
    %p1721 = scmp.lt.s32.totalorder %s1720, 1023
    %s1722 = scalar_select %p1721, %s1720, 1023
    %s1723 = sshrl.u32 %s1722, 3
    %s1724 = sand.u32 %s1722, 7
    %s1725 = smul.u32 %s1723, 16
    %s1726 = sadd.s32 %s1724, %s1725
    %s1727 = scalar_lea.hbm %s3, %s1726
    %s1728 = scalar_lea.vmem [#allocation2], 151
    %s1729 = sshll.u32 %s1727, 4
    %s1730 = int_to_ptr.hbm [resolvable:$true] %s1729
    %s1731 = sshll.u32 %s1728, 4
    %s1732 = int_to_ptr.vmem [resolvable:$true] %s1731
    %1736 = dma.hbm_to_vmem [thread:$0]  %s1730, 32, %s1732, [#allocation3], 128, 128, 1
    %s1737 = sadd.s32 %s133, 5
    %s1738 = smul.u32 %s1737, 128
    %s1739 = sld [smem:[#allocation5 + %s1738]]
    %p1740 = scmp.gt.s32.totalorder %s1739, 0
    %s1741 = scalar_select %p1740, %s1739, 0
    %p1742 = scmp.lt.s32.totalorder %s1741, 1023
    %s1743 = scalar_select %p1742, %s1741, 1023
    %s1744 = sshrl.u32 %s1743, 3
    %s1745 = sand.u32 %s1743, 7
    %s1746 = smul.u32 %s1744, 16
    %s1747 = sadd.s32 %s1745, %s1746
    %s1748 = scalar_lea.hbm %s3, %s1747
    %s1749 = scalar_lea.vmem [#allocation2], 160
    %s1750 = sshll.u32 %s1748, 4
    %s1751 = int_to_ptr.hbm [resolvable:$true] %s1750
    %s1752 = sshll.u32 %s1749, 4
    %s1753 = int_to_ptr.vmem [resolvable:$true] %s1752
    %1757 = dma.hbm_to_vmem [thread:$0]  %s1751, 32, %s1753, [#allocation3], 128, 128, 1
    %s1758 = sadd.s32 %s1738, 1
    %s1759 = sld [smem:[#allocation5 + %s1758]]
    %p1760 = scmp.gt.s32.totalorder %s1759, 0
    %s1761 = scalar_select %p1760, %s1759, 0
    %p1762 = scmp.lt.s32.totalorder %s1761, 1023
    %s1763 = scalar_select %p1762, %s1761, 1023
    %s1764 = sshrl.u32 %s1763, 3
    %s1765 = sand.u32 %s1763, 7
    %s1766 = smul.u32 %s1764, 16
    %s1767 = sadd.s32 %s1765, %s1766
    %s1768 = scalar_lea.hbm %s3, %s1767
    %s1769 = scalar_lea.vmem [#allocation2], 161
    %s1770 = sshll.u32 %s1768, 4
    %s1771 = int_to_ptr.hbm [resolvable:$true] %s1770
    %s1772 = sshll.u32 %s1769, 4
    %s1773 = int_to_ptr.vmem [resolvable:$true] %s1772
    %1777 = dma.hbm_to_vmem [thread:$0]  %s1771, 32, %s1773, [#allocation3], 128, 128, 1
    %s1778 = sadd.s32 %s1738, 2
    %s1779 = sld [smem:[#allocation5 + %s1778]]
    %p1780 = scmp.gt.s32.totalorder %s1779, 0
    %s1781 = scalar_select %p1780, %s1779, 0
    %p1782 = scmp.lt.s32.totalorder %s1781, 1023
    %s1783 = scalar_select %p1782, %s1781, 1023
    %s1784 = sshrl.u32 %s1783, 3
    %s1785 = sand.u32 %s1783, 7
    %s1786 = smul.u32 %s1784, 16
    %s1787 = sadd.s32 %s1785, %s1786
    %s1788 = scalar_lea.hbm %s3, %s1787
    %s1789 = scalar_lea.vmem [#allocation2], 162
    %s1790 = sshll.u32 %s1788, 4
    %s1791 = int_to_ptr.hbm [resolvable:$true] %s1790
    %s1792 = sshll.u32 %s1789, 4
    %s1793 = int_to_ptr.vmem [resolvable:$true] %s1792
    %1797 = dma.hbm_to_vmem [thread:$0]  %s1791, 32, %s1793, [#allocation3], 128, 128, 1
    %s1798 = sadd.s32 %s1738, 3
    %s1799 = sld [smem:[#allocation5 + %s1798]]
    %p1800 = scmp.gt.s32.totalorder %s1799, 0
    %s1801 = scalar_select %p1800, %s1799, 0
    %p1802 = scmp.lt.s32.totalorder %s1801, 1023
    %s1803 = scalar_select %p1802, %s1801, 1023
    %s1804 = sshrl.u32 %s1803, 3
    %s1805 = sand.u32 %s1803, 7
    %s1806 = smul.u32 %s1804, 16
    %s1807 = sadd.s32 %s1805, %s1806
    %s1808 = scalar_lea.hbm %s3, %s1807
    %s1809 = scalar_lea.vmem [#allocation2], 163
    %s1810 = sshll.u32 %s1808, 4
    %s1811 = int_to_ptr.hbm [resolvable:$true] %s1810
    %s1812 = sshll.u32 %s1809, 4
    %s1813 = int_to_ptr.vmem [resolvable:$true] %s1812
    %1817 = dma.hbm_to_vmem [thread:$0]  %s1811, 32, %s1813, [#allocation3], 128, 128, 1
    %s1818 = sadd.s32 %s1738, 4
    %s1819 = sld [smem:[#allocation5 + %s1818]]
    %p1820 = scmp.gt.s32.totalorder %s1819, 0
    %s1821 = scalar_select %p1820, %s1819, 0
    %p1822 = scmp.lt.s32.totalorder %s1821, 1023
    %s1823 = scalar_select %p1822, %s1821, 1023
    %s1824 = sshrl.u32 %s1823, 3
    %s1825 = sand.u32 %s1823, 7
    %s1826 = smul.u32 %s1824, 16
    %s1827 = sadd.s32 %s1825, %s1826
    %s1828 = scalar_lea.hbm %s3, %s1827
    %s1829 = scalar_lea.vmem [#allocation2], 164
    %s1830 = sshll.u32 %s1828, 4
    %s1831 = int_to_ptr.hbm [resolvable:$true] %s1830
    %s1832 = sshll.u32 %s1829, 4
    %s1833 = int_to_ptr.vmem [resolvable:$true] %s1832
    %1837 = dma.hbm_to_vmem [thread:$0]  %s1831, 32, %s1833, [#allocation3], 128, 128, 1
    %s1838 = sadd.s32 %s1738, 5
    %s1839 = sld [smem:[#allocation5 + %s1838]]
    %p1840 = scmp.gt.s32.totalorder %s1839, 0
    %s1841 = scalar_select %p1840, %s1839, 0
    %p1842 = scmp.lt.s32.totalorder %s1841, 1023
    %s1843 = scalar_select %p1842, %s1841, 1023
    %s1844 = sshrl.u32 %s1843, 3
    %s1845 = sand.u32 %s1843, 7
    %s1846 = smul.u32 %s1844, 16
    %s1847 = sadd.s32 %s1845, %s1846
    %s1848 = scalar_lea.hbm %s3, %s1847
    %s1849 = scalar_lea.vmem [#allocation2], 165
    %s1850 = sshll.u32 %s1848, 4
    %s1851 = int_to_ptr.hbm [resolvable:$true] %s1850
    %s1852 = sshll.u32 %s1849, 4
    %s1853 = int_to_ptr.vmem [resolvable:$true] %s1852
    %1857 = dma.hbm_to_vmem [thread:$0]  %s1851, 32, %s1853, [#allocation3], 128, 128, 1
    %s1858 = sadd.s32 %s1738, 6
    %s1859 = sld [smem:[#allocation5 + %s1858]]
    %p1860 = scmp.gt.s32.totalorder %s1859, 0
    %s1861 = scalar_select %p1860, %s1859, 0
    %p1862 = scmp.lt.s32.totalorder %s1861, 1023
    %s1863 = scalar_select %p1862, %s1861, 1023
    %s1864 = sshrl.u32 %s1863, 3
    %s1865 = sand.u32 %s1863, 7
    %s1866 = smul.u32 %s1864, 16
    %s1867 = sadd.s32 %s1865, %s1866
    %s1868 = scalar_lea.hbm %s3, %s1867
    %s1869 = scalar_lea.vmem [#allocation2], 166
    %s1870 = sshll.u32 %s1868, 4
    %s1871 = int_to_ptr.hbm [resolvable:$true] %s1870
    %s1872 = sshll.u32 %s1869, 4
    %s1873 = int_to_ptr.vmem [resolvable:$true] %s1872
    %1877 = dma.hbm_to_vmem [thread:$0]  %s1871, 32, %s1873, [#allocation3], 128, 128, 1
    %s1878 = sadd.s32 %s1738, 7
    %s1879 = sld [smem:[#allocation5 + %s1878]]
    %p1880 = scmp.gt.s32.totalorder %s1879, 0
    %s1881 = scalar_select %p1880, %s1879, 0
    %p1882 = scmp.lt.s32.totalorder %s1881, 1023
    %s1883 = scalar_select %p1882, %s1881, 1023
    %s1884 = sshrl.u32 %s1883, 3
    %s1885 = sand.u32 %s1883, 7
    %s1886 = smul.u32 %s1884, 16
    %s1887 = sadd.s32 %s1885, %s1886
    %s1888 = scalar_lea.hbm %s3, %s1887
    %s1889 = scalar_lea.vmem [#allocation2], 167
    %s1890 = sshll.u32 %s1888, 4
    %s1891 = int_to_ptr.hbm [resolvable:$true] %s1890
    %s1892 = sshll.u32 %s1889, 4
    %s1893 = int_to_ptr.vmem [resolvable:$true] %s1892
    %1897 = dma.hbm_to_vmem [thread:$0]  %s1891, 32, %s1893, [#allocation3], 128, 128, 1
    %s1898 = sadd.s32 %s1738, 8
    %s1899 = sld [smem:[#allocation5 + %s1898]]
    %p1900 = scmp.gt.s32.totalorder %s1899, 0
    %s1901 = scalar_select %p1900, %s1899, 0
    %p1902 = scmp.lt.s32.totalorder %s1901, 1023
    %s1903 = scalar_select %p1902, %s1901, 1023
    %s1904 = sshrl.u32 %s1903, 3
    %s1905 = sand.u32 %s1903, 7
    %s1906 = smul.u32 %s1904, 16
    %s1907 = sadd.s32 %s1905, %s1906
    %s1908 = scalar_lea.hbm %s3, %s1907
    %s1909 = scalar_lea.vmem [#allocation2], 176
    %s1910 = sshll.u32 %s1908, 4
    %s1911 = int_to_ptr.hbm [resolvable:$true] %s1910
    %s1912 = sshll.u32 %s1909, 4
    %s1913 = int_to_ptr.vmem [resolvable:$true] %s1912
    %1917 = dma.hbm_to_vmem [thread:$0]  %s1911, 32, %s1913, [#allocation3], 128, 128, 1
    %s1918 = sadd.s32 %s1738, 9
    %s1919 = sld [smem:[#allocation5 + %s1918]]
    %p1920 = scmp.gt.s32.totalorder %s1919, 0
    %s1921 = scalar_select %p1920, %s1919, 0
    %p1922 = scmp.lt.s32.totalorder %s1921, 1023
    %s1923 = scalar_select %p1922, %s1921, 1023
    %s1924 = sshrl.u32 %s1923, 3
    %s1925 = sand.u32 %s1923, 7
    %s1926 = smul.u32 %s1924, 16
    %s1927 = sadd.s32 %s1925, %s1926
    %s1928 = scalar_lea.hbm %s3, %s1927
    %s1929 = scalar_lea.vmem [#allocation2], 177
    %s1930 = sshll.u32 %s1928, 4
    %s1931 = int_to_ptr.hbm [resolvable:$true] %s1930
    %s1932 = sshll.u32 %s1929, 4
    %s1933 = int_to_ptr.vmem [resolvable:$true] %s1932
    %1937 = dma.hbm_to_vmem [thread:$0]  %s1931, 32, %s1933, [#allocation3], 128, 128, 1
    %s1938 = sadd.s32 %s1738, 10
    %s1939 = sld [smem:[#allocation5 + %s1938]]
    %p1940 = scmp.gt.s32.totalorder %s1939, 0
    %s1941 = scalar_select %p1940, %s1939, 0
    %p1942 = scmp.lt.s32.totalorder %s1941, 1023
    %s1943 = scalar_select %p1942, %s1941, 1023
    %s1944 = sshrl.u32 %s1943, 3
    %s1945 = sand.u32 %s1943, 7
    %s1946 = smul.u32 %s1944, 16
    %s1947 = sadd.s32 %s1945, %s1946
    %s1948 = scalar_lea.hbm %s3, %s1947
    %s1949 = scalar_lea.vmem [#allocation2], 178
    %s1950 = sshll.u32 %s1948, 4
    %s1951 = int_to_ptr.hbm [resolvable:$true] %s1950
    %s1952 = sshll.u32 %s1949, 4
    %s1953 = int_to_ptr.vmem [resolvable:$true] %s1952
    %1957 = dma.hbm_to_vmem [thread:$0]  %s1951, 32, %s1953, [#allocation3], 128, 128, 1
    %s1958 = sadd.s32 %s1738, 11
    %s1959 = sld [smem:[#allocation5 + %s1958]]
    %p1960 = scmp.gt.s32.totalorder %s1959, 0
    %s1961 = scalar_select %p1960, %s1959, 0
    %p1962 = scmp.lt.s32.totalorder %s1961, 1023
    %s1963 = scalar_select %p1962, %s1961, 1023
    %s1964 = sshrl.u32 %s1963, 3
    %s1965 = sand.u32 %s1963, 7
    %s1966 = smul.u32 %s1964, 16
    %s1967 = sadd.s32 %s1965, %s1966
    %s1968 = scalar_lea.hbm %s3, %s1967
    %s1969 = scalar_lea.vmem [#allocation2], 179
    %s1970 = sshll.u32 %s1968, 4
    %s1971 = int_to_ptr.hbm [resolvable:$true] %s1970
    %s1972 = sshll.u32 %s1969, 4
    %s1973 = int_to_ptr.vmem [resolvable:$true] %s1972
    %1977 = dma.hbm_to_vmem [thread:$0]  %s1971, 32, %s1973, [#allocation3], 128, 128, 1
    %s1978 = sadd.s32 %s1738, 12
    %s1979 = sld [smem:[#allocation5 + %s1978]]
    %p1980 = scmp.gt.s32.totalorder %s1979, 0
    %s1981 = scalar_select %p1980, %s1979, 0
    %p1982 = scmp.lt.s32.totalorder %s1981, 1023
    %s1983 = scalar_select %p1982, %s1981, 1023
    %s1984 = sshrl.u32 %s1983, 3
    %s1985 = sand.u32 %s1983, 7
    %s1986 = smul.u32 %s1984, 16
    %s1987 = sadd.s32 %s1985, %s1986
    %s1988 = scalar_lea.hbm %s3, %s1987
    %s1989 = scalar_lea.vmem [#allocation2], 180
    %s1990 = sshll.u32 %s1988, 4
    %s1991 = int_to_ptr.hbm [resolvable:$true] %s1990
    %s1992 = sshll.u32 %s1989, 4
    %s1993 = int_to_ptr.vmem [resolvable:$true] %s1992
    %1997 = dma.hbm_to_vmem [thread:$0]  %s1991, 32, %s1993, [#allocation3], 128, 128, 1
    %s1998 = sadd.s32 %s1738, 13
    %s1999 = sld [smem:[#allocation5 + %s1998]]
    %p2000 = scmp.gt.s32.totalorder %s1999, 0
    %s2001 = scalar_select %p2000, %s1999, 0
    %p2002 = scmp.lt.s32.totalorder %s2001, 1023
    %s2003 = scalar_select %p2002, %s2001, 1023
    %s2004 = sshrl.u32 %s2003, 3
    %s2005 = sand.u32 %s2003, 7
    %s2006 = smul.u32 %s2004, 16
    %s2007 = sadd.s32 %s2005, %s2006
    %s2008 = scalar_lea.hbm %s3, %s2007
    %s2009 = scalar_lea.vmem [#allocation2], 181
    %s2010 = sshll.u32 %s2008, 4
    %s2011 = int_to_ptr.hbm [resolvable:$true] %s2010
    %s2012 = sshll.u32 %s2009, 4
    %s2013 = int_to_ptr.vmem [resolvable:$true] %s2012
    %2017 = dma.hbm_to_vmem [thread:$0]  %s2011, 32, %s2013, [#allocation3], 128, 128, 1
    %s2018 = sadd.s32 %s1738, 14
    %s2019 = sld [smem:[#allocation5 + %s2018]]
    %p2020 = scmp.gt.s32.totalorder %s2019, 0
    %s2021 = scalar_select %p2020, %s2019, 0
    %p2022 = scmp.lt.s32.totalorder %s2021, 1023
    %s2023 = scalar_select %p2022, %s2021, 1023
    %s2024 = sshrl.u32 %s2023, 3
    %s2025 = sand.u32 %s2023, 7
    %s2026 = smul.u32 %s2024, 16
    %s2027 = sadd.s32 %s2025, %s2026
    %s2028 = scalar_lea.hbm %s3, %s2027
    %s2029 = scalar_lea.vmem [#allocation2], 182
    %s2030 = sshll.u32 %s2028, 4
    %s2031 = int_to_ptr.hbm [resolvable:$true] %s2030
    %s2032 = sshll.u32 %s2029, 4
    %s2033 = int_to_ptr.vmem [resolvable:$true] %s2032
    %2037 = dma.hbm_to_vmem [thread:$0]  %s2031, 32, %s2033, [#allocation3], 128, 128, 1
    %s2038 = sadd.s32 %s1738, 15
    %s2039 = sld [smem:[#allocation5 + %s2038]]
    %p2040 = scmp.gt.s32.totalorder %s2039, 0
    %s2041 = scalar_select %p2040, %s2039, 0
    %p2042 = scmp.lt.s32.totalorder %s2041, 1023
    %s2043 = scalar_select %p2042, %s2041, 1023
    %s2044 = sshrl.u32 %s2043, 3
    %s2045 = sand.u32 %s2043, 7
    %s2046 = smul.u32 %s2044, 16
    %s2047 = sadd.s32 %s2045, %s2046
    %s2048 = scalar_lea.hbm %s3, %s2047
    %s2049 = scalar_lea.vmem [#allocation2], 183
    %s2050 = sshll.u32 %s2048, 4
    %s2051 = int_to_ptr.hbm [resolvable:$true] %s2050
    %s2052 = sshll.u32 %s2049, 4
    %s2053 = int_to_ptr.vmem [resolvable:$true] %s2052
    %2057 = dma.hbm_to_vmem [thread:$0]  %s2051, 32, %s2053, [#allocation3], 128, 128, 1
    %s2058 = sadd.s32 %s133, 6
    %s2059 = smul.u32 %s2058, 128
    %s2060 = sld [smem:[#allocation5 + %s2059]]
    %p2061 = scmp.gt.s32.totalorder %s2060, 0
    %s2062 = scalar_select %p2061, %s2060, 0
    %p2063 = scmp.lt.s32.totalorder %s2062, 1023
    %s2064 = scalar_select %p2063, %s2062, 1023
    %s2065 = sshrl.u32 %s2064, 3
    %s2066 = sand.u32 %s2064, 7
    %s2067 = smul.u32 %s2065, 16
    %s2068 = sadd.s32 %s2066, %s2067
    %s2069 = scalar_lea.hbm %s3, %s2068
    %s2070 = scalar_lea.vmem [#allocation2], 192
    %s2071 = sshll.u32 %s2069, 4
    %s2072 = int_to_ptr.hbm [resolvable:$true] %s2071
    %s2073 = sshll.u32 %s2070, 4
    %s2074 = int_to_ptr.vmem [resolvable:$true] %s2073
    %2078 = dma.hbm_to_vmem [thread:$0]  %s2072, 32, %s2074, [#allocation3], 128, 128, 1
    %s2079 = sadd.s32 %s2059, 1
    %s2080 = sld [smem:[#allocation5 + %s2079]]
    %p2081 = scmp.gt.s32.totalorder %s2080, 0
    %s2082 = scalar_select %p2081, %s2080, 0
    %p2083 = scmp.lt.s32.totalorder %s2082, 1023
    %s2084 = scalar_select %p2083, %s2082, 1023
    %s2085 = sshrl.u32 %s2084, 3
    %s2086 = sand.u32 %s2084, 7
    %s2087 = smul.u32 %s2085, 16
    %s2088 = sadd.s32 %s2086, %s2087
    %s2089 = scalar_lea.hbm %s3, %s2088
    %s2090 = scalar_lea.vmem [#allocation2], 193
    %s2091 = sshll.u32 %s2089, 4
    %s2092 = int_to_ptr.hbm [resolvable:$true] %s2091
    %s2093 = sshll.u32 %s2090, 4
    %s2094 = int_to_ptr.vmem [resolvable:$true] %s2093
    %2098 = dma.hbm_to_vmem [thread:$0]  %s2092, 32, %s2094, [#allocation3], 128, 128, 1
    %s2099 = sadd.s32 %s2059, 2
    %s2100 = sld [smem:[#allocation5 + %s2099]]
    %p2101 = scmp.gt.s32.totalorder %s2100, 0
    %s2102 = scalar_select %p2101, %s2100, 0
    %p2103 = scmp.lt.s32.totalorder %s2102, 1023
    %s2104 = scalar_select %p2103, %s2102, 1023
    %s2105 = sshrl.u32 %s2104, 3
    %s2106 = sand.u32 %s2104, 7
    %s2107 = smul.u32 %s2105, 16
    %s2108 = sadd.s32 %s2106, %s2107
    %s2109 = scalar_lea.hbm %s3, %s2108
    %s2110 = scalar_lea.vmem [#allocation2], 194
    %s2111 = sshll.u32 %s2109, 4
    %s2112 = int_to_ptr.hbm [resolvable:$true] %s2111
    %s2113 = sshll.u32 %s2110, 4
    %s2114 = int_to_ptr.vmem [resolvable:$true] %s2113
    %2118 = dma.hbm_to_vmem [thread:$0]  %s2112, 32, %s2114, [#allocation3], 128, 128, 1
    %s2119 = sadd.s32 %s2059, 3
    %s2120 = sld [smem:[#allocation5 + %s2119]]
    %p2121 = scmp.gt.s32.totalorder %s2120, 0
    %s2122 = scalar_select %p2121, %s2120, 0
    %p2123 = scmp.lt.s32.totalorder %s2122, 1023
    %s2124 = scalar_select %p2123, %s2122, 1023
    %s2125 = sshrl.u32 %s2124, 3
    %s2126 = sand.u32 %s2124, 7
    %s2127 = smul.u32 %s2125, 16
    %s2128 = sadd.s32 %s2126, %s2127
    %s2129 = scalar_lea.hbm %s3, %s2128
    %s2130 = scalar_lea.vmem [#allocation2], 195
    %s2131 = sshll.u32 %s2129, 4
    %s2132 = int_to_ptr.hbm [resolvable:$true] %s2131
    %s2133 = sshll.u32 %s2130, 4
    %s2134 = int_to_ptr.vmem [resolvable:$true] %s2133
    %2138 = dma.hbm_to_vmem [thread:$0]  %s2132, 32, %s2134, [#allocation3], 128, 128, 1
    %s2139 = sadd.s32 %s2059, 4
    %s2140 = sld [smem:[#allocation5 + %s2139]]
    %p2141 = scmp.gt.s32.totalorder %s2140, 0
    %s2142 = scalar_select %p2141, %s2140, 0
    %p2143 = scmp.lt.s32.totalorder %s2142, 1023
    %s2144 = scalar_select %p2143, %s2142, 1023
    %s2145 = sshrl.u32 %s2144, 3
    %s2146 = sand.u32 %s2144, 7
    %s2147 = smul.u32 %s2145, 16
    %s2148 = sadd.s32 %s2146, %s2147
    %s2149 = scalar_lea.hbm %s3, %s2148
    %s2150 = scalar_lea.vmem [#allocation2], 196
    %s2151 = sshll.u32 %s2149, 4
    %s2152 = int_to_ptr.hbm [resolvable:$true] %s2151
    %s2153 = sshll.u32 %s2150, 4
    %s2154 = int_to_ptr.vmem [resolvable:$true] %s2153
    %2158 = dma.hbm_to_vmem [thread:$0]  %s2152, 32, %s2154, [#allocation3], 128, 128, 1
    %s2159 = sadd.s32 %s2059, 5
    %s2160 = sld [smem:[#allocation5 + %s2159]]
    %p2161 = scmp.gt.s32.totalorder %s2160, 0
    %s2162 = scalar_select %p2161, %s2160, 0
    %p2163 = scmp.lt.s32.totalorder %s2162, 1023
    %s2164 = scalar_select %p2163, %s2162, 1023
    %s2165 = sshrl.u32 %s2164, 3
    %s2166 = sand.u32 %s2164, 7
    %s2167 = smul.u32 %s2165, 16
    %s2168 = sadd.s32 %s2166, %s2167
    %s2169 = scalar_lea.hbm %s3, %s2168
    %s2170 = scalar_lea.vmem [#allocation2], 197
    %s2171 = sshll.u32 %s2169, 4
    %s2172 = int_to_ptr.hbm [resolvable:$true] %s2171
    %s2173 = sshll.u32 %s2170, 4
    %s2174 = int_to_ptr.vmem [resolvable:$true] %s2173
    %2178 = dma.hbm_to_vmem [thread:$0]  %s2172, 32, %s2174, [#allocation3], 128, 128, 1
    %s2179 = sadd.s32 %s2059, 6
    %s2180 = sld [smem:[#allocation5 + %s2179]]
    %p2181 = scmp.gt.s32.totalorder %s2180, 0
    %s2182 = scalar_select %p2181, %s2180, 0
    %p2183 = scmp.lt.s32.totalorder %s2182, 1023
    %s2184 = scalar_select %p2183, %s2182, 1023
    %s2185 = sshrl.u32 %s2184, 3
    %s2186 = sand.u32 %s2184, 7
    %s2187 = smul.u32 %s2185, 16
    %s2188 = sadd.s32 %s2186, %s2187
    %s2189 = scalar_lea.hbm %s3, %s2188
    %s2190 = scalar_lea.vmem [#allocation2], 198
    %s2191 = sshll.u32 %s2189, 4
    %s2192 = int_to_ptr.hbm [resolvable:$true] %s2191
    %s2193 = sshll.u32 %s2190, 4
    %s2194 = int_to_ptr.vmem [resolvable:$true] %s2193
    %2198 = dma.hbm_to_vmem [thread:$0]  %s2192, 32, %s2194, [#allocation3], 128, 128, 1
    %s2199 = sadd.s32 %s2059, 7
    %s2200 = sld [smem:[#allocation5 + %s2199]]
    %p2201 = scmp.gt.s32.totalorder %s2200, 0
    %s2202 = scalar_select %p2201, %s2200, 0
    %p2203 = scmp.lt.s32.totalorder %s2202, 1023
    %s2204 = scalar_select %p2203, %s2202, 1023
    %s2205 = sshrl.u32 %s2204, 3
    %s2206 = sand.u32 %s2204, 7
    %s2207 = smul.u32 %s2205, 16
    %s2208 = sadd.s32 %s2206, %s2207
    %s2209 = scalar_lea.hbm %s3, %s2208
    %s2210 = scalar_lea.vmem [#allocation2], 199
    %s2211 = sshll.u32 %s2209, 4
    %s2212 = int_to_ptr.hbm [resolvable:$true] %s2211
    %s2213 = sshll.u32 %s2210, 4
    %s2214 = int_to_ptr.vmem [resolvable:$true] %s2213
    %2218 = dma.hbm_to_vmem [thread:$0]  %s2212, 32, %s2214, [#allocation3], 128, 128, 1
    %s2219 = sadd.s32 %s2059, 8
    %s2220 = sld [smem:[#allocation5 + %s2219]]
    %p2221 = scmp.gt.s32.totalorder %s2220, 0
    %s2222 = scalar_select %p2221, %s2220, 0
    %p2223 = scmp.lt.s32.totalorder %s2222, 1023
    %s2224 = scalar_select %p2223, %s2222, 1023
    %s2225 = sshrl.u32 %s2224, 3
    %s2226 = sand.u32 %s2224, 7
    %s2227 = smul.u32 %s2225, 16
    %s2228 = sadd.s32 %s2226, %s2227
    %s2229 = scalar_lea.hbm %s3, %s2228
    %s2230 = scalar_lea.vmem [#allocation2], 208
    %s2231 = sshll.u32 %s2229, 4
    %s2232 = int_to_ptr.hbm [resolvable:$true] %s2231
    %s2233 = sshll.u32 %s2230, 4
    %s2234 = int_to_ptr.vmem [resolvable:$true] %s2233
    %2238 = dma.hbm_to_vmem [thread:$0]  %s2232, 32, %s2234, [#allocation3], 128, 128, 1
    %s2239 = sadd.s32 %s2059, 9
    %s2240 = sld [smem:[#allocation5 + %s2239]]
    %p2241 = scmp.gt.s32.totalorder %s2240, 0
    %s2242 = scalar_select %p2241, %s2240, 0
    %p2243 = scmp.lt.s32.totalorder %s2242, 1023
    %s2244 = scalar_select %p2243, %s2242, 1023
    %s2245 = sshrl.u32 %s2244, 3
    %s2246 = sand.u32 %s2244, 7
    %s2247 = smul.u32 %s2245, 16
    %s2248 = sadd.s32 %s2246, %s2247
    %s2249 = scalar_lea.hbm %s3, %s2248
    %s2250 = scalar_lea.vmem [#allocation2], 209
    %s2251 = sshll.u32 %s2249, 4
    %s2252 = int_to_ptr.hbm [resolvable:$true] %s2251
    %s2253 = sshll.u32 %s2250, 4
    %s2254 = int_to_ptr.vmem [resolvable:$true] %s2253
    %2258 = dma.hbm_to_vmem [thread:$0]  %s2252, 32, %s2254, [#allocation3], 128, 128, 1
    %s2259 = sadd.s32 %s2059, 10
    %s2260 = sld [smem:[#allocation5 + %s2259]]
    %p2261 = scmp.gt.s32.totalorder %s2260, 0
    %s2262 = scalar_select %p2261, %s2260, 0
    %p2263 = scmp.lt.s32.totalorder %s2262, 1023
    %s2264 = scalar_select %p2263, %s2262, 1023
    %s2265 = sshrl.u32 %s2264, 3
    %s2266 = sand.u32 %s2264, 7
    %s2267 = smul.u32 %s2265, 16
    %s2268 = sadd.s32 %s2266, %s2267
    %s2269 = scalar_lea.hbm %s3, %s2268
    %s2270 = scalar_lea.vmem [#allocation2], 210
    %s2271 = sshll.u32 %s2269, 4
    %s2272 = int_to_ptr.hbm [resolvable:$true] %s2271
    %s2273 = sshll.u32 %s2270, 4
    %s2274 = int_to_ptr.vmem [resolvable:$true] %s2273
    %2278 = dma.hbm_to_vmem [thread:$0]  %s2272, 32, %s2274, [#allocation3], 128, 128, 1
    %s2279 = sadd.s32 %s2059, 11
    %s2280 = sld [smem:[#allocation5 + %s2279]]
    %p2281 = scmp.gt.s32.totalorder %s2280, 0
    %s2282 = scalar_select %p2281, %s2280, 0
    %p2283 = scmp.lt.s32.totalorder %s2282, 1023
    %s2284 = scalar_select %p2283, %s2282, 1023
    %s2285 = sshrl.u32 %s2284, 3
    %s2286 = sand.u32 %s2284, 7
    %s2287 = smul.u32 %s2285, 16
    %s2288 = sadd.s32 %s2286, %s2287
    %s2289 = scalar_lea.hbm %s3, %s2288
    %s2290 = scalar_lea.vmem [#allocation2], 211
    %s2291 = sshll.u32 %s2289, 4
    %s2292 = int_to_ptr.hbm [resolvable:$true] %s2291
    %s2293 = sshll.u32 %s2290, 4
    %s2294 = int_to_ptr.vmem [resolvable:$true] %s2293
    %2298 = dma.hbm_to_vmem [thread:$0]  %s2292, 32, %s2294, [#allocation3], 128, 128, 1
    %s2299 = sadd.s32 %s2059, 12
    %s2300 = sld [smem:[#allocation5 + %s2299]]
    %p2301 = scmp.gt.s32.totalorder %s2300, 0
    %s2302 = scalar_select %p2301, %s2300, 0
    %p2303 = scmp.lt.s32.totalorder %s2302, 1023
    %s2304 = scalar_select %p2303, %s2302, 1023
    %s2305 = sshrl.u32 %s2304, 3
    %s2306 = sand.u32 %s2304, 7
    %s2307 = smul.u32 %s2305, 16
    %s2308 = sadd.s32 %s2306, %s2307
    %s2309 = scalar_lea.hbm %s3, %s2308
    %s2310 = scalar_lea.vmem [#allocation2], 212
    %s2311 = sshll.u32 %s2309, 4
    %s2312 = int_to_ptr.hbm [resolvable:$true] %s2311
    %s2313 = sshll.u32 %s2310, 4
    %s2314 = int_to_ptr.vmem [resolvable:$true] %s2313
    %2318 = dma.hbm_to_vmem [thread:$0]  %s2312, 32, %s2314, [#allocation3], 128, 128, 1
    %s2319 = sadd.s32 %s2059, 13
    %s2320 = sld [smem:[#allocation5 + %s2319]]
    %p2321 = scmp.gt.s32.totalorder %s2320, 0
    %s2322 = scalar_select %p2321, %s2320, 0
    %p2323 = scmp.lt.s32.totalorder %s2322, 1023
    %s2324 = scalar_select %p2323, %s2322, 1023
    %s2325 = sshrl.u32 %s2324, 3
    %s2326 = sand.u32 %s2324, 7
    %s2327 = smul.u32 %s2325, 16
    %s2328 = sadd.s32 %s2326, %s2327
    %s2329 = scalar_lea.hbm %s3, %s2328
    %s2330 = scalar_lea.vmem [#allocation2], 213
    %s2331 = sshll.u32 %s2329, 4
    %s2332 = int_to_ptr.hbm [resolvable:$true] %s2331
    %s2333 = sshll.u32 %s2330, 4
    %s2334 = int_to_ptr.vmem [resolvable:$true] %s2333
    %2338 = dma.hbm_to_vmem [thread:$0]  %s2332, 32, %s2334, [#allocation3], 128, 128, 1
    %s2339 = sadd.s32 %s2059, 14
    %s2340 = sld [smem:[#allocation5 + %s2339]]
    %p2341 = scmp.gt.s32.totalorder %s2340, 0
    %s2342 = scalar_select %p2341, %s2340, 0
    %p2343 = scmp.lt.s32.totalorder %s2342, 1023
    %s2344 = scalar_select %p2343, %s2342, 1023
    %s2345 = sshrl.u32 %s2344, 3
    %s2346 = sand.u32 %s2344, 7
    %s2347 = smul.u32 %s2345, 16
    %s2348 = sadd.s32 %s2346, %s2347
    %s2349 = scalar_lea.hbm %s3, %s2348
    %s2350 = scalar_lea.vmem [#allocation2], 214
    %s2351 = sshll.u32 %s2349, 4
    %s2352 = int_to_ptr.hbm [resolvable:$true] %s2351
    %s2353 = sshll.u32 %s2350, 4
    %s2354 = int_to_ptr.vmem [resolvable:$true] %s2353
    %2358 = dma.hbm_to_vmem [thread:$0]  %s2352, 32, %s2354, [#allocation3], 128, 128, 1
    %s2359 = sadd.s32 %s2059, 15
    %s2360 = sld [smem:[#allocation5 + %s2359]]
    %p2361 = scmp.gt.s32.totalorder %s2360, 0
    %s2362 = scalar_select %p2361, %s2360, 0
    %p2363 = scmp.lt.s32.totalorder %s2362, 1023
    %s2364 = scalar_select %p2363, %s2362, 1023
    %s2365 = sshrl.u32 %s2364, 3
    %s2366 = sand.u32 %s2364, 7
    %s2367 = smul.u32 %s2365, 16
    %s2368 = sadd.s32 %s2366, %s2367
    %s2369 = scalar_lea.hbm %s3, %s2368
    %s2370 = scalar_lea.vmem [#allocation2], 215
    %s2371 = sshll.u32 %s2369, 4
    %s2372 = int_to_ptr.hbm [resolvable:$true] %s2371
    %s2373 = sshll.u32 %s2370, 4
    %s2374 = int_to_ptr.vmem [resolvable:$true] %s2373
    %2378 = dma.hbm_to_vmem [thread:$0]  %s2372, 32, %s2374, [#allocation3], 128, 128, 1
    %s2379 = sadd.s32 %s133, 7
    %s2380 = smul.u32 %s2379, 128
    %s2381 = sld [smem:[#allocation5 + %s2380]]
    %p2382 = scmp.gt.s32.totalorder %s2381, 0
    %s2383 = scalar_select %p2382, %s2381, 0
    %p2384 = scmp.lt.s32.totalorder %s2383, 1023
    %s2385 = scalar_select %p2384, %s2383, 1023
    %s2386 = sshrl.u32 %s2385, 3
    %s2387 = sand.u32 %s2385, 7
    %s2388 = smul.u32 %s2386, 16
    %s2389 = sadd.s32 %s2387, %s2388
    %s2390 = scalar_lea.hbm %s3, %s2389
    %s2391 = scalar_lea.vmem [#allocation2], 224
    %s2392 = sshll.u32 %s2390, 4
    %s2393 = int_to_ptr.hbm [resolvable:$true] %s2392
    %s2394 = sshll.u32 %s2391, 4
    %s2395 = int_to_ptr.vmem [resolvable:$true] %s2394
    %2399 = dma.hbm_to_vmem [thread:$0]  %s2393, 32, %s2395, [#allocation3], 128, 128, 1
    %s2400 = sadd.s32 %s2380, 1
    %s2401 = sld [smem:[#allocation5 + %s2400]]
    %p2402 = scmp.gt.s32.totalorder %s2401, 0
    %s2403 = scalar_select %p2402, %s2401, 0
    %p2404 = scmp.lt.s32.totalorder %s2403, 1023
    %s2405 = scalar_select %p2404, %s2403, 1023
    %s2406 = sshrl.u32 %s2405, 3
    %s2407 = sand.u32 %s2405, 7
    %s2408 = smul.u32 %s2406, 16
    %s2409 = sadd.s32 %s2407, %s2408
    %s2410 = scalar_lea.hbm %s3, %s2409
    %s2411 = scalar_lea.vmem [#allocation2], 225
    %s2412 = sshll.u32 %s2410, 4
    %s2413 = int_to_ptr.hbm [resolvable:$true] %s2412
    %s2414 = sshll.u32 %s2411, 4
    %s2415 = int_to_ptr.vmem [resolvable:$true] %s2414
    %2419 = dma.hbm_to_vmem [thread:$0]  %s2413, 32, %s2415, [#allocation3], 128, 128, 1
    %s2420 = sadd.s32 %s2380, 2
    %s2421 = sld [smem:[#allocation5 + %s2420]]
    %p2422 = scmp.gt.s32.totalorder %s2421, 0
    %s2423 = scalar_select %p2422, %s2421, 0
    %p2424 = scmp.lt.s32.totalorder %s2423, 1023
    %s2425 = scalar_select %p2424, %s2423, 1023
    %s2426 = sshrl.u32 %s2425, 3
    %s2427 = sand.u32 %s2425, 7
    %s2428 = smul.u32 %s2426, 16
    %s2429 = sadd.s32 %s2427, %s2428
    %s2430 = scalar_lea.hbm %s3, %s2429
    %s2431 = scalar_lea.vmem [#allocation2], 226
    %s2432 = sshll.u32 %s2430, 4
    %s2433 = int_to_ptr.hbm [resolvable:$true] %s2432
    %s2434 = sshll.u32 %s2431, 4
    %s2435 = int_to_ptr.vmem [resolvable:$true] %s2434
    %2439 = dma.hbm_to_vmem [thread:$0]  %s2433, 32, %s2435, [#allocation3], 128, 128, 1
    %s2440 = sadd.s32 %s2380, 3
    %s2441 = sld [smem:[#allocation5 + %s2440]]
    %p2442 = scmp.gt.s32.totalorder %s2441, 0
    %s2443 = scalar_select %p2442, %s2441, 0
    %p2444 = scmp.lt.s32.totalorder %s2443, 1023
    %s2445 = scalar_select %p2444, %s2443, 1023
    %s2446 = sshrl.u32 %s2445, 3
    %s2447 = sand.u32 %s2445, 7
    %s2448 = smul.u32 %s2446, 16
    %s2449 = sadd.s32 %s2447, %s2448
    %s2450 = scalar_lea.hbm %s3, %s2449
    %s2451 = scalar_lea.vmem [#allocation2], 227
    %s2452 = sshll.u32 %s2450, 4
    %s2453 = int_to_ptr.hbm [resolvable:$true] %s2452
    %s2454 = sshll.u32 %s2451, 4
    %s2455 = int_to_ptr.vmem [resolvable:$true] %s2454
    %2459 = dma.hbm_to_vmem [thread:$0]  %s2453, 32, %s2455, [#allocation3], 128, 128, 1
    %s2460 = sadd.s32 %s2380, 4
    %s2461 = sld [smem:[#allocation5 + %s2460]]
    %p2462 = scmp.gt.s32.totalorder %s2461, 0
    %s2463 = scalar_select %p2462, %s2461, 0
    %p2464 = scmp.lt.s32.totalorder %s2463, 1023
    %s2465 = scalar_select %p2464, %s2463, 1023
    %s2466 = sshrl.u32 %s2465, 3
    %s2467 = sand.u32 %s2465, 7
    %s2468 = smul.u32 %s2466, 16
    %s2469 = sadd.s32 %s2467, %s2468
    %s2470 = scalar_lea.hbm %s3, %s2469
    %s2471 = scalar_lea.vmem [#allocation2], 228
    %s2472 = sshll.u32 %s2470, 4
    %s2473 = int_to_ptr.hbm [resolvable:$true] %s2472
    %s2474 = sshll.u32 %s2471, 4
    %s2475 = int_to_ptr.vmem [resolvable:$true] %s2474
    %2479 = dma.hbm_to_vmem [thread:$0]  %s2473, 32, %s2475, [#allocation3], 128, 128, 1
    %s2480 = sadd.s32 %s2380, 5
    %s2481 = sld [smem:[#allocation5 + %s2480]]
    %p2482 = scmp.gt.s32.totalorder %s2481, 0
    %s2483 = scalar_select %p2482, %s2481, 0
    %p2484 = scmp.lt.s32.totalorder %s2483, 1023
    %s2485 = scalar_select %p2484, %s2483, 1023
    %s2486 = sshrl.u32 %s2485, 3
    %s2487 = sand.u32 %s2485, 7
    %s2488 = smul.u32 %s2486, 16
    %s2489 = sadd.s32 %s2487, %s2488
    %s2490 = scalar_lea.hbm %s3, %s2489
    %s2491 = scalar_lea.vmem [#allocation2], 229
    %s2492 = sshll.u32 %s2490, 4
    %s2493 = int_to_ptr.hbm [resolvable:$true] %s2492
    %s2494 = sshll.u32 %s2491, 4
    %s2495 = int_to_ptr.vmem [resolvable:$true] %s2494
    %2499 = dma.hbm_to_vmem [thread:$0]  %s2493, 32, %s2495, [#allocation3], 128, 128, 1
    %s2500 = sadd.s32 %s2380, 6
    %s2501 = sld [smem:[#allocation5 + %s2500]]
    %p2502 = scmp.gt.s32.totalorder %s2501, 0
    %s2503 = scalar_select %p2502, %s2501, 0
    %p2504 = scmp.lt.s32.totalorder %s2503, 1023
    %s2505 = scalar_select %p2504, %s2503, 1023
    %s2506 = sshrl.u32 %s2505, 3
    %s2507 = sand.u32 %s2505, 7
    %s2508 = smul.u32 %s2506, 16
    %s2509 = sadd.s32 %s2507, %s2508
    %s2510 = scalar_lea.hbm %s3, %s2509
    %s2511 = scalar_lea.vmem [#allocation2], 230
    %s2512 = sshll.u32 %s2510, 4
    %s2513 = int_to_ptr.hbm [resolvable:$true] %s2512
    %s2514 = sshll.u32 %s2511, 4
    %s2515 = int_to_ptr.vmem [resolvable:$true] %s2514
    %2519 = dma.hbm_to_vmem [thread:$0]  %s2513, 32, %s2515, [#allocation3], 128, 128, 1
    %s2520 = sadd.s32 %s2380, 7
    %s2521 = sld [smem:[#allocation5 + %s2520]]
    %p2522 = scmp.gt.s32.totalorder %s2521, 0
    %s2523 = scalar_select %p2522, %s2521, 0
    %p2524 = scmp.lt.s32.totalorder %s2523, 1023
    %s2525 = scalar_select %p2524, %s2523, 1023
    %s2526 = sshrl.u32 %s2525, 3
    %s2527 = sand.u32 %s2525, 7
    %s2528 = smul.u32 %s2526, 16
    %s2529 = sadd.s32 %s2527, %s2528
    %s2530 = scalar_lea.hbm %s3, %s2529
    %s2531 = scalar_lea.vmem [#allocation2], 231
    %s2532 = sshll.u32 %s2530, 4
    %s2533 = int_to_ptr.hbm [resolvable:$true] %s2532
    %s2534 = sshll.u32 %s2531, 4
    %s2535 = int_to_ptr.vmem [resolvable:$true] %s2534
    %2539 = dma.hbm_to_vmem [thread:$0]  %s2533, 32, %s2535, [#allocation3], 128, 128, 1
    %s2540 = sadd.s32 %s2380, 8
    %s2541 = sld [smem:[#allocation5 + %s2540]]
    %p2542 = scmp.gt.s32.totalorder %s2541, 0
    %s2543 = scalar_select %p2542, %s2541, 0
    %p2544 = scmp.lt.s32.totalorder %s2543, 1023
    %s2545 = scalar_select %p2544, %s2543, 1023
    %s2546 = sshrl.u32 %s2545, 3
    %s2547 = sand.u32 %s2545, 7
    %s2548 = smul.u32 %s2546, 16
    %s2549 = sadd.s32 %s2547, %s2548
    %s2550 = scalar_lea.hbm %s3, %s2549
    %s2551 = scalar_lea.vmem [#allocation2], 240
    %s2552 = sshll.u32 %s2550, 4
    %s2553 = int_to_ptr.hbm [resolvable:$true] %s2552
    %s2554 = sshll.u32 %s2551, 4
    %s2555 = int_to_ptr.vmem [resolvable:$true] %s2554
    %2559 = dma.hbm_to_vmem [thread:$0]  %s2553, 32, %s2555, [#allocation3], 128, 128, 1
    %s2560 = sadd.s32 %s2380, 9
    %s2561 = sld [smem:[#allocation5 + %s2560]]
    %p2562 = scmp.gt.s32.totalorder %s2561, 0
    %s2563 = scalar_select %p2562, %s2561, 0
    %p2564 = scmp.lt.s32.totalorder %s2563, 1023
    %s2565 = scalar_select %p2564, %s2563, 1023
    %s2566 = sshrl.u32 %s2565, 3
    %s2567 = sand.u32 %s2565, 7
    %s2568 = smul.u32 %s2566, 16
    %s2569 = sadd.s32 %s2567, %s2568
    %s2570 = scalar_lea.hbm %s3, %s2569
    %s2571 = scalar_lea.vmem [#allocation2], 241
    %s2572 = sshll.u32 %s2570, 4
    %s2573 = int_to_ptr.hbm [resolvable:$true] %s2572
    %s2574 = sshll.u32 %s2571, 4
    %s2575 = int_to_ptr.vmem [resolvable:$true] %s2574
    %2579 = dma.hbm_to_vmem [thread:$0]  %s2573, 32, %s2575, [#allocation3], 128, 128, 1
    %s2580 = sadd.s32 %s2380, 10
    %s2581 = sld [smem:[#allocation5 + %s2580]]
    %p2582 = scmp.gt.s32.totalorder %s2581, 0
    %s2583 = scalar_select %p2582, %s2581, 0
    %p2584 = scmp.lt.s32.totalorder %s2583, 1023
    %s2585 = scalar_select %p2584, %s2583, 1023
    %s2586 = sshrl.u32 %s2585, 3
    %s2587 = sand.u32 %s2585, 7
    %s2588 = smul.u32 %s2586, 16
    %s2589 = sadd.s32 %s2587, %s2588
    %s2590 = scalar_lea.hbm %s3, %s2589
    %s2591 = scalar_lea.vmem [#allocation2], 242
    %s2592 = sshll.u32 %s2590, 4
    %s2593 = int_to_ptr.hbm [resolvable:$true] %s2592
    %s2594 = sshll.u32 %s2591, 4
    %s2595 = int_to_ptr.vmem [resolvable:$true] %s2594
    %2599 = dma.hbm_to_vmem [thread:$0]  %s2593, 32, %s2595, [#allocation3], 128, 128, 1
    %s2600 = sadd.s32 %s2380, 11
    %s2601 = sld [smem:[#allocation5 + %s2600]]
    %p2602 = scmp.gt.s32.totalorder %s2601, 0
    %s2603 = scalar_select %p2602, %s2601, 0
    %p2604 = scmp.lt.s32.totalorder %s2603, 1023
    %s2605 = scalar_select %p2604, %s2603, 1023
    %s2606 = sshrl.u32 %s2605, 3
    %s2607 = sand.u32 %s2605, 7
    %s2608 = smul.u32 %s2606, 16
    %s2609 = sadd.s32 %s2607, %s2608
    %s2610 = scalar_lea.hbm %s3, %s2609
    %s2611 = scalar_lea.vmem [#allocation2], 243
    %s2612 = sshll.u32 %s2610, 4
    %s2613 = int_to_ptr.hbm [resolvable:$true] %s2612
    %s2614 = sshll.u32 %s2611, 4
    %s2615 = int_to_ptr.vmem [resolvable:$true] %s2614
    %2619 = dma.hbm_to_vmem [thread:$0]  %s2613, 32, %s2615, [#allocation3], 128, 128, 1
    %s2620 = sadd.s32 %s2380, 12
    %s2621 = sld [smem:[#allocation5 + %s2620]]
    %p2622 = scmp.gt.s32.totalorder %s2621, 0
    %s2623 = scalar_select %p2622, %s2621, 0
    %p2624 = scmp.lt.s32.totalorder %s2623, 1023
    %s2625 = scalar_select %p2624, %s2623, 1023
    %s2626 = sshrl.u32 %s2625, 3
    %s2627 = sand.u32 %s2625, 7
    %s2628 = smul.u32 %s2626, 16
    %s2629 = sadd.s32 %s2627, %s2628
    %s2630 = scalar_lea.hbm %s3, %s2629
    %s2631 = scalar_lea.vmem [#allocation2], 244
    %s2632 = sshll.u32 %s2630, 4
    %s2633 = int_to_ptr.hbm [resolvable:$true] %s2632
    %s2634 = sshll.u32 %s2631, 4
    %s2635 = int_to_ptr.vmem [resolvable:$true] %s2634
    %2639 = dma.hbm_to_vmem [thread:$0]  %s2633, 32, %s2635, [#allocation3], 128, 128, 1
    %s2640 = sadd.s32 %s2380, 13
    %s2641 = sld [smem:[#allocation5 + %s2640]]
    %p2642 = scmp.gt.s32.totalorder %s2641, 0
    %s2643 = scalar_select %p2642, %s2641, 0
    %p2644 = scmp.lt.s32.totalorder %s2643, 1023
    %s2645 = scalar_select %p2644, %s2643, 1023
    %s2646 = sshrl.u32 %s2645, 3
    %s2647 = sand.u32 %s2645, 7
    %s2648 = smul.u32 %s2646, 16
    %s2649 = sadd.s32 %s2647, %s2648
    %s2650 = scalar_lea.hbm %s3, %s2649
    %s2651 = scalar_lea.vmem [#allocation2], 245
    %s2652 = sshll.u32 %s2650, 4
    %s2653 = int_to_ptr.hbm [resolvable:$true] %s2652
    %s2654 = sshll.u32 %s2651, 4
    %s2655 = int_to_ptr.vmem [resolvable:$true] %s2654
    %2659 = dma.hbm_to_vmem [thread:$0]  %s2653, 32, %s2655, [#allocation3], 128, 128, 1
    %s2660 = sadd.s32 %s2380, 14
    %s2661 = sld [smem:[#allocation5 + %s2660]]
    %p2662 = scmp.gt.s32.totalorder %s2661, 0
    %s2663 = scalar_select %p2662, %s2661, 0
    %p2664 = scmp.lt.s32.totalorder %s2663, 1023
    %s2665 = scalar_select %p2664, %s2663, 1023
    %s2666 = sshrl.u32 %s2665, 3
    %s2667 = sand.u32 %s2665, 7
    %s2668 = smul.u32 %s2666, 16
    %s2669 = sadd.s32 %s2667, %s2668
    %s2670 = scalar_lea.hbm %s3, %s2669
    %s2671 = scalar_lea.vmem [#allocation2], 246
    %s2672 = sshll.u32 %s2670, 4
    %s2673 = int_to_ptr.hbm [resolvable:$true] %s2672
    %s2674 = sshll.u32 %s2671, 4
    %s2675 = int_to_ptr.vmem [resolvable:$true] %s2674
    %2679 = dma.hbm_to_vmem [thread:$0]  %s2673, 32, %s2675, [#allocation3], 128, 128, 1
    %s2680 = sadd.s32 %s2380, 15
    %s2681 = sld [smem:[#allocation5 + %s2680]]
    %p2682 = scmp.gt.s32.totalorder %s2681, 0
    %s2683 = scalar_select %p2682, %s2681, 0
    %p2684 = scmp.lt.s32.totalorder %s2683, 1023
    %s2685 = scalar_select %p2684, %s2683, 1023
    %s2686 = sshrl.u32 %s2685, 3
    %s2687 = sand.u32 %s2685, 7
    %s2688 = smul.u32 %s2686, 16
    %s2689 = sadd.s32 %s2687, %s2688
    %s2690 = scalar_lea.hbm %s3, %s2689
    %s2691 = scalar_lea.vmem [#allocation2], 247
    %s2692 = sshll.u32 %s2690, 4
    %s2693 = int_to_ptr.hbm [resolvable:$true] %s2692
    %s2694 = sshll.u32 %s2691, 4
    %s2695 = int_to_ptr.vmem [resolvable:$true] %s2694
    %2699 = dma.hbm_to_vmem [thread:$0]  %s2693, 32, %s2695, [#allocation3], 128, 128, 1
    %v2700 = vld [vmem:[#allocation9] sm:$0xff]
    %v2701 = vld [vmem:[#allocation12] sm:$0xff]
    %v2702 = vld [vmem:[#allocation12 + $0x8] sm:$0xff]
    %v2703 = vld [vmem:[%s7] sm:$0x1]
    %v2705 = vperm.slane %v2703, 0
    %vm2707 = vcmask 130048
    %v2709 = vsel %vm2707, %v2700, 0
    %2711 = vmatpush.msra.mxu0 0.0
    %2712 = vmatpush.msra.mxu0 0.0
    %2713 = vmatpush.msra.mxu0 0.0
    %2714 = vmatpush.msra.mxu0 0.0
    %2715 = vmatpush.msra.mxu0 0.0
    %2716 = vmatpush.msra.mxu0 0.0
    %2717 = vmatpush.msra.mxu0 0.0
    %2718 = vmatpush.msra.mxu0 0.0
    %2719 = vmatpush.msra.mxu0 0.0
    %2720 = vmatpush.msra.mxu0 0.0
    %2721 = vmatpush.msra.mxu0 0.0
    %2722 = vmatpush.msra.mxu0 0.0
    %2723 = vmatpush.msra.mxu0 0.0
    %2724 = vmatpush.msra.mxu0 0.0
    %2725 = vmatpush.msra.mxu0 %v2702
    %2726 = vmatpush.msra.mxu0 %v2701
    %2727 = vmatmul.f32.gmra.mxu0 %v2709
    %v2728 = vpop.f32.mrf.mxu0
    %v2729 = vadd.f32 %v2705, %v2728
    %2730 = vdwg.mxu0
    %v2731 = vmax.f32 %v2729, 0.0
    %v2732 = vpack.c.bf16 %v2731, %v2731
    %v2733 = vld [vmem:[#allocation15] sm:$0xf]
    %v2734 = vld [vmem:[#allocation15 + $0x4] sm:$0xf]
    %v2735 = vld [vmem:[#allocation15 + $0x8] sm:$0xf]
    %v2736 = vld [vmem:[#allocation15 + $0xc] sm:$0xf]
    %v2737 = vld [vmem:[#allocation15 + $0x10] sm:$0xf]
    %v2738 = vld [vmem:[#allocation15 + $0x14] sm:$0xf]
    %v2739 = vld [vmem:[#allocation15 + $0x18] sm:$0xf]
    %v2740 = vld [vmem:[#allocation15 + $0x1c] sm:$0xf]
    %v2741 = vld [vmem:[#allocation15 + $0x20] sm:$0xf]
    %v2742 = vld [vmem:[#allocation15 + $0x24] sm:$0xf]
    %v2743 = vld [vmem:[#allocation15 + $0x28] sm:$0xf]
    %v2744 = vld [vmem:[#allocation15 + $0x2c] sm:$0xf]
    %v2745 = vld [vmem:[#allocation15 + $0x30] sm:$0xf]
    %v2746 = vld [vmem:[#allocation15 + $0x34] sm:$0xf]
    %v2747 = vld [vmem:[#allocation15 + $0x38] sm:$0xf]
    %v2748 = vld [vmem:[#allocation15 + $0x3c] sm:$0xf]
    %v2749 = vld [vmem:[%s10] sm:$0x1]
    %v2751 = vperm.slane %v2749, 0
    %v2769 = vunpack.c.l.b16 %v2733
    %v2770 = vunpack.c.l.b16 %v2734
    %v2771 = vunpack.c.l.b16 %v2735
    %v2772 = vunpack.c.l.b16 %v2736
    %v2773 = vunpack.c.l.b16 %v2737
    %v2774 = vunpack.c.l.b16 %v2738
    %v2775 = vunpack.c.l.b16 %v2739
    %v2776 = vunpack.c.l.b16 %v2740
    %v2777 = vunpack.c.l.b16 %v2741
    %v2778 = vunpack.c.l.b16 %v2742
    %v2779 = vunpack.c.l.b16 %v2743
    %v2780 = vunpack.c.l.b16 %v2744
    %v2781 = vunpack.c.l.b16 %v2745
    %v2782 = vunpack.c.l.b16 %v2746
    %v2783 = vunpack.c.l.b16 %v2747
    %v2784 = vunpack.c.l.b16 %v2748
    %v2785 = vpack.c.b16 %v2770, %v2769
    %v2786 = vpack.c.b16 %v2772, %v2771
    %v2787 = vpack.c.b16 %v2774, %v2773
    %v2788 = vpack.c.b16 %v2776, %v2775
    %v2789 = vpack.c.b16 %v2778, %v2777
    %v2790 = vpack.c.b16 %v2780, %v2779
    %v2791 = vpack.c.b16 %v2782, %v2781
    %v2792 = vpack.c.b16 %v2784, %v2783
    %2801 = vmatpush.bf16.msra.mxu0 %v2792
    %2802 = vmatpush.bf16.msra.mxu0 %v2791
    %2803 = vmatpush.bf16.msra.mxu0 %v2790
    %2804 = vmatpush.bf16.msra.mxu0 %v2789
    %2805 = vmatpush.bf16.msra.mxu0 %v2788
    %2806 = vmatpush.bf16.msra.mxu0 %v2787
    %2807 = vmatpush.bf16.msra.mxu0 %v2786
    %2808 = vmatpush.bf16.msra.mxu0 %v2785
    %2809 = vmatmul.bf16.gmra.mxu0 %v2732
    %v2810 = vpop.f32.mrf.mxu0
    %v2811 = vadd.f32 %v2751, %v2810
    %v2812 = vpop.f32.mrf.mxu0
    %2813 = vdwg.mxu0
    %v2814 = vld [vmem:[#allocation6] sm:$0xff]
    %v2815 = vsel %vm2707, %v2814, 0.0
    %2816 = vadd.xlane.f32.xlu0 %v2815
    %v2817 = vpop.xlane.xlu0 %2816
    %v2818 = vmax.f32 %v2817, 1.0
    %v2819 = vrcp.pop %v2818
    %v2820 = vmul.f32 %v2818, %v2819
    %v2821 = vsub.f32 1.0, %v2820
    %v2822 = vmul.f32 %v2819, %v2821
    %v2823 = vadd.f32 %v2819, %v2822
    %vm2824 = vweird.f32 %v2818
    %vm2825 = vweird.f32 %v2819
    %vm2826 = vmor %vm2824, %vm2825
    %v2827 = vsel %vm2826, %v2819, %v2823
    %v2828 = vand.u32 2147483647, %v2818
    %vm2829 = vcmp.eq.f32.partialorder %v2828, 8.507059e+37
    %v2830 = vand.u32 %v2818, 2147483648
    %v2831 = vor.u32 1.1754944e-38, %v2830
    %v2832 = vsel %vm2829, %v2831, %v2827
    %v2833 = vmul.f32 1.0, %v2832
    %s2834 = smul.u32 8, 16
    %s2835 = smul.u32 %s2834, 2
    %s2836 = sshll.u32 %s2835, 4
    %2837 = dma.done [#allocation3], %s2836
    %v2838 = vld [vmem:[#allocation2] sm:$0xff]
    %v2839 = vld [vmem:[#allocation2 + $0x8] sm:$0xff]
    %v2840 = vld [vmem:[#allocation2 + $0x10] sm:$0xff]
    %v2841 = vld [vmem:[#allocation2 + $0x18] sm:$0xff]
    %v2842 = vld [vmem:[#allocation2 + $0x20] sm:$0xff]
    %v2843 = vld [vmem:[#allocation2 + $0x28] sm:$0xff]
    %v2844 = vld [vmem:[#allocation2 + $0x30] sm:$0xff]
    %v2845 = vld [vmem:[#allocation2 + $0x38] sm:$0xff]
    %v2846 = vld [vmem:[#allocation2 + $0x40] sm:$0xff]
    %v2847 = vld [vmem:[#allocation2 + $0x48] sm:$0xff]
    %v2848 = vld [vmem:[#allocation2 + $0x50] sm:$0xff]
    %v2849 = vld [vmem:[#allocation2 + $0x58] sm:$0xff]
    %v2850 = vld [vmem:[#allocation2 + $0x60] sm:$0xff]
    %v2851 = vld [vmem:[#allocation2 + $0x68] sm:$0xff]
    %v2852 = vld [vmem:[#allocation2 + $0x70] sm:$0xff]
    %v2853 = vld [vmem:[#allocation2 + $0x78] sm:$0xff]
    %v2854 = vld [vmem:[#allocation2 + $0x80] sm:$0xff]
    %v2855 = vld [vmem:[#allocation2 + $0x88] sm:$0xff]
    %v2856 = vld [vmem:[#allocation2 + $0x90] sm:$0xff]
    %v2857 = vld [vmem:[#allocation2 + $0x98] sm:$0xff]
    %v2858 = vld [vmem:[#allocation2 + $0xa0] sm:$0xff]
    %v2859 = vld [vmem:[#allocation2 + $0xa8] sm:$0xff]
    %v2860 = vld [vmem:[#allocation2 + $0xb0] sm:$0xff]
    %v2861 = vld [vmem:[#allocation2 + $0xb8] sm:$0xff]
    %v2862 = vld [vmem:[#allocation2 + $0xc0] sm:$0xff]
    %v2863 = vld [vmem:[#allocation2 + $0xc8] sm:$0xff]
    %v2864 = vld [vmem:[#allocation2 + $0xd0] sm:$0xff]
    %v2865 = vld [vmem:[#allocation2 + $0xd8] sm:$0xff]
    %v2866 = vld [vmem:[#allocation2 + $0xe0] sm:$0xff]
    %v2867 = vld [vmem:[#allocation2 + $0xe8] sm:$0xff]
    %v2868 = vld [vmem:[#allocation2 + $0xf0] sm:$0xff]
    %v2869 = vld [vmem:[#allocation2 + $0xf8] sm:$0xff]
    %v2870 = vperm.slane %v2814, 0
    %v2871 = vlaneseq
    %v2872 = vshrl.u32 %v2871, 7
    %2874 = vset.pattern.permute.xlu0 %v2872
    %2875 = vperm.xlu0 %2874, %v2870
    %v2876 = vpop.permute.xlu0 %2875
    %v2877 = vlaneseq
    %v2878 = vshrl.u32 %v2877, 7
    %v2879 = vadd.s32 %v2878, 8
    %2880 = vset.pattern.permute.xlu0 %v2879
    %2881 = vperm.xlu0 %2880, %v2870
    %v2882 = vpop.permute.xlu0 %2881
    %v2883 = vperm.slane %v2814, 1
    %v2884 = vlaneseq
    %v2885 = vshrl.u32 %v2884, 7
    %2887 = vset.pattern.permute.xlu0 %v2885
    %2888 = vperm.xlu0 %2887, %v2883
    %v2889 = vpop.permute.xlu0 %2888
    %v2890 = vlaneseq
    %v2891 = vshrl.u32 %v2890, 7
    %v2892 = vadd.s32 %v2891, 8
    %2893 = vset.pattern.permute.xlu0 %v2892
    %2894 = vperm.xlu0 %2893, %v2883
    %v2895 = vpop.permute.xlu0 %2894
    %v2896 = vperm.slane %v2814, 2
    %v2897 = vlaneseq
    %v2898 = vshrl.u32 %v2897, 7
    %2900 = vset.pattern.permute.xlu0 %v2898
    %2901 = vperm.xlu0 %2900, %v2896
    %v2902 = vpop.permute.xlu0 %2901
    %v2903 = vlaneseq
    %v2904 = vshrl.u32 %v2903, 7
    %v2905 = vadd.s32 %v2904, 8
    %2906 = vset.pattern.permute.xlu0 %v2905
    %2907 = vperm.xlu0 %2906, %v2896
    %v2908 = vpop.permute.xlu0 %2907
    %v2909 = vperm.slane %v2814, 3
    %v2910 = vlaneseq
    %v2911 = vshrl.u32 %v2910, 7
    %2913 = vset.pattern.permute.xlu0 %v2911
    %2914 = vperm.xlu0 %2913, %v2909
    %v2915 = vpop.permute.xlu0 %2914
    %v2916 = vlaneseq
    %v2917 = vshrl.u32 %v2916, 7
    %v2918 = vadd.s32 %v2917, 8
    %2919 = vset.pattern.permute.xlu0 %v2918
    %2920 = vperm.xlu0 %2919, %v2909
    %v2921 = vpop.permute.xlu0 %2920
    %v2922 = vperm.slane %v2814, 4
    %v2923 = vlaneseq
    %v2924 = vshrl.u32 %v2923, 7
    %2926 = vset.pattern.permute.xlu0 %v2924
    %2927 = vperm.xlu0 %2926, %v2922
    %v2928 = vpop.permute.xlu0 %2927
    %v2929 = vlaneseq
    %v2930 = vshrl.u32 %v2929, 7
    %v2931 = vadd.s32 %v2930, 8
    %2932 = vset.pattern.permute.xlu0 %v2931
    %2933 = vperm.xlu0 %2932, %v2922
    %v2934 = vpop.permute.xlu0 %2933
    %v2935 = vperm.slane %v2814, 5
    %v2936 = vlaneseq
    %v2937 = vshrl.u32 %v2936, 7
    %2939 = vset.pattern.permute.xlu0 %v2937
    %2940 = vperm.xlu0 %2939, %v2935
    %v2941 = vpop.permute.xlu0 %2940
    %v2942 = vlaneseq
    %v2943 = vshrl.u32 %v2942, 7
    %v2944 = vadd.s32 %v2943, 8
    %2945 = vset.pattern.permute.xlu0 %v2944
    %2946 = vperm.xlu0 %2945, %v2935
    %v2947 = vpop.permute.xlu0 %2946
    %v2948 = vperm.slane %v2814, 6
    %v2949 = vlaneseq
    %v2950 = vshrl.u32 %v2949, 7
    %2952 = vset.pattern.permute.xlu0 %v2950
    %2953 = vperm.xlu0 %2952, %v2948
    %v2954 = vpop.permute.xlu0 %2953
    %v2955 = vlaneseq
    %v2956 = vshrl.u32 %v2955, 7
    %v2957 = vadd.s32 %v2956, 8
    %2958 = vset.pattern.permute.xlu0 %v2957
    %2959 = vperm.xlu0 %2958, %v2948
    %v2960 = vpop.permute.xlu0 %2959
    %v2961 = vperm.slane %v2814, 7
    %v2962 = vlaneseq
    %v2963 = vshrl.u32 %v2962, 7
    %2965 = vset.pattern.permute.xlu0 %v2963
    %2966 = vperm.xlu0 %2965, %v2961
    %v2967 = vpop.permute.xlu0 %2966
    %v2968 = vlaneseq
    %v2969 = vshrl.u32 %v2968, 7
    %v2970 = vadd.s32 %v2969, 8
    %2971 = vset.pattern.permute.xlu0 %v2970
    %2972 = vperm.xlu0 %2971, %v2961
    %v2973 = vpop.permute.xlu0 %2972
    %v2974 = vmul.f32 %v2838, %v2876
    %v2975 = vmul.f32 %v2839, %v2876
    %v2976 = vmul.f32 %v2840, %v2882
    %v2977 = vmul.f32 %v2841, %v2882
    %v2978 = vmul.f32 %v2842, %v2889
    %v2979 = vmul.f32 %v2843, %v2889
    %v2980 = vmul.f32 %v2844, %v2895
    %v2981 = vmul.f32 %v2845, %v2895
    %v2982 = vmul.f32 %v2846, %v2902
    %v2983 = vmul.f32 %v2847, %v2902
    %v2984 = vmul.f32 %v2848, %v2908
    %v2985 = vmul.f32 %v2849, %v2908
    %v2986 = vmul.f32 %v2850, %v2915
    %v2987 = vmul.f32 %v2851, %v2915
    %v2988 = vmul.f32 %v2852, %v2921
    %v2989 = vmul.f32 %v2853, %v2921
    %v2990 = vmul.f32 %v2854, %v2928
    %v2991 = vmul.f32 %v2855, %v2928
    %v2992 = vmul.f32 %v2856, %v2934
    %v2993 = vmul.f32 %v2857, %v2934
    %v2994 = vmul.f32 %v2858, %v2941
    %v2995 = vmul.f32 %v2859, %v2941
    %v2996 = vmul.f32 %v2860, %v2947
    %v2997 = vmul.f32 %v2861, %v2947
    %v2998 = vmul.f32 %v2862, %v2954
    %v2999 = vmul.f32 %v2863, %v2954
    %v3000 = vmul.f32 %v2864, %v2960
    %v3001 = vmul.f32 %v2865, %v2960
    %v3002 = vmul.f32 %v2866, %v2967
    %v3003 = vmul.f32 %v2867, %v2967
    %v3004 = vmul.f32 %v2868, %v2973
    %v3005 = vmul.f32 %v2869, %v2973
    %v3006 = vadd.f32 %v2974, %v2976
    %v3007 = vrot.slane %v3006, 4
    %v3008 = vadd.f32 %v3006, %v3007
    %v3009 = vrot.slane %v3008, 2
    %v3010 = vadd.f32 %v3008, %v3009
    %v3011 = vrot.slane %v3010, 1
    %v3012 = vadd.f32 %v3010, %v3011
    %v3013 = vadd.f32 %v2975, %v2977
    %v3014 = vrot.slane %v3013, 4
    %v3015 = vadd.f32 %v3013, %v3014
    %v3016 = vrot.slane %v3015, 2
    %v3017 = vadd.f32 %v3015, %v3016
    %v3018 = vrot.slane %v3017, 1
    %v3019 = vadd.f32 %v3017, %v3018
    %v3020 = vadd.f32 %v2978, %v2980
    %v3021 = vrot.slane %v3020, 4
    %v3022 = vadd.f32 %v3020, %v3021
    %v3023 = vrot.slane %v3022, 2
    %v3024 = vadd.f32 %v3022, %v3023
    %v3025 = vrot.slane %v3024, 1
    %v3026 = vadd.f32 %v3024, %v3025
    %v3027 = vadd.f32 %v2979, %v2981
    %v3028 = vrot.slane %v3027, 4
    %v3029 = vadd.f32 %v3027, %v3028
    %v3030 = vrot.slane %v3029, 2
    %v3031 = vadd.f32 %v3029, %v3030
    %v3032 = vrot.slane %v3031, 1
    %v3033 = vadd.f32 %v3031, %v3032
    %v3034 = vadd.f32 %v2982, %v2984
    %v3035 = vrot.slane %v3034, 4
    %v3036 = vadd.f32 %v3034, %v3035
    %v3037 = vrot.slane %v3036, 2
    %v3038 = vadd.f32 %v3036, %v3037
    %v3039 = vrot.slane %v3038, 1
    %v3040 = vadd.f32 %v3038, %v3039
    %v3041 = vadd.f32 %v2983, %v2985
    %v3042 = vrot.slane %v3041, 4
    %v3043 = vadd.f32 %v3041, %v3042
    %v3044 = vrot.slane %v3043, 2
    %v3045 = vadd.f32 %v3043, %v3044
    %v3046 = vrot.slane %v3045, 1
    %v3047 = vadd.f32 %v3045, %v3046
    %v3048 = vadd.f32 %v2986, %v2988
    %v3049 = vrot.slane %v3048, 4
    %v3050 = vadd.f32 %v3048, %v3049
    %v3051 = vrot.slane %v3050, 2
    %v3052 = vadd.f32 %v3050, %v3051
    %v3053 = vrot.slane %v3052, 1
    %v3054 = vadd.f32 %v3052, %v3053
    %v3055 = vadd.f32 %v2987, %v2989
    %v3056 = vrot.slane %v3055, 4
    %v3057 = vadd.f32 %v3055, %v3056
    %v3058 = vrot.slane %v3057, 2
    %v3059 = vadd.f32 %v3057, %v3058
    %v3060 = vrot.slane %v3059, 1
    %v3061 = vadd.f32 %v3059, %v3060
    %v3062 = vadd.f32 %v2990, %v2992
    %v3063 = vrot.slane %v3062, 4
    %v3064 = vadd.f32 %v3062, %v3063
    %v3065 = vrot.slane %v3064, 2
    %v3066 = vadd.f32 %v3064, %v3065
    %v3067 = vrot.slane %v3066, 1
    %v3068 = vadd.f32 %v3066, %v3067
    %v3069 = vadd.f32 %v2991, %v2993
    %v3070 = vrot.slane %v3069, 4
    %v3071 = vadd.f32 %v3069, %v3070
    %v3072 = vrot.slane %v3071, 2
    %v3073 = vadd.f32 %v3071, %v3072
    %v3074 = vrot.slane %v3073, 1
    %v3075 = vadd.f32 %v3073, %v3074
    %v3076 = vadd.f32 %v2994, %v2996
    %v3077 = vrot.slane %v3076, 4
    %v3078 = vadd.f32 %v3076, %v3077
    %v3079 = vrot.slane %v3078, 2
    %v3080 = vadd.f32 %v3078, %v3079
    %v3081 = vrot.slane %v3080, 1
    %v3082 = vadd.f32 %v3080, %v3081
    %v3083 = vadd.f32 %v2995, %v2997
    %v3084 = vrot.slane %v3083, 4
    %v3085 = vadd.f32 %v3083, %v3084
    %v3086 = vrot.slane %v3085, 2
    %v3087 = vadd.f32 %v3085, %v3086
    %v3088 = vrot.slane %v3087, 1
    %v3089 = vadd.f32 %v3087, %v3088
    %v3090 = vadd.f32 %v2998, %v3000
    %v3091 = vrot.slane %v3090, 4
    %v3092 = vadd.f32 %v3090, %v3091
    %v3093 = vrot.slane %v3092, 2
    %v3094 = vadd.f32 %v3092, %v3093
    %v3095 = vrot.slane %v3094, 1
    %v3096 = vadd.f32 %v3094, %v3095
    %v3097 = vadd.f32 %v2999, %v3001
    %v3098 = vrot.slane %v3097, 4
    %v3099 = vadd.f32 %v3097, %v3098
    %v3100 = vrot.slane %v3099, 2
    %v3101 = vadd.f32 %v3099, %v3100
    %v3102 = vrot.slane %v3101, 1
    %v3103 = vadd.f32 %v3101, %v3102
    %v3104 = vadd.f32 %v3002, %v3004
    %v3105 = vrot.slane %v3104, 4
    %v3106 = vadd.f32 %v3104, %v3105
    %v3107 = vrot.slane %v3106, 2
    %v3108 = vadd.f32 %v3106, %v3107
    %v3109 = vrot.slane %v3108, 1
    %v3110 = vadd.f32 %v3108, %v3109
    %v3111 = vadd.f32 %v3003, %v3005
    %v3112 = vrot.slane %v3111, 4
    %v3113 = vadd.f32 %v3111, %v3112
    %v3114 = vrot.slane %v3113, 2
    %v3115 = vadd.f32 %v3113, %v3114
    %v3116 = vrot.slane %v3115, 1
    %v3117 = vadd.f32 %v3115, %v3116
    %v3119 = vrot.slane %v2833, 1
    %v3120 = vrot.slane %v2833, 2
    %v3121 = vrot.slane %v2833, 3
    %v3122 = vrot.slane %v2833, 4
    %v3123 = vrot.slane %v2833, 5
    %v3124 = vrot.slane %v2833, 6
    %v3125 = vrot.slane %v2833, 7
    %v3134 = vmul.f32 %v3012, %v2833
    %v3135 = vmul.f32 %v3019, %v2833
    %v3136 = vmul.f32 %v3026, %v3119
    %v3137 = vmul.f32 %v3033, %v3119
    %v3138 = vmul.f32 %v3040, %v3120
    %v3139 = vmul.f32 %v3047, %v3120
    %v3140 = vmul.f32 %v3054, %v3121
    %v3141 = vmul.f32 %v3061, %v3121
    %v3142 = vmul.f32 %v3068, %v3122
    %v3143 = vmul.f32 %v3075, %v3122
    %v3144 = vmul.f32 %v3082, %v3123
    %v3145 = vmul.f32 %v3089, %v3123
    %v3146 = vmul.f32 %v3096, %v3124
    %v3147 = vmul.f32 %v3103, %v3124
    %v3148 = vmul.f32 %v3110, %v3125
    %v3149 = vmul.f32 %v3117, %v3125
    %v3150 = vpack.c.bf16 %v3134, %v3134
    %v3151 = vpack.c.bf16 %v3135, %v3135
    %v3152 = vpack.c.bf16 %v3136, %v3136
    %v3153 = vpack.c.bf16 %v3137, %v3137
    %v3154 = vpack.c.bf16 %v3138, %v3138
    %v3155 = vpack.c.bf16 %v3139, %v3139
    %v3156 = vpack.c.bf16 %v3140, %v3140
    %v3157 = vpack.c.bf16 %v3141, %v3141
    %v3158 = vpack.c.bf16 %v3142, %v3142
    %v3159 = vpack.c.bf16 %v3143, %v3143
    %v3160 = vpack.c.bf16 %v3144, %v3144
    %v3161 = vpack.c.bf16 %v3145, %v3145
    %v3162 = vpack.c.bf16 %v3146, %v3146
    %v3163 = vpack.c.bf16 %v3147, %v3147
    %v3164 = vpack.c.bf16 %v3148, %v3148
    %v3165 = vpack.c.bf16 %v3149, %v3149
    %v3166 = vld [vmem:[#allocation11] sm:$0xff]
    %v3167 = vld [vmem:[#allocation11 + $0x8] sm:$0xff]
    %v3168 = vld [vmem:[#allocation11 + $0x10] sm:$0xff]
    %v3169 = vld [vmem:[#allocation11 + $0x18] sm:$0xff]
    %v3170 = vld [vmem:[#allocation11 + $0x20] sm:$0xff]
    %v3171 = vld [vmem:[#allocation11 + $0x28] sm:$0xff]
    %v3172 = vld [vmem:[#allocation11 + $0x30] sm:$0xff]
    %v3173 = vld [vmem:[#allocation11 + $0x38] sm:$0xff]
    %v3174 = vld [vmem:[#allocation11 + $0x40] sm:$0xff]
    %v3175 = vld [vmem:[#allocation11 + $0x48] sm:$0xff]
    %v3176 = vld [vmem:[#allocation11 + $0x50] sm:$0xff]
    %v3177 = vld [vmem:[#allocation11 + $0x58] sm:$0xff]
    %v3178 = vld [vmem:[#allocation11 + $0x60] sm:$0xff]
    %v3179 = vld [vmem:[#allocation11 + $0x68] sm:$0xff]
    %v3180 = vld [vmem:[#allocation11 + $0x70] sm:$0xff]
    %v3181 = vld [vmem:[#allocation11 + $0x78] sm:$0xff]
    %v3182 = vld [vmem:[#allocation11 + $0x80] sm:$0xff]
    %v3183 = vld [vmem:[#allocation11 + $0x88] sm:$0xff]
    %v3184 = vld [vmem:[#allocation11 + $0x90] sm:$0xff]
    %v3185 = vld [vmem:[#allocation11 + $0x98] sm:$0xff]
    %v3186 = vld [vmem:[#allocation11 + $0xa0] sm:$0xff]
    %v3187 = vld [vmem:[#allocation11 + $0xa8] sm:$0xff]
    %v3188 = vld [vmem:[#allocation11 + $0xb0] sm:$0xff]
    %v3189 = vld [vmem:[#allocation11 + $0xb8] sm:$0xff]
    %v3190 = vld [vmem:[#allocation11 + $0xc0] sm:$0xff]
    %v3191 = vld [vmem:[#allocation11 + $0xc8] sm:$0xff]
    %v3192 = vld [vmem:[#allocation11 + $0xd0] sm:$0xff]
    %v3193 = vld [vmem:[#allocation11 + $0xd8] sm:$0xff]
    %v3194 = vld [vmem:[#allocation11 + $0xe0] sm:$0xff]
    %v3195 = vld [vmem:[#allocation11 + $0xe8] sm:$0xff]
    %v3196 = vld [vmem:[#allocation11 + $0xf0] sm:$0xff]
    %v3197 = vld [vmem:[#allocation11 + $0xf8] sm:$0xff]
    %v3198 = vld [vmem:[%s5] sm:$0x3]
    %v3200 = vperm.slane %v3198, 0
    %v3201 = vperm.slane %v3198, 1
    %v3220 = vunpack.c.l.b16 %v3150
    %v3221 = vunpack.c.l.b16 %v3151
    %v3222 = vunpack.c.l.b16 %v3152
    %v3223 = vunpack.c.l.b16 %v3153
    %v3224 = vunpack.c.l.b16 %v3154
    %v3225 = vunpack.c.l.b16 %v3155
    %v3226 = vunpack.c.l.b16 %v3156
    %v3227 = vunpack.c.l.b16 %v3157
    %v3228 = vunpack.c.l.b16 %v3158
    %v3229 = vunpack.c.l.b16 %v3159
    %v3230 = vunpack.c.l.b16 %v3160
    %v3231 = vunpack.c.l.b16 %v3161
    %v3232 = vunpack.c.l.b16 %v3162
    %v3233 = vunpack.c.l.b16 %v3163
    %v3234 = vunpack.c.l.b16 %v3164
    %v3235 = vunpack.c.l.b16 %v3165
    %v3236 = vrot.slane %v3222, 7
    %vm3237 = vcmask 1041409
    %v3238 = vsel %vm3237, %v3236, %v3220
    %v3239 = vrot.slane %v3224, 6
    %vm3240 = vcmask 1042434
    %v3241 = vsel %vm3240, %v3239, %v3238
    %v3242 = vrot.slane %v3226, 5
    %vm3243 = vcmask 1043459
    %v3244 = vsel %vm3243, %v3242, %v3241
    %v3245 = vrot.slane %v3228, 4
    %vm3246 = vcmask 1044484
    %v3247 = vsel %vm3246, %v3245, %v3244
    %v3248 = vrot.slane %v3230, 3
    %vm3249 = vcmask 1045509
    %v3250 = vsel %vm3249, %v3248, %v3247
    %v3251 = vrot.slane %v3232, 2
    %vm3252 = vcmask 1046534
    %v3253 = vsel %vm3252, %v3251, %v3250
    %v3254 = vrot.slane %v3234, 1
    %vm3255 = vcmask 1047559
    %v3256 = vsel %vm3255, %v3254, %v3253
    %v3257 = vrot.slane %v3223, 7
    %v3258 = vsel %vm3237, %v3257, %v3221
    %v3259 = vrot.slane %v3225, 6
    %v3260 = vsel %vm3240, %v3259, %v3258
    %v3261 = vrot.slane %v3227, 5
    %v3262 = vsel %vm3243, %v3261, %v3260
    %v3263 = vrot.slane %v3229, 4
    %v3264 = vsel %vm3246, %v3263, %v3262
    %v3265 = vrot.slane %v3231, 3
    %v3266 = vsel %vm3249, %v3265, %v3264
    %v3267 = vrot.slane %v3233, 2
    %v3268 = vsel %vm3252, %v3267, %v3266
    %v3269 = vrot.slane %v3235, 1
    %v3270 = vsel %vm3255, %v3269, %v3268
    %v3271 = vpack.c.b16 %v3256, %v3256
    %v3272 = vpack.c.b16 %v3270, %v3270
    %v3307 = vunpack.c.l.b16 %v3166
    %v3308 = vunpack.c.h.b16 %v3166
    %v3309 = vunpack.c.l.b16 %v3167
    %v3310 = vunpack.c.h.b16 %v3167
    %v3311 = vunpack.c.l.b16 %v3168
    %v3312 = vunpack.c.h.b16 %v3168
    %v3313 = vunpack.c.l.b16 %v3169
    %v3314 = vunpack.c.h.b16 %v3169
    %v3315 = vunpack.c.l.b16 %v3170
    %v3316 = vunpack.c.h.b16 %v3170
    %v3317 = vunpack.c.l.b16 %v3171
    %v3318 = vunpack.c.h.b16 %v3171
    %v3319 = vunpack.c.l.b16 %v3172
    %v3320 = vunpack.c.h.b16 %v3172
    %v3321 = vunpack.c.l.b16 %v3173
    %v3322 = vunpack.c.h.b16 %v3173
    %v3323 = vunpack.c.l.b16 %v3174
    %v3324 = vunpack.c.h.b16 %v3174
    %v3325 = vunpack.c.l.b16 %v3175
    %v3326 = vunpack.c.h.b16 %v3175
    %v3327 = vunpack.c.l.b16 %v3176
    %v3328 = vunpack.c.h.b16 %v3176
    %v3329 = vunpack.c.l.b16 %v3177
    %v3330 = vunpack.c.h.b16 %v3177
    %v3331 = vunpack.c.l.b16 %v3178
    %v3332 = vunpack.c.h.b16 %v3178
    %v3333 = vunpack.c.l.b16 %v3179
    %v3334 = vunpack.c.h.b16 %v3179
    %v3335 = vunpack.c.l.b16 %v3180
    %v3336 = vunpack.c.h.b16 %v3180
    %v3337 = vunpack.c.l.b16 %v3181
    %v3338 = vunpack.c.h.b16 %v3181
    %v3339 = vunpack.c.l.b16 %v3182
    %v3340 = vunpack.c.h.b16 %v3182
    %v3341 = vunpack.c.l.b16 %v3183
    %v3342 = vunpack.c.h.b16 %v3183
    %v3343 = vunpack.c.l.b16 %v3184
    %v3344 = vunpack.c.h.b16 %v3184
    %v3345 = vunpack.c.l.b16 %v3185
    %v3346 = vunpack.c.h.b16 %v3185
    %v3347 = vunpack.c.l.b16 %v3186
    %v3348 = vunpack.c.h.b16 %v3186
    %v3349 = vunpack.c.l.b16 %v3187
    %v3350 = vunpack.c.h.b16 %v3187
    %v3351 = vunpack.c.l.b16 %v3188
    %v3352 = vunpack.c.h.b16 %v3188
    %v3353 = vunpack.c.l.b16 %v3189
    %v3354 = vunpack.c.h.b16 %v3189
    %v3355 = vunpack.c.l.b16 %v3190
    %v3356 = vunpack.c.h.b16 %v3190
    %v3357 = vunpack.c.l.b16 %v3191
    %v3358 = vunpack.c.h.b16 %v3191
    %v3359 = vunpack.c.l.b16 %v3192
    %v3360 = vunpack.c.h.b16 %v3192
    %v3361 = vunpack.c.l.b16 %v3193
    %v3362 = vunpack.c.h.b16 %v3193
    %v3363 = vunpack.c.l.b16 %v3194
    %v3364 = vunpack.c.h.b16 %v3194
    %v3365 = vunpack.c.l.b16 %v3195
    %v3366 = vunpack.c.h.b16 %v3195
    %v3367 = vunpack.c.l.b16 %v3196
    %v3368 = vunpack.c.h.b16 %v3196
    %v3369 = vunpack.c.l.b16 %v3197
    %v3370 = vunpack.c.h.b16 %v3197
    %v3371 = vpack.c.b16 %v3309, %v3307
    %v3372 = vpack.c.b16 %v3310, %v3308
    %v3373 = vpack.c.b16 %v3313, %v3311
    %v3374 = vpack.c.b16 %v3314, %v3312
    %v3375 = vpack.c.b16 %v3317, %v3315
    %v3376 = vpack.c.b16 %v3318, %v3316
    %v3377 = vpack.c.b16 %v3321, %v3319
    %v3378 = vpack.c.b16 %v3322, %v3320
    %v3379 = vpack.c.b16 %v3325, %v3323
    %v3380 = vpack.c.b16 %v3326, %v3324
    %v3381 = vpack.c.b16 %v3329, %v3327
    %v3382 = vpack.c.b16 %v3330, %v3328
    %v3383 = vpack.c.b16 %v3333, %v3331
    %v3384 = vpack.c.b16 %v3334, %v3332
    %v3385 = vpack.c.b16 %v3337, %v3335
    %v3386 = vpack.c.b16 %v3338, %v3336
    %v3387 = vpack.c.b16 %v3341, %v3339
    %v3388 = vpack.c.b16 %v3342, %v3340
    %v3389 = vpack.c.b16 %v3345, %v3343
    %v3390 = vpack.c.b16 %v3346, %v3344
    %v3391 = vpack.c.b16 %v3349, %v3347
    %v3392 = vpack.c.b16 %v3350, %v3348
    %v3393 = vpack.c.b16 %v3353, %v3351
    %v3394 = vpack.c.b16 %v3354, %v3352
    %v3395 = vpack.c.b16 %v3357, %v3355
    %v3396 = vpack.c.b16 %v3358, %v3356
    %v3397 = vpack.c.b16 %v3361, %v3359
    %v3398 = vpack.c.b16 %v3362, %v3360
    %v3399 = vpack.c.b16 %v3365, %v3363
    %v3400 = vpack.c.b16 %v3366, %v3364
    %v3401 = vpack.c.b16 %v3369, %v3367
    %v3402 = vpack.c.b16 %v3370, %v3368
    %3435 = vmatpush.bf16.msra.mxu0 %v3385
    %3436 = vmatpush.bf16.msra.mxu0 %v3383
    %3437 = vmatpush.bf16.msra.mxu0 %v3381
    %3438 = vmatpush.bf16.msra.mxu0 %v3379
    %3439 = vmatpush.bf16.msra.mxu0 %v3377
    %3440 = vmatpush.bf16.msra.mxu0 %v3375
    %3441 = vmatpush.bf16.msra.mxu0 %v3373
    %3442 = vmatpush.bf16.msra.mxu0 %v3371
    %3443 = vmatmul.bf16.gmra.mxu0 %v3271
    %v3444 = vpop.f32.mrf.mxu0
    %v3445 = vadd.f32 %v3200, %v3444
    %v3446 = vpop.f32.mrf.mxu0
    %3447 = vdwg.mxu0
    %3448 = vmatpush.bf16.msra.mxu0 %v3401
    %3449 = vmatpush.bf16.msra.mxu0 %v3399
    %3450 = vmatpush.bf16.msra.mxu0 %v3397
    %3451 = vmatpush.bf16.msra.mxu0 %v3395
    %3452 = vmatpush.bf16.msra.mxu0 %v3393
    %3453 = vmatpush.bf16.msra.mxu0 %v3391
    %3454 = vmatpush.bf16.msra.mxu0 %v3389
    %3455 = vmatpush.bf16.msra.mxu0 %v3387
    %3456 = vmatmul.bf16.gmra.mxu0 %v3272
    %v3457 = vpop.f32.mrf.mxu0
    %v3458 = vadd.f32 %v3445, %v3457
    %v3459 = vpop.f32.mrf.mxu0
    %3460 = vdwg.mxu0
    %3461 = vmatpush.bf16.msra.mxu0 %v3386
    %3462 = vmatpush.bf16.msra.mxu0 %v3384
    %3463 = vmatpush.bf16.msra.mxu0 %v3382
    %3464 = vmatpush.bf16.msra.mxu0 %v3380
    %3465 = vmatpush.bf16.msra.mxu0 %v3378
    %3466 = vmatpush.bf16.msra.mxu0 %v3376
    %3467 = vmatpush.bf16.msra.mxu0 %v3374
    %3468 = vmatpush.bf16.msra.mxu0 %v3372
    %3469 = vmatmul.bf16.gmra.mxu0 %v3271
    %v3470 = vpop.f32.mrf.mxu0
    %v3471 = vadd.f32 %v3201, %v3470
    %v3472 = vpop.f32.mrf.mxu0
    %3473 = vdwg.mxu0
    %3474 = vmatpush.bf16.msra.mxu0 %v3402
    %3475 = vmatpush.bf16.msra.mxu0 %v3400
    %3476 = vmatpush.bf16.msra.mxu0 %v3398
    %3477 = vmatpush.bf16.msra.mxu0 %v3396
    %3478 = vmatpush.bf16.msra.mxu0 %v3394
    %3479 = vmatpush.bf16.msra.mxu0 %v3392
    %3480 = vmatpush.bf16.msra.mxu0 %v3390
    %3481 = vmatpush.bf16.msra.mxu0 %v3388
    %3482 = vmatmul.bf16.gmra.mxu0 %v3272
    %v3483 = vpop.f32.mrf.mxu0
    %v3484 = vadd.f32 %v3471, %v3483
    %v3485 = vpop.f32.mrf.mxu0
    %3486 = vdwg.mxu0
    %v3487 = vtanh.pop %v3458
    %v3488 = vtanh.pop %v3484
    %v3489 = vpack.c.bf16 %v3487, %v3487
    %v3490 = vpack.c.bf16 %v3488, %v3488
    %v3491 = vld [vmem:[#allocation14] sm:$0xf]
    %v3492 = vld [vmem:[#allocation14 + $0x4] sm:$0xf]
    %v3493 = vld [vmem:[#allocation14 + $0x8] sm:$0xf]
    %v3494 = vld [vmem:[#allocation14 + $0xc] sm:$0xf]
    %v3495 = vld [vmem:[#allocation14 + $0x10] sm:$0xf]
    %v3496 = vld [vmem:[#allocation14 + $0x14] sm:$0xf]
    %v3497 = vld [vmem:[#allocation14 + $0x18] sm:$0xf]
    %v3498 = vld [vmem:[#allocation14 + $0x1c] sm:$0xf]
    %v3499 = vld [vmem:[#allocation14 + $0x20] sm:$0xf]
    %v3500 = vld [vmem:[#allocation14 + $0x24] sm:$0xf]
    %v3501 = vld [vmem:[#allocation14 + $0x28] sm:$0xf]
    %v3502 = vld [vmem:[#allocation14 + $0x2c] sm:$0xf]
    %v3503 = vld [vmem:[#allocation14 + $0x30] sm:$0xf]
    %v3504 = vld [vmem:[#allocation14 + $0x34] sm:$0xf]
    %v3505 = vld [vmem:[#allocation14 + $0x38] sm:$0xf]
    %v3506 = vld [vmem:[#allocation14 + $0x3c] sm:$0xf]
    %v3507 = vld [vmem:[#allocation14 + $0x40] sm:$0xf]
    %v3508 = vld [vmem:[#allocation14 + $0x44] sm:$0xf]
    %v3509 = vld [vmem:[#allocation14 + $0x48] sm:$0xf]
    %v3510 = vld [vmem:[#allocation14 + $0x4c] sm:$0xf]
    %v3511 = vld [vmem:[#allocation14 + $0x50] sm:$0xf]
    %v3512 = vld [vmem:[#allocation14 + $0x54] sm:$0xf]
    %v3513 = vld [vmem:[#allocation14 + $0x58] sm:$0xf]
    %v3514 = vld [vmem:[#allocation14 + $0x5c] sm:$0xf]
    %v3515 = vld [vmem:[#allocation14 + $0x60] sm:$0xf]
    %v3516 = vld [vmem:[#allocation14 + $0x64] sm:$0xf]
    %v3517 = vld [vmem:[#allocation14 + $0x68] sm:$0xf]
    %v3518 = vld [vmem:[#allocation14 + $0x6c] sm:$0xf]
    %v3519 = vld [vmem:[#allocation14 + $0x70] sm:$0xf]
    %v3520 = vld [vmem:[#allocation14 + $0x74] sm:$0xf]
    %v3521 = vld [vmem:[#allocation14 + $0x78] sm:$0xf]
    %v3522 = vld [vmem:[#allocation14 + $0x7c] sm:$0xf]
    %v3555 = vunpack.c.l.b16 %v3491
    %v3556 = vunpack.c.l.b16 %v3492
    %v3557 = vunpack.c.l.b16 %v3493
    %v3558 = vunpack.c.l.b16 %v3494
    %v3559 = vunpack.c.l.b16 %v3495
    %v3560 = vunpack.c.l.b16 %v3496
    %v3561 = vunpack.c.l.b16 %v3497
    %v3562 = vunpack.c.l.b16 %v3498
    %v3563 = vunpack.c.l.b16 %v3499
    %v3564 = vunpack.c.l.b16 %v3500
    %v3565 = vunpack.c.l.b16 %v3501
    %v3566 = vunpack.c.l.b16 %v3502
    %v3567 = vunpack.c.l.b16 %v3503
    %v3568 = vunpack.c.l.b16 %v3504
    %v3569 = vunpack.c.l.b16 %v3505
    %v3570 = vunpack.c.l.b16 %v3506
    %v3571 = vunpack.c.l.b16 %v3507
    %v3572 = vunpack.c.l.b16 %v3508
    %v3573 = vunpack.c.l.b16 %v3509
    %v3574 = vunpack.c.l.b16 %v3510
    %v3575 = vunpack.c.l.b16 %v3511
    %v3576 = vunpack.c.l.b16 %v3512
    %v3577 = vunpack.c.l.b16 %v3513
    %v3578 = vunpack.c.l.b16 %v3514
    %v3579 = vunpack.c.l.b16 %v3515
    %v3580 = vunpack.c.l.b16 %v3516
    %v3581 = vunpack.c.l.b16 %v3517
    %v3582 = vunpack.c.l.b16 %v3518
    %v3583 = vunpack.c.l.b16 %v3519
    %v3584 = vunpack.c.l.b16 %v3520
    %v3585 = vunpack.c.l.b16 %v3521
    %v3586 = vunpack.c.l.b16 %v3522
    %v3587 = vpack.c.b16 %v3556, %v3555
    %v3588 = vpack.c.b16 %v3558, %v3557
    %v3589 = vpack.c.b16 %v3560, %v3559
    %v3590 = vpack.c.b16 %v3562, %v3561
    %v3591 = vpack.c.b16 %v3564, %v3563
    %v3592 = vpack.c.b16 %v3566, %v3565
    %v3593 = vpack.c.b16 %v3568, %v3567
    %v3594 = vpack.c.b16 %v3570, %v3569
    %v3595 = vpack.c.b16 %v3572, %v3571
    %v3596 = vpack.c.b16 %v3574, %v3573
    %v3597 = vpack.c.b16 %v3576, %v3575
    %v3598 = vpack.c.b16 %v3578, %v3577
    %v3599 = vpack.c.b16 %v3580, %v3579
    %v3600 = vpack.c.b16 %v3582, %v3581
    %v3601 = vpack.c.b16 %v3584, %v3583
    %v3602 = vpack.c.b16 %v3586, %v3585
    %3619 = vmatpush.bf16.msra.mxu0 %v3594
    %3620 = vmatpush.bf16.msra.mxu0 %v3593
    %3621 = vmatpush.bf16.msra.mxu0 %v3592
    %3622 = vmatpush.bf16.msra.mxu0 %v3591
    %3623 = vmatpush.bf16.msra.mxu0 %v3590
    %3624 = vmatpush.bf16.msra.mxu0 %v3589
    %3625 = vmatpush.bf16.msra.mxu0 %v3588
    %3626 = vmatpush.bf16.msra.mxu0 %v3587
    %3627 = vmatmul.bf16.gmra.mxu0 %v3489
    %v3628 = vpop.f32.mrf.mxu0
    %v3629 = vadd.f32 0.0, %v3628
    %v3630 = vpop.f32.mrf.mxu0
    %3631 = vdwg.mxu0
    %3632 = vmatpush.bf16.msra.mxu0 %v3602
    %3633 = vmatpush.bf16.msra.mxu0 %v3601
    %3634 = vmatpush.bf16.msra.mxu0 %v3600
    %3635 = vmatpush.bf16.msra.mxu0 %v3599
    %3636 = vmatpush.bf16.msra.mxu0 %v3598
    %3637 = vmatpush.bf16.msra.mxu0 %v3597
    %3638 = vmatpush.bf16.msra.mxu0 %v3596
    %3639 = vmatpush.bf16.msra.mxu0 %v3595
    %3640 = vmatmul.bf16.gmra.mxu0 %v3490
    %v3641 = vpop.f32.mrf.mxu0
    %v3642 = vadd.f32 %v3629, %v3641
    %v3643 = vpop.f32.mrf.mxu0
    %3644 = vdwg.mxu0
    %v3645 = vadd.f32 %v2811, %v3642
    %3646 = vst [vmem:[#allocation17] sm:$0xff] %v3645
    // Predicated region
    $region62: #{tpu_custom_call.1} parent=1 // pred_check
      _
    $region63: #{tpu_custom_call.1} parent=1 // pred_check_branch
      %3648 = sbr.rel (0) target = $region65
    $region64: #{tpu_custom_call.1} parent=1 // pred_region
      %3650 = vsyncadd [#allocation8], 0
      %s3652 = sshll.u32 [#allocation17], 4
      %s3653 = int_to_ptr.vmem [resolvable:$true] %s3652
      %s3654 = sshll.u32 %s11, 4
      %s3655 = int_to_ptr.hbm [resolvable:$true] %s3654
      %3657 = dma.vmem_to_hbm [thread:$0]  %s3653, 128, %s3655, [#allocation8]
    $region65: #{tpu_custom_call.1} parent=1 // pred_fallthru
      _
    // Predicated region
    $region66: #{tpu_custom_call.1} parent=1 // pred_check
      _
    $region67: #{tpu_custom_call.1} parent=1 // pred_check_branch
      %3659 = sbr.rel (0) target = $region69
    $region68: #{tpu_custom_call.1} parent=1 // pred_region
      %3661 = dma.done [#allocation8], 128
    $region69: #{tpu_custom_call.1} parent=1 // pred_fallthru
      _
    %3662 = vsyncpa [#allocation7], 1
    %3663 = vsyncpa [#allocation10], 1
    %3664 = vsyncpa [#allocation13], 1
    %3665 = vsyncpa [#allocation16], 1
    %3666 = vsyncpa [#allocation8], 1
  %3667 = vsyncmov [#allocation3]
  %s3668 = vpop.sfrf %3667
  %p3669 = scmp.eq.s32.totalorder %s3668, 0
  %p3670 = pneg %p3669
  %3672 = shalt.err (%p3670)

</llo_original>
